<compile_context>
chip_gen: v7x
topology: tpu7x:2x2x1
jax: 0.10.0
libtpu: 0.0.40
codegen_flags: <defaults>
</compile_context>

<pallas_src>
import numpy as np

import jax
import jax.numpy as jnp
from jax.experimental import pallas as pl
from jax.experimental.pallas import tpu as pltpu


_LANE = 128
_SUBLANE = 8


def _round_up(x: int, m: int) -> int:
    return ((x + m - 1) // m) * m


def _cdiv(a: int, b: int) -> int:
    return (a + b - 1) // b


# ---------------------------------------------------------------------------
# Fused MLP kernel:  x_ref, [W_i, epilogue_i]*, o_ref
#   epilogue_i is a small f32 array: row 0 = bias, rows 1/2 = gamma/beta (LN).
# All feature dims are already padded to multiples of 128.
# ---------------------------------------------------------------------------
def _make_mlp_kernel(layer_cfgs):
    """layer_cfgs: tuple of (true_out_dim, padded_out_dim, use_ln, activate)."""

    def kernel(*refs):
        x_ref = refs[0]
        o_ref = refs[-1]
        params = refs[1:-1]

        h = x_ref[...]                                   # (TB, Fin_pad), weight dtype
        for li, (d_true, d_pad, use_ln, activate) in enumerate(layer_cfgs):
            w_ref = params[2 * li]                       # (din_pad, d_pad), weight dtype
            ep_ref = params[2 * li + 1]                  # (1|3, d_pad), f32

            lhs = h if h.dtype == w_ref.dtype else h.astype(w_ref.dtype)
            # MXU matmul, f32 accumulation.
            y = jnp.dot(lhs, w_ref[...], preferred_element_type=jnp.float32)
            y = y + ep_ref[0:1, :]                       # bias, f32 epilogue (VPU)

            if use_ln:
                # Padded lanes of y are exactly 0 (padded W cols + bias are 0),
                # so unmasked sums with a 1/d_true denominator are exact.
                inv_d = 1.0 / d_true
                mean = jnp.sum(y, axis=-1, keepdims=True) * inv_d
                ex2 = jnp.sum(y * y, axis=-1, keepdims=True) * inv_d
                var = ex2 - mean * mean                  # biased var (matches torch)
                inv = jax.lax.rsqrt(var + 1e-5)          # EUP, torch eps = 1e-5
                gamma = ep_ref[1:2, :]                   # 0 on padded lanes -> stay 0
                beta = ep_ref[2:3, :]
                y = (y - mean) * (inv * gamma) + beta

            if activate:
                y = jnp.maximum(y, 0.0)
            h = y

        o_ref[...] = h.astype(o_ref.dtype)

    return kernel


# ---------------------------------------------------------------------------
# Module wrapper (mirrors MLP.__init__ / MLP.forward)
# ---------------------------------------------------------------------------
class MLPPallas:
    def __init__(self, in_features, hidden_dims=(1024, 1024), activate_final=True,
                 use_layer_norm=False, dropout_rate=None, *, key=None,
                 weight_dtype=jnp.bfloat16, row_tile_max=512):
        if key is None:
            key = jax.random.PRNGKey(0)
        self.in_features = int(in_features)
        self.hidden_dims = [int(d) for d in hidden_dims]
        self.activate_final = bool(activate_final)
        self.use_layer_norm = bool(use_layer_norm)
        self.dropout_rate = dropout_rate        # eval-mode: identity (see TODO above)
        self.weight_dtype = jnp.dtype(weight_dtype)
        # 512-row tiles stay well inside VMEM even on v7x (64 MiB) for 1024-wide
        # hidden layers once the constant-index weights are single-buffered.
        self.row_tile_max = max(_SUBLANE, _round_up(int(row_tile_max), _SUBLANE))

        self.in_pad = _round_up(self.in_features, _LANE)

        self.layer_cfgs = []        # (true_out, pad_out, use_ln, activate)
        self.params = []            # padded kernel params, in kernel order
        self.ref_params = []        # unpadded f32 params (for the reference)

        cur_true, cur_pad = self.in_features, self.in_pad
        n = len(self.hidden_dims)
        for i, d in enumerate(self.hidden_dims):
            d_pad = _round_up(d, _LANE)
            key, kw = jax.random.split(key)
            # xavier_uniform_ (fan_in = cur_true, fan_out = d), bias = 0
            bound = float(np.sqrt(6.0 / (cur_true + d)))
            w = jax.random.uniform(kw, (cur_true, d), jnp.float32, -bound, bound)
            b = jnp.zeros((1, d), jnp.float32)

            w_p = jnp.zeros((cur_pad, d_pad), jnp.float32).at[:cur_true, :d].set(w)

            # Epilogue params concatenated into one small f32 array per layer
            # (fewer DMA descriptors / in_specs): row 0 = bias, rows 1/2 = LN
            # gamma/beta.  gamma == 0 on padded lanes keeps them exactly 0.
            if self.use_layer_norm:
                g = jnp.ones((1, d), jnp.float32)
                be = jnp.zeros((1, d), jnp.float32)
                ep = jnp.zeros((3, d_pad), jnp.float32).at[1, :d].set(1.0)
            else:
                g, be = None, None
                ep = jnp.zeros((1, d_pad), jnp.float32)

            self.params += [w_p.astype(self.weight_dtype), ep]

            activate = (i < n - 1) or self.activate_final
            self.layer_cfgs.append((d, d_pad, self.use_layer_norm, activate))
            self.ref_params.append((w, b, g, be))
            cur_true, cur_pad = d, d_pad

        self.out_true, self.out_pad = cur_true, cur_pad
        self._use_buffered = hasattr(pl, "Buffered")
        self._fwd_cache = {}

    # --- tiling / VMEM heuristics -----------------------------------------
    def _pick_tile(self, rows8):
        if rows8 <= _SUBLANE:
            return rows8
        # Aim for >= 2 grid steps (feeds both v7x TensorCores; an extra grid
        # step is ~0.35 us elsewhere), capped so VMEM stays comfortable.
        half = _round_up(_cdiv(rows8, 2), _SUBLANE)
        return max(_SUBLANE, min(self.row_tile_max, half))

    def _vmem_limit_bytes(self, tb, single_buffer_params):
        nbuf = 1 if single_buffer_params else 2
        est = 2 * tb * self.in_pad * self.weight_dtype.itemsize      # x block, 2 bufs
        est += 2 * tb * self.out_pad * 4                             # out block, 2 bufs
        for arr in self.params:
            est += nbuf * arr.size * arr.dtype.itemsize              # resident params
        widest = max([self.in_pad] + [c[1] for c in self.layer_cfgs])
        est += 4 * tb * widest * 4                                   # kernel temporaries
        est = int(est * 1.5) + (4 << 20)                             # headroom
        return int(min(max(est, 32 << 20), 100 << 20))

    # --- build a jitted forward for a given (static) number of rows --------
    def _build_forward(self, rows, use_buffered):
        rows8 = _round_up(max(rows, 1), _SUBLANE)
        tb = self._pick_tile(rows8)
        grid = (_cdiv(rows8, tb),)

        if use_buffered:
            # Constant-index params: single-buffer them (the block index never
            # changes, double-buffering only doubles their VMEM footprint).
            def param_spec(shape):
                return pl.BlockSpec(shape, lambda i: (0, 0),
                                    pipeline_mode=pl.Buffered(1))
        else:
            def param_spec(shape):
                return pl.BlockSpec(shape, lambda i: (0, 0))

        in_specs = [pl.BlockSpec((tb, self.in_pad), lambda i: (i, 0))]
        in_specs += [param_spec(arr.shape) for arr in self.params]
        out_spec = pl.BlockSpec((tb, self.out_pad), lambda i: (i, 0))

        call = pl.pallas_call(
            _make_mlp_kernel(tuple(self.layer_cfgs)),
            out_shape=jax.ShapeDtypeStruct((rows8, self.out_pad), jnp.float32),
            grid=grid,
            in_specs=in_specs,
            out_specs=out_spec,
            compiler_params=pltpu.CompilerParams(
                dimension_semantics=("parallel",),
                vmem_limit_bytes=self._vmem_limit_bytes(tb, use_buffered)),
        )

        in_f, in_p = self.in_features, self.in_pad
        out_t = self.out_true
        params = tuple(self.params)
        wdtype = self.weight_dtype

        def fwd(x2):
            # Cast to the matmul dtype *before* DMA (halves x bytes for bf16);
            # pad rows only to a sublane multiple and features to a lane
            # multiple.  Everything here fuses under jit.
            xp = jnp.pad(x2.astype(wdtype),
                         ((0, rows8 - x2.shape[0]), (0, in_p - in_f)))
            out = call(xp, *params)
            return out[:x2.shape[0], :out_t]

        return jax.jit(fwd)

    # --- forward ------------------------------------------------------------
    def __call__(self, x):
        orig_shape = x.shape
        assert orig_shape[-1] == self.in_features, orig_shape
        rows = int(np.prod(orig_shape[:-1])) if len(orig_shape) > 1 else 1
        x2 = jnp.asarray(x, jnp.float32).reshape(rows, self.in_features)

        try:
            fwd = self._fwd_cache.get(rows)
            if fwd is None:
                fwd = self._build_forward(rows, self._use_buffered)
                self._fwd_cache[rows] = fwd
            out2 = fwd(x2)
        except Exception:
            if not self._use_buffered:
                raise
            # pl.Buffered(1) not supported by this jax/libtpu combo -> rebuild
            # with default double-buffering (correctness unchanged).
            self._use_buffered = False
            self._fwd_cache.clear()
            fwd = self._build_forward(rows, False)
            self._fwd_cache[rows] = fwd
            out2 = fwd(x2)

        return out2.reshape(*orig_shape[:-1], self.out_true)


# ---------------------------------------------------------------------------
# Pure-JAX f32 reference (mirrors the PyTorch forward exactly)
# ---------------------------------------------------------------------------
def _reference_forward(x, mlp: MLPPallas):
    h = jnp.asarray(x, jnp.float32).reshape(-1, mlp.in_features)
    for (w, b, g, be), (d, _dp, use_ln, activate) in zip(mlp.ref_params,
                                                         mlp.layer_cfgs):
        h = h @ w + b
        if use_ln:
            mean = jnp.mean(h, axis=-1, keepdims=True)
            var = jnp.mean((h - mean) ** 2, axis=-1, keepdims=True)
            h = (h - mean) * jax.lax.rsqrt(var + 1e-5) * g + be
        if activate:
            h = jnp.maximum(h, 0.0)
    return h.reshape(*x.shape[:-1], mlp.layer_cfgs[-1][0])


if __name__ == "__main__":
    key = jax.random.PRNGKey(0)
    kx, kp1, kp2 = jax.random.split(key, 3)

    # --- default config: bf16 weights, hidden [1024, 1024], ReLU both layers --
    # batch=16, in_features=112 (deliberately not lane-aligned -> padding path).
    B, F = 16, 112
    x = jax.random.normal(kx, (B, F), dtype=jnp.float32)
    mlp = MLPPallas(in_features=F, hidden_dims=[1024, 1024],
                    activate_final=True, use_layer_norm=False, key=kp1)
    out = jax.block_until_ready(mlp(x))
    ref = _reference_forward(x, mlp)
    assert out.shape == (B, 1024), out.shape
    err = float(jnp.max(jnp.abs(out - ref)))
    assert err < 5e-2, f"default-config mismatch, max |err| = {err}"

    # --- LayerNorm config, f32 weights, 3-D input, partial last row block ----
    # rows = 4*5 = 20 -> pads to 24 rows, tile 16 -> grid (2,) with a partial
    # last block (exercises OOB-masked reads/writes and the masked-free LN).
    x3 = jax.random.normal(kp2, (4, 5, F), dtype=jnp.float32)
    mlp_ln = MLPPallas(in_features=F, hidden_dims=[48, 32],
                       activate_final=True, use_layer_norm=True,
                       weight_dtype=jnp.float32, key=jax.random.PRNGKey(7))
    out_ln = jax.block_until_ready(mlp_ln(x3))
    ref_ln = _reference_forward(x3, mlp_ln)
    assert out_ln.shape == (4, 5, 32), out_ln.shape
    err_ln = float(jnp.max(jnp.abs(out_ln - ref_ln)))
    assert err_ln < 1e-3, f"layernorm-config mismatch, max |err| = {err_ln}"

    print("KERNEL_OK")
</pallas_src>

<mosaic_0001>
module attributes {stable_mosaic.version = 11 : i64} {
  func.func @kernel(%arg0: i32, %arg1: memref<8x128xbf16, #tpu.memory_space<vmem>>, %arg2: memref<128x1024xbf16, #tpu.memory_space<vmem>>, %arg3: memref<1x1024xf32, #tpu.memory_space<vmem>>, %arg4: memref<1024x1024xbf16, #tpu.memory_space<vmem>>, %arg5: memref<1x1024xf32, #tpu.memory_space<vmem>>, %arg6: memref<8x1024xf32, #tpu.memory_space<vmem>>) attributes {dimension_semantics = [#tpu.dimension_semantics<parallel>], iteration_bounds = array<i64: 2>, scalar_prefetch = 0 : i64, scratch_operands = 0 : i64, tpu.core_type = #tpu.core_type<tc>, window_params = [{transform_indices = @transform_0, window_bounds = array<i64: 8, 128>}, {pipeline_mode = #tpu.pipeline_mode<synchronous>, transform_indices = @transform_1, window_bounds = array<i64: 128, 1024>}, {pipeline_mode = #tpu.pipeline_mode<synchronous>, transform_indices = @transform_2, window_bounds = array<i64: 1, 1024>}, {pipeline_mode = #tpu.pipeline_mode<synchronous>, transform_indices = @transform_3, window_bounds = array<i64: 1024, 1024>}, {pipeline_mode = #tpu.pipeline_mode<synchronous>, transform_indices = @transform_4, window_bounds = array<i64: 1, 1024>}, {transform_indices = @transform_5, window_bounds = array<i64: 8, 1024>}]} {
    %c0 = arith.constant 0 : index
    %c0_0 = arith.constant 0 : index
    %0 = vector.load %arg1[%c0, %c0_0] : memref<8x128xbf16, #tpu.memory_space<vmem>>, vector<8x128xbf16>
    %c0_1 = arith.constant 0 : index
    %c0_2 = arith.constant 0 : index
    %1 = vector.load %arg2[%c0_1, %c0_2] : memref<128x1024xbf16, #tpu.memory_space<vmem>>, vector<128x1024xbf16>
    %cst = arith.constant dense<0.000000e+00> : vector<8x1024xf32>
    %2 = tpu.matmul %0, %1, %cst {dimension_numbers = #tpu.dot_dimension_numbers<[1], [0], [0], [1], [0, 0, 1, 1], [], []>} : vector<8x128xbf16>, vector<128x1024xbf16>, vector<8x1024xf32> -> vector<8x1024xf32>
    %c0_3 = arith.constant 0 : index
    %c0_4 = arith.constant 0 : index
    %3 = vector.load %arg3[%c0_3, %c0_4] : memref<1x1024xf32, #tpu.memory_space<vmem>>, vector<1x1024xf32>
    %4 = vector.broadcast %3 : vector<1x1024xf32> to vector<8x1024xf32>
    %5 = arith.addf %2, %4 : vector<8x1024xf32>
    %cst_5 = arith.constant 0.000000e+00 : f32
    %6 = vector.broadcast %cst_5 : f32 to vector<8x1024xf32>
    %7 = arith.maximumf %5, %6 : vector<8x1024xf32>
    %8 = arith.truncf %7 : vector<8x1024xf32> to vector<8x1024xbf16>
    %c0_6 = arith.constant 0 : index
    %c0_7 = arith.constant 0 : index
    %9 = vector.load %arg4[%c0_6, %c0_7] : memref<1024x1024xbf16, #tpu.memory_space<vmem>>, vector<1024x1024xbf16>
    %cst_8 = arith.constant dense<0.000000e+00> : vector<8x1024xf32>
    %10 = tpu.matmul %8, %9, %cst_8 {dimension_numbers = #tpu.dot_dimension_numbers<[1], [0], [0], [1], [0, 0, 1, 1], [], []>} : vector<8x1024xbf16>, vector<1024x1024xbf16>, vector<8x1024xf32> -> vector<8x1024xf32>
    %c0_9 = arith.constant 0 : index
    %c0_10 = arith.constant 0 : index
    %11 = vector.load %arg5[%c0_9, %c0_10] : memref<1x1024xf32, #tpu.memory_space<vmem>>, vector<1x1024xf32>
    %12 = vector.broadcast %11 : vector<1x1024xf32> to vector<8x1024xf32>
    %13 = arith.addf %10, %12 : vector<8x1024xf32>
    %cst_11 = arith.constant 0.000000e+00 : f32
    %14 = vector.broadcast %cst_11 : f32 to vector<8x1024xf32>
    %15 = arith.maximumf %13, %14 : vector<8x1024xf32>
    %c0_12 = arith.constant 0 : index
    %c0_13 = arith.constant 0 : index
    %16 = vector.load %arg6[%c0_12, %c0_13] : memref<8x1024xf32, #tpu.memory_space<vmem>>, vector<8x1024xf32>
    tpu.vector_store %arg6[%c0_12, %c0_13], %15 {strides = array<i32>} : memref<8x1024xf32, #tpu.memory_space<vmem>>, vector<8x1024xf32>,
    return
  }
  func.func @transform_0(%arg0: i32) -> (i32, i32) {
    %c0_i32 = arith.constant 0 : i32
    %c0_i32_0 = arith.constant 0 : i32
    return %arg0, %c0_i32 : i32, i32
  }
  func.func @transform_1(%arg0: i32) -> (i32, i32) {
    %c0_i32 = arith.constant 0 : i32
    %c0_i32_0 = arith.constant 0 : i32
    %c0_i32_1 = arith.constant 0 : i32
    return %c0_i32, %c0_i32_0 : i32, i32
  }
  func.func @transform_2(%arg0: i32) -> (i32, i32) {
    %c0_i32 = arith.constant 0 : i32
    %c0_i32_0 = arith.constant 0 : i32
    %c0_i32_1 = arith.constant 0 : i32
    return %c0_i32, %c0_i32_0 : i32, i32
  }
  func.func @transform_3(%arg0: i32) -> (i32, i32) {
    %c0_i32 = arith.constant 0 : i32
    %c0_i32_0 = arith.constant 0 : i32
    %c0_i32_1 = arith.constant 0 : i32
    return %c0_i32, %c0_i32_0 : i32, i32
  }
  func.func @transform_4(%arg0: i32) -> (i32, i32) {
    %c0_i32 = arith.constant 0 : i32
    %c0_i32_0 = arith.constant 0 : i32
    %c0_i32_1 = arith.constant 0 : i32
    return %c0_i32, %c0_i32_0 : i32, i32
  }
  func.func @transform_5(%arg0: i32) -> (i32, i32) {
    %c0_i32 = arith.constant 0 : i32
    %c0_i32_0 = arith.constant 0 : i32
    return %arg0, %c0_i32 : i32, i32
  }
}

module attributes {stable_mosaic.version = 11 : i64} {
  func.func @kernel(%arg0: i32, %arg1: memref<8x128xbf16, #tpu.memory_space<vmem>>, %arg2: memref<128x1024xbf16, #tpu.memory_space<vmem>>, %arg3: memref<1x1024xf32, #tpu.memory_space<vmem>>, %arg4: memref<1024x1024xbf16, #tpu.memory_space<vmem>>, %arg5: memref<1x1024xf32, #tpu.memory_space<vmem>>, %arg6: memref<8x1024xf32, #tpu.memory_space<vmem>>) attributes {dimension_semantics = [#tpu.dimension_semantics<parallel>], iteration_bounds = array<i64: 2>, scalar_prefetch = 0 : i64, scratch_operands = 0 : i64, tpu.core_type = #tpu.core_type<tc>, window_params = [{transform_indices = @transform_0, window_bounds = array<i64: 8, 128>}, {pipeline_mode = #tpu.pipeline_mode<synchronous>, transform_indices = @transform_1, window_bounds = array<i64: 128, 1024>}, {pipeline_mode = #tpu.pipeline_mode<synchronous>, transform_indices = @transform_2, window_bounds = array<i64: 1, 1024>}, {pipeline_mode = #tpu.pipeline_mode<synchronous>, transform_indices = @transform_3, window_bounds = array<i64: 1024, 1024>}, {pipeline_mode = #tpu.pipeline_mode<synchronous>, transform_indices = @transform_4, window_bounds = array<i64: 1, 1024>}, {transform_indices = @transform_5, window_bounds = array<i64: 8, 1024>}]} {
    %c0 = arith.constant 0 : index
    %c0_0 = arith.constant 0 : index
    %0 = vector.load %arg1[%c0, %c0_0] : memref<8x128xbf16, #tpu.memory_space<vmem>>, vector<8x128xbf16>
    %c0_1 = arith.constant 0 : index
    %c0_2 = arith.constant 0 : index
    %1 = vector.load %arg2[%c0_1, %c0_2] : memref<128x1024xbf16, #tpu.memory_space<vmem>>, vector<128x1024xbf16>
    %cst = arith.constant dense<0.000000e+00> : vector<8x1024xf32>
    %2 = tpu.matmul %0, %1, %cst {dimension_numbers = #tpu.dot_dimension_numbers<[1], [0], [0], [1], [0, 0, 1, 1], [], []>} : vector<8x128xbf16>, vector<128x1024xbf16>, vector<8x1024xf32> -> vector<8x1024xf32>
    %c0_3 = arith.constant 0 : index
    %c0_4 = arith.constant 0 : index
    %3 = vector.load %arg3[%c0_3, %c0_4] : memref<1x1024xf32, #tpu.memory_space<vmem>>, vector<1x1024xf32>
    %4 = vector.broadcast %3 : vector<1x1024xf32> to vector<8x1024xf32>
    %5 = arith.addf %2, %4 : vector<8x1024xf32>
    %cst_5 = arith.constant 0.000000e+00 : f32
    %6 = vector.broadcast %cst_5 : f32 to vector<8x1024xf32>
    %7 = arith.maximumf %5, %6 : vector<8x1024xf32>
    %8 = arith.truncf %7 : vector<8x1024xf32> to vector<8x1024xbf16>
    %c0_6 = arith.constant 0 : index
    %c0_7 = arith.constant 0 : index
    %9 = vector.load %arg4[%c0_6, %c0_7] : memref<1024x1024xbf16, #tpu.memory_space<vmem>>, vector<1024x1024xbf16>
    %cst_8 = arith.constant dense<0.000000e+00> : vector<8x1024xf32>
    %10 = tpu.matmul %8, %9, %cst_8 {dimension_numbers = #tpu.dot_dimension_numbers<[1], [0], [0], [1], [0, 0, 1, 1], [], []>} : vector<8x1024xbf16>, vector<1024x1024xbf16>, vector<8x1024xf32> -> vector<8x1024xf32>
    %c0_9 = arith.constant 0 : index
    %c0_10 = arith.constant 0 : index
    %11 = vector.load %arg5[%c0_9, %c0_10] : memref<1x1024xf32, #tpu.memory_space<vmem>>, vector<1x1024xf32>
    %12 = vector.broadcast %11 : vector<1x1024xf32> to vector<8x1024xf32>
    %13 = arith.addf %10, %12 : vector<8x1024xf32>
    %cst_11 = arith.constant 0.000000e+00 : f32
    %14 = vector.broadcast %cst_11 : f32 to vector<8x1024xf32>
    %15 = arith.maximumf %13, %14 : vector<8x1024xf32>
    %c0_12 = arith.constant 0 : index
    %c0_13 = arith.constant 0 : index
    %16 = vector.load %arg6[%c0_12, %c0_13] : memref<8x1024xf32, #tpu.memory_space<vmem>>, vector<8x1024xf32>
    tpu.vector_store %arg6[%c0_12, %c0_13], %15 {strides = array<i32>} : memref<8x1024xf32, #tpu.memory_space<vmem>>, vector<8x1024xf32>,
    return
  }
  func.func @transform_0(%arg0: i32) -> (i32, i32) {
    %c0_i32 = arith.constant 0 : i32
    %c0_i32_0 = arith.constant 0 : i32
    return %arg0, %c0_i32 : i32, i32
  }
  func.func @transform_1(%arg0: i32) -> (i32, i32) {
    %c0_i32 = arith.constant 0 : i32
    %c0_i32_0 = arith.constant 0 : i32
    %c0_i32_1 = arith.constant 0 : i32
    return %c0_i32, %c0_i32_0 : i32, i32
  }
  func.func @transform_2(%arg0: i32) -> (i32, i32) {
    %c0_i32 = arith.constant 0 : i32
    %c0_i32_0 = arith.constant 0 : i32
    %c0_i32_1 = arith.constant 0 : i32
    return %c0_i32, %c0_i32_0 : i32, i32
  }
  func.func @transform_3(%arg0: i32) -> (i32, i32) {
    %c0_i32 = arith.constant 0 : i32
    %c0_i32_0 = arith.constant 0 : i32
    %c0_i32_1 = arith.constant 0 : i32
    return %c0_i32, %c0_i32_0 : i32, i32
  }
  func.func @transform_4(%arg0: i32) -> (i32, i32) {
    %c0_i32 = arith.constant 0 : i32
    %c0_i32_0 = arith.constant 0 : i32
    %c0_i32_1 = arith.constant 0 : i32
    return %c0_i32, %c0_i32_0 : i32, i32
  }
  func.func @transform_5(%arg0: i32) -> (i32, i32) {
    %c0_i32 = arith.constant 0 : i32
    %c0_i32_0 = arith.constant 0 : i32
    return %arg0, %c0_i32 : i32, i32
  }
}

</mosaic_0001>

<llo_original>
// kernel: fwd.1
$region0: #{fwd.1}
  #allocation0 [shape = 'u32[]', space=smem, size = 0x4, offset = 0x4, fixed_abs, tag = 'smem constant byte address 0x4 - core index']
  #allocation1 [shape = 'u32[144,128]{1,0:T(1,128)}', space=vmem, size = 0x12000, scoped, tag = 'internal scratch']
  %s0 = inlined_call_operand.vmem [shape: bf16[16,128], index: 0, kind: input, shape index: {}]
  %s1 = inlined_call_operand.vmem [shape: bf16[128,1024], index: 1, kind: input, shape index: {}]
  %s2 = inlined_call_operand.vmem [shape: f32[1,1024], index: 2, kind: input, shape index: {}, may-alias: {2,4}]
  %s3 = inlined_call_operand.vmem [shape: bf16[1024,1024], index: 3, kind: input, shape index: {}]
  %s4 = inlined_call_operand.vmem [shape: f32[1,1024], index: 4, kind: input, shape index: {}, may-alias: {2,4}]
  %s5 = inlined_call_operand.hbm [shape: f32[16,1024], index: 5, kind: output, shape index: {}]
  %s6 = sld [smem:[#allocation0]]
  $region53: #{fwd.1} parent=0
    _
  %s8 = ssub.s32 1, %s6
  %s9 = scalar_select 0, %s8, %s6
  $region1: #{fwd.1} parent=0
    #allocation2 [shape = 'u8[65536]{0}', space=vmem, size = 0x10000, scoped, tag = 'output window, operand 0']
    #allocation3 [shape = 's32[2]{0}', space=sflag, size = 0x8, scoped, tag = 'scoped memory for fwd.1']
    %10 = vsyncpa [#allocation3], 0
    %s11 = scalar_lea.sflag [#allocation3], 1
    %12 = vsyncpa %s11, 0
    loop: start=0, step=1, limit=4
    $region2: #{fwd.1} parent=1 // loop_pre_header
      _
    $region3: #{fwd.1} parent=1 // loop_header
      %s14 = sphi 0, %s18
      %p15 = scmp.ge.s32.totalorder %s14, 4
      %s24 = sphi 0, %s26
      %s27 = sphi 0, %s24
      %s28 = sphi 0, %s27
      %s44 = sphi 0, %s28
      %s48 = sphi 0, %s48
      %s50 = sphi 0, %s48
      %s51 = sphi 0, %s50
      %s65 = sphi 0, %s51
      %s69 = sphi 0, %s69
      %s71 = sphi 0, %s69
      %s72 = sphi 0, %s71
      %s86 = sphi 0, %s72
      %s90 = sphi 0, %s90
      %s92 = sphi 0, %s90
      %s93 = sphi 0, %s92
      %s107 = sphi 0, %s93
      %s111 = sphi 0, %s111
      %s113 = sphi 0, %s111
      %s114 = sphi 0, %s113
      %s128 = sphi 0, %s114
      %s134 = sphi 0, %s136
      %s137 = sphi 0, %s134
      %s138 = sphi 0, %s137
      %s154 = sphi 0, %s138
    $region4: #{fwd.1} parent=1 // loop_header_branch
      %17 = sbr.rel (%p15) target = $region8
    $region5: #{fwd.1} parent=1 // loop_body
      %s19 = ssub.s32 %s14, 1
      %s20 = ssub.s32 %s14, 2
      %s21 = sadd.s32 %s14, 1
      %s22 = ssub.s32 %s14, %s21
      %p23 = scmp.eq.s32.totalorder %s22, 0
      %s25 = sadd.s32 %s24, 1
      %s26 = scalar_select %p23, %s24, %s25
      %p29 = pneg %p23
      %p30 = scmp.eq.s32.totalorder %s14, 1
      %p31 = por %p29, %p30
      %p32 = scmp.ne.s32.totalorder %s24, %s27
      %p33 = scmp.eq.s32.totalorder %s14, 0
      %p34 = por %p32, %p33
      %p35 = scmp.ne.s32.totalorder %s24, %s27
      %p36 = scmp.eq.s32.totalorder %s19, 1
      %p37 = por %p35, %p36
      %p38 = scmp.ne.s32.totalorder %s27, %s28
      %p39 = scmp.eq.s32.totalorder %s19, 0
      %p40 = por %p38, %p39
      %p41 = scmp.ne.s32.totalorder %s27, %s28
      %p42 = scmp.eq.s32.totalorder %s20, 1
      %p43 = por %p41, %p42
      %p45 = scmp.ne.s32.totalorder %s28, %s44
      %p46 = scmp.eq.s32.totalorder %s20, 0
      %p47 = por %p45, %p46
      %s49 = sadd.s32 %s48, 1
      %p52 = scmp.eq.s32.totalorder %s14, 1
      %p53 = scmp.ne.s32.totalorder %s48, %s50
      %p54 = scmp.eq.s32.totalorder %s14, 0
      %p55 = por %p53, %p54
      %p56 = scmp.ne.s32.totalorder %s48, %s50
      %p57 = scmp.eq.s32.totalorder %s19, 1
      %p58 = por %p56, %p57
      %p59 = scmp.ne.s32.totalorder %s50, %s51
      %p60 = scmp.eq.s32.totalorder %s19, 0
      %p61 = por %p59, %p60
      %p62 = scmp.ne.s32.totalorder %s50, %s51
      %p63 = scmp.eq.s32.totalorder %s20, 1
      %p64 = por %p62, %p63
      %p66 = scmp.ne.s32.totalorder %s51, %s65
      %p67 = scmp.eq.s32.totalorder %s20, 0
      %p68 = por %p66, %p67
      %s70 = sadd.s32 %s69, 1
      %p73 = scmp.eq.s32.totalorder %s14, 1
      %p74 = scmp.ne.s32.totalorder %s69, %s71
      %p75 = scmp.eq.s32.totalorder %s14, 0
      %p76 = por %p74, %p75
      %p77 = scmp.ne.s32.totalorder %s69, %s71
      %p78 = scmp.eq.s32.totalorder %s19, 1
      %p79 = por %p77, %p78
      %p80 = scmp.ne.s32.totalorder %s71, %s72
      %p81 = scmp.eq.s32.totalorder %s19, 0
      %p82 = por %p80, %p81
      %p83 = scmp.ne.s32.totalorder %s71, %s72
      %p84 = scmp.eq.s32.totalorder %s20, 1
      %p85 = por %p83, %p84
      %p87 = scmp.ne.s32.totalorder %s72, %s86
      %p88 = scmp.eq.s32.totalorder %s20, 0
      %p89 = por %p87, %p88
      %s91 = sadd.s32 %s90, 1
      %p94 = scmp.eq.s32.totalorder %s14, 1
      %p95 = scmp.ne.s32.totalorder %s90, %s92
      %p96 = scmp.eq.s32.totalorder %s14, 0
      %p97 = por %p95, %p96
      %p98 = scmp.ne.s32.totalorder %s90, %s92
      %p99 = scmp.eq.s32.totalorder %s19, 1
      %p100 = por %p98, %p99
      %p101 = scmp.ne.s32.totalorder %s92, %s93
      %p102 = scmp.eq.s32.totalorder %s19, 0
      %p103 = por %p101, %p102
      %p104 = scmp.ne.s32.totalorder %s92, %s93
      %p105 = scmp.eq.s32.totalorder %s20, 1
      %p106 = por %p104, %p105
      %p108 = scmp.ne.s32.totalorder %s93, %s107
      %p109 = scmp.eq.s32.totalorder %s20, 0
      %p110 = por %p108, %p109
      %s112 = sadd.s32 %s111, 1
      %p115 = scmp.eq.s32.totalorder %s14, 1
      %p116 = scmp.ne.s32.totalorder %s111, %s113
      %p117 = scmp.eq.s32.totalorder %s14, 0
      %p118 = por %p116, %p117
      %p119 = scmp.ne.s32.totalorder %s111, %s113
      %p120 = scmp.eq.s32.totalorder %s19, 1
      %p121 = por %p119, %p120
      %p122 = scmp.ne.s32.totalorder %s113, %s114
      %p123 = scmp.eq.s32.totalorder %s19, 0
      %p124 = por %p122, %p123
      %p125 = scmp.ne.s32.totalorder %s113, %s114
      %p126 = scmp.eq.s32.totalorder %s20, 1
      %p127 = por %p125, %p126
      %p129 = scmp.ne.s32.totalorder %s114, %s128
      %p130 = scmp.eq.s32.totalorder %s20, 0
      %p131 = por %p129, %p130
      %s132 = ssub.s32 %s14, %s21
      %p133 = scmp.eq.s32.totalorder %s132, 0
      %s135 = sadd.s32 %s134, 1
      %s136 = scalar_select %p133, %s134, %s135
      %p139 = pneg %p133
      %p140 = scmp.eq.s32.totalorder %s14, 1
      %p141 = por %p139, %p140
      %p142 = scmp.ne.s32.totalorder %s134, %s137
      %p143 = scmp.eq.s32.totalorder %s14, 0
      %p144 = por %p142, %p143
      %p145 = scmp.ne.s32.totalorder %s134, %s137
      %p146 = scmp.eq.s32.totalorder %s19, 1
      %p147 = por %p145, %p146
      %p148 = scmp.ne.s32.totalorder %s137, %s138
      %p149 = scmp.eq.s32.totalorder %s19, 0
      %p150 = por %p148, %p149
      %p151 = scmp.ne.s32.totalorder %s137, %s138
      %p152 = scmp.eq.s32.totalorder %s20, 1
      %p153 = por %p151, %p152
      %p155 = scmp.ne.s32.totalorder %s138, %s154
      %p156 = scmp.eq.s32.totalorder %s20, 0
      %p157 = por %p155, %p156
      %p158 = scmp.le.s32.totalorder 1, %s14
      %p159 = scmp.lt.s32.totalorder %s14, 3
      %p160 = pnand %p158, %p159
      %p161 = pneg %p160
      // Predicated region
      $region9: #{fwd.1} parent=5 // pred_check
        _
      $region10: #{fwd.1} parent=5 // pred_check_branch
        %163 = sbr.rel (%p160) target = $region12
      $region11: #{fwd.1} parent=5 // pred_region
        %s164 = ssub.s32 %s14, 1
        // Predicated region
        $region13: #{fwd.1} parent=11 // pred_check
          %p165 = pneg %p61
        $region14: #{fwd.1} parent=11 // pred_check_branch
          %167 = sbr.rel (%p165) target = $region16
        $region15: #{fwd.1} parent=11 // pred_region
          _
        $region16: #{fwd.1} parent=11 // pred_fallthru
          _
        // Predicated region
        $region17: #{fwd.1} parent=11 // pred_check
          %p168 = pneg %p82
        $region18: #{fwd.1} parent=11 // pred_check_branch
          %170 = sbr.rel (%p168) target = $region20
        $region19: #{fwd.1} parent=11 // pred_region
          _
        $region20: #{fwd.1} parent=11 // pred_fallthru
          _
        // Predicated region
        $region21: #{fwd.1} parent=11 // pred_check
          %p171 = pneg %p103
        $region22: #{fwd.1} parent=11 // pred_check_branch
          %173 = sbr.rel (%p171) target = $region24
        $region23: #{fwd.1} parent=11 // pred_region
          _
        $region24: #{fwd.1} parent=11 // pred_fallthru
          _
        // Predicated region
        $region25: #{fwd.1} parent=11 // pred_check
          %p174 = pneg %p124
        $region26: #{fwd.1} parent=11 // pred_check_branch
          %176 = sbr.rel (%p174) target = $region28
        $region27: #{fwd.1} parent=11 // pred_region
          _
        $region28: #{fwd.1} parent=11 // pred_fallthru
          _
      $region12: #{fwd.1} parent=5 // pred_fallthru
        _
      %p177 = scmp.lt.s32.totalorder %s14, 2
      // Predicated region
      $region29: #{fwd.1} parent=5 // pred_check
        %p178 = pneg %p177
      $region30: #{fwd.1} parent=5 // pred_check_branch
        %180 = sbr.rel (%p178) target = $region32
      $region31: #{fwd.1} parent=5 // pred_region
        // Predicated region
        $region33: #{fwd.1} parent=31 // pred_check
          %p181 = pneg %p34
        $region34: #{fwd.1} parent=31 // pred_check_branch
          %183 = sbr.rel (%p181) target = $region36
        $region35: #{fwd.1} parent=31 // pred_region
          %p184 = scmp.lt.s32.totalorder %s14, 1
          %s185 = scalar_select %p184, %s14, 1
          %s186 = smul.addr %s185, 4
          %s187 = scalar_lea.vmem %s0, %s186
        $region36: #{fwd.1} parent=31 // pred_fallthru
          _
      $region32: #{fwd.1} parent=5 // pred_fallthru
        _
      %p188 = scmp.le.s32.totalorder 1, %s14
      %p189 = scmp.lt.s32.totalorder %s14, 3
      %p190 = pnand %p188, %p189
      %p191 = pneg %p190
      // Predicated region
      $region37: #{fwd.1} parent=5 // pred_check
        _
      $region38: #{fwd.1} parent=5 // pred_check_branch
        %193 = sbr.rel (%p190) target = $region40
      $region39: #{fwd.1} parent=5 // pred_region
        %s194 = ssub.s32 %s14, 1
        %p195 = scmp.lt.s32.totalorder %s19, 1
        %s196 = scalar_select %p195, %s19, 1
        %s197 = smul.addr %s196, 4
        %s198 = scalar_lea.vmem %s0, %s197
        %p199 = pneg %p40
        %p200 = pneg %p37
        %p201 = pneg %p61
        %p202 = pneg %p58
        %p203 = pneg %p82
        %p204 = pneg %p79
        %p205 = pneg %p103
        %p206 = pneg %p100
        %p207 = pneg %p124
        %p208 = pneg %p121
        %p209 = pneg %p150
        %p210 = pneg %p147
        %s211 = sand.u32 %s137, 1
        %s212 = scalar_lea.sflag [#allocation3], %s211
        %s213 = sand.u32 %s137, 1
        %s214 = smul.addr %s213, 64
        %s215 = scalar_lea.vmem [#allocation2], %s214
        %p216 = scmp.lt.s32.totalorder %s19, 1
        %s217 = scalar_select %p216, %s19, 1
        %s218 = smul.addr %s217, 4
        %s219 = scalar_lea.vmem %s0, %s218
        %v221 = vld [vmem:[%s219] sm:$0xf]
        %v222 = vld [vmem:[%s1] sm:$0xff]
        %v223 = vld [vmem:[%s1 + $0x8] sm:$0xff]
        %v224 = vld [vmem:[%s1 + $0x10] sm:$0xff]
        %v225 = vld [vmem:[%s1 + $0x18] sm:$0xff]
        %v226 = vld [vmem:[%s1 + $0x20] sm:$0xff]
        %v227 = vld [vmem:[%s1 + $0x28] sm:$0xff]
        %v228 = vld [vmem:[%s1 + $0x30] sm:$0xff]
        %v229 = vld [vmem:[%s1 + $0x38] sm:$0xff]
        %v230 = vld [vmem:[%s1 + $0x40] sm:$0xff]
        %v231 = vld [vmem:[%s1 + $0x48] sm:$0xff]
        %v232 = vld [vmem:[%s1 + $0x50] sm:$0xff]
        %v233 = vld [vmem:[%s1 + $0x58] sm:$0xff]
        %v234 = vld [vmem:[%s1 + $0x60] sm:$0xff]
        %v235 = vld [vmem:[%s1 + $0x68] sm:$0xff]
        %v236 = vld [vmem:[%s1 + $0x70] sm:$0xff]
        %v237 = vld [vmem:[%s1 + $0x78] sm:$0xff]
        %v238 = vld [vmem:[%s1 + $0x80] sm:$0xff]
        %v239 = vld [vmem:[%s1 + $0x88] sm:$0xff]
        %v240 = vld [vmem:[%s1 + $0x90] sm:$0xff]
        %v241 = vld [vmem:[%s1 + $0x98] sm:$0xff]
        %v242 = vld [vmem:[%s1 + $0xa0] sm:$0xff]
        %v243 = vld [vmem:[%s1 + $0xa8] sm:$0xff]
        %v244 = vld [vmem:[%s1 + $0xb0] sm:$0xff]
        %v245 = vld [vmem:[%s1 + $0xb8] sm:$0xff]
        %v246 = vld [vmem:[%s1 + $0xc0] sm:$0xff]
        %v247 = vld [vmem:[%s1 + $0xc8] sm:$0xff]
        %v248 = vld [vmem:[%s1 + $0xd0] sm:$0xff]
        %v249 = vld [vmem:[%s1 + $0xd8] sm:$0xff]
        %v250 = vld [vmem:[%s1 + $0xe0] sm:$0xff]
        %v251 = vld [vmem:[%s1 + $0xe8] sm:$0xff]
        %v252 = vld [vmem:[%s1 + $0xf0] sm:$0xff]
        %v253 = vld [vmem:[%s1 + $0xf8] sm:$0xff]
        %v254 = vld [vmem:[%s1 + $0x100] sm:$0xff]
        %v255 = vld [vmem:[%s1 + $0x108] sm:$0xff]
        %v256 = vld [vmem:[%s1 + $0x110] sm:$0xff]
        %v257 = vld [vmem:[%s1 + $0x118] sm:$0xff]
        %v258 = vld [vmem:[%s1 + $0x120] sm:$0xff]
        %v259 = vld [vmem:[%s1 + $0x128] sm:$0xff]
        %v260 = vld [vmem:[%s1 + $0x130] sm:$0xff]
        %v261 = vld [vmem:[%s1 + $0x138] sm:$0xff]
        %v262 = vld [vmem:[%s1 + $0x140] sm:$0xff]
        %v263 = vld [vmem:[%s1 + $0x148] sm:$0xff]
        %v264 = vld [vmem:[%s1 + $0x150] sm:$0xff]
        %v265 = vld [vmem:[%s1 + $0x158] sm:$0xff]
        %v266 = vld [vmem:[%s1 + $0x160] sm:$0xff]
        %v267 = vld [vmem:[%s1 + $0x168] sm:$0xff]
        %v268 = vld [vmem:[%s1 + $0x170] sm:$0xff]
        %v269 = vld [vmem:[%s1 + $0x178] sm:$0xff]
        %v270 = vld [vmem:[%s1 + $0x180] sm:$0xff]
        %v271 = vld [vmem:[%s1 + $0x188] sm:$0xff]
        %v272 = vld [vmem:[%s1 + $0x190] sm:$0xff]
        %v273 = vld [vmem:[%s1 + $0x198] sm:$0xff]
        %v274 = vld [vmem:[%s1 + $0x1a0] sm:$0xff]
        %v275 = vld [vmem:[%s1 + $0x1a8] sm:$0xff]
        %v276 = vld [vmem:[%s1 + $0x1b0] sm:$0xff]
        %v277 = vld [vmem:[%s1 + $0x1b8] sm:$0xff]
        %v278 = vld [vmem:[%s1 + $0x1c0] sm:$0xff]
        %v279 = vld [vmem:[%s1 + $0x1c8] sm:$0xff]
        %v280 = vld [vmem:[%s1 + $0x1d0] sm:$0xff]
        %v281 = vld [vmem:[%s1 + $0x1d8] sm:$0xff]
        %v282 = vld [vmem:[%s1 + $0x1e0] sm:$0xff]
        %v283 = vld [vmem:[%s1 + $0x1e8] sm:$0xff]
        %v284 = vld [vmem:[%s1 + $0x1f0] sm:$0xff]
        %v285 = vld [vmem:[%s1 + $0x1f8] sm:$0xff]
        %v286 = vld [vmem:[%s2] sm:$0xff]
        %v288 = vlaneseq
        %v289 = vshrl.u32 %v288, 7
        %v290 = vsub.s32 0, %v289
        %v291 = vrot.slane %v286, %v290
        %v292 = vlaneseq
        %v293 = vshrl.u32 %v292, 7
        %v294 = vsub.s32 1, %v293
        %v295 = vrot.slane %v286, %v294
        %v296 = vlaneseq
        %v297 = vshrl.u32 %v296, 7
        %v298 = vsub.s32 2, %v297
        %v299 = vrot.slane %v286, %v298
        %v300 = vlaneseq
        %v301 = vshrl.u32 %v300, 7
        %v302 = vsub.s32 3, %v301
        %v303 = vrot.slane %v286, %v302
        %v304 = vlaneseq
        %v305 = vshrl.u32 %v304, 7
        %v306 = vsub.s32 4, %v305
        %v307 = vrot.slane %v286, %v306
        %v308 = vlaneseq
        %v309 = vshrl.u32 %v308, 7
        %v310 = vsub.s32 5, %v309
        %v311 = vrot.slane %v286, %v310
        %v312 = vlaneseq
        %v313 = vshrl.u32 %v312, 7
        %v314 = vsub.s32 6, %v313
        %v315 = vrot.slane %v286, %v314
        %v316 = vlaneseq
        %v317 = vshrl.u32 %v316, 7
        %v318 = vsub.s32 7, %v317
        %v319 = vrot.slane %v286, %v318
        %v392 = vunpack.c.l.b16 %v222
        %v393 = vunpack.c.h.b16 %v222
        %v394 = vunpack.c.l.b16 %v223
        %v395 = vunpack.c.h.b16 %v223
        %v396 = vunpack.c.l.b16 %v224
        %v397 = vunpack.c.h.b16 %v224
        %v398 = vunpack.c.l.b16 %v225
        %v399 = vunpack.c.h.b16 %v225
        %v400 = vunpack.c.l.b16 %v226
        %v401 = vunpack.c.h.b16 %v226
        %v402 = vunpack.c.l.b16 %v227
        %v403 = vunpack.c.h.b16 %v227
        %v404 = vunpack.c.l.b16 %v228
        %v405 = vunpack.c.h.b16 %v228
        %v406 = vunpack.c.l.b16 %v229
        %v407 = vunpack.c.h.b16 %v229
        %v408 = vunpack.c.l.b16 %v230
        %v409 = vunpack.c.h.b16 %v230
        %v410 = vunpack.c.l.b16 %v231
        %v411 = vunpack.c.h.b16 %v231
        %v412 = vunpack.c.l.b16 %v232
        %v413 = vunpack.c.h.b16 %v232
        %v414 = vunpack.c.l.b16 %v233
        %v415 = vunpack.c.h.b16 %v233
        %v416 = vunpack.c.l.b16 %v234
        %v417 = vunpack.c.h.b16 %v234
        %v418 = vunpack.c.l.b16 %v235
        %v419 = vunpack.c.h.b16 %v235
        %v420 = vunpack.c.l.b16 %v236
        %v421 = vunpack.c.h.b16 %v236
        %v422 = vunpack.c.l.b16 %v237
        %v423 = vunpack.c.h.b16 %v237
        %v424 = vunpack.c.l.b16 %v238
        %v425 = vunpack.c.h.b16 %v238
        %v426 = vunpack.c.l.b16 %v239
        %v427 = vunpack.c.h.b16 %v239
        %v428 = vunpack.c.l.b16 %v240
        %v429 = vunpack.c.h.b16 %v240
        %v430 = vunpack.c.l.b16 %v241
        %v431 = vunpack.c.h.b16 %v241
        %v432 = vunpack.c.l.b16 %v242
        %v433 = vunpack.c.h.b16 %v242
        %v434 = vunpack.c.l.b16 %v243
        %v435 = vunpack.c.h.b16 %v243
        %v436 = vunpack.c.l.b16 %v244
        %v437 = vunpack.c.h.b16 %v244
        %v438 = vunpack.c.l.b16 %v245
        %v439 = vunpack.c.h.b16 %v245
        %v440 = vunpack.c.l.b16 %v246
        %v441 = vunpack.c.h.b16 %v246
        %v442 = vunpack.c.l.b16 %v247
        %v443 = vunpack.c.h.b16 %v247
        %v444 = vunpack.c.l.b16 %v248
        %v445 = vunpack.c.h.b16 %v248
        %v446 = vunpack.c.l.b16 %v249
        %v447 = vunpack.c.h.b16 %v249
        %v448 = vunpack.c.l.b16 %v250
        %v449 = vunpack.c.h.b16 %v250
        %v450 = vunpack.c.l.b16 %v251
        %v451 = vunpack.c.h.b16 %v251
        %v452 = vunpack.c.l.b16 %v252
        %v453 = vunpack.c.h.b16 %v252
        %v454 = vunpack.c.l.b16 %v253
        %v455 = vunpack.c.h.b16 %v253
        %v456 = vunpack.c.l.b16 %v254
        %v457 = vunpack.c.h.b16 %v254
        %v458 = vunpack.c.l.b16 %v255
        %v459 = vunpack.c.h.b16 %v255
        %v460 = vunpack.c.l.b16 %v256
        %v461 = vunpack.c.h.b16 %v256
        %v462 = vunpack.c.l.b16 %v257
        %v463 = vunpack.c.h.b16 %v257
        %v464 = vunpack.c.l.b16 %v258
        %v465 = vunpack.c.h.b16 %v258
        %v466 = vunpack.c.l.b16 %v259
        %v467 = vunpack.c.h.b16 %v259
        %v468 = vunpack.c.l.b16 %v260
        %v469 = vunpack.c.h.b16 %v260
        %v470 = vunpack.c.l.b16 %v261
        %v471 = vunpack.c.h.b16 %v261
        %v472 = vunpack.c.l.b16 %v262
        %v473 = vunpack.c.h.b16 %v262
        %v474 = vunpack.c.l.b16 %v263
        %v475 = vunpack.c.h.b16 %v263
        %v476 = vunpack.c.l.b16 %v264
        %v477 = vunpack.c.h.b16 %v264
        %v478 = vunpack.c.l.b16 %v265
        %v479 = vunpack.c.h.b16 %v265
        %v480 = vunpack.c.l.b16 %v266
        %v481 = vunpack.c.h.b16 %v266
        %v482 = vunpack.c.l.b16 %v267
        %v483 = vunpack.c.h.b16 %v267
        %v484 = vunpack.c.l.b16 %v268
        %v485 = vunpack.c.h.b16 %v268
        %v486 = vunpack.c.l.b16 %v269
        %v487 = vunpack.c.h.b16 %v269
        %v488 = vunpack.c.l.b16 %v270
        %v489 = vunpack.c.h.b16 %v270
        %v490 = vunpack.c.l.b16 %v271
        %v491 = vunpack.c.h.b16 %v271
        %v492 = vunpack.c.l.b16 %v272
        %v493 = vunpack.c.h.b16 %v272
        %v494 = vunpack.c.l.b16 %v273
        %v495 = vunpack.c.h.b16 %v273
        %v496 = vunpack.c.l.b16 %v274
        %v497 = vunpack.c.h.b16 %v274
        %v498 = vunpack.c.l.b16 %v275
        %v499 = vunpack.c.h.b16 %v275
        %v500 = vunpack.c.l.b16 %v276
        %v501 = vunpack.c.h.b16 %v276
        %v502 = vunpack.c.l.b16 %v277
        %v503 = vunpack.c.h.b16 %v277
        %v504 = vunpack.c.l.b16 %v278
        %v505 = vunpack.c.h.b16 %v278
        %v506 = vunpack.c.l.b16 %v279
        %v507 = vunpack.c.h.b16 %v279
        %v508 = vunpack.c.l.b16 %v280
        %v509 = vunpack.c.h.b16 %v280
        %v510 = vunpack.c.l.b16 %v281
        %v511 = vunpack.c.h.b16 %v281
        %v512 = vunpack.c.l.b16 %v282
        %v513 = vunpack.c.h.b16 %v282
        %v514 = vunpack.c.l.b16 %v283
        %v515 = vunpack.c.h.b16 %v283
        %v516 = vunpack.c.l.b16 %v284
        %v517 = vunpack.c.h.b16 %v284
        %v518 = vunpack.c.l.b16 %v285
        %v519 = vunpack.c.h.b16 %v285
        %v520 = vpack.c.b16 %v400, %v392
        %v521 = vpack.c.b16 %v401, %v393
        %v522 = vpack.c.b16 %v402, %v394
        %v523 = vpack.c.b16 %v403, %v395
        %v524 = vpack.c.b16 %v404, %v396
        %v525 = vpack.c.b16 %v405, %v397
        %v526 = vpack.c.b16 %v406, %v398
        %v527 = vpack.c.b16 %v407, %v399
        %v528 = vpack.c.b16 %v416, %v408
        %v529 = vpack.c.b16 %v417, %v409
        %v530 = vpack.c.b16 %v418, %v410
        %v531 = vpack.c.b16 %v419, %v411
        %v532 = vpack.c.b16 %v420, %v412
        %v533 = vpack.c.b16 %v421, %v413
        %v534 = vpack.c.b16 %v422, %v414
        %v535 = vpack.c.b16 %v423, %v415
        %v536 = vpack.c.b16 %v432, %v424
        %v537 = vpack.c.b16 %v433, %v425
        %v538 = vpack.c.b16 %v434, %v426
        %v539 = vpack.c.b16 %v435, %v427
        %v540 = vpack.c.b16 %v436, %v428
        %v541 = vpack.c.b16 %v437, %v429
        %v542 = vpack.c.b16 %v438, %v430
        %v543 = vpack.c.b16 %v439, %v431
        %v544 = vpack.c.b16 %v448, %v440
        %v545 = vpack.c.b16 %v449, %v441
        %v546 = vpack.c.b16 %v450, %v442
        %v547 = vpack.c.b16 %v451, %v443
        %v548 = vpack.c.b16 %v452, %v444
        %v549 = vpack.c.b16 %v453, %v445
        %v550 = vpack.c.b16 %v454, %v446
        %v551 = vpack.c.b16 %v455, %v447
        %v552 = vpack.c.b16 %v464, %v456
        %v553 = vpack.c.b16 %v465, %v457
        %v554 = vpack.c.b16 %v466, %v458
        %v555 = vpack.c.b16 %v467, %v459
        %v556 = vpack.c.b16 %v468, %v460
        %v557 = vpack.c.b16 %v469, %v461
        %v558 = vpack.c.b16 %v470, %v462
        %v559 = vpack.c.b16 %v471, %v463
        %v560 = vpack.c.b16 %v480, %v472
        %v561 = vpack.c.b16 %v481, %v473
        %v562 = vpack.c.b16 %v482, %v474
        %v563 = vpack.c.b16 %v483, %v475
        %v564 = vpack.c.b16 %v484, %v476
        %v565 = vpack.c.b16 %v485, %v477
        %v566 = vpack.c.b16 %v486, %v478
        %v567 = vpack.c.b16 %v487, %v479
        %v568 = vpack.c.b16 %v496, %v488
        %v569 = vpack.c.b16 %v497, %v489
        %v570 = vpack.c.b16 %v498, %v490
        %v571 = vpack.c.b16 %v499, %v491
        %v572 = vpack.c.b16 %v500, %v492
        %v573 = vpack.c.b16 %v501, %v493
        %v574 = vpack.c.b16 %v502, %v494
        %v575 = vpack.c.b16 %v503, %v495
        %v576 = vpack.c.b16 %v512, %v504
        %v577 = vpack.c.b16 %v513, %v505
        %v578 = vpack.c.b16 %v514, %v506
        %v579 = vpack.c.b16 %v515, %v507
        %v580 = vpack.c.b16 %v516, %v508
        %v581 = vpack.c.b16 %v517, %v509
        %v582 = vpack.c.b16 %v518, %v510
        %v583 = vpack.c.b16 %v519, %v511
        %648 = vmatprep.subr.bf16.mxu0 %v521
        %649 = vmatpush1.bf16.msra.mxu0 %v520
        %650 = vmatprep.subr.bf16.mxu0 %v529
        %651 = vmatpush1.bf16.msra.mxu0 %v528
        %652 = vmatprep.subr.bf16.mxu0 %v537
        %653 = vmatpush1.bf16.msra.mxu0 %v536
        %654 = vmatprep.subr.bf16.mxu0 %v545
        %655 = vmatpush1.bf16.msra.mxu0 %v544
        %656 = vmatprep.subr.bf16.mxu0 %v553
        %657 = vmatpush1.bf16.msra.mxu0 %v552
        %658 = vmatprep.subr.bf16.mxu0 %v561
        %659 = vmatpush1.bf16.msra.mxu0 %v560
        %660 = vmatprep.subr.bf16.mxu0 %v569
        %661 = vmatpush1.bf16.msra.mxu0 %v568
        %662 = vmatprep.subr.bf16.mxu0 %v577
        %663 = vmatpush1.bf16.msra.mxu0 %v576
        %664 = vmatprep.subr.bf16.mxu0 0
        %665 = vmatpush1.bf16.msra.mxu0 0
        %666 = vmatprep.subr.bf16.mxu0 0
        %667 = vmatpush1.bf16.msra.mxu0 0
        %668 = vmatprep.subr.bf16.mxu0 0
        %669 = vmatpush1.bf16.msra.mxu0 0
        %670 = vmatprep.subr.bf16.mxu0 0
        %671 = vmatpush1.bf16.msra.mxu0 0
        %672 = vmatprep.subr.bf16.mxu0 0
        %673 = vmatpush1.bf16.msra.mxu0 0
        %674 = vmatprep.subr.bf16.mxu0 0
        %675 = vmatpush1.bf16.msra.mxu0 0
        %676 = vmatprep.subr.bf16.mxu0 0
        %677 = vmatpush1.bf16.msra.mxu0 0
        %678 = vmatprep.subr.bf16.mxu0 0
        %679 = vmatpush1.bf16.msra.mxu0 0
        %680 = vmatprep.mubr.bf16.mxu0 0
        %681 = vmatmul.mubr.bf16.gmra.mrb[0].mxu0 %v221
        %v682 = vpop.f32.mrb[0].mxu0
        %v683 = vadd.f32 %v291, %v682
        %v684 = vpop.f32.mrb[0].mxu0
        %v685 = vadd.f32 %v295, %v684
        %v686 = vpop.f32.mrb[0].mxu0
        %v687 = vpop.f32.mrb[0].mxu0
        %688 = vdwg.mxu0
        %689 = vmatprep.subr.bf16.mxu0 %v523
        %690 = vmatpush1.bf16.msra.mxu0 %v522
        %691 = vmatprep.subr.bf16.mxu0 %v531
        %692 = vmatpush1.bf16.msra.mxu0 %v530
        %693 = vmatprep.subr.bf16.mxu0 %v539
        %694 = vmatpush1.bf16.msra.mxu0 %v538
        %695 = vmatprep.subr.bf16.mxu0 %v547
        %696 = vmatpush1.bf16.msra.mxu0 %v546
        %697 = vmatprep.subr.bf16.mxu0 %v555
        %698 = vmatpush1.bf16.msra.mxu0 %v554
        %699 = vmatprep.subr.bf16.mxu0 %v563
        %700 = vmatpush1.bf16.msra.mxu0 %v562
        %701 = vmatprep.subr.bf16.mxu0 %v571
        %702 = vmatpush1.bf16.msra.mxu0 %v570
        %703 = vmatprep.subr.bf16.mxu0 %v579
        %704 = vmatpush1.bf16.msra.mxu0 %v578
        %705 = vmatprep.subr.bf16.mxu0 0
        %706 = vmatpush1.bf16.msra.mxu0 0
        %707 = vmatprep.subr.bf16.mxu0 0
        %708 = vmatpush1.bf16.msra.mxu0 0
        %709 = vmatprep.subr.bf16.mxu0 0
        %710 = vmatpush1.bf16.msra.mxu0 0
        %711 = vmatprep.subr.bf16.mxu0 0
        %712 = vmatpush1.bf16.msra.mxu0 0
        %713 = vmatprep.subr.bf16.mxu0 0
        %714 = vmatpush1.bf16.msra.mxu0 0
        %715 = vmatprep.subr.bf16.mxu0 0
        %716 = vmatpush1.bf16.msra.mxu0 0
        %717 = vmatprep.subr.bf16.mxu0 0
        %718 = vmatpush1.bf16.msra.mxu0 0
        %719 = vmatprep.subr.bf16.mxu0 0
        %720 = vmatpush1.bf16.msra.mxu0 0
        %721 = vmatprep.mubr.bf16.mxu0 0
        %722 = vmatmul.mubr.bf16.gmra.mrb[0].mxu0 %v221
        %v723 = vpop.f32.mrb[0].mxu0
        %v724 = vadd.f32 %v299, %v723
        %v725 = vpop.f32.mrb[0].mxu0
        %v726 = vadd.f32 %v303, %v725
        %v727 = vpop.f32.mrb[0].mxu0
        %v728 = vpop.f32.mrb[0].mxu0
        %729 = vdwg.mxu0
        %730 = vmatprep.subr.bf16.mxu0 %v525
        %731 = vmatpush1.bf16.msra.mxu0 %v524
        %732 = vmatprep.subr.bf16.mxu0 %v533
        %733 = vmatpush1.bf16.msra.mxu0 %v532
        %734 = vmatprep.subr.bf16.mxu0 %v541
        %735 = vmatpush1.bf16.msra.mxu0 %v540
        %736 = vmatprep.subr.bf16.mxu0 %v549
        %737 = vmatpush1.bf16.msra.mxu0 %v548
        %738 = vmatprep.subr.bf16.mxu0 %v557
        %739 = vmatpush1.bf16.msra.mxu0 %v556
        %740 = vmatprep.subr.bf16.mxu0 %v565
        %741 = vmatpush1.bf16.msra.mxu0 %v564
        %742 = vmatprep.subr.bf16.mxu0 %v573
        %743 = vmatpush1.bf16.msra.mxu0 %v572
        %744 = vmatprep.subr.bf16.mxu0 %v581
        %745 = vmatpush1.bf16.msra.mxu0 %v580
        %746 = vmatprep.subr.bf16.mxu0 0
        %747 = vmatpush1.bf16.msra.mxu0 0
        %748 = vmatprep.subr.bf16.mxu0 0
        %749 = vmatpush1.bf16.msra.mxu0 0
        %750 = vmatprep.subr.bf16.mxu0 0
        %751 = vmatpush1.bf16.msra.mxu0 0
        %752 = vmatprep.subr.bf16.mxu0 0
        %753 = vmatpush1.bf16.msra.mxu0 0
        %754 = vmatprep.subr.bf16.mxu0 0
        %755 = vmatpush1.bf16.msra.mxu0 0
        %756 = vmatprep.subr.bf16.mxu0 0
        %757 = vmatpush1.bf16.msra.mxu0 0
        %758 = vmatprep.subr.bf16.mxu0 0
        %759 = vmatpush1.bf16.msra.mxu0 0
        %760 = vmatprep.subr.bf16.mxu0 0
        %761 = vmatpush1.bf16.msra.mxu0 0
        %762 = vmatprep.mubr.bf16.mxu0 0
        %763 = vmatmul.mubr.bf16.gmra.mrb[0].mxu0 %v221
        %v764 = vpop.f32.mrb[0].mxu0
        %v765 = vadd.f32 %v307, %v764
        %v766 = vpop.f32.mrb[0].mxu0
        %v767 = vadd.f32 %v311, %v766
        %v768 = vpop.f32.mrb[0].mxu0
        %v769 = vpop.f32.mrb[0].mxu0
        %770 = vdwg.mxu0
        %771 = vmatprep.subr.bf16.mxu0 %v527
        %772 = vmatpush1.bf16.msra.mxu0 %v526
        %773 = vmatprep.subr.bf16.mxu0 %v535
        %774 = vmatpush1.bf16.msra.mxu0 %v534
        %775 = vmatprep.subr.bf16.mxu0 %v543
        %776 = vmatpush1.bf16.msra.mxu0 %v542
        %777 = vmatprep.subr.bf16.mxu0 %v551
        %778 = vmatpush1.bf16.msra.mxu0 %v550
        %779 = vmatprep.subr.bf16.mxu0 %v559
        %780 = vmatpush1.bf16.msra.mxu0 %v558
        %781 = vmatprep.subr.bf16.mxu0 %v567
        %782 = vmatpush1.bf16.msra.mxu0 %v566
        %783 = vmatprep.subr.bf16.mxu0 %v575
        %784 = vmatpush1.bf16.msra.mxu0 %v574
        %785 = vmatprep.subr.bf16.mxu0 %v583
        %786 = vmatpush1.bf16.msra.mxu0 %v582
        %787 = vmatprep.subr.bf16.mxu0 0
        %788 = vmatpush1.bf16.msra.mxu0 0
        %789 = vmatprep.subr.bf16.mxu0 0
        %790 = vmatpush1.bf16.msra.mxu0 0
        %791 = vmatprep.subr.bf16.mxu0 0
        %792 = vmatpush1.bf16.msra.mxu0 0
        %793 = vmatprep.subr.bf16.mxu0 0
        %794 = vmatpush1.bf16.msra.mxu0 0
        %795 = vmatprep.subr.bf16.mxu0 0
        %796 = vmatpush1.bf16.msra.mxu0 0
        %797 = vmatprep.subr.bf16.mxu0 0
        %798 = vmatpush1.bf16.msra.mxu0 0
        %799 = vmatprep.subr.bf16.mxu0 0
        %800 = vmatpush1.bf16.msra.mxu0 0
        %801 = vmatprep.subr.bf16.mxu0 0
        %802 = vmatpush1.bf16.msra.mxu0 0
        %803 = vmatprep.mubr.bf16.mxu0 0
        %804 = vmatmul.mubr.bf16.gmra.mrb[0].mxu0 %v221
        %v805 = vpop.f32.mrb[0].mxu0
        %v806 = vadd.f32 %v315, %v805
        %v807 = vpop.f32.mrb[0].mxu0
        %v808 = vadd.f32 %v319, %v807
        %v809 = vpop.f32.mrb[0].mxu0
        %v810 = vpop.f32.mrb[0].mxu0
        %811 = vdwg.mxu0
        %v812 = vmax.f32 %v683, 0.0
        %v813 = vmax.f32 %v685, 0.0
        %v814 = vmax.f32 %v724, 0.0
        %v815 = vmax.f32 %v726, 0.0
        %v816 = vmax.f32 %v765, 0.0
        %v817 = vmax.f32 %v767, 0.0
        %v818 = vmax.f32 %v806, 0.0
        %v819 = vmax.f32 %v808, 0.0
        %v820 = vpack.c.bf16 %v812, %v812
        %v821 = vpack.c.bf16 %v813, %v813
        %v822 = vpack.c.bf16 %v814, %v814
        %v823 = vpack.c.bf16 %v815, %v815
        %v824 = vpack.c.bf16 %v816, %v816
        %v825 = vpack.c.bf16 %v817, %v817
        %v826 = vpack.c.bf16 %v818, %v818
        %v827 = vpack.c.bf16 %v819, %v819
        %v828 = vld [vmem:[%s3] sm:$0xff]
        %v829 = vld [vmem:[%s3 + $0x8] sm:$0xff]
        %v830 = vld [vmem:[%s3 + $0x10] sm:$0xff]
        %v831 = vld [vmem:[%s3 + $0x18] sm:$0xff]
        %v832 = vld [vmem:[%s3 + $0x20] sm:$0xff]
        %v833 = vld [vmem:[%s3 + $0x28] sm:$0xff]
        %v834 = vld [vmem:[%s3 + $0x30] sm:$0xff]
        %v835 = vld [vmem:[%s3 + $0x38] sm:$0xff]
        %v836 = vld [vmem:[%s3 + $0x40] sm:$0xff]
        %v837 = vld [vmem:[%s3 + $0x48] sm:$0xff]
        %v838 = vld [vmem:[%s3 + $0x50] sm:$0xff]
        %v839 = vld [vmem:[%s3 + $0x58] sm:$0xff]
        %v840 = vld [vmem:[%s3 + $0x60] sm:$0xff]
        %v841 = vld [vmem:[%s3 + $0x68] sm:$0xff]
        %v842 = vld [vmem:[%s3 + $0x70] sm:$0xff]
        %v843 = vld [vmem:[%s3 + $0x78] sm:$0xff]
        %v844 = vld [vmem:[%s3 + $0x80] sm:$0xff]
        %v845 = vld [vmem:[%s3 + $0x88] sm:$0xff]
        %v846 = vld [vmem:[%s3 + $0x90] sm:$0xff]
        %v847 = vld [vmem:[%s3 + $0x98] sm:$0xff]
        %v848 = vld [vmem:[%s3 + $0xa0] sm:$0xff]
        %v849 = vld [vmem:[%s3 + $0xa8] sm:$0xff]
        %v850 = vld [vmem:[%s3 + $0xb0] sm:$0xff]
        %v851 = vld [vmem:[%s3 + $0xb8] sm:$0xff]
        %v852 = vld [vmem:[%s3 + $0xc0] sm:$0xff]
        %v853 = vld [vmem:[%s3 + $0xc8] sm:$0xff]
        %v854 = vld [vmem:[%s3 + $0xd0] sm:$0xff]
        %v855 = vld [vmem:[%s3 + $0xd8] sm:$0xff]
        %v856 = vld [vmem:[%s3 + $0xe0] sm:$0xff]
        %v857 = vld [vmem:[%s3 + $0xe8] sm:$0xff]
        %v858 = vld [vmem:[%s3 + $0xf0] sm:$0xff]
        %v859 = vld [vmem:[%s3 + $0xf8] sm:$0xff]
        %v860 = vld [vmem:[%s3 + $0x100] sm:$0xff]
        %v861 = vld [vmem:[%s3 + $0x108] sm:$0xff]
        %v862 = vld [vmem:[%s3 + $0x110] sm:$0xff]
        %v863 = vld [vmem:[%s3 + $0x118] sm:$0xff]
        %v864 = vld [vmem:[%s3 + $0x120] sm:$0xff]
        %v865 = vld [vmem:[%s3 + $0x128] sm:$0xff]
        %v866 = vld [vmem:[%s3 + $0x130] sm:$0xff]
        %v867 = vld [vmem:[%s3 + $0x138] sm:$0xff]
        %v868 = vld [vmem:[%s3 + $0x140] sm:$0xff]
        %v869 = vld [vmem:[%s3 + $0x148] sm:$0xff]
        %v870 = vld [vmem:[%s3 + $0x150] sm:$0xff]
        %v871 = vld [vmem:[%s3 + $0x158] sm:$0xff]
        %v872 = vld [vmem:[%s3 + $0x160] sm:$0xff]
        %v873 = vld [vmem:[%s3 + $0x168] sm:$0xff]
        %v874 = vld [vmem:[%s3 + $0x170] sm:$0xff]
        %v875 = vld [vmem:[%s3 + $0x178] sm:$0xff]
        %v876 = vld [vmem:[%s3 + $0x180] sm:$0xff]
        %v877 = vld [vmem:[%s3 + $0x188] sm:$0xff]
        %v878 = vld [vmem:[%s3 + $0x190] sm:$0xff]
        %v879 = vld [vmem:[%s3 + $0x198] sm:$0xff]
        %v880 = vld [vmem:[%s3 + $0x1a0] sm:$0xff]
        %v881 = vld [vmem:[%s3 + $0x1a8] sm:$0xff]
        %v882 = vld [vmem:[%s3 + $0x1b0] sm:$0xff]
        %v883 = vld [vmem:[%s3 + $0x1b8] sm:$0xff]
        %v884 = vld [vmem:[%s3 + $0x1c0] sm:$0xff]
        %v885 = vld [vmem:[%s3 + $0x1c8] sm:$0xff]
        %v886 = vld [vmem:[%s3 + $0x1d0] sm:$0xff]
        %v887 = vld [vmem:[%s3 + $0x1d8] sm:$0xff]
        %v888 = vld [vmem:[%s3 + $0x1e0] sm:$0xff]
        %v889 = vld [vmem:[%s3 + $0x1e8] sm:$0xff]
        %v890 = vld [vmem:[%s3 + $0x1f0] sm:$0xff]
        %v891 = vld [vmem:[%s3 + $0x1f8] sm:$0xff]
        %v892 = vld [vmem:[%s3 + $0x200] sm:$0xff]
        %v893 = vld [vmem:[%s3 + $0x208] sm:$0xff]
        %v894 = vld [vmem:[%s3 + $0x210] sm:$0xff]
        %v895 = vld [vmem:[%s3 + $0x218] sm:$0xff]
        %v896 = vld [vmem:[%s3 + $0x220] sm:$0xff]
        %v897 = vld [vmem:[%s3 + $0x228] sm:$0xff]
        %v898 = vld [vmem:[%s3 + $0x230] sm:$0xff]
        %v899 = vld [vmem:[%s3 + $0x238] sm:$0xff]
        %v900 = vld [vmem:[%s3 + $0x240] sm:$0xff]
        %v901 = vld [vmem:[%s3 + $0x248] sm:$0xff]
        %v902 = vld [vmem:[%s3 + $0x250] sm:$0xff]
        %v903 = vld [vmem:[%s3 + $0x258] sm:$0xff]
        %v904 = vld [vmem:[%s3 + $0x260] sm:$0xff]
        %v905 = vld [vmem:[%s3 + $0x268] sm:$0xff]
        %v906 = vld [vmem:[%s3 + $0x270] sm:$0xff]
        %v907 = vld [vmem:[%s3 + $0x278] sm:$0xff]
        %v908 = vld [vmem:[%s3 + $0x280] sm:$0xff]
        %v909 = vld [vmem:[%s3 + $0x288] sm:$0xff]
        %v910 = vld [vmem:[%s3 + $0x290] sm:$0xff]
        %v911 = vld [vmem:[%s3 + $0x298] sm:$0xff]
        %v912 = vld [vmem:[%s3 + $0x2a0] sm:$0xff]
        %v913 = vld [vmem:[%s3 + $0x2a8] sm:$0xff]
        %v914 = vld [vmem:[%s3 + $0x2b0] sm:$0xff]
        %v915 = vld [vmem:[%s3 + $0x2b8] sm:$0xff]
        %v916 = vld [vmem:[%s3 + $0x2c0] sm:$0xff]
        %v917 = vld [vmem:[%s3 + $0x2c8] sm:$0xff]
        %v918 = vld [vmem:[%s3 + $0x2d0] sm:$0xff]
        %v919 = vld [vmem:[%s3 + $0x2d8] sm:$0xff]
        %v920 = vld [vmem:[%s3 + $0x2e0] sm:$0xff]
        %v921 = vld [vmem:[%s3 + $0x2e8] sm:$0xff]
        %v922 = vld [vmem:[%s3 + $0x2f0] sm:$0xff]
        %v923 = vld [vmem:[%s3 + $0x2f8] sm:$0xff]
        %v924 = vld [vmem:[%s3 + $0x300] sm:$0xff]
        %v925 = vld [vmem:[%s3 + $0x308] sm:$0xff]
        %v926 = vld [vmem:[%s3 + $0x310] sm:$0xff]
        %v927 = vld [vmem:[%s3 + $0x318] sm:$0xff]
        %v928 = vld [vmem:[%s3 + $0x320] sm:$0xff]
        %v929 = vld [vmem:[%s3 + $0x328] sm:$0xff]
        %v930 = vld [vmem:[%s3 + $0x330] sm:$0xff]
        %v931 = vld [vmem:[%s3 + $0x338] sm:$0xff]
        %v932 = vld [vmem:[%s3 + $0x340] sm:$0xff]
        %v933 = vld [vmem:[%s3 + $0x348] sm:$0xff]
        %v934 = vld [vmem:[%s3 + $0x350] sm:$0xff]
        %v935 = vld [vmem:[%s3 + $0x358] sm:$0xff]
        %v936 = vld [vmem:[%s3 + $0x360] sm:$0xff]
        %v937 = vld [vmem:[%s3 + $0x368] sm:$0xff]
        %v938 = vld [vmem:[%s3 + $0x370] sm:$0xff]
        %v939 = vld [vmem:[%s3 + $0x378] sm:$0xff]
        %v940 = vld [vmem:[%s3 + $0x380] sm:$0xff]
        %v941 = vld [vmem:[%s3 + $0x388] sm:$0xff]
        %v942 = vld [vmem:[%s3 + $0x390] sm:$0xff]
        %v943 = vld [vmem:[%s3 + $0x398] sm:$0xff]
        %v944 = vld [vmem:[%s3 + $0x3a0] sm:$0xff]
        %v945 = vld [vmem:[%s3 + $0x3a8] sm:$0xff]
        %v946 = vld [vmem:[%s3 + $0x3b0] sm:$0xff]
        %v947 = vld [vmem:[%s3 + $0x3b8] sm:$0xff]
        %v948 = vld [vmem:[%s3 + $0x3c0] sm:$0xff]
        %v949 = vld [vmem:[%s3 + $0x3c8] sm:$0xff]
        %v950 = vld [vmem:[%s3 + $0x3d0] sm:$0xff]
        %v951 = vld [vmem:[%s3 + $0x3d8] sm:$0xff]
        %v952 = vld [vmem:[%s3 + $0x3e0] sm:$0xff]
        %v953 = vld [vmem:[%s3 + $0x3e8] sm:$0xff]
        %v954 = vld [vmem:[%s3 + $0x3f0] sm:$0xff]
        %v955 = vld [vmem:[%s3 + $0x3f8] sm:$0xff]
        %v956 = vld [vmem:[%s3 + $0x400] sm:$0xff]
        %v957 = vld [vmem:[%s3 + $0x408] sm:$0xff]
        %v958 = vld [vmem:[%s3 + $0x410] sm:$0xff]
        %v959 = vld [vmem:[%s3 + $0x418] sm:$0xff]
        %v960 = vld [vmem:[%s3 + $0x420] sm:$0xff]
        %v961 = vld [vmem:[%s3 + $0x428] sm:$0xff]
        %v962 = vld [vmem:[%s3 + $0x430] sm:$0xff]
        %v963 = vld [vmem:[%s3 + $0x438] sm:$0xff]
        %v964 = vld [vmem:[%s3 + $0x440] sm:$0xff]
        %v965 = vld [vmem:[%s3 + $0x448] sm:$0xff]
        %v966 = vld [vmem:[%s3 + $0x450] sm:$0xff]
        %v967 = vld [vmem:[%s3 + $0x458] sm:$0xff]
        %v968 = vld [vmem:[%s3 + $0x460] sm:$0xff]
        %v969 = vld [vmem:[%s3 + $0x468] sm:$0xff]
        %v970 = vld [vmem:[%s3 + $0x470] sm:$0xff]
        %v971 = vld [vmem:[%s3 + $0x478] sm:$0xff]
        %v972 = vld [vmem:[%s3 + $0x480] sm:$0xff]
        %v973 = vld [vmem:[%s3 + $0x488] sm:$0xff]
        %v974 = vld [vmem:[%s3 + $0x490] sm:$0xff]
        %v975 = vld [vmem:[%s3 + $0x498] sm:$0xff]
        %v976 = vld [vmem:[%s3 + $0x4a0] sm:$0xff]
        %v977 = vld [vmem:[%s3 + $0x4a8] sm:$0xff]
        %v978 = vld [vmem:[%s3 + $0x4b0] sm:$0xff]
        %v979 = vld [vmem:[%s3 + $0x4b8] sm:$0xff]
        %v980 = vld [vmem:[%s3 + $0x4c0] sm:$0xff]
        %v981 = vld [vmem:[%s3 + $0x4c8] sm:$0xff]
        %v982 = vld [vmem:[%s3 + $0x4d0] sm:$0xff]
        %v983 = vld [vmem:[%s3 + $0x4d8] sm:$0xff]
        %v984 = vld [vmem:[%s3 + $0x4e0] sm:$0xff]
        %v985 = vld [vmem:[%s3 + $0x4e8] sm:$0xff]
        %v986 = vld [vmem:[%s3 + $0x4f0] sm:$0xff]
        %v987 = vld [vmem:[%s3 + $0x4f8] sm:$0xff]
        %v988 = vld [vmem:[%s3 + $0x500] sm:$0xff]
        %v989 = vld [vmem:[%s3 + $0x508] sm:$0xff]
        %v990 = vld [vmem:[%s3 + $0x510] sm:$0xff]
        %v991 = vld [vmem:[%s3 + $0x518] sm:$0xff]
        %v992 = vld [vmem:[%s3 + $0x520] sm:$0xff]
        %v993 = vld [vmem:[%s3 + $0x528] sm:$0xff]
        %v994 = vld [vmem:[%s3 + $0x530] sm:$0xff]
        %v995 = vld [vmem:[%s3 + $0x538] sm:$0xff]
        %v996 = vld [vmem:[%s3 + $0x540] sm:$0xff]
        %v997 = vld [vmem:[%s3 + $0x548] sm:$0xff]
        %v998 = vld [vmem:[%s3 + $0x550] sm:$0xff]
        %v999 = vld [vmem:[%s3 + $0x558] sm:$0xff]
        %v1000 = vld [vmem:[%s3 + $0x560] sm:$0xff]
        %v1001 = vld [vmem:[%s3 + $0x568] sm:$0xff]
        %v1002 = vld [vmem:[%s3 + $0x570] sm:$0xff]
        %v1003 = vld [vmem:[%s3 + $0x578] sm:$0xff]
        %v1004 = vld [vmem:[%s3 + $0x580] sm:$0xff]
        %v1005 = vld [vmem:[%s3 + $0x588] sm:$0xff]
        %v1006 = vld [vmem:[%s3 + $0x590] sm:$0xff]
        %v1007 = vld [vmem:[%s3 + $0x598] sm:$0xff]
        %v1008 = vld [vmem:[%s3 + $0x5a0] sm:$0xff]
        %v1009 = vld [vmem:[%s3 + $0x5a8] sm:$0xff]
        %v1010 = vld [vmem:[%s3 + $0x5b0] sm:$0xff]
        %v1011 = vld [vmem:[%s3 + $0x5b8] sm:$0xff]
        %v1012 = vld [vmem:[%s3 + $0x5c0] sm:$0xff]
        %v1013 = vld [vmem:[%s3 + $0x5c8] sm:$0xff]
        %v1014 = vld [vmem:[%s3 + $0x5d0] sm:$0xff]
        %v1015 = vld [vmem:[%s3 + $0x5d8] sm:$0xff]
        %v1016 = vld [vmem:[%s3 + $0x5e0] sm:$0xff]
        %v1017 = vld [vmem:[%s3 + $0x5e8] sm:$0xff]
        %v1018 = vld [vmem:[%s3 + $0x5f0] sm:$0xff]
        %v1019 = vld [vmem:[%s3 + $0x5f8] sm:$0xff]
        %v1020 = vld [vmem:[%s3 + $0x600] sm:$0xff]
        %v1021 = vld [vmem:[%s3 + $0x608] sm:$0xff]
        %v1022 = vld [vmem:[%s3 + $0x610] sm:$0xff]
        %v1023 = vld [vmem:[%s3 + $0x618] sm:$0xff]
        %v1024 = vld [vmem:[%s3 + $0x620] sm:$0xff]
        %v1025 = vld [vmem:[%s3 + $0x628] sm:$0xff]
        %v1026 = vld [vmem:[%s3 + $0x630] sm:$0xff]
        %v1027 = vld [vmem:[%s3 + $0x638] sm:$0xff]
        %v1028 = vld [vmem:[%s3 + $0x640] sm:$0xff]
        %v1029 = vld [vmem:[%s3 + $0x648] sm:$0xff]
        %v1030 = vld [vmem:[%s3 + $0x650] sm:$0xff]
        %v1031 = vld [vmem:[%s3 + $0x658] sm:$0xff]
        %v1032 = vld [vmem:[%s3 + $0x660] sm:$0xff]
        %v1033 = vld [vmem:[%s3 + $0x668] sm:$0xff]
        %v1034 = vld [vmem:[%s3 + $0x670] sm:$0xff]
        %v1035 = vld [vmem:[%s3 + $0x678] sm:$0xff]
        %v1036 = vld [vmem:[%s3 + $0x680] sm:$0xff]
        %v1037 = vld [vmem:[%s3 + $0x688] sm:$0xff]
        %v1038 = vld [vmem:[%s3 + $0x690] sm:$0xff]
        %v1039 = vld [vmem:[%s3 + $0x698] sm:$0xff]
        %v1040 = vld [vmem:[%s3 + $0x6a0] sm:$0xff]
        %v1041 = vld [vmem:[%s3 + $0x6a8] sm:$0xff]
        %v1042 = vld [vmem:[%s3 + $0x6b0] sm:$0xff]
        %v1043 = vld [vmem:[%s3 + $0x6b8] sm:$0xff]
        %v1044 = vld [vmem:[%s3 + $0x6c0] sm:$0xff]
        %v1045 = vld [vmem:[%s3 + $0x6c8] sm:$0xff]
        %v1046 = vld [vmem:[%s3 + $0x6d0] sm:$0xff]
        %v1047 = vld [vmem:[%s3 + $0x6d8] sm:$0xff]
        %v1048 = vld [vmem:[%s3 + $0x6e0] sm:$0xff]
        %v1049 = vld [vmem:[%s3 + $0x6e8] sm:$0xff]
        %v1050 = vld [vmem:[%s3 + $0x6f0] sm:$0xff]
        %v1051 = vld [vmem:[%s3 + $0x6f8] sm:$0xff]
        %v1052 = vld [vmem:[%s3 + $0x700] sm:$0xff]
        %v1053 = vld [vmem:[%s3 + $0x708] sm:$0xff]
        %v1054 = vld [vmem:[%s3 + $0x710] sm:$0xff]
        %v1055 = vld [vmem:[%s3 + $0x718] sm:$0xff]
        %v1056 = vld [vmem:[%s3 + $0x720] sm:$0xff]
        %v1057 = vld [vmem:[%s3 + $0x728] sm:$0xff]
        %v1058 = vld [vmem:[%s3 + $0x730] sm:$0xff]
        %v1059 = vld [vmem:[%s3 + $0x738] sm:$0xff]
        %v1060 = vld [vmem:[%s3 + $0x740] sm:$0xff]
        %v1061 = vld [vmem:[%s3 + $0x748] sm:$0xff]
        %v1062 = vld [vmem:[%s3 + $0x750] sm:$0xff]
        %v1063 = vld [vmem:[%s3 + $0x758] sm:$0xff]
        %v1064 = vld [vmem:[%s3 + $0x760] sm:$0xff]
        %v1065 = vld [vmem:[%s3 + $0x768] sm:$0xff]
        %v1066 = vld [vmem:[%s3 + $0x770] sm:$0xff]
        %v1067 = vld [vmem:[%s3 + $0x778] sm:$0xff]
        %v1068 = vld [vmem:[%s3 + $0x780] sm:$0xff]
        %v1069 = vld [vmem:[%s3 + $0x788] sm:$0xff]
        %v1070 = vld [vmem:[%s3 + $0x790] sm:$0xff]
        %v1071 = vld [vmem:[%s3 + $0x798] sm:$0xff]
        %v1072 = vld [vmem:[%s3 + $0x7a0] sm:$0xff]
        %v1073 = vld [vmem:[%s3 + $0x7a8] sm:$0xff]
        %v1074 = vld [vmem:[%s3 + $0x7b0] sm:$0xff]
        %v1075 = vld [vmem:[%s3 + $0x7b8] sm:$0xff]
        %v1076 = vld [vmem:[%s3 + $0x7c0] sm:$0xff]
        %v1077 = vld [vmem:[%s3 + $0x7c8] sm:$0xff]
        %v1078 = vld [vmem:[%s3 + $0x7d0] sm:$0xff]
        %v1079 = vld [vmem:[%s3 + $0x7d8] sm:$0xff]
        %v1080 = vld [vmem:[%s3 + $0x7e0] sm:$0xff]
        %v1081 = vld [vmem:[%s3 + $0x7e8] sm:$0xff]
        %v1082 = vld [vmem:[%s3 + $0x7f0] sm:$0xff]
        %v1083 = vld [vmem:[%s3 + $0x7f8] sm:$0xff]
        %v1084 = vld [vmem:[%s3 + $0x800] sm:$0xff]
        %v1085 = vld [vmem:[%s3 + $0x808] sm:$0xff]
        %v1086 = vld [vmem:[%s3 + $0x810] sm:$0xff]
        %v1087 = vld [vmem:[%s3 + $0x818] sm:$0xff]
        %v1088 = vld [vmem:[%s3 + $0x820] sm:$0xff]
        %v1089 = vld [vmem:[%s3 + $0x828] sm:$0xff]
        %v1090 = vld [vmem:[%s3 + $0x830] sm:$0xff]
        %v1091 = vld [vmem:[%s3 + $0x838] sm:$0xff]
        %v1092 = vld [vmem:[%s3 + $0x840] sm:$0xff]
        %v1093 = vld [vmem:[%s3 + $0x848] sm:$0xff]
        %v1094 = vld [vmem:[%s3 + $0x850] sm:$0xff]
        %v1095 = vld [vmem:[%s3 + $0x858] sm:$0xff]
        %v1096 = vld [vmem:[%s3 + $0x860] sm:$0xff]
        %v1097 = vld [vmem:[%s3 + $0x868] sm:$0xff]
        %v1098 = vld [vmem:[%s3 + $0x870] sm:$0xff]
        %v1099 = vld [vmem:[%s3 + $0x878] sm:$0xff]
        %v1100 = vld [vmem:[%s3 + $0x880] sm:$0xff]
        %v1101 = vld [vmem:[%s3 + $0x888] sm:$0xff]
        %v1102 = vld [vmem:[%s3 + $0x890] sm:$0xff]
        %v1103 = vld [vmem:[%s3 + $0x898] sm:$0xff]
        %v1104 = vld [vmem:[%s3 + $0x8a0] sm:$0xff]
        %v1105 = vld [vmem:[%s3 + $0x8a8] sm:$0xff]
        %v1106 = vld [vmem:[%s3 + $0x8b0] sm:$0xff]
        %v1107 = vld [vmem:[%s3 + $0x8b8] sm:$0xff]
        %v1108 = vld [vmem:[%s3 + $0x8c0] sm:$0xff]
        %v1109 = vld [vmem:[%s3 + $0x8c8] sm:$0xff]
        %v1110 = vld [vmem:[%s3 + $0x8d0] sm:$0xff]
        %v1111 = vld [vmem:[%s3 + $0x8d8] sm:$0xff]
        %v1112 = vld [vmem:[%s3 + $0x8e0] sm:$0xff]
        %v1113 = vld [vmem:[%s3 + $0x8e8] sm:$0xff]
        %v1114 = vld [vmem:[%s3 + $0x8f0] sm:$0xff]
        %v1115 = vld [vmem:[%s3 + $0x8f8] sm:$0xff]
        %v1116 = vld [vmem:[%s3 + $0x900] sm:$0xff]
        %v1117 = vld [vmem:[%s3 + $0x908] sm:$0xff]
        %v1118 = vld [vmem:[%s3 + $0x910] sm:$0xff]
        %v1119 = vld [vmem:[%s3 + $0x918] sm:$0xff]
        %v1120 = vld [vmem:[%s3 + $0x920] sm:$0xff]
        %v1121 = vld [vmem:[%s3 + $0x928] sm:$0xff]
        %v1122 = vld [vmem:[%s3 + $0x930] sm:$0xff]
        %v1123 = vld [vmem:[%s3 + $0x938] sm:$0xff]
        %v1124 = vld [vmem:[%s3 + $0x940] sm:$0xff]
        %v1125 = vld [vmem:[%s3 + $0x948] sm:$0xff]
        %v1126 = vld [vmem:[%s3 + $0x950] sm:$0xff]
        %v1127 = vld [vmem:[%s3 + $0x958] sm:$0xff]
        %v1128 = vld [vmem:[%s3 + $0x960] sm:$0xff]
        %v1129 = vld [vmem:[%s3 + $0x968] sm:$0xff]
        %v1130 = vld [vmem:[%s3 + $0x970] sm:$0xff]
        %v1131 = vld [vmem:[%s3 + $0x978] sm:$0xff]
        %v1132 = vld [vmem:[%s3 + $0x980] sm:$0xff]
        %v1133 = vld [vmem:[%s3 + $0x988] sm:$0xff]
        %v1134 = vld [vmem:[%s3 + $0x990] sm:$0xff]
        %v1135 = vld [vmem:[%s3 + $0x998] sm:$0xff]
        %v1136 = vld [vmem:[%s3 + $0x9a0] sm:$0xff]
        %v1137 = vld [vmem:[%s3 + $0x9a8] sm:$0xff]
        %v1138 = vld [vmem:[%s3 + $0x9b0] sm:$0xff]
        %v1139 = vld [vmem:[%s3 + $0x9b8] sm:$0xff]
        %v1140 = vld [vmem:[%s3 + $0x9c0] sm:$0xff]
        %v1141 = vld [vmem:[%s3 + $0x9c8] sm:$0xff]
        %v1142 = vld [vmem:[%s3 + $0x9d0] sm:$0xff]
        %v1143 = vld [vmem:[%s3 + $0x9d8] sm:$0xff]
        %v1144 = vld [vmem:[%s3 + $0x9e0] sm:$0xff]
        %v1145 = vld [vmem:[%s3 + $0x9e8] sm:$0xff]
        %v1146 = vld [vmem:[%s3 + $0x9f0] sm:$0xff]
        %v1147 = vld [vmem:[%s3 + $0x9f8] sm:$0xff]
        %v1148 = vld [vmem:[%s3 + $0xa00] sm:$0xff]
        %v1149 = vld [vmem:[%s3 + $0xa08] sm:$0xff]
        %v1150 = vld [vmem:[%s3 + $0xa10] sm:$0xff]
        %v1151 = vld [vmem:[%s3 + $0xa18] sm:$0xff]
        %v1152 = vld [vmem:[%s3 + $0xa20] sm:$0xff]
        %v1153 = vld [vmem:[%s3 + $0xa28] sm:$0xff]
        %v1154 = vld [vmem:[%s3 + $0xa30] sm:$0xff]
        %v1155 = vld [vmem:[%s3 + $0xa38] sm:$0xff]
        %v1156 = vld [vmem:[%s3 + $0xa40] sm:$0xff]
        %v1157 = vld [vmem:[%s3 + $0xa48] sm:$0xff]
        %v1158 = vld [vmem:[%s3 + $0xa50] sm:$0xff]
        %v1159 = vld [vmem:[%s3 + $0xa58] sm:$0xff]
        %v1160 = vld [vmem:[%s3 + $0xa60] sm:$0xff]
        %v1161 = vld [vmem:[%s3 + $0xa68] sm:$0xff]
        %v1162 = vld [vmem:[%s3 + $0xa70] sm:$0xff]
        %v1163 = vld [vmem:[%s3 + $0xa78] sm:$0xff]
        %v1164 = vld [vmem:[%s3 + $0xa80] sm:$0xff]
        %v1165 = vld [vmem:[%s3 + $0xa88] sm:$0xff]
        %v1166 = vld [vmem:[%s3 + $0xa90] sm:$0xff]
        %v1167 = vld [vmem:[%s3 + $0xa98] sm:$0xff]
        %v1168 = vld [vmem:[%s3 + $0xaa0] sm:$0xff]
        %v1169 = vld [vmem:[%s3 + $0xaa8] sm:$0xff]
        %v1170 = vld [vmem:[%s3 + $0xab0] sm:$0xff]
        %v1171 = vld [vmem:[%s3 + $0xab8] sm:$0xff]
        %v1172 = vld [vmem:[%s3 + $0xac0] sm:$0xff]
        %v1173 = vld [vmem:[%s3 + $0xac8] sm:$0xff]
        %v1174 = vld [vmem:[%s3 + $0xad0] sm:$0xff]
        %v1175 = vld [vmem:[%s3 + $0xad8] sm:$0xff]
        %v1176 = vld [vmem:[%s3 + $0xae0] sm:$0xff]
        %v1177 = vld [vmem:[%s3 + $0xae8] sm:$0xff]
        %v1178 = vld [vmem:[%s3 + $0xaf0] sm:$0xff]
        %v1179 = vld [vmem:[%s3 + $0xaf8] sm:$0xff]
        %v1180 = vld [vmem:[%s3 + $0xb00] sm:$0xff]
        %v1181 = vld [vmem:[%s3 + $0xb08] sm:$0xff]
        %v1182 = vld [vmem:[%s3 + $0xb10] sm:$0xff]
        %v1183 = vld [vmem:[%s3 + $0xb18] sm:$0xff]
        %v1184 = vld [vmem:[%s3 + $0xb20] sm:$0xff]
        %v1185 = vld [vmem:[%s3 + $0xb28] sm:$0xff]
        %v1186 = vld [vmem:[%s3 + $0xb30] sm:$0xff]
        %v1187 = vld [vmem:[%s3 + $0xb38] sm:$0xff]
        %v1188 = vld [vmem:[%s3 + $0xb40] sm:$0xff]
        %v1189 = vld [vmem:[%s3 + $0xb48] sm:$0xff]
        %v1190 = vld [vmem:[%s3 + $0xb50] sm:$0xff]
        %v1191 = vld [vmem:[%s3 + $0xb58] sm:$0xff]
        %v1192 = vld [vmem:[%s3 + $0xb60] sm:$0xff]
        %v1193 = vld [vmem:[%s3 + $0xb68] sm:$0xff]
        %v1194 = vld [vmem:[%s3 + $0xb70] sm:$0xff]
        %v1195 = vld [vmem:[%s3 + $0xb78] sm:$0xff]
        %v1196 = vld [vmem:[%s3 + $0xb80] sm:$0xff]
        %v1197 = vld [vmem:[%s3 + $0xb88] sm:$0xff]
        %v1198 = vld [vmem:[%s3 + $0xb90] sm:$0xff]
        %v1199 = vld [vmem:[%s3 + $0xb98] sm:$0xff]
        %v1200 = vld [vmem:[%s3 + $0xba0] sm:$0xff]
        %v1201 = vld [vmem:[%s3 + $0xba8] sm:$0xff]
        %v1202 = vld [vmem:[%s3 + $0xbb0] sm:$0xff]
        %v1203 = vld [vmem:[%s3 + $0xbb8] sm:$0xff]
        %v1204 = vld [vmem:[%s3 + $0xbc0] sm:$0xff]
        %v1205 = vld [vmem:[%s3 + $0xbc8] sm:$0xff]
        %v1206 = vld [vmem:[%s3 + $0xbd0] sm:$0xff]
        %v1207 = vld [vmem:[%s3 + $0xbd8] sm:$0xff]
        %v1208 = vld [vmem:[%s3 + $0xbe0] sm:$0xff]
        %v1209 = vld [vmem:[%s3 + $0xbe8] sm:$0xff]
        %v1210 = vld [vmem:[%s3 + $0xbf0] sm:$0xff]
        %v1211 = vld [vmem:[%s3 + $0xbf8] sm:$0xff]
        %v1212 = vld [vmem:[%s3 + $0xc00] sm:$0xff]
        %v1213 = vld [vmem:[%s3 + $0xc08] sm:$0xff]
        %v1214 = vld [vmem:[%s3 + $0xc10] sm:$0xff]
        %v1215 = vld [vmem:[%s3 + $0xc18] sm:$0xff]
        %v1216 = vld [vmem:[%s3 + $0xc20] sm:$0xff]
        %v1217 = vld [vmem:[%s3 + $0xc28] sm:$0xff]
        %v1218 = vld [vmem:[%s3 + $0xc30] sm:$0xff]
        %v1219 = vld [vmem:[%s3 + $0xc38] sm:$0xff]
        %v1220 = vld [vmem:[%s3 + $0xc40] sm:$0xff]
        %v1221 = vld [vmem:[%s3 + $0xc48] sm:$0xff]
        %v1222 = vld [vmem:[%s3 + $0xc50] sm:$0xff]
        %v1223 = vld [vmem:[%s3 + $0xc58] sm:$0xff]
        %v1224 = vld [vmem:[%s3 + $0xc60] sm:$0xff]
        %v1225 = vld [vmem:[%s3 + $0xc68] sm:$0xff]
        %v1226 = vld [vmem:[%s3 + $0xc70] sm:$0xff]
        %v1227 = vld [vmem:[%s3 + $0xc78] sm:$0xff]
        %v1228 = vld [vmem:[%s3 + $0xc80] sm:$0xff]
        %v1229 = vld [vmem:[%s3 + $0xc88] sm:$0xff]
        %v1230 = vld [vmem:[%s3 + $0xc90] sm:$0xff]
        %v1231 = vld [vmem:[%s3 + $0xc98] sm:$0xff]
        %v1232 = vld [vmem:[%s3 + $0xca0] sm:$0xff]
        %v1233 = vld [vmem:[%s3 + $0xca8] sm:$0xff]
        %v1234 = vld [vmem:[%s3 + $0xcb0] sm:$0xff]
        %v1235 = vld [vmem:[%s3 + $0xcb8] sm:$0xff]
        %v1236 = vld [vmem:[%s3 + $0xcc0] sm:$0xff]
        %v1237 = vld [vmem:[%s3 + $0xcc8] sm:$0xff]
        %v1238 = vld [vmem:[%s3 + $0xcd0] sm:$0xff]
        %v1239 = vld [vmem:[%s3 + $0xcd8] sm:$0xff]
        %v1240 = vld [vmem:[%s3 + $0xce0] sm:$0xff]
        %v1241 = vld [vmem:[%s3 + $0xce8] sm:$0xff]
        %v1242 = vld [vmem:[%s3 + $0xcf0] sm:$0xff]
        %v1243 = vld [vmem:[%s3 + $0xcf8] sm:$0xff]
        %v1244 = vld [vmem:[%s3 + $0xd00] sm:$0xff]
        %v1245 = vld [vmem:[%s3 + $0xd08] sm:$0xff]
        %v1246 = vld [vmem:[%s3 + $0xd10] sm:$0xff]
        %v1247 = vld [vmem:[%s3 + $0xd18] sm:$0xff]
        %v1248 = vld [vmem:[%s3 + $0xd20] sm:$0xff]
        %v1249 = vld [vmem:[%s3 + $0xd28] sm:$0xff]
        %v1250 = vld [vmem:[%s3 + $0xd30] sm:$0xff]
        %v1251 = vld [vmem:[%s3 + $0xd38] sm:$0xff]
        %v1252 = vld [vmem:[%s3 + $0xd40] sm:$0xff]
        %v1253 = vld [vmem:[%s3 + $0xd48] sm:$0xff]
        %v1254 = vld [vmem:[%s3 + $0xd50] sm:$0xff]
        %v1255 = vld [vmem:[%s3 + $0xd58] sm:$0xff]
        %v1256 = vld [vmem:[%s3 + $0xd60] sm:$0xff]
        %v1257 = vld [vmem:[%s3 + $0xd68] sm:$0xff]
        %v1258 = vld [vmem:[%s3 + $0xd70] sm:$0xff]
        %v1259 = vld [vmem:[%s3 + $0xd78] sm:$0xff]
        %v1260 = vld [vmem:[%s3 + $0xd80] sm:$0xff]
        %v1261 = vld [vmem:[%s3 + $0xd88] sm:$0xff]
        %v1262 = vld [vmem:[%s3 + $0xd90] sm:$0xff]
        %v1263 = vld [vmem:[%s3 + $0xd98] sm:$0xff]
        %v1264 = vld [vmem:[%s3 + $0xda0] sm:$0xff]
        %v1265 = vld [vmem:[%s3 + $0xda8] sm:$0xff]
        %v1266 = vld [vmem:[%s3 + $0xdb0] sm:$0xff]
        %v1267 = vld [vmem:[%s3 + $0xdb8] sm:$0xff]
        %v1268 = vld [vmem:[%s3 + $0xdc0] sm:$0xff]
        %v1269 = vld [vmem:[%s3 + $0xdc8] sm:$0xff]
        %v1270 = vld [vmem:[%s3 + $0xdd0] sm:$0xff]
        %v1271 = vld [vmem:[%s3 + $0xdd8] sm:$0xff]
        %v1272 = vld [vmem:[%s3 + $0xde0] sm:$0xff]
        %v1273 = vld [vmem:[%s3 + $0xde8] sm:$0xff]
        %v1274 = vld [vmem:[%s3 + $0xdf0] sm:$0xff]
        %v1275 = vld [vmem:[%s3 + $0xdf8] sm:$0xff]
        %v1276 = vld [vmem:[%s3 + $0xe00] sm:$0xff]
        %v1277 = vld [vmem:[%s3 + $0xe08] sm:$0xff]
        %v1278 = vld [vmem:[%s3 + $0xe10] sm:$0xff]
        %v1279 = vld [vmem:[%s3 + $0xe18] sm:$0xff]
        %v1280 = vld [vmem:[%s3 + $0xe20] sm:$0xff]
        %v1281 = vld [vmem:[%s3 + $0xe28] sm:$0xff]
        %v1282 = vld [vmem:[%s3 + $0xe30] sm:$0xff]
        %v1283 = vld [vmem:[%s3 + $0xe38] sm:$0xff]
        %v1284 = vld [vmem:[%s3 + $0xe40] sm:$0xff]
        %v1285 = vld [vmem:[%s3 + $0xe48] sm:$0xff]
        %v1286 = vld [vmem:[%s3 + $0xe50] sm:$0xff]
        %v1287 = vld [vmem:[%s3 + $0xe58] sm:$0xff]
        %v1288 = vld [vmem:[%s3 + $0xe60] sm:$0xff]
        %v1289 = vld [vmem:[%s3 + $0xe68] sm:$0xff]
        %v1290 = vld [vmem:[%s3 + $0xe70] sm:$0xff]
        %v1291 = vld [vmem:[%s3 + $0xe78] sm:$0xff]
        %v1292 = vld [vmem:[%s3 + $0xe80] sm:$0xff]
        %v1293 = vld [vmem:[%s3 + $0xe88] sm:$0xff]
        %v1294 = vld [vmem:[%s3 + $0xe90] sm:$0xff]
        %v1295 = vld [vmem:[%s3 + $0xe98] sm:$0xff]
        %v1296 = vld [vmem:[%s3 + $0xea0] sm:$0xff]
        %v1297 = vld [vmem:[%s3 + $0xea8] sm:$0xff]
        %v1298 = vld [vmem:[%s3 + $0xeb0] sm:$0xff]
        %v1299 = vld [vmem:[%s3 + $0xeb8] sm:$0xff]
        %v1300 = vld [vmem:[%s3 + $0xec0] sm:$0xff]
        %v1301 = vld [vmem:[%s3 + $0xec8] sm:$0xff]
        %v1302 = vld [vmem:[%s3 + $0xed0] sm:$0xff]
        %v1303 = vld [vmem:[%s3 + $0xed8] sm:$0xff]
        %v1304 = vld [vmem:[%s3 + $0xee0] sm:$0xff]
        %v1305 = vld [vmem:[%s3 + $0xee8] sm:$0xff]
        %v1306 = vld [vmem:[%s3 + $0xef0] sm:$0xff]
        %v1307 = vld [vmem:[%s3 + $0xef8] sm:$0xff]
        %v1308 = vld [vmem:[%s3 + $0xf00] sm:$0xff]
        %v1309 = vld [vmem:[%s3 + $0xf08] sm:$0xff]
        %v1310 = vld [vmem:[%s3 + $0xf10] sm:$0xff]
        %v1311 = vld [vmem:[%s3 + $0xf18] sm:$0xff]
        %v1312 = vld [vmem:[%s3 + $0xf20] sm:$0xff]
        %v1313 = vld [vmem:[%s3 + $0xf28] sm:$0xff]
        %v1314 = vld [vmem:[%s3 + $0xf30] sm:$0xff]
        %v1315 = vld [vmem:[%s3 + $0xf38] sm:$0xff]
        %v1316 = vld [vmem:[%s3 + $0xf40] sm:$0xff]
        %v1317 = vld [vmem:[%s3 + $0xf48] sm:$0xff]
        %v1318 = vld [vmem:[%s3 + $0xf50] sm:$0xff]
        %v1319 = vld [vmem:[%s3 + $0xf58] sm:$0xff]
        %v1320 = vld [vmem:[%s3 + $0xf60] sm:$0xff]
        %v1321 = vld [vmem:[%s3 + $0xf68] sm:$0xff]
        %v1322 = vld [vmem:[%s3 + $0xf70] sm:$0xff]
        %v1323 = vld [vmem:[%s3 + $0xf78] sm:$0xff]
        %v1324 = vld [vmem:[%s3 + $0xf80] sm:$0xff]
        %v1325 = vld [vmem:[%s3 + $0xf88] sm:$0xff]
        %v1326 = vld [vmem:[%s3 + $0xf90] sm:$0xff]
        %v1327 = vld [vmem:[%s3 + $0xf98] sm:$0xff]
        %v1328 = vld [vmem:[%s3 + $0xfa0] sm:$0xff]
        %v1329 = vld [vmem:[%s3 + $0xfa8] sm:$0xff]
        %v1330 = vld [vmem:[%s3 + $0xfb0] sm:$0xff]
        %v1331 = vld [vmem:[%s3 + $0xfb8] sm:$0xff]
        %v1332 = vld [vmem:[%s3 + $0xfc0] sm:$0xff]
        %v1333 = vld [vmem:[%s3 + $0xfc8] sm:$0xff]
        %v1334 = vld [vmem:[%s3 + $0xfd0] sm:$0xff]
        %v1335 = vld [vmem:[%s3 + $0xfd8] sm:$0xff]
        %v1336 = vld [vmem:[%s3 + $0xfe0] sm:$0xff]
        %v1337 = vld [vmem:[%s3 + $0xfe8] sm:$0xff]
        %v1338 = vld [vmem:[%s3 + $0xff0] sm:$0xff]
        %v1339 = vld [vmem:[%s3 + $0xff8] sm:$0xff]
        %v1340 = vld [vmem:[%s4] sm:$0xff]
        %v1342 = vlaneseq
        %v1343 = vshrl.u32 %v1342, 7
        %v1344 = vsub.s32 0, %v1343
        %v1345 = vrot.slane %v1340, %v1344
        %v1346 = vlaneseq
        %v1347 = vshrl.u32 %v1346, 7
        %v1348 = vsub.s32 1, %v1347
        %v1349 = vrot.slane %v1340, %v1348
        %v1350 = vlaneseq
        %v1351 = vshrl.u32 %v1350, 7
        %v1352 = vsub.s32 2, %v1351
        %v1353 = vrot.slane %v1340, %v1352
        %v1354 = vlaneseq
        %v1355 = vshrl.u32 %v1354, 7
        %v1356 = vsub.s32 3, %v1355
        %v1357 = vrot.slane %v1340, %v1356
        %v1358 = vlaneseq
        %v1359 = vshrl.u32 %v1358, 7
        %v1360 = vsub.s32 4, %v1359
        %v1361 = vrot.slane %v1340, %v1360
        %v1362 = vlaneseq
        %v1363 = vshrl.u32 %v1362, 7
        %v1364 = vsub.s32 5, %v1363
        %v1365 = vrot.slane %v1340, %v1364
        %v1366 = vlaneseq
        %v1367 = vshrl.u32 %v1366, 7
        %v1368 = vsub.s32 6, %v1367
        %v1369 = vrot.slane %v1340, %v1368
        %v1370 = vlaneseq
        %v1371 = vshrl.u32 %v1370, 7
        %v1372 = vsub.s32 7, %v1371
        %v1373 = vrot.slane %v1340, %v1372
        %v1894 = vunpack.c.l.b16 %v828
        %v1895 = vunpack.c.h.b16 %v828
        %v1896 = vunpack.c.l.b16 %v829
        %v1897 = vunpack.c.h.b16 %v829
        %v1898 = vunpack.c.l.b16 %v830
        %v1899 = vunpack.c.h.b16 %v830
        %v1900 = vunpack.c.l.b16 %v831
        %v1901 = vunpack.c.h.b16 %v831
        %v1902 = vunpack.c.l.b16 %v832
        %v1903 = vunpack.c.h.b16 %v832
        %v1904 = vunpack.c.l.b16 %v833
        %v1905 = vunpack.c.h.b16 %v833
        %v1906 = vunpack.c.l.b16 %v834
        %v1907 = vunpack.c.h.b16 %v834
        %v1908 = vunpack.c.l.b16 %v835
        %v1909 = vunpack.c.h.b16 %v835
        %v1910 = vunpack.c.l.b16 %v836
        %v1911 = vunpack.c.h.b16 %v836
        %v1912 = vunpack.c.l.b16 %v837
        %v1913 = vunpack.c.h.b16 %v837
        %v1914 = vunpack.c.l.b16 %v838
        %v1915 = vunpack.c.h.b16 %v838
        %v1916 = vunpack.c.l.b16 %v839
        %v1917 = vunpack.c.h.b16 %v839
        %v1918 = vunpack.c.l.b16 %v840
        %v1919 = vunpack.c.h.b16 %v840
        %v1920 = vunpack.c.l.b16 %v841
        %v1921 = vunpack.c.h.b16 %v841
        %v1922 = vunpack.c.l.b16 %v842
        %v1923 = vunpack.c.h.b16 %v842
        %v1924 = vunpack.c.l.b16 %v843
        %v1925 = vunpack.c.h.b16 %v843
        %v1926 = vunpack.c.l.b16 %v844
        %v1927 = vunpack.c.h.b16 %v844
        %v1928 = vunpack.c.l.b16 %v845
        %v1929 = vunpack.c.h.b16 %v845
        %v1930 = vunpack.c.l.b16 %v846
        %v1931 = vunpack.c.h.b16 %v846
        %v1932 = vunpack.c.l.b16 %v847
        %v1933 = vunpack.c.h.b16 %v847
        %v1934 = vunpack.c.l.b16 %v848
        %v1935 = vunpack.c.h.b16 %v848
        %v1936 = vunpack.c.l.b16 %v849
        %v1937 = vunpack.c.h.b16 %v849
        %v1938 = vunpack.c.l.b16 %v850
        %v1939 = vunpack.c.h.b16 %v850
        %v1940 = vunpack.c.l.b16 %v851
        %v1941 = vunpack.c.h.b16 %v851
        %v1942 = vunpack.c.l.b16 %v852
        %v1943 = vunpack.c.h.b16 %v852
        %v1944 = vunpack.c.l.b16 %v853
        %v1945 = vunpack.c.h.b16 %v853
        %v1946 = vunpack.c.l.b16 %v854
        %v1947 = vunpack.c.h.b16 %v854
        %v1948 = vunpack.c.l.b16 %v855
        %v1949 = vunpack.c.h.b16 %v855
        %v1950 = vunpack.c.l.b16 %v856
        %v1951 = vunpack.c.h.b16 %v856
        %v1952 = vunpack.c.l.b16 %v857
        %v1953 = vunpack.c.h.b16 %v857
        %v1954 = vunpack.c.l.b16 %v858
        %v1955 = vunpack.c.h.b16 %v858
        %v1956 = vunpack.c.l.b16 %v859
        %v1957 = vunpack.c.h.b16 %v859
        %v1958 = vunpack.c.l.b16 %v860
        %v1959 = vunpack.c.h.b16 %v860
        %v1960 = vunpack.c.l.b16 %v861
        %v1961 = vunpack.c.h.b16 %v861
        %v1962 = vunpack.c.l.b16 %v862
        %v1963 = vunpack.c.h.b16 %v862
        %v1964 = vunpack.c.l.b16 %v863
        %v1965 = vunpack.c.h.b16 %v863
        %v1966 = vunpack.c.l.b16 %v864
        %v1967 = vunpack.c.h.b16 %v864
        %v1968 = vunpack.c.l.b16 %v865
        %v1969 = vunpack.c.h.b16 %v865
        %v1970 = vunpack.c.l.b16 %v866
        %v1971 = vunpack.c.h.b16 %v866
        %v1972 = vunpack.c.l.b16 %v867
        %v1973 = vunpack.c.h.b16 %v867
        %v1974 = vunpack.c.l.b16 %v868
        %v1975 = vunpack.c.h.b16 %v868
        %v1976 = vunpack.c.l.b16 %v869
        %v1977 = vunpack.c.h.b16 %v869
        %v1978 = vunpack.c.l.b16 %v870
        %v1979 = vunpack.c.h.b16 %v870
        %v1980 = vunpack.c.l.b16 %v871
        %v1981 = vunpack.c.h.b16 %v871
        %v1982 = vunpack.c.l.b16 %v872
        %v1983 = vunpack.c.h.b16 %v872
        %v1984 = vunpack.c.l.b16 %v873
        %v1985 = vunpack.c.h.b16 %v873
        %v1986 = vunpack.c.l.b16 %v874
        %v1987 = vunpack.c.h.b16 %v874
        %v1988 = vunpack.c.l.b16 %v875
        %v1989 = vunpack.c.h.b16 %v875
        %v1990 = vunpack.c.l.b16 %v876
        %v1991 = vunpack.c.h.b16 %v876
        %v1992 = vunpack.c.l.b16 %v877
        %v1993 = vunpack.c.h.b16 %v877
        %v1994 = vunpack.c.l.b16 %v878
        %v1995 = vunpack.c.h.b16 %v878
        %v1996 = vunpack.c.l.b16 %v879
        %v1997 = vunpack.c.h.b16 %v879
        %v1998 = vunpack.c.l.b16 %v880
        %v1999 = vunpack.c.h.b16 %v880
        %v2000 = vunpack.c.l.b16 %v881
        %v2001 = vunpack.c.h.b16 %v881
        %v2002 = vunpack.c.l.b16 %v882
        %v2003 = vunpack.c.h.b16 %v882
        %v2004 = vunpack.c.l.b16 %v883
        %v2005 = vunpack.c.h.b16 %v883
        %v2006 = vunpack.c.l.b16 %v884
        %v2007 = vunpack.c.h.b16 %v884
        %v2008 = vunpack.c.l.b16 %v885
        %v2009 = vunpack.c.h.b16 %v885
        %v2010 = vunpack.c.l.b16 %v886
        %v2011 = vunpack.c.h.b16 %v886
        %v2012 = vunpack.c.l.b16 %v887
        %v2013 = vunpack.c.h.b16 %v887
        %v2014 = vunpack.c.l.b16 %v888
        %v2015 = vunpack.c.h.b16 %v888
        %v2016 = vunpack.c.l.b16 %v889
        %v2017 = vunpack.c.h.b16 %v889
        %v2018 = vunpack.c.l.b16 %v890
        %v2019 = vunpack.c.h.b16 %v890
        %v2020 = vunpack.c.l.b16 %v891
        %v2021 = vunpack.c.h.b16 %v891
        %v2022 = vunpack.c.l.b16 %v892
        %v2023 = vunpack.c.h.b16 %v892
        %v2024 = vunpack.c.l.b16 %v893
        %v2025 = vunpack.c.h.b16 %v893
        %v2026 = vunpack.c.l.b16 %v894
        %v2027 = vunpack.c.h.b16 %v894
        %v2028 = vunpack.c.l.b16 %v895
        %v2029 = vunpack.c.h.b16 %v895
        %v2030 = vunpack.c.l.b16 %v896
        %v2031 = vunpack.c.h.b16 %v896
        %v2032 = vunpack.c.l.b16 %v897
        %v2033 = vunpack.c.h.b16 %v897
        %v2034 = vunpack.c.l.b16 %v898
        %v2035 = vunpack.c.h.b16 %v898
        %v2036 = vunpack.c.l.b16 %v899
        %v2037 = vunpack.c.h.b16 %v899
        %v2038 = vunpack.c.l.b16 %v900
        %v2039 = vunpack.c.h.b16 %v900
        %v2040 = vunpack.c.l.b16 %v901
        %v2041 = vunpack.c.h.b16 %v901
        %v2042 = vunpack.c.l.b16 %v902
        %v2043 = vunpack.c.h.b16 %v902
        %v2044 = vunpack.c.l.b16 %v903
        %v2045 = vunpack.c.h.b16 %v903
        %v2046 = vunpack.c.l.b16 %v904
        %v2047 = vunpack.c.h.b16 %v904
        %v2048 = vunpack.c.l.b16 %v905
        %v2049 = vunpack.c.h.b16 %v905
        %v2050 = vunpack.c.l.b16 %v906
        %v2051 = vunpack.c.h.b16 %v906
        %v2052 = vunpack.c.l.b16 %v907
        %v2053 = vunpack.c.h.b16 %v907
        %v2054 = vunpack.c.l.b16 %v908
        %v2055 = vunpack.c.h.b16 %v908
        %v2056 = vunpack.c.l.b16 %v909
        %v2057 = vunpack.c.h.b16 %v909
        %v2058 = vunpack.c.l.b16 %v910
        %v2059 = vunpack.c.h.b16 %v910
        %v2060 = vunpack.c.l.b16 %v911
        %v2061 = vunpack.c.h.b16 %v911
        %v2062 = vunpack.c.l.b16 %v912
        %v2063 = vunpack.c.h.b16 %v912
        %v2064 = vunpack.c.l.b16 %v913
        %v2065 = vunpack.c.h.b16 %v913
        %v2066 = vunpack.c.l.b16 %v914
        %v2067 = vunpack.c.h.b16 %v914
        %v2068 = vunpack.c.l.b16 %v915
        %v2069 = vunpack.c.h.b16 %v915
        %v2070 = vunpack.c.l.b16 %v916
        %v2071 = vunpack.c.h.b16 %v916
        %v2072 = vunpack.c.l.b16 %v917
        %v2073 = vunpack.c.h.b16 %v917
        %v2074 = vunpack.c.l.b16 %v918
        %v2075 = vunpack.c.h.b16 %v918
        %v2076 = vunpack.c.l.b16 %v919
        %v2077 = vunpack.c.h.b16 %v919
        %v2078 = vunpack.c.l.b16 %v920
        %v2079 = vunpack.c.h.b16 %v920
        %v2080 = vunpack.c.l.b16 %v921
        %v2081 = vunpack.c.h.b16 %v921
        %v2082 = vunpack.c.l.b16 %v922
        %v2083 = vunpack.c.h.b16 %v922
        %v2084 = vunpack.c.l.b16 %v923
        %v2085 = vunpack.c.h.b16 %v923
        %v2086 = vunpack.c.l.b16 %v924
        %v2087 = vunpack.c.h.b16 %v924
        %v2088 = vunpack.c.l.b16 %v925
        %v2089 = vunpack.c.h.b16 %v925
        %v2090 = vunpack.c.l.b16 %v926
        %v2091 = vunpack.c.h.b16 %v926
        %v2092 = vunpack.c.l.b16 %v927
        %v2093 = vunpack.c.h.b16 %v927
        %v2094 = vunpack.c.l.b16 %v928
        %v2095 = vunpack.c.h.b16 %v928
        %v2096 = vunpack.c.l.b16 %v929
        %v2097 = vunpack.c.h.b16 %v929
        %v2098 = vunpack.c.l.b16 %v930
        %v2099 = vunpack.c.h.b16 %v930
        %v2100 = vunpack.c.l.b16 %v931
        %v2101 = vunpack.c.h.b16 %v931
        %v2102 = vunpack.c.l.b16 %v932
        %v2103 = vunpack.c.h.b16 %v932
        %v2104 = vunpack.c.l.b16 %v933
        %v2105 = vunpack.c.h.b16 %v933
        %v2106 = vunpack.c.l.b16 %v934
        %v2107 = vunpack.c.h.b16 %v934
        %v2108 = vunpack.c.l.b16 %v935
        %v2109 = vunpack.c.h.b16 %v935
        %v2110 = vunpack.c.l.b16 %v936
        %v2111 = vunpack.c.h.b16 %v936
        %v2112 = vunpack.c.l.b16 %v937
        %v2113 = vunpack.c.h.b16 %v937
        %v2114 = vunpack.c.l.b16 %v938
        %v2115 = vunpack.c.h.b16 %v938
        %v2116 = vunpack.c.l.b16 %v939
        %v2117 = vunpack.c.h.b16 %v939
        %v2118 = vunpack.c.l.b16 %v940
        %v2119 = vunpack.c.h.b16 %v940
        %v2120 = vunpack.c.l.b16 %v941
        %v2121 = vunpack.c.h.b16 %v941
        %v2122 = vunpack.c.l.b16 %v942
        %v2123 = vunpack.c.h.b16 %v942
        %v2124 = vunpack.c.l.b16 %v943
        %v2125 = vunpack.c.h.b16 %v943
        %v2126 = vunpack.c.l.b16 %v944
        %v2127 = vunpack.c.h.b16 %v944
        %v2128 = vunpack.c.l.b16 %v945
        %v2129 = vunpack.c.h.b16 %v945
        %v2130 = vunpack.c.l.b16 %v946
        %v2131 = vunpack.c.h.b16 %v946
        %v2132 = vunpack.c.l.b16 %v947
        %v2133 = vunpack.c.h.b16 %v947
        %v2134 = vunpack.c.l.b16 %v948
        %v2135 = vunpack.c.h.b16 %v948
        %v2136 = vunpack.c.l.b16 %v949
        %v2137 = vunpack.c.h.b16 %v949
        %v2138 = vunpack.c.l.b16 %v950
        %v2139 = vunpack.c.h.b16 %v950
        %v2140 = vunpack.c.l.b16 %v951
        %v2141 = vunpack.c.h.b16 %v951
        %v2142 = vunpack.c.l.b16 %v952
        %v2143 = vunpack.c.h.b16 %v952
        %v2144 = vunpack.c.l.b16 %v953
        %v2145 = vunpack.c.h.b16 %v953
        %v2146 = vunpack.c.l.b16 %v954
        %v2147 = vunpack.c.h.b16 %v954
        %v2148 = vunpack.c.l.b16 %v955
        %v2149 = vunpack.c.h.b16 %v955
        %v2150 = vunpack.c.l.b16 %v956
        %v2151 = vunpack.c.h.b16 %v956
        %v2152 = vunpack.c.l.b16 %v957
        %v2153 = vunpack.c.h.b16 %v957
        %v2154 = vunpack.c.l.b16 %v958
        %v2155 = vunpack.c.h.b16 %v958
        %v2156 = vunpack.c.l.b16 %v959
        %v2157 = vunpack.c.h.b16 %v959
        %v2158 = vunpack.c.l.b16 %v960
        %v2159 = vunpack.c.h.b16 %v960
        %v2160 = vunpack.c.l.b16 %v961
        %v2161 = vunpack.c.h.b16 %v961
        %v2162 = vunpack.c.l.b16 %v962
        %v2163 = vunpack.c.h.b16 %v962
        %v2164 = vunpack.c.l.b16 %v963
        %v2165 = vunpack.c.h.b16 %v963
        %v2166 = vunpack.c.l.b16 %v964
        %v2167 = vunpack.c.h.b16 %v964
        %v2168 = vunpack.c.l.b16 %v965
        %v2169 = vunpack.c.h.b16 %v965
        %v2170 = vunpack.c.l.b16 %v966
        %v2171 = vunpack.c.h.b16 %v966
        %v2172 = vunpack.c.l.b16 %v967
        %v2173 = vunpack.c.h.b16 %v967
        %v2174 = vunpack.c.l.b16 %v968
        %v2175 = vunpack.c.h.b16 %v968
        %v2176 = vunpack.c.l.b16 %v969
        %v2177 = vunpack.c.h.b16 %v969
        %v2178 = vunpack.c.l.b16 %v970
        %v2179 = vunpack.c.h.b16 %v970
        %v2180 = vunpack.c.l.b16 %v971
        %v2181 = vunpack.c.h.b16 %v971
        %v2182 = vunpack.c.l.b16 %v972
        %v2183 = vunpack.c.h.b16 %v972
        %v2184 = vunpack.c.l.b16 %v973
        %v2185 = vunpack.c.h.b16 %v973
        %v2186 = vunpack.c.l.b16 %v974
        %v2187 = vunpack.c.h.b16 %v974
        %v2188 = vunpack.c.l.b16 %v975
        %v2189 = vunpack.c.h.b16 %v975
        %v2190 = vunpack.c.l.b16 %v976
        %v2191 = vunpack.c.h.b16 %v976
        %v2192 = vunpack.c.l.b16 %v977
        %v2193 = vunpack.c.h.b16 %v977
        %v2194 = vunpack.c.l.b16 %v978
        %v2195 = vunpack.c.h.b16 %v978
        %v2196 = vunpack.c.l.b16 %v979
        %v2197 = vunpack.c.h.b16 %v979
        %v2198 = vunpack.c.l.b16 %v980
        %v2199 = vunpack.c.h.b16 %v980
        %v2200 = vunpack.c.l.b16 %v981
        %v2201 = vunpack.c.h.b16 %v981
        %v2202 = vunpack.c.l.b16 %v982
        %v2203 = vunpack.c.h.b16 %v982
        %v2204 = vunpack.c.l.b16 %v983
        %v2205 = vunpack.c.h.b16 %v983
        %v2206 = vunpack.c.l.b16 %v984
        %v2207 = vunpack.c.h.b16 %v984
        %v2208 = vunpack.c.l.b16 %v985
        %v2209 = vunpack.c.h.b16 %v985
        %v2210 = vunpack.c.l.b16 %v986
        %v2211 = vunpack.c.h.b16 %v986
        %v2212 = vunpack.c.l.b16 %v987
        %v2213 = vunpack.c.h.b16 %v987
        %v2214 = vunpack.c.l.b16 %v988
        %v2215 = vunpack.c.h.b16 %v988
        %v2216 = vunpack.c.l.b16 %v989
        %v2217 = vunpack.c.h.b16 %v989
        %v2218 = vunpack.c.l.b16 %v990
        %v2219 = vunpack.c.h.b16 %v990
        %v2220 = vunpack.c.l.b16 %v991
        %v2221 = vunpack.c.h.b16 %v991
        %v2222 = vunpack.c.l.b16 %v992
        %v2223 = vunpack.c.h.b16 %v992
        %v2224 = vunpack.c.l.b16 %v993
        %v2225 = vunpack.c.h.b16 %v993
        %v2226 = vunpack.c.l.b16 %v994
        %v2227 = vunpack.c.h.b16 %v994
        %v2228 = vunpack.c.l.b16 %v995
        %v2229 = vunpack.c.h.b16 %v995
        %v2230 = vunpack.c.l.b16 %v996
        %v2231 = vunpack.c.h.b16 %v996
        %v2232 = vunpack.c.l.b16 %v997
        %v2233 = vunpack.c.h.b16 %v997
        %v2234 = vunpack.c.l.b16 %v998
        %v2235 = vunpack.c.h.b16 %v998
        %v2236 = vunpack.c.l.b16 %v999
        %v2237 = vunpack.c.h.b16 %v999
        %v2238 = vunpack.c.l.b16 %v1000
        %v2239 = vunpack.c.h.b16 %v1000
        %v2240 = vunpack.c.l.b16 %v1001
        %v2241 = vunpack.c.h.b16 %v1001
        %v2242 = vunpack.c.l.b16 %v1002
        %v2243 = vunpack.c.h.b16 %v1002
        %v2244 = vunpack.c.l.b16 %v1003
        %v2245 = vunpack.c.h.b16 %v1003
        %v2246 = vunpack.c.l.b16 %v1004
        %v2247 = vunpack.c.h.b16 %v1004
        %v2248 = vunpack.c.l.b16 %v1005
        %v2249 = vunpack.c.h.b16 %v1005
        %v2250 = vunpack.c.l.b16 %v1006
        %v2251 = vunpack.c.h.b16 %v1006
        %v2252 = vunpack.c.l.b16 %v1007
        %v2253 = vunpack.c.h.b16 %v1007
        %v2254 = vunpack.c.l.b16 %v1008
        %v2255 = vunpack.c.h.b16 %v1008
        %v2256 = vunpack.c.l.b16 %v1009
        %v2257 = vunpack.c.h.b16 %v1009
        %v2258 = vunpack.c.l.b16 %v1010
        %v2259 = vunpack.c.h.b16 %v1010
        %v2260 = vunpack.c.l.b16 %v1011
        %v2261 = vunpack.c.h.b16 %v1011
        %v2262 = vunpack.c.l.b16 %v1012
        %v2263 = vunpack.c.h.b16 %v1012
        %v2264 = vunpack.c.l.b16 %v1013
        %v2265 = vunpack.c.h.b16 %v1013
        %v2266 = vunpack.c.l.b16 %v1014
        %v2267 = vunpack.c.h.b16 %v1014
        %v2268 = vunpack.c.l.b16 %v1015
        %v2269 = vunpack.c.h.b16 %v1015
        %v2270 = vunpack.c.l.b16 %v1016
        %v2271 = vunpack.c.h.b16 %v1016
        %v2272 = vunpack.c.l.b16 %v1017
        %v2273 = vunpack.c.h.b16 %v1017
        %v2274 = vunpack.c.l.b16 %v1018
        %v2275 = vunpack.c.h.b16 %v1018
        %v2276 = vunpack.c.l.b16 %v1019
        %v2277 = vunpack.c.h.b16 %v1019
        %v2278 = vunpack.c.l.b16 %v1020
        %v2279 = vunpack.c.h.b16 %v1020
        %v2280 = vunpack.c.l.b16 %v1021
        %v2281 = vunpack.c.h.b16 %v1021
        %v2282 = vunpack.c.l.b16 %v1022
        %v2283 = vunpack.c.h.b16 %v1022
        %v2284 = vunpack.c.l.b16 %v1023
        %v2285 = vunpack.c.h.b16 %v1023
        %v2286 = vunpack.c.l.b16 %v1024
        %v2287 = vunpack.c.h.b16 %v1024
        %v2288 = vunpack.c.l.b16 %v1025
        %v2289 = vunpack.c.h.b16 %v1025
        %v2290 = vunpack.c.l.b16 %v1026
        %v2291 = vunpack.c.h.b16 %v1026
        %v2292 = vunpack.c.l.b16 %v1027
        %v2293 = vunpack.c.h.b16 %v1027
        %v2294 = vunpack.c.l.b16 %v1028
        %v2295 = vunpack.c.h.b16 %v1028
        %v2296 = vunpack.c.l.b16 %v1029
        %v2297 = vunpack.c.h.b16 %v1029
        %v2298 = vunpack.c.l.b16 %v1030
        %v2299 = vunpack.c.h.b16 %v1030
        %v2300 = vunpack.c.l.b16 %v1031
        %v2301 = vunpack.c.h.b16 %v1031
        %v2302 = vunpack.c.l.b16 %v1032
        %v2303 = vunpack.c.h.b16 %v1032
        %v2304 = vunpack.c.l.b16 %v1033
        %v2305 = vunpack.c.h.b16 %v1033
        %v2306 = vunpack.c.l.b16 %v1034
        %v2307 = vunpack.c.h.b16 %v1034
        %v2308 = vunpack.c.l.b16 %v1035
        %v2309 = vunpack.c.h.b16 %v1035
        %v2310 = vunpack.c.l.b16 %v1036
        %v2311 = vunpack.c.h.b16 %v1036
        %v2312 = vunpack.c.l.b16 %v1037
        %v2313 = vunpack.c.h.b16 %v1037
        %v2314 = vunpack.c.l.b16 %v1038
        %v2315 = vunpack.c.h.b16 %v1038
        %v2316 = vunpack.c.l.b16 %v1039
        %v2317 = vunpack.c.h.b16 %v1039
        %v2318 = vunpack.c.l.b16 %v1040
        %v2319 = vunpack.c.h.b16 %v1040
        %v2320 = vunpack.c.l.b16 %v1041
        %v2321 = vunpack.c.h.b16 %v1041
        %v2322 = vunpack.c.l.b16 %v1042
        %v2323 = vunpack.c.h.b16 %v1042
        %v2324 = vunpack.c.l.b16 %v1043
        %v2325 = vunpack.c.h.b16 %v1043
        %v2326 = vunpack.c.l.b16 %v1044
        %v2327 = vunpack.c.h.b16 %v1044
        %v2328 = vunpack.c.l.b16 %v1045
        %v2329 = vunpack.c.h.b16 %v1045
        %v2330 = vunpack.c.l.b16 %v1046
        %v2331 = vunpack.c.h.b16 %v1046
        %v2332 = vunpack.c.l.b16 %v1047
        %v2333 = vunpack.c.h.b16 %v1047
        %v2334 = vunpack.c.l.b16 %v1048
        %v2335 = vunpack.c.h.b16 %v1048
        %v2336 = vunpack.c.l.b16 %v1049
        %v2337 = vunpack.c.h.b16 %v1049
        %v2338 = vunpack.c.l.b16 %v1050
        %v2339 = vunpack.c.h.b16 %v1050
        %v2340 = vunpack.c.l.b16 %v1051
        %v2341 = vunpack.c.h.b16 %v1051
        %v2342 = vunpack.c.l.b16 %v1052
        %v2343 = vunpack.c.h.b16 %v1052
        %v2344 = vunpack.c.l.b16 %v1053
        %v2345 = vunpack.c.h.b16 %v1053
        %v2346 = vunpack.c.l.b16 %v1054
        %v2347 = vunpack.c.h.b16 %v1054
        %v2348 = vunpack.c.l.b16 %v1055
        %v2349 = vunpack.c.h.b16 %v1055
        %v2350 = vunpack.c.l.b16 %v1056
        %v2351 = vunpack.c.h.b16 %v1056
        %v2352 = vunpack.c.l.b16 %v1057
        %v2353 = vunpack.c.h.b16 %v1057
        %v2354 = vunpack.c.l.b16 %v1058
        %v2355 = vunpack.c.h.b16 %v1058
        %v2356 = vunpack.c.l.b16 %v1059
        %v2357 = vunpack.c.h.b16 %v1059
        %v2358 = vunpack.c.l.b16 %v1060
        %v2359 = vunpack.c.h.b16 %v1060
        %v2360 = vunpack.c.l.b16 %v1061
        %v2361 = vunpack.c.h.b16 %v1061
        %v2362 = vunpack.c.l.b16 %v1062
        %v2363 = vunpack.c.h.b16 %v1062
        %v2364 = vunpack.c.l.b16 %v1063
        %v2365 = vunpack.c.h.b16 %v1063
        %v2366 = vunpack.c.l.b16 %v1064
        %v2367 = vunpack.c.h.b16 %v1064
        %v2368 = vunpack.c.l.b16 %v1065
        %v2369 = vunpack.c.h.b16 %v1065
        %v2370 = vunpack.c.l.b16 %v1066
        %v2371 = vunpack.c.h.b16 %v1066
        %v2372 = vunpack.c.l.b16 %v1067
        %v2373 = vunpack.c.h.b16 %v1067
        %v2374 = vunpack.c.l.b16 %v1068
        %v2375 = vunpack.c.h.b16 %v1068
        %v2376 = vunpack.c.l.b16 %v1069
        %v2377 = vunpack.c.h.b16 %v1069
        %v2378 = vunpack.c.l.b16 %v1070
        %v2379 = vunpack.c.h.b16 %v1070
        %v2380 = vunpack.c.l.b16 %v1071
        %v2381 = vunpack.c.h.b16 %v1071
        %v2382 = vunpack.c.l.b16 %v1072
        %v2383 = vunpack.c.h.b16 %v1072
        %v2384 = vunpack.c.l.b16 %v1073
        %v2385 = vunpack.c.h.b16 %v1073
        %v2386 = vunpack.c.l.b16 %v1074
        %v2387 = vunpack.c.h.b16 %v1074
        %v2388 = vunpack.c.l.b16 %v1075
        %v2389 = vunpack.c.h.b16 %v1075
        %v2390 = vunpack.c.l.b16 %v1076
        %v2391 = vunpack.c.h.b16 %v1076
        %v2392 = vunpack.c.l.b16 %v1077
        %v2393 = vunpack.c.h.b16 %v1077
        %v2394 = vunpack.c.l.b16 %v1078
        %v2395 = vunpack.c.h.b16 %v1078
        %v2396 = vunpack.c.l.b16 %v1079
        %v2397 = vunpack.c.h.b16 %v1079
        %v2398 = vunpack.c.l.b16 %v1080
        %v2399 = vunpack.c.h.b16 %v1080
        %v2400 = vunpack.c.l.b16 %v1081
        %v2401 = vunpack.c.h.b16 %v1081
        %v2402 = vunpack.c.l.b16 %v1082
        %v2403 = vunpack.c.h.b16 %v1082
        %v2404 = vunpack.c.l.b16 %v1083
        %v2405 = vunpack.c.h.b16 %v1083
        %v2406 = vunpack.c.l.b16 %v1084
        %v2407 = vunpack.c.h.b16 %v1084
        %v2408 = vunpack.c.l.b16 %v1085
        %v2409 = vunpack.c.h.b16 %v1085
        %v2410 = vunpack.c.l.b16 %v1086
        %v2411 = vunpack.c.h.b16 %v1086
        %v2412 = vunpack.c.l.b16 %v1087
        %v2413 = vunpack.c.h.b16 %v1087
        %v2414 = vunpack.c.l.b16 %v1088
        %v2415 = vunpack.c.h.b16 %v1088
        %v2416 = vunpack.c.l.b16 %v1089
        %v2417 = vunpack.c.h.b16 %v1089
        %v2418 = vunpack.c.l.b16 %v1090
        %v2419 = vunpack.c.h.b16 %v1090
        %v2420 = vunpack.c.l.b16 %v1091
        %v2421 = vunpack.c.h.b16 %v1091
        %v2422 = vunpack.c.l.b16 %v1092
        %v2423 = vunpack.c.h.b16 %v1092
        %v2424 = vunpack.c.l.b16 %v1093
        %v2425 = vunpack.c.h.b16 %v1093
        %v2426 = vunpack.c.l.b16 %v1094
        %v2427 = vunpack.c.h.b16 %v1094
        %v2428 = vunpack.c.l.b16 %v1095
        %v2429 = vunpack.c.h.b16 %v1095
        %v2430 = vunpack.c.l.b16 %v1096
        %v2431 = vunpack.c.h.b16 %v1096
        %v2432 = vunpack.c.l.b16 %v1097
        %v2433 = vunpack.c.h.b16 %v1097
        %v2434 = vunpack.c.l.b16 %v1098
        %v2435 = vunpack.c.h.b16 %v1098
        %v2436 = vunpack.c.l.b16 %v1099
        %v2437 = vunpack.c.h.b16 %v1099
        %v2438 = vunpack.c.l.b16 %v1100
        %v2439 = vunpack.c.h.b16 %v1100
        %v2440 = vunpack.c.l.b16 %v1101
        %v2441 = vunpack.c.h.b16 %v1101
        %v2442 = vunpack.c.l.b16 %v1102
        %v2443 = vunpack.c.h.b16 %v1102
        %v2444 = vunpack.c.l.b16 %v1103
        %v2445 = vunpack.c.h.b16 %v1103
        %v2446 = vunpack.c.l.b16 %v1104
        %v2447 = vunpack.c.h.b16 %v1104
        %v2448 = vunpack.c.l.b16 %v1105
        %v2449 = vunpack.c.h.b16 %v1105
        %v2450 = vunpack.c.l.b16 %v1106
        %v2451 = vunpack.c.h.b16 %v1106
        %v2452 = vunpack.c.l.b16 %v1107
        %v2453 = vunpack.c.h.b16 %v1107
        %v2454 = vunpack.c.l.b16 %v1108
        %v2455 = vunpack.c.h.b16 %v1108
        %v2456 = vunpack.c.l.b16 %v1109
        %v2457 = vunpack.c.h.b16 %v1109
        %v2458 = vunpack.c.l.b16 %v1110
        %v2459 = vunpack.c.h.b16 %v1110
        %v2460 = vunpack.c.l.b16 %v1111
        %v2461 = vunpack.c.h.b16 %v1111
        %v2462 = vunpack.c.l.b16 %v1112
        %v2463 = vunpack.c.h.b16 %v1112
        %v2464 = vunpack.c.l.b16 %v1113
        %v2465 = vunpack.c.h.b16 %v1113
        %v2466 = vunpack.c.l.b16 %v1114
        %v2467 = vunpack.c.h.b16 %v1114
        %v2468 = vunpack.c.l.b16 %v1115
        %v2469 = vunpack.c.h.b16 %v1115
        %v2470 = vunpack.c.l.b16 %v1116
        %v2471 = vunpack.c.h.b16 %v1116
        %v2472 = vunpack.c.l.b16 %v1117
        %v2473 = vunpack.c.h.b16 %v1117
        %v2474 = vunpack.c.l.b16 %v1118
        %v2475 = vunpack.c.h.b16 %v1118
        %v2476 = vunpack.c.l.b16 %v1119
        %v2477 = vunpack.c.h.b16 %v1119
        %v2478 = vunpack.c.l.b16 %v1120
        %v2479 = vunpack.c.h.b16 %v1120
        %v2480 = vunpack.c.l.b16 %v1121
        %v2481 = vunpack.c.h.b16 %v1121
        %v2482 = vunpack.c.l.b16 %v1122
        %v2483 = vunpack.c.h.b16 %v1122
        %v2484 = vunpack.c.l.b16 %v1123
        %v2485 = vunpack.c.h.b16 %v1123
        %v2486 = vunpack.c.l.b16 %v1124
        %v2487 = vunpack.c.h.b16 %v1124
        %v2488 = vunpack.c.l.b16 %v1125
        %v2489 = vunpack.c.h.b16 %v1125
        %v2490 = vunpack.c.l.b16 %v1126
        %v2491 = vunpack.c.h.b16 %v1126
        %v2492 = vunpack.c.l.b16 %v1127
        %v2493 = vunpack.c.h.b16 %v1127
        %v2494 = vunpack.c.l.b16 %v1128
        %v2495 = vunpack.c.h.b16 %v1128
        %v2496 = vunpack.c.l.b16 %v1129
        %v2497 = vunpack.c.h.b16 %v1129
        %v2498 = vunpack.c.l.b16 %v1130
        %v2499 = vunpack.c.h.b16 %v1130
        %v2500 = vunpack.c.l.b16 %v1131
        %v2501 = vunpack.c.h.b16 %v1131
        %v2502 = vunpack.c.l.b16 %v1132
        %v2503 = vunpack.c.h.b16 %v1132
        %v2504 = vunpack.c.l.b16 %v1133
        %v2505 = vunpack.c.h.b16 %v1133
        %v2506 = vunpack.c.l.b16 %v1134
        %v2507 = vunpack.c.h.b16 %v1134
        %v2508 = vunpack.c.l.b16 %v1135
        %v2509 = vunpack.c.h.b16 %v1135
        %v2510 = vunpack.c.l.b16 %v1136
        %v2511 = vunpack.c.h.b16 %v1136
        %v2512 = vunpack.c.l.b16 %v1137
        %v2513 = vunpack.c.h.b16 %v1137
        %v2514 = vunpack.c.l.b16 %v1138
        %v2515 = vunpack.c.h.b16 %v1138
        %v2516 = vunpack.c.l.b16 %v1139
        %v2517 = vunpack.c.h.b16 %v1139
        %v2518 = vunpack.c.l.b16 %v1140
        %v2519 = vunpack.c.h.b16 %v1140
        %v2520 = vunpack.c.l.b16 %v1141
        %v2521 = vunpack.c.h.b16 %v1141
        %v2522 = vunpack.c.l.b16 %v1142
        %v2523 = vunpack.c.h.b16 %v1142
        %v2524 = vunpack.c.l.b16 %v1143
        %v2525 = vunpack.c.h.b16 %v1143
        %v2526 = vunpack.c.l.b16 %v1144
        %v2527 = vunpack.c.h.b16 %v1144
        %v2528 = vunpack.c.l.b16 %v1145
        %v2529 = vunpack.c.h.b16 %v1145
        %v2530 = vunpack.c.l.b16 %v1146
        %v2531 = vunpack.c.h.b16 %v1146
        %v2532 = vunpack.c.l.b16 %v1147
        %v2533 = vunpack.c.h.b16 %v1147
        %v2534 = vunpack.c.l.b16 %v1148
        %v2535 = vunpack.c.h.b16 %v1148
        %v2536 = vunpack.c.l.b16 %v1149
        %v2537 = vunpack.c.h.b16 %v1149
        %v2538 = vunpack.c.l.b16 %v1150
        %v2539 = vunpack.c.h.b16 %v1150
        %v2540 = vunpack.c.l.b16 %v1151
        %v2541 = vunpack.c.h.b16 %v1151
        %v2542 = vunpack.c.l.b16 %v1152
        %v2543 = vunpack.c.h.b16 %v1152
        %v2544 = vunpack.c.l.b16 %v1153
        %v2545 = vunpack.c.h.b16 %v1153
        %v2546 = vunpack.c.l.b16 %v1154
        %v2547 = vunpack.c.h.b16 %v1154
        %v2548 = vunpack.c.l.b16 %v1155
        %v2549 = vunpack.c.h.b16 %v1155
        %v2550 = vunpack.c.l.b16 %v1156
        %v2551 = vunpack.c.h.b16 %v1156
        %v2552 = vunpack.c.l.b16 %v1157
        %v2553 = vunpack.c.h.b16 %v1157
        %v2554 = vunpack.c.l.b16 %v1158
        %v2555 = vunpack.c.h.b16 %v1158
        %v2556 = vunpack.c.l.b16 %v1159
        %v2557 = vunpack.c.h.b16 %v1159
        %v2558 = vunpack.c.l.b16 %v1160
        %v2559 = vunpack.c.h.b16 %v1160
        %v2560 = vunpack.c.l.b16 %v1161
        %v2561 = vunpack.c.h.b16 %v1161
        %v2562 = vunpack.c.l.b16 %v1162
        %v2563 = vunpack.c.h.b16 %v1162
        %v2564 = vunpack.c.l.b16 %v1163
        %v2565 = vunpack.c.h.b16 %v1163
        %v2566 = vunpack.c.l.b16 %v1164
        %v2567 = vunpack.c.h.b16 %v1164
        %v2568 = vunpack.c.l.b16 %v1165
        %v2569 = vunpack.c.h.b16 %v1165
        %v2570 = vunpack.c.l.b16 %v1166
        %v2571 = vunpack.c.h.b16 %v1166
        %v2572 = vunpack.c.l.b16 %v1167
        %v2573 = vunpack.c.h.b16 %v1167
        %v2574 = vunpack.c.l.b16 %v1168
        %v2575 = vunpack.c.h.b16 %v1168
        %v2576 = vunpack.c.l.b16 %v1169
        %v2577 = vunpack.c.h.b16 %v1169
        %v2578 = vunpack.c.l.b16 %v1170
        %v2579 = vunpack.c.h.b16 %v1170
        %v2580 = vunpack.c.l.b16 %v1171
        %v2581 = vunpack.c.h.b16 %v1171
        %v2582 = vunpack.c.l.b16 %v1172
        %v2583 = vunpack.c.h.b16 %v1172
        %v2584 = vunpack.c.l.b16 %v1173
        %v2585 = vunpack.c.h.b16 %v1173
        %v2586 = vunpack.c.l.b16 %v1174
        %v2587 = vunpack.c.h.b16 %v1174
        %v2588 = vunpack.c.l.b16 %v1175
        %v2589 = vunpack.c.h.b16 %v1175
        %v2590 = vunpack.c.l.b16 %v1176
        %v2591 = vunpack.c.h.b16 %v1176
        %v2592 = vunpack.c.l.b16 %v1177
        %v2593 = vunpack.c.h.b16 %v1177
        %v2594 = vunpack.c.l.b16 %v1178
        %v2595 = vunpack.c.h.b16 %v1178
        %v2596 = vunpack.c.l.b16 %v1179
        %v2597 = vunpack.c.h.b16 %v1179
        %v2598 = vunpack.c.l.b16 %v1180
        %v2599 = vunpack.c.h.b16 %v1180
        %v2600 = vunpack.c.l.b16 %v1181
        %v2601 = vunpack.c.h.b16 %v1181
        %v2602 = vunpack.c.l.b16 %v1182
        %v2603 = vunpack.c.h.b16 %v1182
        %v2604 = vunpack.c.l.b16 %v1183
        %v2605 = vunpack.c.h.b16 %v1183
        %v2606 = vunpack.c.l.b16 %v1184
        %v2607 = vunpack.c.h.b16 %v1184
        %v2608 = vunpack.c.l.b16 %v1185
        %v2609 = vunpack.c.h.b16 %v1185
        %v2610 = vunpack.c.l.b16 %v1186
        %v2611 = vunpack.c.h.b16 %v1186
        %v2612 = vunpack.c.l.b16 %v1187
        %v2613 = vunpack.c.h.b16 %v1187
        %v2614 = vunpack.c.l.b16 %v1188
        %v2615 = vunpack.c.h.b16 %v1188
        %v2616 = vunpack.c.l.b16 %v1189
        %v2617 = vunpack.c.h.b16 %v1189
        %v2618 = vunpack.c.l.b16 %v1190
        %v2619 = vunpack.c.h.b16 %v1190
        %v2620 = vunpack.c.l.b16 %v1191
        %v2621 = vunpack.c.h.b16 %v1191
        %v2622 = vunpack.c.l.b16 %v1192
        %v2623 = vunpack.c.h.b16 %v1192
        %v2624 = vunpack.c.l.b16 %v1193
        %v2625 = vunpack.c.h.b16 %v1193
        %v2626 = vunpack.c.l.b16 %v1194
        %v2627 = vunpack.c.h.b16 %v1194
        %v2628 = vunpack.c.l.b16 %v1195
        %v2629 = vunpack.c.h.b16 %v1195
        %v2630 = vunpack.c.l.b16 %v1196
        %v2631 = vunpack.c.h.b16 %v1196
        %v2632 = vunpack.c.l.b16 %v1197
        %v2633 = vunpack.c.h.b16 %v1197
        %v2634 = vunpack.c.l.b16 %v1198
        %v2635 = vunpack.c.h.b16 %v1198
        %v2636 = vunpack.c.l.b16 %v1199
        %v2637 = vunpack.c.h.b16 %v1199
        %v2638 = vunpack.c.l.b16 %v1200
        %v2639 = vunpack.c.h.b16 %v1200
        %v2640 = vunpack.c.l.b16 %v1201
        %v2641 = vunpack.c.h.b16 %v1201
        %v2642 = vunpack.c.l.b16 %v1202
        %v2643 = vunpack.c.h.b16 %v1202
        %v2644 = vunpack.c.l.b16 %v1203
        %v2645 = vunpack.c.h.b16 %v1203
        %v2646 = vunpack.c.l.b16 %v1204
        %v2647 = vunpack.c.h.b16 %v1204
        %v2648 = vunpack.c.l.b16 %v1205
        %v2649 = vunpack.c.h.b16 %v1205
        %v2650 = vunpack.c.l.b16 %v1206
        %v2651 = vunpack.c.h.b16 %v1206
        %v2652 = vunpack.c.l.b16 %v1207
        %v2653 = vunpack.c.h.b16 %v1207
        %v2654 = vunpack.c.l.b16 %v1208
        %v2655 = vunpack.c.h.b16 %v1208
        %v2656 = vunpack.c.l.b16 %v1209
        %v2657 = vunpack.c.h.b16 %v1209
        %v2658 = vunpack.c.l.b16 %v1210
        %v2659 = vunpack.c.h.b16 %v1210
        %v2660 = vunpack.c.l.b16 %v1211
        %v2661 = vunpack.c.h.b16 %v1211
        %v2662 = vunpack.c.l.b16 %v1212
        %v2663 = vunpack.c.h.b16 %v1212
        %v2664 = vunpack.c.l.b16 %v1213
        %v2665 = vunpack.c.h.b16 %v1213
        %v2666 = vunpack.c.l.b16 %v1214
        %v2667 = vunpack.c.h.b16 %v1214
        %v2668 = vunpack.c.l.b16 %v1215
        %v2669 = vunpack.c.h.b16 %v1215
        %v2670 = vunpack.c.l.b16 %v1216
        %v2671 = vunpack.c.h.b16 %v1216
        %v2672 = vunpack.c.l.b16 %v1217
        %v2673 = vunpack.c.h.b16 %v1217
        %v2674 = vunpack.c.l.b16 %v1218
        %v2675 = vunpack.c.h.b16 %v1218
        %v2676 = vunpack.c.l.b16 %v1219
        %v2677 = vunpack.c.h.b16 %v1219
        %v2678 = vunpack.c.l.b16 %v1220
        %v2679 = vunpack.c.h.b16 %v1220
        %v2680 = vunpack.c.l.b16 %v1221
        %v2681 = vunpack.c.h.b16 %v1221
        %v2682 = vunpack.c.l.b16 %v1222
        %v2683 = vunpack.c.h.b16 %v1222
        %v2684 = vunpack.c.l.b16 %v1223
        %v2685 = vunpack.c.h.b16 %v1223
        %v2686 = vunpack.c.l.b16 %v1224
        %v2687 = vunpack.c.h.b16 %v1224
        %v2688 = vunpack.c.l.b16 %v1225
        %v2689 = vunpack.c.h.b16 %v1225
        %v2690 = vunpack.c.l.b16 %v1226
        %v2691 = vunpack.c.h.b16 %v1226
        %v2692 = vunpack.c.l.b16 %v1227
        %v2693 = vunpack.c.h.b16 %v1227
        %v2694 = vunpack.c.l.b16 %v1228
        %v2695 = vunpack.c.h.b16 %v1228
        %v2696 = vunpack.c.l.b16 %v1229
        %v2697 = vunpack.c.h.b16 %v1229
        %v2698 = vunpack.c.l.b16 %v1230
        %v2699 = vunpack.c.h.b16 %v1230
        %v2700 = vunpack.c.l.b16 %v1231
        %v2701 = vunpack.c.h.b16 %v1231
        %v2702 = vunpack.c.l.b16 %v1232
        %v2703 = vunpack.c.h.b16 %v1232
        %v2704 = vunpack.c.l.b16 %v1233
        %v2705 = vunpack.c.h.b16 %v1233
        %v2706 = vunpack.c.l.b16 %v1234
        %v2707 = vunpack.c.h.b16 %v1234
        %v2708 = vunpack.c.l.b16 %v1235
        %v2709 = vunpack.c.h.b16 %v1235
        %v2710 = vunpack.c.l.b16 %v1236
        %v2711 = vunpack.c.h.b16 %v1236
        %v2712 = vunpack.c.l.b16 %v1237
        %v2713 = vunpack.c.h.b16 %v1237
        %v2714 = vunpack.c.l.b16 %v1238
        %v2715 = vunpack.c.h.b16 %v1238
        %v2716 = vunpack.c.l.b16 %v1239
        %v2717 = vunpack.c.h.b16 %v1239
        %v2718 = vunpack.c.l.b16 %v1240
        %v2719 = vunpack.c.h.b16 %v1240
        %v2720 = vunpack.c.l.b16 %v1241
        %v2721 = vunpack.c.h.b16 %v1241
        %v2722 = vunpack.c.l.b16 %v1242
        %v2723 = vunpack.c.h.b16 %v1242
        %v2724 = vunpack.c.l.b16 %v1243
        %v2725 = vunpack.c.h.b16 %v1243
        %v2726 = vunpack.c.l.b16 %v1244
        %v2727 = vunpack.c.h.b16 %v1244
        %v2728 = vunpack.c.l.b16 %v1245
        %v2729 = vunpack.c.h.b16 %v1245
        %v2730 = vunpack.c.l.b16 %v1246
        %v2731 = vunpack.c.h.b16 %v1246
        %v2732 = vunpack.c.l.b16 %v1247
        %v2733 = vunpack.c.h.b16 %v1247
        %v2734 = vunpack.c.l.b16 %v1248
        %v2735 = vunpack.c.h.b16 %v1248
        %v2736 = vunpack.c.l.b16 %v1249
        %v2737 = vunpack.c.h.b16 %v1249
        %v2738 = vunpack.c.l.b16 %v1250
        %v2739 = vunpack.c.h.b16 %v1250
        %v2740 = vunpack.c.l.b16 %v1251
        %v2741 = vunpack.c.h.b16 %v1251
        %v2742 = vunpack.c.l.b16 %v1252
        %v2743 = vunpack.c.h.b16 %v1252
        %v2744 = vunpack.c.l.b16 %v1253
        %v2745 = vunpack.c.h.b16 %v1253
        %v2746 = vunpack.c.l.b16 %v1254
        %v2747 = vunpack.c.h.b16 %v1254
        %v2748 = vunpack.c.l.b16 %v1255
        %v2749 = vunpack.c.h.b16 %v1255
        %v2750 = vunpack.c.l.b16 %v1256
        %v2751 = vunpack.c.h.b16 %v1256
        %v2752 = vunpack.c.l.b16 %v1257
        %v2753 = vunpack.c.h.b16 %v1257
        %v2754 = vunpack.c.l.b16 %v1258
        %v2755 = vunpack.c.h.b16 %v1258
        %v2756 = vunpack.c.l.b16 %v1259
        %v2757 = vunpack.c.h.b16 %v1259
        %v2758 = vunpack.c.l.b16 %v1260
        %v2759 = vunpack.c.h.b16 %v1260
        %v2760 = vunpack.c.l.b16 %v1261
        %v2761 = vunpack.c.h.b16 %v1261
        %v2762 = vunpack.c.l.b16 %v1262
        %v2763 = vunpack.c.h.b16 %v1262
        %v2764 = vunpack.c.l.b16 %v1263
        %v2765 = vunpack.c.h.b16 %v1263
        %v2766 = vunpack.c.l.b16 %v1264
        %v2767 = vunpack.c.h.b16 %v1264
        %v2768 = vunpack.c.l.b16 %v1265
        %v2769 = vunpack.c.h.b16 %v1265
        %v2770 = vunpack.c.l.b16 %v1266
        %v2771 = vunpack.c.h.b16 %v1266
        %v2772 = vunpack.c.l.b16 %v1267
        %v2773 = vunpack.c.h.b16 %v1267
        %v2774 = vunpack.c.l.b16 %v1268
        %v2775 = vunpack.c.h.b16 %v1268
        %v2776 = vunpack.c.l.b16 %v1269
        %v2777 = vunpack.c.h.b16 %v1269
        %v2778 = vunpack.c.l.b16 %v1270
        %v2779 = vunpack.c.h.b16 %v1270
        %v2780 = vunpack.c.l.b16 %v1271
        %v2781 = vunpack.c.h.b16 %v1271
        %v2782 = vunpack.c.l.b16 %v1272
        %v2783 = vunpack.c.h.b16 %v1272
        %v2784 = vunpack.c.l.b16 %v1273
        %v2785 = vunpack.c.h.b16 %v1273
        %v2786 = vunpack.c.l.b16 %v1274
        %v2787 = vunpack.c.h.b16 %v1274
        %v2788 = vunpack.c.l.b16 %v1275
        %v2789 = vunpack.c.h.b16 %v1275
        %v2790 = vunpack.c.l.b16 %v1276
        %v2791 = vunpack.c.h.b16 %v1276
        %v2792 = vunpack.c.l.b16 %v1277
        %v2793 = vunpack.c.h.b16 %v1277
        %v2794 = vunpack.c.l.b16 %v1278
        %v2795 = vunpack.c.h.b16 %v1278
        %v2796 = vunpack.c.l.b16 %v1279
        %v2797 = vunpack.c.h.b16 %v1279
        %v2798 = vunpack.c.l.b16 %v1280
        %v2799 = vunpack.c.h.b16 %v1280
        %v2800 = vunpack.c.l.b16 %v1281
        %v2801 = vunpack.c.h.b16 %v1281
        %v2802 = vunpack.c.l.b16 %v1282
        %v2803 = vunpack.c.h.b16 %v1282
        %v2804 = vunpack.c.l.b16 %v1283
        %v2805 = vunpack.c.h.b16 %v1283
        %v2806 = vunpack.c.l.b16 %v1284
        %v2807 = vunpack.c.h.b16 %v1284
        %v2808 = vunpack.c.l.b16 %v1285
        %v2809 = vunpack.c.h.b16 %v1285
        %v2810 = vunpack.c.l.b16 %v1286
        %v2811 = vunpack.c.h.b16 %v1286
        %v2812 = vunpack.c.l.b16 %v1287
        %v2813 = vunpack.c.h.b16 %v1287
        %v2814 = vunpack.c.l.b16 %v1288
        %v2815 = vunpack.c.h.b16 %v1288
        %v2816 = vunpack.c.l.b16 %v1289
        %v2817 = vunpack.c.h.b16 %v1289
        %v2818 = vunpack.c.l.b16 %v1290
        %v2819 = vunpack.c.h.b16 %v1290
        %v2820 = vunpack.c.l.b16 %v1291
        %v2821 = vunpack.c.h.b16 %v1291
        %v2822 = vunpack.c.l.b16 %v1292
        %v2823 = vunpack.c.h.b16 %v1292
        %v2824 = vunpack.c.l.b16 %v1293
        %v2825 = vunpack.c.h.b16 %v1293
        %v2826 = vunpack.c.l.b16 %v1294
        %v2827 = vunpack.c.h.b16 %v1294
        %v2828 = vunpack.c.l.b16 %v1295
        %v2829 = vunpack.c.h.b16 %v1295
        %v2830 = vunpack.c.l.b16 %v1296
        %v2831 = vunpack.c.h.b16 %v1296
        %v2832 = vunpack.c.l.b16 %v1297
        %v2833 = vunpack.c.h.b16 %v1297
        %v2834 = vunpack.c.l.b16 %v1298
        %v2835 = vunpack.c.h.b16 %v1298
        %v2836 = vunpack.c.l.b16 %v1299
        %v2837 = vunpack.c.h.b16 %v1299
        %v2838 = vunpack.c.l.b16 %v1300
        %v2839 = vunpack.c.h.b16 %v1300
        %v2840 = vunpack.c.l.b16 %v1301
        %v2841 = vunpack.c.h.b16 %v1301
        %v2842 = vunpack.c.l.b16 %v1302
        %v2843 = vunpack.c.h.b16 %v1302
        %v2844 = vunpack.c.l.b16 %v1303
        %v2845 = vunpack.c.h.b16 %v1303
        %v2846 = vunpack.c.l.b16 %v1304
        %v2847 = vunpack.c.h.b16 %v1304
        %v2848 = vunpack.c.l.b16 %v1305
        %v2849 = vunpack.c.h.b16 %v1305
        %v2850 = vunpack.c.l.b16 %v1306
        %v2851 = vunpack.c.h.b16 %v1306
        %v2852 = vunpack.c.l.b16 %v1307
        %v2853 = vunpack.c.h.b16 %v1307
        %v2854 = vunpack.c.l.b16 %v1308
        %v2855 = vunpack.c.h.b16 %v1308
        %v2856 = vunpack.c.l.b16 %v1309
        %v2857 = vunpack.c.h.b16 %v1309
        %v2858 = vunpack.c.l.b16 %v1310
        %v2859 = vunpack.c.h.b16 %v1310
        %v2860 = vunpack.c.l.b16 %v1311
        %v2861 = vunpack.c.h.b16 %v1311
        %v2862 = vunpack.c.l.b16 %v1312
        %v2863 = vunpack.c.h.b16 %v1312
        %v2864 = vunpack.c.l.b16 %v1313
        %v2865 = vunpack.c.h.b16 %v1313
        %v2866 = vunpack.c.l.b16 %v1314
        %v2867 = vunpack.c.h.b16 %v1314
        %v2868 = vunpack.c.l.b16 %v1315
        %v2869 = vunpack.c.h.b16 %v1315
        %v2870 = vunpack.c.l.b16 %v1316
        %v2871 = vunpack.c.h.b16 %v1316
        %v2872 = vunpack.c.l.b16 %v1317
        %v2873 = vunpack.c.h.b16 %v1317
        %v2874 = vunpack.c.l.b16 %v1318
        %v2875 = vunpack.c.h.b16 %v1318
        %v2876 = vunpack.c.l.b16 %v1319
        %v2877 = vunpack.c.h.b16 %v1319
        %v2878 = vunpack.c.l.b16 %v1320
        %v2879 = vunpack.c.h.b16 %v1320
        %v2880 = vunpack.c.l.b16 %v1321
        %v2881 = vunpack.c.h.b16 %v1321
        %v2882 = vunpack.c.l.b16 %v1322
        %v2883 = vunpack.c.h.b16 %v1322
        %v2884 = vunpack.c.l.b16 %v1323
        %v2885 = vunpack.c.h.b16 %v1323
        %v2886 = vunpack.c.l.b16 %v1324
        %v2887 = vunpack.c.h.b16 %v1324
        %v2888 = vunpack.c.l.b16 %v1325
        %v2889 = vunpack.c.h.b16 %v1325
        %v2890 = vunpack.c.l.b16 %v1326
        %v2891 = vunpack.c.h.b16 %v1326
        %v2892 = vunpack.c.l.b16 %v1327
        %v2893 = vunpack.c.h.b16 %v1327
        %v2894 = vunpack.c.l.b16 %v1328
        %v2895 = vunpack.c.h.b16 %v1328
        %v2896 = vunpack.c.l.b16 %v1329
        %v2897 = vunpack.c.h.b16 %v1329
        %v2898 = vunpack.c.l.b16 %v1330
        %v2899 = vunpack.c.h.b16 %v1330
        %v2900 = vunpack.c.l.b16 %v1331
        %v2901 = vunpack.c.h.b16 %v1331
        %v2902 = vunpack.c.l.b16 %v1332
        %v2903 = vunpack.c.h.b16 %v1332
        %v2904 = vunpack.c.l.b16 %v1333
        %v2905 = vunpack.c.h.b16 %v1333
        %v2906 = vunpack.c.l.b16 %v1334
        %v2907 = vunpack.c.h.b16 %v1334
        %v2908 = vunpack.c.l.b16 %v1335
        %v2909 = vunpack.c.h.b16 %v1335
        %v2910 = vunpack.c.l.b16 %v1336
        %v2911 = vunpack.c.h.b16 %v1336
        %v2912 = vunpack.c.l.b16 %v1337
        %v2913 = vunpack.c.h.b16 %v1337
        %v2914 = vunpack.c.l.b16 %v1338
        %v2915 = vunpack.c.h.b16 %v1338
        %v2916 = vunpack.c.l.b16 %v1339
        %v2917 = vunpack.c.h.b16 %v1339
        %v2918 = vpack.c.b16 %v1902, %v1894
        %v2919 = vpack.c.b16 %v1903, %v1895
        %v2920 = vpack.c.b16 %v1904, %v1896
        %v2921 = vpack.c.b16 %v1905, %v1897
        %v2922 = vpack.c.b16 %v1906, %v1898
        %v2923 = vpack.c.b16 %v1907, %v1899
        %v2924 = vpack.c.b16 %v1908, %v1900
        %v2925 = vpack.c.b16 %v1909, %v1901
        %v2926 = vpack.c.b16 %v1918, %v1910
        %v2927 = vpack.c.b16 %v1919, %v1911
        %v2928 = vpack.c.b16 %v1920, %v1912
        %v2929 = vpack.c.b16 %v1921, %v1913
        %v2930 = vpack.c.b16 %v1922, %v1914
        %v2931 = vpack.c.b16 %v1923, %v1915
        %v2932 = vpack.c.b16 %v1924, %v1916
        %v2933 = vpack.c.b16 %v1925, %v1917
        %v2934 = vpack.c.b16 %v1934, %v1926
        %v2935 = vpack.c.b16 %v1935, %v1927
        %v2936 = vpack.c.b16 %v1936, %v1928
        %v2937 = vpack.c.b16 %v1937, %v1929
        %v2938 = vpack.c.b16 %v1938, %v1930
        %v2939 = vpack.c.b16 %v1939, %v1931
        %v2940 = vpack.c.b16 %v1940, %v1932
        %v2941 = vpack.c.b16 %v1941, %v1933
        %v2942 = vpack.c.b16 %v1950, %v1942
        %v2943 = vpack.c.b16 %v1951, %v1943
        %v2944 = vpack.c.b16 %v1952, %v1944
        %v2945 = vpack.c.b16 %v1953, %v1945
        %v2946 = vpack.c.b16 %v1954, %v1946
        %v2947 = vpack.c.b16 %v1955, %v1947
        %v2948 = vpack.c.b16 %v1956, %v1948
        %v2949 = vpack.c.b16 %v1957, %v1949
        %v2950 = vpack.c.b16 %v1966, %v1958
        %v2951 = vpack.c.b16 %v1967, %v1959
        %v2952 = vpack.c.b16 %v1968, %v1960
        %v2953 = vpack.c.b16 %v1969, %v1961
        %v2954 = vpack.c.b16 %v1970, %v1962
        %v2955 = vpack.c.b16 %v1971, %v1963
        %v2956 = vpack.c.b16 %v1972, %v1964
        %v2957 = vpack.c.b16 %v1973, %v1965
        %v2958 = vpack.c.b16 %v1982, %v1974
        %v2959 = vpack.c.b16 %v1983, %v1975
        %v2960 = vpack.c.b16 %v1984, %v1976
        %v2961 = vpack.c.b16 %v1985, %v1977
        %v2962 = vpack.c.b16 %v1986, %v1978
        %v2963 = vpack.c.b16 %v1987, %v1979
        %v2964 = vpack.c.b16 %v1988, %v1980
        %v2965 = vpack.c.b16 %v1989, %v1981
        %v2966 = vpack.c.b16 %v1998, %v1990
        %v2967 = vpack.c.b16 %v1999, %v1991
        %v2968 = vpack.c.b16 %v2000, %v1992
        %v2969 = vpack.c.b16 %v2001, %v1993
        %v2970 = vpack.c.b16 %v2002, %v1994
        %v2971 = vpack.c.b16 %v2003, %v1995
        %v2972 = vpack.c.b16 %v2004, %v1996
        %v2973 = vpack.c.b16 %v2005, %v1997
        %v2974 = vpack.c.b16 %v2014, %v2006
        %v2975 = vpack.c.b16 %v2015, %v2007
        %v2976 = vpack.c.b16 %v2016, %v2008
        %v2977 = vpack.c.b16 %v2017, %v2009
        %v2978 = vpack.c.b16 %v2018, %v2010
        %v2979 = vpack.c.b16 %v2019, %v2011
        %v2980 = vpack.c.b16 %v2020, %v2012
        %v2981 = vpack.c.b16 %v2021, %v2013
        %v2982 = vpack.c.b16 %v2030, %v2022
        %v2983 = vpack.c.b16 %v2031, %v2023
        %v2984 = vpack.c.b16 %v2032, %v2024
        %v2985 = vpack.c.b16 %v2033, %v2025
        %v2986 = vpack.c.b16 %v2034, %v2026
        %v2987 = vpack.c.b16 %v2035, %v2027
        %v2988 = vpack.c.b16 %v2036, %v2028
        %v2989 = vpack.c.b16 %v2037, %v2029
        %v2990 = vpack.c.b16 %v2046, %v2038
        %v2991 = vpack.c.b16 %v2047, %v2039
        %v2992 = vpack.c.b16 %v2048, %v2040
        %v2993 = vpack.c.b16 %v2049, %v2041
        %v2994 = vpack.c.b16 %v2050, %v2042
        %v2995 = vpack.c.b16 %v2051, %v2043
        %v2996 = vpack.c.b16 %v2052, %v2044
        %v2997 = vpack.c.b16 %v2053, %v2045
        %v2998 = vpack.c.b16 %v2062, %v2054
        %v2999 = vpack.c.b16 %v2063, %v2055
        %v3000 = vpack.c.b16 %v2064, %v2056
        %v3001 = vpack.c.b16 %v2065, %v2057
        %v3002 = vpack.c.b16 %v2066, %v2058
        %v3003 = vpack.c.b16 %v2067, %v2059
        %v3004 = vpack.c.b16 %v2068, %v2060
        %v3005 = vpack.c.b16 %v2069, %v2061
        %v3006 = vpack.c.b16 %v2078, %v2070
        %v3007 = vpack.c.b16 %v2079, %v2071
        %v3008 = vpack.c.b16 %v2080, %v2072
        %v3009 = vpack.c.b16 %v2081, %v2073
        %v3010 = vpack.c.b16 %v2082, %v2074
        %v3011 = vpack.c.b16 %v2083, %v2075
        %v3012 = vpack.c.b16 %v2084, %v2076
        %v3013 = vpack.c.b16 %v2085, %v2077
        %v3014 = vpack.c.b16 %v2094, %v2086
        %v3015 = vpack.c.b16 %v2095, %v2087
        %v3016 = vpack.c.b16 %v2096, %v2088
        %v3017 = vpack.c.b16 %v2097, %v2089
        %v3018 = vpack.c.b16 %v2098, %v2090
        %v3019 = vpack.c.b16 %v2099, %v2091
        %v3020 = vpack.c.b16 %v2100, %v2092
        %v3021 = vpack.c.b16 %v2101, %v2093
        %v3022 = vpack.c.b16 %v2110, %v2102
        %v3023 = vpack.c.b16 %v2111, %v2103
        %v3024 = vpack.c.b16 %v2112, %v2104
        %v3025 = vpack.c.b16 %v2113, %v2105
        %v3026 = vpack.c.b16 %v2114, %v2106
        %v3027 = vpack.c.b16 %v2115, %v2107
        %v3028 = vpack.c.b16 %v2116, %v2108
        %v3029 = vpack.c.b16 %v2117, %v2109
        %v3030 = vpack.c.b16 %v2126, %v2118
        %v3031 = vpack.c.b16 %v2127, %v2119
        %v3032 = vpack.c.b16 %v2128, %v2120
        %v3033 = vpack.c.b16 %v2129, %v2121
        %v3034 = vpack.c.b16 %v2130, %v2122
        %v3035 = vpack.c.b16 %v2131, %v2123
        %v3036 = vpack.c.b16 %v2132, %v2124
        %v3037 = vpack.c.b16 %v2133, %v2125
        %v3038 = vpack.c.b16 %v2142, %v2134
        %v3039 = vpack.c.b16 %v2143, %v2135
        %v3040 = vpack.c.b16 %v2144, %v2136
        %v3041 = vpack.c.b16 %v2145, %v2137
        %v3042 = vpack.c.b16 %v2146, %v2138
        %v3043 = vpack.c.b16 %v2147, %v2139
        %v3044 = vpack.c.b16 %v2148, %v2140
        %v3045 = vpack.c.b16 %v2149, %v2141
        %v3046 = vpack.c.b16 %v2158, %v2150
        %v3047 = vpack.c.b16 %v2159, %v2151
        %v3048 = vpack.c.b16 %v2160, %v2152
        %v3049 = vpack.c.b16 %v2161, %v2153
        %v3050 = vpack.c.b16 %v2162, %v2154
        %v3051 = vpack.c.b16 %v2163, %v2155
        %v3052 = vpack.c.b16 %v2164, %v2156
        %v3053 = vpack.c.b16 %v2165, %v2157
        %v3054 = vpack.c.b16 %v2174, %v2166
        %v3055 = vpack.c.b16 %v2175, %v2167
        %v3056 = vpack.c.b16 %v2176, %v2168
        %v3057 = vpack.c.b16 %v2177, %v2169
        %v3058 = vpack.c.b16 %v2178, %v2170
        %v3059 = vpack.c.b16 %v2179, %v2171
        %v3060 = vpack.c.b16 %v2180, %v2172
        %v3061 = vpack.c.b16 %v2181, %v2173
        %v3062 = vpack.c.b16 %v2190, %v2182
        %v3063 = vpack.c.b16 %v2191, %v2183
        %v3064 = vpack.c.b16 %v2192, %v2184
        %v3065 = vpack.c.b16 %v2193, %v2185
        %v3066 = vpack.c.b16 %v2194, %v2186
        %v3067 = vpack.c.b16 %v2195, %v2187
        %v3068 = vpack.c.b16 %v2196, %v2188
        %v3069 = vpack.c.b16 %v2197, %v2189
        %v3070 = vpack.c.b16 %v2206, %v2198
        %v3071 = vpack.c.b16 %v2207, %v2199
        %v3072 = vpack.c.b16 %v2208, %v2200
        %v3073 = vpack.c.b16 %v2209, %v2201
        %v3074 = vpack.c.b16 %v2210, %v2202
        %v3075 = vpack.c.b16 %v2211, %v2203
        %v3076 = vpack.c.b16 %v2212, %v2204
        %v3077 = vpack.c.b16 %v2213, %v2205
        %v3078 = vpack.c.b16 %v2222, %v2214
        %v3079 = vpack.c.b16 %v2223, %v2215
        %v3080 = vpack.c.b16 %v2224, %v2216
        %v3081 = vpack.c.b16 %v2225, %v2217
        %v3082 = vpack.c.b16 %v2226, %v2218
        %v3083 = vpack.c.b16 %v2227, %v2219
        %v3084 = vpack.c.b16 %v2228, %v2220
        %v3085 = vpack.c.b16 %v2229, %v2221
        %v3086 = vpack.c.b16 %v2238, %v2230
        %v3087 = vpack.c.b16 %v2239, %v2231
        %v3088 = vpack.c.b16 %v2240, %v2232
        %v3089 = vpack.c.b16 %v2241, %v2233
        %v3090 = vpack.c.b16 %v2242, %v2234
        %v3091 = vpack.c.b16 %v2243, %v2235
        %v3092 = vpack.c.b16 %v2244, %v2236
        %v3093 = vpack.c.b16 %v2245, %v2237
        %v3094 = vpack.c.b16 %v2254, %v2246
        %v3095 = vpack.c.b16 %v2255, %v2247
        %v3096 = vpack.c.b16 %v2256, %v2248
        %v3097 = vpack.c.b16 %v2257, %v2249
        %v3098 = vpack.c.b16 %v2258, %v2250
        %v3099 = vpack.c.b16 %v2259, %v2251
        %v3100 = vpack.c.b16 %v2260, %v2252
        %v3101 = vpack.c.b16 %v2261, %v2253
        %v3102 = vpack.c.b16 %v2270, %v2262
        %v3103 = vpack.c.b16 %v2271, %v2263
        %v3104 = vpack.c.b16 %v2272, %v2264
        %v3105 = vpack.c.b16 %v2273, %v2265
        %v3106 = vpack.c.b16 %v2274, %v2266
        %v3107 = vpack.c.b16 %v2275, %v2267
        %v3108 = vpack.c.b16 %v2276, %v2268
        %v3109 = vpack.c.b16 %v2277, %v2269
        %v3110 = vpack.c.b16 %v2286, %v2278
        %v3111 = vpack.c.b16 %v2287, %v2279
        %v3112 = vpack.c.b16 %v2288, %v2280
        %v3113 = vpack.c.b16 %v2289, %v2281
        %v3114 = vpack.c.b16 %v2290, %v2282
        %v3115 = vpack.c.b16 %v2291, %v2283
        %v3116 = vpack.c.b16 %v2292, %v2284
        %v3117 = vpack.c.b16 %v2293, %v2285
        %v3118 = vpack.c.b16 %v2302, %v2294
        %v3119 = vpack.c.b16 %v2303, %v2295
        %v3120 = vpack.c.b16 %v2304, %v2296
        %v3121 = vpack.c.b16 %v2305, %v2297
        %v3122 = vpack.c.b16 %v2306, %v2298
        %v3123 = vpack.c.b16 %v2307, %v2299
        %v3124 = vpack.c.b16 %v2308, %v2300
        %v3125 = vpack.c.b16 %v2309, %v2301
        %v3126 = vpack.c.b16 %v2318, %v2310
        %v3127 = vpack.c.b16 %v2319, %v2311
        %v3128 = vpack.c.b16 %v2320, %v2312
        %v3129 = vpack.c.b16 %v2321, %v2313
        %v3130 = vpack.c.b16 %v2322, %v2314
        %v3131 = vpack.c.b16 %v2323, %v2315
        %v3132 = vpack.c.b16 %v2324, %v2316
        %v3133 = vpack.c.b16 %v2325, %v2317
        %v3134 = vpack.c.b16 %v2334, %v2326
        %v3135 = vpack.c.b16 %v2335, %v2327
        %v3136 = vpack.c.b16 %v2336, %v2328
        %v3137 = vpack.c.b16 %v2337, %v2329
        %v3138 = vpack.c.b16 %v2338, %v2330
        %v3139 = vpack.c.b16 %v2339, %v2331
        %v3140 = vpack.c.b16 %v2340, %v2332
        %v3141 = vpack.c.b16 %v2341, %v2333
        %v3142 = vpack.c.b16 %v2350, %v2342
        %v3143 = vpack.c.b16 %v2351, %v2343
        %v3144 = vpack.c.b16 %v2352, %v2344
        %v3145 = vpack.c.b16 %v2353, %v2345
        %v3146 = vpack.c.b16 %v2354, %v2346
        %v3147 = vpack.c.b16 %v2355, %v2347
        %v3148 = vpack.c.b16 %v2356, %v2348
        %v3149 = vpack.c.b16 %v2357, %v2349
        %v3150 = vpack.c.b16 %v2366, %v2358
        %v3151 = vpack.c.b16 %v2367, %v2359
        %v3152 = vpack.c.b16 %v2368, %v2360
        %v3153 = vpack.c.b16 %v2369, %v2361
        %v3154 = vpack.c.b16 %v2370, %v2362
        %v3155 = vpack.c.b16 %v2371, %v2363
        %v3156 = vpack.c.b16 %v2372, %v2364
        %v3157 = vpack.c.b16 %v2373, %v2365
        %v3158 = vpack.c.b16 %v2382, %v2374
        %v3159 = vpack.c.b16 %v2383, %v2375
        %v3160 = vpack.c.b16 %v2384, %v2376
        %v3161 = vpack.c.b16 %v2385, %v2377
        %v3162 = vpack.c.b16 %v2386, %v2378
        %v3163 = vpack.c.b16 %v2387, %v2379
        %v3164 = vpack.c.b16 %v2388, %v2380
        %v3165 = vpack.c.b16 %v2389, %v2381
        %v3166 = vpack.c.b16 %v2398, %v2390
        %v3167 = vpack.c.b16 %v2399, %v2391
        %v3168 = vpack.c.b16 %v2400, %v2392
        %v3169 = vpack.c.b16 %v2401, %v2393
        %v3170 = vpack.c.b16 %v2402, %v2394
        %v3171 = vpack.c.b16 %v2403, %v2395
        %v3172 = vpack.c.b16 %v2404, %v2396
        %v3173 = vpack.c.b16 %v2405, %v2397
        %v3174 = vpack.c.b16 %v2414, %v2406
        %v3175 = vpack.c.b16 %v2415, %v2407
        %v3176 = vpack.c.b16 %v2416, %v2408
        %v3177 = vpack.c.b16 %v2417, %v2409
        %v3178 = vpack.c.b16 %v2418, %v2410
        %v3179 = vpack.c.b16 %v2419, %v2411
        %v3180 = vpack.c.b16 %v2420, %v2412
        %v3181 = vpack.c.b16 %v2421, %v2413
        %v3182 = vpack.c.b16 %v2430, %v2422
        %v3183 = vpack.c.b16 %v2431, %v2423
        %v3184 = vpack.c.b16 %v2432, %v2424
        %v3185 = vpack.c.b16 %v2433, %v2425
        %v3186 = vpack.c.b16 %v2434, %v2426
        %v3187 = vpack.c.b16 %v2435, %v2427
        %v3188 = vpack.c.b16 %v2436, %v2428
        %v3189 = vpack.c.b16 %v2437, %v2429
        %v3190 = vpack.c.b16 %v2446, %v2438
        %v3191 = vpack.c.b16 %v2447, %v2439
        %v3192 = vpack.c.b16 %v2448, %v2440
        %v3193 = vpack.c.b16 %v2449, %v2441
        %v3194 = vpack.c.b16 %v2450, %v2442
        %v3195 = vpack.c.b16 %v2451, %v2443
        %v3196 = vpack.c.b16 %v2452, %v2444
        %v3197 = vpack.c.b16 %v2453, %v2445
        %v3198 = vpack.c.b16 %v2462, %v2454
        %v3199 = vpack.c.b16 %v2463, %v2455
        %v3200 = vpack.c.b16 %v2464, %v2456
        %v3201 = vpack.c.b16 %v2465, %v2457
        %v3202 = vpack.c.b16 %v2466, %v2458
        %v3203 = vpack.c.b16 %v2467, %v2459
        %v3204 = vpack.c.b16 %v2468, %v2460
        %v3205 = vpack.c.b16 %v2469, %v2461
        %v3206 = vpack.c.b16 %v2478, %v2470
        %v3207 = vpack.c.b16 %v2479, %v2471
        %v3208 = vpack.c.b16 %v2480, %v2472
        %v3209 = vpack.c.b16 %v2481, %v2473
        %v3210 = vpack.c.b16 %v2482, %v2474
        %v3211 = vpack.c.b16 %v2483, %v2475
        %v3212 = vpack.c.b16 %v2484, %v2476
        %v3213 = vpack.c.b16 %v2485, %v2477
        %v3214 = vpack.c.b16 %v2494, %v2486
        %v3215 = vpack.c.b16 %v2495, %v2487
        %v3216 = vpack.c.b16 %v2496, %v2488
        %v3217 = vpack.c.b16 %v2497, %v2489
        %v3218 = vpack.c.b16 %v2498, %v2490
        %v3219 = vpack.c.b16 %v2499, %v2491
        %v3220 = vpack.c.b16 %v2500, %v2492
        %v3221 = vpack.c.b16 %v2501, %v2493
        %v3222 = vpack.c.b16 %v2510, %v2502
        %v3223 = vpack.c.b16 %v2511, %v2503
        %v3224 = vpack.c.b16 %v2512, %v2504
        %v3225 = vpack.c.b16 %v2513, %v2505
        %v3226 = vpack.c.b16 %v2514, %v2506
        %v3227 = vpack.c.b16 %v2515, %v2507
        %v3228 = vpack.c.b16 %v2516, %v2508
        %v3229 = vpack.c.b16 %v2517, %v2509
        %v3230 = vpack.c.b16 %v2526, %v2518
        %v3231 = vpack.c.b16 %v2527, %v2519
        %v3232 = vpack.c.b16 %v2528, %v2520
        %v3233 = vpack.c.b16 %v2529, %v2521
        %v3234 = vpack.c.b16 %v2530, %v2522
        %v3235 = vpack.c.b16 %v2531, %v2523
        %v3236 = vpack.c.b16 %v2532, %v2524
        %v3237 = vpack.c.b16 %v2533, %v2525
        %v3238 = vpack.c.b16 %v2542, %v2534
        %v3239 = vpack.c.b16 %v2543, %v2535
        %v3240 = vpack.c.b16 %v2544, %v2536
        %v3241 = vpack.c.b16 %v2545, %v2537
        %v3242 = vpack.c.b16 %v2546, %v2538
        %v3243 = vpack.c.b16 %v2547, %v2539
        %v3244 = vpack.c.b16 %v2548, %v2540
        %v3245 = vpack.c.b16 %v2549, %v2541
        %v3246 = vpack.c.b16 %v2558, %v2550
        %v3247 = vpack.c.b16 %v2559, %v2551
        %v3248 = vpack.c.b16 %v2560, %v2552
        %v3249 = vpack.c.b16 %v2561, %v2553
        %v3250 = vpack.c.b16 %v2562, %v2554
        %v3251 = vpack.c.b16 %v2563, %v2555
        %v3252 = vpack.c.b16 %v2564, %v2556
        %v3253 = vpack.c.b16 %v2565, %v2557
        %v3254 = vpack.c.b16 %v2574, %v2566
        %v3255 = vpack.c.b16 %v2575, %v2567
        %v3256 = vpack.c.b16 %v2576, %v2568
        %v3257 = vpack.c.b16 %v2577, %v2569
        %v3258 = vpack.c.b16 %v2578, %v2570
        %v3259 = vpack.c.b16 %v2579, %v2571
        %v3260 = vpack.c.b16 %v2580, %v2572
        %v3261 = vpack.c.b16 %v2581, %v2573
        %v3262 = vpack.c.b16 %v2590, %v2582
        %v3263 = vpack.c.b16 %v2591, %v2583
        %v3264 = vpack.c.b16 %v2592, %v2584
        %v3265 = vpack.c.b16 %v2593, %v2585
        %v3266 = vpack.c.b16 %v2594, %v2586
        %v3267 = vpack.c.b16 %v2595, %v2587
        %v3268 = vpack.c.b16 %v2596, %v2588
        %v3269 = vpack.c.b16 %v2597, %v2589
        %v3270 = vpack.c.b16 %v2606, %v2598
        %v3271 = vpack.c.b16 %v2607, %v2599
        %v3272 = vpack.c.b16 %v2608, %v2600
        %v3273 = vpack.c.b16 %v2609, %v2601
        %v3274 = vpack.c.b16 %v2610, %v2602
        %v3275 = vpack.c.b16 %v2611, %v2603
        %v3276 = vpack.c.b16 %v2612, %v2604
        %v3277 = vpack.c.b16 %v2613, %v2605
        %v3278 = vpack.c.b16 %v2622, %v2614
        %v3279 = vpack.c.b16 %v2623, %v2615
        %v3280 = vpack.c.b16 %v2624, %v2616
        %v3281 = vpack.c.b16 %v2625, %v2617
        %v3282 = vpack.c.b16 %v2626, %v2618
        %v3283 = vpack.c.b16 %v2627, %v2619
        %v3284 = vpack.c.b16 %v2628, %v2620
        %v3285 = vpack.c.b16 %v2629, %v2621
        %v3286 = vpack.c.b16 %v2638, %v2630
        %v3287 = vpack.c.b16 %v2639, %v2631
        %v3288 = vpack.c.b16 %v2640, %v2632
        %v3289 = vpack.c.b16 %v2641, %v2633
        %v3290 = vpack.c.b16 %v2642, %v2634
        %v3291 = vpack.c.b16 %v2643, %v2635
        %v3292 = vpack.c.b16 %v2644, %v2636
        %v3293 = vpack.c.b16 %v2645, %v2637
        %v3294 = vpack.c.b16 %v2654, %v2646
        %v3295 = vpack.c.b16 %v2655, %v2647
        %v3296 = vpack.c.b16 %v2656, %v2648
        %v3297 = vpack.c.b16 %v2657, %v2649
        %v3298 = vpack.c.b16 %v2658, %v2650
        %v3299 = vpack.c.b16 %v2659, %v2651
        %v3300 = vpack.c.b16 %v2660, %v2652
        %v3301 = vpack.c.b16 %v2661, %v2653
        %v3302 = vpack.c.b16 %v2670, %v2662
        %v3303 = vpack.c.b16 %v2671, %v2663
        %v3304 = vpack.c.b16 %v2672, %v2664
        %v3305 = vpack.c.b16 %v2673, %v2665
        %v3306 = vpack.c.b16 %v2674, %v2666
        %v3307 = vpack.c.b16 %v2675, %v2667
        %v3308 = vpack.c.b16 %v2676, %v2668
        %v3309 = vpack.c.b16 %v2677, %v2669
        %v3310 = vpack.c.b16 %v2686, %v2678
        %v3311 = vpack.c.b16 %v2687, %v2679
        %v3312 = vpack.c.b16 %v2688, %v2680
        %v3313 = vpack.c.b16 %v2689, %v2681
        %v3314 = vpack.c.b16 %v2690, %v2682
        %v3315 = vpack.c.b16 %v2691, %v2683
        %v3316 = vpack.c.b16 %v2692, %v2684
        %v3317 = vpack.c.b16 %v2693, %v2685
        %v3318 = vpack.c.b16 %v2702, %v2694
        %v3319 = vpack.c.b16 %v2703, %v2695
        %v3320 = vpack.c.b16 %v2704, %v2696
        %v3321 = vpack.c.b16 %v2705, %v2697
        %v3322 = vpack.c.b16 %v2706, %v2698
        %v3323 = vpack.c.b16 %v2707, %v2699
        %v3324 = vpack.c.b16 %v2708, %v2700
        %v3325 = vpack.c.b16 %v2709, %v2701
        %v3326 = vpack.c.b16 %v2718, %v2710
        %v3327 = vpack.c.b16 %v2719, %v2711
        %v3328 = vpack.c.b16 %v2720, %v2712
        %v3329 = vpack.c.b16 %v2721, %v2713
        %v3330 = vpack.c.b16 %v2722, %v2714
        %v3331 = vpack.c.b16 %v2723, %v2715
        %v3332 = vpack.c.b16 %v2724, %v2716
        %v3333 = vpack.c.b16 %v2725, %v2717
        %v3334 = vpack.c.b16 %v2734, %v2726
        %v3335 = vpack.c.b16 %v2735, %v2727
        %v3336 = vpack.c.b16 %v2736, %v2728
        %v3337 = vpack.c.b16 %v2737, %v2729
        %v3338 = vpack.c.b16 %v2738, %v2730
        %v3339 = vpack.c.b16 %v2739, %v2731
        %v3340 = vpack.c.b16 %v2740, %v2732
        %v3341 = vpack.c.b16 %v2741, %v2733
        %v3342 = vpack.c.b16 %v2750, %v2742
        %v3343 = vpack.c.b16 %v2751, %v2743
        %v3344 = vpack.c.b16 %v2752, %v2744
        %v3345 = vpack.c.b16 %v2753, %v2745
        %v3346 = vpack.c.b16 %v2754, %v2746
        %v3347 = vpack.c.b16 %v2755, %v2747
        %v3348 = vpack.c.b16 %v2756, %v2748
        %v3349 = vpack.c.b16 %v2757, %v2749
        %v3350 = vpack.c.b16 %v2766, %v2758
        %v3351 = vpack.c.b16 %v2767, %v2759
        %v3352 = vpack.c.b16 %v2768, %v2760
        %v3353 = vpack.c.b16 %v2769, %v2761
        %v3354 = vpack.c.b16 %v2770, %v2762
        %v3355 = vpack.c.b16 %v2771, %v2763
        %v3356 = vpack.c.b16 %v2772, %v2764
        %v3357 = vpack.c.b16 %v2773, %v2765
        %v3358 = vpack.c.b16 %v2782, %v2774
        %v3359 = vpack.c.b16 %v2783, %v2775
        %v3360 = vpack.c.b16 %v2784, %v2776
        %v3361 = vpack.c.b16 %v2785, %v2777
        %v3362 = vpack.c.b16 %v2786, %v2778
        %v3363 = vpack.c.b16 %v2787, %v2779
        %v3364 = vpack.c.b16 %v2788, %v2780
        %v3365 = vpack.c.b16 %v2789, %v2781
        %v3366 = vpack.c.b16 %v2798, %v2790
        %v3367 = vpack.c.b16 %v2799, %v2791
        %v3368 = vpack.c.b16 %v2800, %v2792
        %v3369 = vpack.c.b16 %v2801, %v2793
        %v3370 = vpack.c.b16 %v2802, %v2794
        %v3371 = vpack.c.b16 %v2803, %v2795
        %v3372 = vpack.c.b16 %v2804, %v2796
        %v3373 = vpack.c.b16 %v2805, %v2797
        %v3374 = vpack.c.b16 %v2814, %v2806
        %v3375 = vpack.c.b16 %v2815, %v2807
        %v3376 = vpack.c.b16 %v2816, %v2808
        %v3377 = vpack.c.b16 %v2817, %v2809
        %v3378 = vpack.c.b16 %v2818, %v2810
        %v3379 = vpack.c.b16 %v2819, %v2811
        %v3380 = vpack.c.b16 %v2820, %v2812
        %v3381 = vpack.c.b16 %v2821, %v2813
        %v3382 = vpack.c.b16 %v2830, %v2822
        %v3383 = vpack.c.b16 %v2831, %v2823
        %v3384 = vpack.c.b16 %v2832, %v2824
        %v3385 = vpack.c.b16 %v2833, %v2825
        %v3386 = vpack.c.b16 %v2834, %v2826
        %v3387 = vpack.c.b16 %v2835, %v2827
        %v3388 = vpack.c.b16 %v2836, %v2828
        %v3389 = vpack.c.b16 %v2837, %v2829
        %v3390 = vpack.c.b16 %v2846, %v2838
        %v3391 = vpack.c.b16 %v2847, %v2839
        %v3392 = vpack.c.b16 %v2848, %v2840
        %v3393 = vpack.c.b16 %v2849, %v2841
        %v3394 = vpack.c.b16 %v2850, %v2842
        %v3395 = vpack.c.b16 %v2851, %v2843
        %v3396 = vpack.c.b16 %v2852, %v2844
        %v3397 = vpack.c.b16 %v2853, %v2845
        %v3398 = vpack.c.b16 %v2862, %v2854
        %v3399 = vpack.c.b16 %v2863, %v2855
        %v3400 = vpack.c.b16 %v2864, %v2856
        %v3401 = vpack.c.b16 %v2865, %v2857
        %v3402 = vpack.c.b16 %v2866, %v2858
        %v3403 = vpack.c.b16 %v2867, %v2859
        %v3404 = vpack.c.b16 %v2868, %v2860
        %v3405 = vpack.c.b16 %v2869, %v2861
        %v3406 = vpack.c.b16 %v2878, %v2870
        %v3407 = vpack.c.b16 %v2879, %v2871
        %v3408 = vpack.c.b16 %v2880, %v2872
        %v3409 = vpack.c.b16 %v2881, %v2873
        %v3410 = vpack.c.b16 %v2882, %v2874
        %v3411 = vpack.c.b16 %v2883, %v2875
        %v3412 = vpack.c.b16 %v2884, %v2876
        %v3413 = vpack.c.b16 %v2885, %v2877
        %v3414 = vpack.c.b16 %v2894, %v2886
        %v3415 = vpack.c.b16 %v2895, %v2887
        %v3416 = vpack.c.b16 %v2896, %v2888
        %v3417 = vpack.c.b16 %v2897, %v2889
        %v3418 = vpack.c.b16 %v2898, %v2890
        %v3419 = vpack.c.b16 %v2899, %v2891
        %v3420 = vpack.c.b16 %v2900, %v2892
        %v3421 = vpack.c.b16 %v2901, %v2893
        %v3422 = vpack.c.b16 %v2910, %v2902
        %v3423 = vpack.c.b16 %v2911, %v2903
        %v3424 = vpack.c.b16 %v2912, %v2904
        %v3425 = vpack.c.b16 %v2913, %v2905
        %v3426 = vpack.c.b16 %v2914, %v2906
        %v3427 = vpack.c.b16 %v2915, %v2907
        %v3428 = vpack.c.b16 %v2916, %v2908
        %v3429 = vpack.c.b16 %v2917, %v2909
        %3942 = vmatprep.subr.bf16.mxu0 %v2919
        %3943 = vmatpush1.bf16.msra.mxu0 %v2918
        %3944 = vmatprep.subr.bf16.mxu0 %v2927
        %3945 = vmatpush1.bf16.msra.mxu0 %v2926
        %3946 = vmatprep.subr.bf16.mxu0 %v2935
        %3947 = vmatpush1.bf16.msra.mxu0 %v2934
        %3948 = vmatprep.subr.bf16.mxu0 %v2943
        %3949 = vmatpush1.bf16.msra.mxu0 %v2942
        %3950 = vmatprep.subr.bf16.mxu0 %v2951
        %3951 = vmatpush1.bf16.msra.mxu0 %v2950
        %3952 = vmatprep.subr.bf16.mxu0 %v2959
        %3953 = vmatpush1.bf16.msra.mxu0 %v2958
        %3954 = vmatprep.subr.bf16.mxu0 %v2967
        %3955 = vmatpush1.bf16.msra.mxu0 %v2966
        %3956 = vmatprep.subr.bf16.mxu0 %v2975
        %3957 = vmatpush1.bf16.msra.mxu0 %v2974
        %3958 = vmatprep.subr.bf16.mxu0 %v2983
        %3959 = vmatpush1.bf16.msra.mxu0 %v2982
        %3960 = vmatprep.subr.bf16.mxu0 %v2991
        %3961 = vmatpush1.bf16.msra.mxu0 %v2990
        %3962 = vmatprep.subr.bf16.mxu0 %v2999
        %3963 = vmatpush1.bf16.msra.mxu0 %v2998
        %3964 = vmatprep.subr.bf16.mxu0 %v3007
        %3965 = vmatpush1.bf16.msra.mxu0 %v3006
        %3966 = vmatprep.subr.bf16.mxu0 %v3015
        %3967 = vmatpush1.bf16.msra.mxu0 %v3014
        %3968 = vmatprep.subr.bf16.mxu0 %v3023
        %3969 = vmatpush1.bf16.msra.mxu0 %v3022
        %3970 = vmatprep.subr.bf16.mxu0 %v3031
        %3971 = vmatpush1.bf16.msra.mxu0 %v3030
        %3972 = vmatprep.subr.bf16.mxu0 %v3039
        %3973 = vmatpush1.bf16.msra.mxu0 %v3038
        %3974 = vmatprep.mubr.bf16.mxu0 %v821
        %3975 = vmatmul.mubr.bf16.gmra.mrb[0].mxu0 %v820
        %v3976 = vpop.f32.mrb[0].mxu0
        %v3977 = vadd.f32 %v1345, %v3976
        %v3978 = vpop.f32.mrb[0].mxu0
        %v3979 = vadd.f32 %v1349, %v3978
        %v3980 = vpop.f32.mrb[0].mxu0
        %v3981 = vpop.f32.mrb[0].mxu0
        %3982 = vdwg.mxu0
        %3983 = vmatprep.subr.bf16.mxu0 %v3047
        %3984 = vmatpush1.bf16.msra.mxu0 %v3046
        %3985 = vmatprep.subr.bf16.mxu0 %v3055
        %3986 = vmatpush1.bf16.msra.mxu0 %v3054
        %3987 = vmatprep.subr.bf16.mxu0 %v3063
        %3988 = vmatpush1.bf16.msra.mxu0 %v3062
        %3989 = vmatprep.subr.bf16.mxu0 %v3071
        %3990 = vmatpush1.bf16.msra.mxu0 %v3070
        %3991 = vmatprep.subr.bf16.mxu0 %v3079
        %3992 = vmatpush1.bf16.msra.mxu0 %v3078
        %3993 = vmatprep.subr.bf16.mxu0 %v3087
        %3994 = vmatpush1.bf16.msra.mxu0 %v3086
        %3995 = vmatprep.subr.bf16.mxu0 %v3095
        %3996 = vmatpush1.bf16.msra.mxu0 %v3094
        %3997 = vmatprep.subr.bf16.mxu0 %v3103
        %3998 = vmatpush1.bf16.msra.mxu0 %v3102
        %3999 = vmatprep.subr.bf16.mxu0 %v3111
        %4000 = vmatpush1.bf16.msra.mxu0 %v3110
        %4001 = vmatprep.subr.bf16.mxu0 %v3119
        %4002 = vmatpush1.bf16.msra.mxu0 %v3118
        %4003 = vmatprep.subr.bf16.mxu0 %v3127
        %4004 = vmatpush1.bf16.msra.mxu0 %v3126
        %4005 = vmatprep.subr.bf16.mxu0 %v3135
        %4006 = vmatpush1.bf16.msra.mxu0 %v3134
        %4007 = vmatprep.subr.bf16.mxu0 %v3143
        %4008 = vmatpush1.bf16.msra.mxu0 %v3142
        %4009 = vmatprep.subr.bf16.mxu0 %v3151
        %4010 = vmatpush1.bf16.msra.mxu0 %v3150
        %4011 = vmatprep.subr.bf16.mxu0 %v3159
        %4012 = vmatpush1.bf16.msra.mxu0 %v3158
        %4013 = vmatprep.subr.bf16.mxu0 %v3167
        %4014 = vmatpush1.bf16.msra.mxu0 %v3166
        %4015 = vmatprep.mubr.bf16.mxu0 %v823
        %4016 = vmatmul.mubr.bf16.gmra.mrb[0].mxu0 %v822
        %v4017 = vpop.f32.mrb[0].mxu0
        %v4018 = vadd.f32 %v3977, %v4017
        %v4019 = vpop.f32.mrb[0].mxu0
        %v4020 = vadd.f32 %v3979, %v4019
        %v4021 = vpop.f32.mrb[0].mxu0
        %v4022 = vpop.f32.mrb[0].mxu0
        %4023 = vdwg.mxu0
        %4024 = vmatprep.subr.bf16.mxu0 %v3175
        %4025 = vmatpush1.bf16.msra.mxu0 %v3174
        %4026 = vmatprep.subr.bf16.mxu0 %v3183
        %4027 = vmatpush1.bf16.msra.mxu0 %v3182
        %4028 = vmatprep.subr.bf16.mxu0 %v3191
        %4029 = vmatpush1.bf16.msra.mxu0 %v3190
        %4030 = vmatprep.subr.bf16.mxu0 %v3199
        %4031 = vmatpush1.bf16.msra.mxu0 %v3198
        %4032 = vmatprep.subr.bf16.mxu0 %v3207
        %4033 = vmatpush1.bf16.msra.mxu0 %v3206
        %4034 = vmatprep.subr.bf16.mxu0 %v3215
        %4035 = vmatpush1.bf16.msra.mxu0 %v3214
        %4036 = vmatprep.subr.bf16.mxu0 %v3223
        %4037 = vmatpush1.bf16.msra.mxu0 %v3222
        %4038 = vmatprep.subr.bf16.mxu0 %v3231
        %4039 = vmatpush1.bf16.msra.mxu0 %v3230
        %4040 = vmatprep.subr.bf16.mxu0 %v3239
        %4041 = vmatpush1.bf16.msra.mxu0 %v3238
        %4042 = vmatprep.subr.bf16.mxu0 %v3247
        %4043 = vmatpush1.bf16.msra.mxu0 %v3246
        %4044 = vmatprep.subr.bf16.mxu0 %v3255
        %4045 = vmatpush1.bf16.msra.mxu0 %v3254
        %4046 = vmatprep.subr.bf16.mxu0 %v3263
        %4047 = vmatpush1.bf16.msra.mxu0 %v3262
        %4048 = vmatprep.subr.bf16.mxu0 %v3271
        %4049 = vmatpush1.bf16.msra.mxu0 %v3270
        %4050 = vmatprep.subr.bf16.mxu0 %v3279
        %4051 = vmatpush1.bf16.msra.mxu0 %v3278
        %4052 = vmatprep.subr.bf16.mxu0 %v3287
        %4053 = vmatpush1.bf16.msra.mxu0 %v3286
        %4054 = vmatprep.subr.bf16.mxu0 %v3295
        %4055 = vmatpush1.bf16.msra.mxu0 %v3294
        %4056 = vmatprep.mubr.bf16.mxu0 %v825
        %4057 = vmatmul.mubr.bf16.gmra.mrb[0].mxu0 %v824
        %v4058 = vpop.f32.mrb[0].mxu0
        %v4059 = vadd.f32 %v4018, %v4058
        %v4060 = vpop.f32.mrb[0].mxu0
        %v4061 = vadd.f32 %v4020, %v4060
        %v4062 = vpop.f32.mrb[0].mxu0
        %v4063 = vpop.f32.mrb[0].mxu0
        %4064 = vdwg.mxu0
        %4065 = vmatprep.subr.bf16.mxu0 %v3303
        %4066 = vmatpush1.bf16.msra.mxu0 %v3302
        %4067 = vmatprep.subr.bf16.mxu0 %v3311
        %4068 = vmatpush1.bf16.msra.mxu0 %v3310
        %4069 = vmatprep.subr.bf16.mxu0 %v3319
        %4070 = vmatpush1.bf16.msra.mxu0 %v3318
        %4071 = vmatprep.subr.bf16.mxu0 %v3327
        %4072 = vmatpush1.bf16.msra.mxu0 %v3326
        %4073 = vmatprep.subr.bf16.mxu0 %v3335
        %4074 = vmatpush1.bf16.msra.mxu0 %v3334
        %4075 = vmatprep.subr.bf16.mxu0 %v3343
        %4076 = vmatpush1.bf16.msra.mxu0 %v3342
        %4077 = vmatprep.subr.bf16.mxu0 %v3351
        %4078 = vmatpush1.bf16.msra.mxu0 %v3350
        %4079 = vmatprep.subr.bf16.mxu0 %v3359
        %4080 = vmatpush1.bf16.msra.mxu0 %v3358
        %4081 = vmatprep.subr.bf16.mxu0 %v3367
        %4082 = vmatpush1.bf16.msra.mxu0 %v3366
        %4083 = vmatprep.subr.bf16.mxu0 %v3375
        %4084 = vmatpush1.bf16.msra.mxu0 %v3374
        %4085 = vmatprep.subr.bf16.mxu0 %v3383
        %4086 = vmatpush1.bf16.msra.mxu0 %v3382
        %4087 = vmatprep.subr.bf16.mxu0 %v3391
        %4088 = vmatpush1.bf16.msra.mxu0 %v3390
        %4089 = vmatprep.subr.bf16.mxu0 %v3399
        %4090 = vmatpush1.bf16.msra.mxu0 %v3398
        %4091 = vmatprep.subr.bf16.mxu0 %v3407
        %4092 = vmatpush1.bf16.msra.mxu0 %v3406
        %4093 = vmatprep.subr.bf16.mxu0 %v3415
        %4094 = vmatpush1.bf16.msra.mxu0 %v3414
        %4095 = vmatprep.subr.bf16.mxu0 %v3423
        %4096 = vmatpush1.bf16.msra.mxu0 %v3422
        %4097 = vmatprep.mubr.bf16.mxu0 %v827
        %4098 = vmatmul.mubr.bf16.gmra.mrb[0].mxu0 %v826
        %v4099 = vpop.f32.mrb[0].mxu0
        %v4100 = vadd.f32 %v4059, %v4099
        %v4101 = vpop.f32.mrb[0].mxu0
        %v4102 = vadd.f32 %v4061, %v4101
        %v4103 = vpop.f32.mrb[0].mxu0
        %v4104 = vpop.f32.mrb[0].mxu0
        %4105 = vdwg.mxu0
        %4106 = vmatprep.subr.bf16.mxu0 %v2921
        %4107 = vmatpush1.bf16.msra.mxu0 %v2920
        %4108 = vmatprep.subr.bf16.mxu0 %v2929
        %4109 = vmatpush1.bf16.msra.mxu0 %v2928
        %4110 = vmatprep.subr.bf16.mxu0 %v2937
        %4111 = vmatpush1.bf16.msra.mxu0 %v2936
        %4112 = vmatprep.subr.bf16.mxu0 %v2945
        %4113 = vmatpush1.bf16.msra.mxu0 %v2944
        %4114 = vmatprep.subr.bf16.mxu0 %v2953
        %4115 = vmatpush1.bf16.msra.mxu0 %v2952
        %4116 = vmatprep.subr.bf16.mxu0 %v2961
        %4117 = vmatpush1.bf16.msra.mxu0 %v2960
        %4118 = vmatprep.subr.bf16.mxu0 %v2969
        %4119 = vmatpush1.bf16.msra.mxu0 %v2968
        %4120 = vmatprep.subr.bf16.mxu0 %v2977
        %4121 = vmatpush1.bf16.msra.mxu0 %v2976
        %4122 = vmatprep.subr.bf16.mxu0 %v2985
        %4123 = vmatpush1.bf16.msra.mxu0 %v2984
        %4124 = vmatprep.subr.bf16.mxu0 %v2993
        %4125 = vmatpush1.bf16.msra.mxu0 %v2992
        %4126 = vmatprep.subr.bf16.mxu0 %v3001
        %4127 = vmatpush1.bf16.msra.mxu0 %v3000
        %4128 = vmatprep.subr.bf16.mxu0 %v3009
        %4129 = vmatpush1.bf16.msra.mxu0 %v3008
        %4130 = vmatprep.subr.bf16.mxu0 %v3017
        %4131 = vmatpush1.bf16.msra.mxu0 %v3016
        %4132 = vmatprep.subr.bf16.mxu0 %v3025
        %4133 = vmatpush1.bf16.msra.mxu0 %v3024
        %4134 = vmatprep.subr.bf16.mxu0 %v3033
        %4135 = vmatpush1.bf16.msra.mxu0 %v3032
        %4136 = vmatprep.subr.bf16.mxu0 %v3041
        %4137 = vmatpush1.bf16.msra.mxu0 %v3040
        %4138 = vmatprep.mubr.bf16.mxu0 %v821
        %4139 = vmatmul.mubr.bf16.gmra.mrb[0].mxu0 %v820
        %v4140 = vpop.f32.mrb[0].mxu0
        %v4141 = vadd.f32 %v1353, %v4140
        %v4142 = vpop.f32.mrb[0].mxu0
        %v4143 = vadd.f32 %v1357, %v4142
        %v4144 = vpop.f32.mrb[0].mxu0
        %v4145 = vpop.f32.mrb[0].mxu0
        %4146 = vdwg.mxu0
        %4147 = vmatprep.subr.bf16.mxu0 %v3049
        %4148 = vmatpush1.bf16.msra.mxu0 %v3048
        %4149 = vmatprep.subr.bf16.mxu0 %v3057
        %4150 = vmatpush1.bf16.msra.mxu0 %v3056
        %4151 = vmatprep.subr.bf16.mxu0 %v3065
        %4152 = vmatpush1.bf16.msra.mxu0 %v3064
        %4153 = vmatprep.subr.bf16.mxu0 %v3073
        %4154 = vmatpush1.bf16.msra.mxu0 %v3072
        %4155 = vmatprep.subr.bf16.mxu0 %v3081
        %4156 = vmatpush1.bf16.msra.mxu0 %v3080
        %4157 = vmatprep.subr.bf16.mxu0 %v3089
        %4158 = vmatpush1.bf16.msra.mxu0 %v3088
        %4159 = vmatprep.subr.bf16.mxu0 %v3097
        %4160 = vmatpush1.bf16.msra.mxu0 %v3096
        %4161 = vmatprep.subr.bf16.mxu0 %v3105
        %4162 = vmatpush1.bf16.msra.mxu0 %v3104
        %4163 = vmatprep.subr.bf16.mxu0 %v3113
        %4164 = vmatpush1.bf16.msra.mxu0 %v3112
        %4165 = vmatprep.subr.bf16.mxu0 %v3121
        %4166 = vmatpush1.bf16.msra.mxu0 %v3120
        %4167 = vmatprep.subr.bf16.mxu0 %v3129
        %4168 = vmatpush1.bf16.msra.mxu0 %v3128
        %4169 = vmatprep.subr.bf16.mxu0 %v3137
        %4170 = vmatpush1.bf16.msra.mxu0 %v3136
        %4171 = vmatprep.subr.bf16.mxu0 %v3145
        %4172 = vmatpush1.bf16.msra.mxu0 %v3144
        %4173 = vmatprep.subr.bf16.mxu0 %v3153
        %4174 = vmatpush1.bf16.msra.mxu0 %v3152
        %4175 = vmatprep.subr.bf16.mxu0 %v3161
        %4176 = vmatpush1.bf16.msra.mxu0 %v3160
        %4177 = vmatprep.subr.bf16.mxu0 %v3169
        %4178 = vmatpush1.bf16.msra.mxu0 %v3168
        %4179 = vmatprep.mubr.bf16.mxu0 %v823
        %4180 = vmatmul.mubr.bf16.gmra.mrb[0].mxu0 %v822
        %v4181 = vpop.f32.mrb[0].mxu0
        %v4182 = vadd.f32 %v4141, %v4181
        %v4183 = vpop.f32.mrb[0].mxu0
        %v4184 = vadd.f32 %v4143, %v4183
        %v4185 = vpop.f32.mrb[0].mxu0
        %v4186 = vpop.f32.mrb[0].mxu0
        %4187 = vdwg.mxu0
        %4188 = vmatprep.subr.bf16.mxu0 %v3177
        %4189 = vmatpush1.bf16.msra.mxu0 %v3176
        %4190 = vmatprep.subr.bf16.mxu0 %v3185
        %4191 = vmatpush1.bf16.msra.mxu0 %v3184
        %4192 = vmatprep.subr.bf16.mxu0 %v3193
        %4193 = vmatpush1.bf16.msra.mxu0 %v3192
        %4194 = vmatprep.subr.bf16.mxu0 %v3201
        %4195 = vmatpush1.bf16.msra.mxu0 %v3200
        %4196 = vmatprep.subr.bf16.mxu0 %v3209
        %4197 = vmatpush1.bf16.msra.mxu0 %v3208
        %4198 = vmatprep.subr.bf16.mxu0 %v3217
        %4199 = vmatpush1.bf16.msra.mxu0 %v3216
        %4200 = vmatprep.subr.bf16.mxu0 %v3225
        %4201 = vmatpush1.bf16.msra.mxu0 %v3224
        %4202 = vmatprep.subr.bf16.mxu0 %v3233
        %4203 = vmatpush1.bf16.msra.mxu0 %v3232
        %4204 = vmatprep.subr.bf16.mxu0 %v3241
        %4205 = vmatpush1.bf16.msra.mxu0 %v3240
        %4206 = vmatprep.subr.bf16.mxu0 %v3249
        %4207 = vmatpush1.bf16.msra.mxu0 %v3248
        %4208 = vmatprep.subr.bf16.mxu0 %v3257
        %4209 = vmatpush1.bf16.msra.mxu0 %v3256
        %4210 = vmatprep.subr.bf16.mxu0 %v3265
        %4211 = vmatpush1.bf16.msra.mxu0 %v3264
        %4212 = vmatprep.subr.bf16.mxu0 %v3273
        %4213 = vmatpush1.bf16.msra.mxu0 %v3272
        %4214 = vmatprep.subr.bf16.mxu0 %v3281
        %4215 = vmatpush1.bf16.msra.mxu0 %v3280
        %4216 = vmatprep.subr.bf16.mxu0 %v3289
        %4217 = vmatpush1.bf16.msra.mxu0 %v3288
        %4218 = vmatprep.subr.bf16.mxu0 %v3297
        %4219 = vmatpush1.bf16.msra.mxu0 %v3296
        %4220 = vmatprep.mubr.bf16.mxu0 %v825
        %4221 = vmatmul.mubr.bf16.gmra.mrb[0].mxu0 %v824
        %v4222 = vpop.f32.mrb[0].mxu0
        %v4223 = vadd.f32 %v4182, %v4222
        %v4224 = vpop.f32.mrb[0].mxu0
        %v4225 = vadd.f32 %v4184, %v4224
        %v4226 = vpop.f32.mrb[0].mxu0
        %v4227 = vpop.f32.mrb[0].mxu0
        %4228 = vdwg.mxu0
        %4229 = vmatprep.subr.bf16.mxu0 %v3305
        %4230 = vmatpush1.bf16.msra.mxu0 %v3304
        %4231 = vmatprep.subr.bf16.mxu0 %v3313
        %4232 = vmatpush1.bf16.msra.mxu0 %v3312
        %4233 = vmatprep.subr.bf16.mxu0 %v3321
        %4234 = vmatpush1.bf16.msra.mxu0 %v3320
        %4235 = vmatprep.subr.bf16.mxu0 %v3329
        %4236 = vmatpush1.bf16.msra.mxu0 %v3328
        %4237 = vmatprep.subr.bf16.mxu0 %v3337
        %4238 = vmatpush1.bf16.msra.mxu0 %v3336
        %4239 = vmatprep.subr.bf16.mxu0 %v3345
        %4240 = vmatpush1.bf16.msra.mxu0 %v3344
        %4241 = vmatprep.subr.bf16.mxu0 %v3353
        %4242 = vmatpush1.bf16.msra.mxu0 %v3352
        %4243 = vmatprep.subr.bf16.mxu0 %v3361
        %4244 = vmatpush1.bf16.msra.mxu0 %v3360
        %4245 = vmatprep.subr.bf16.mxu0 %v3369
        %4246 = vmatpush1.bf16.msra.mxu0 %v3368
        %4247 = vmatprep.subr.bf16.mxu0 %v3377
        %4248 = vmatpush1.bf16.msra.mxu0 %v3376
        %4249 = vmatprep.subr.bf16.mxu0 %v3385
        %4250 = vmatpush1.bf16.msra.mxu0 %v3384
        %4251 = vmatprep.subr.bf16.mxu0 %v3393
        %4252 = vmatpush1.bf16.msra.mxu0 %v3392
        %4253 = vmatprep.subr.bf16.mxu0 %v3401
        %4254 = vmatpush1.bf16.msra.mxu0 %v3400
        %4255 = vmatprep.subr.bf16.mxu0 %v3409
        %4256 = vmatpush1.bf16.msra.mxu0 %v3408
        %4257 = vmatprep.subr.bf16.mxu0 %v3417
        %4258 = vmatpush1.bf16.msra.mxu0 %v3416
        %4259 = vmatprep.subr.bf16.mxu0 %v3425
        %4260 = vmatpush1.bf16.msra.mxu0 %v3424
        %4261 = vmatprep.mubr.bf16.mxu0 %v827
        %4262 = vmatmul.mubr.bf16.gmra.mrb[0].mxu0 %v826
        %v4263 = vpop.f32.mrb[0].mxu0
        %v4264 = vadd.f32 %v4223, %v4263
        %v4265 = vpop.f32.mrb[0].mxu0
        %v4266 = vadd.f32 %v4225, %v4265
        %v4267 = vpop.f32.mrb[0].mxu0
        %v4268 = vpop.f32.mrb[0].mxu0
        %4269 = vdwg.mxu0
        %4270 = vmatprep.subr.bf16.mxu0 %v2923
        %4271 = vmatpush1.bf16.msra.mxu0 %v2922
        %4272 = vmatprep.subr.bf16.mxu0 %v2931
        %4273 = vmatpush1.bf16.msra.mxu0 %v2930
        %4274 = vmatprep.subr.bf16.mxu0 %v2939
        %4275 = vmatpush1.bf16.msra.mxu0 %v2938
        %4276 = vmatprep.subr.bf16.mxu0 %v2947
        %4277 = vmatpush1.bf16.msra.mxu0 %v2946
        %4278 = vmatprep.subr.bf16.mxu0 %v2955
        %4279 = vmatpush1.bf16.msra.mxu0 %v2954
        %4280 = vmatprep.subr.bf16.mxu0 %v2963
        %4281 = vmatpush1.bf16.msra.mxu0 %v2962
        %4282 = vmatprep.subr.bf16.mxu0 %v2971
        %4283 = vmatpush1.bf16.msra.mxu0 %v2970
        %4284 = vmatprep.subr.bf16.mxu0 %v2979
        %4285 = vmatpush1.bf16.msra.mxu0 %v2978
        %4286 = vmatprep.subr.bf16.mxu0 %v2987
        %4287 = vmatpush1.bf16.msra.mxu0 %v2986
        %4288 = vmatprep.subr.bf16.mxu0 %v2995
        %4289 = vmatpush1.bf16.msra.mxu0 %v2994
        %4290 = vmatprep.subr.bf16.mxu0 %v3003
        %4291 = vmatpush1.bf16.msra.mxu0 %v3002
        %4292 = vmatprep.subr.bf16.mxu0 %v3011
        %4293 = vmatpush1.bf16.msra.mxu0 %v3010
        %4294 = vmatprep.subr.bf16.mxu0 %v3019
        %4295 = vmatpush1.bf16.msra.mxu0 %v3018
        %4296 = vmatprep.subr.bf16.mxu0 %v3027
        %4297 = vmatpush1.bf16.msra.mxu0 %v3026
        %4298 = vmatprep.subr.bf16.mxu0 %v3035
        %4299 = vmatpush1.bf16.msra.mxu0 %v3034
        %4300 = vmatprep.subr.bf16.mxu0 %v3043
        %4301 = vmatpush1.bf16.msra.mxu0 %v3042
        %4302 = vmatprep.mubr.bf16.mxu0 %v821
        %4303 = vmatmul.mubr.bf16.gmra.mrb[0].mxu0 %v820
        %v4304 = vpop.f32.mrb[0].mxu0
        %v4305 = vadd.f32 %v1361, %v4304
        %v4306 = vpop.f32.mrb[0].mxu0
        %v4307 = vadd.f32 %v1365, %v4306
        %v4308 = vpop.f32.mrb[0].mxu0
        %v4309 = vpop.f32.mrb[0].mxu0
        %4310 = vdwg.mxu0
        %4311 = vmatprep.subr.bf16.mxu0 %v3051
        %4312 = vmatpush1.bf16.msra.mxu0 %v3050
        %4313 = vmatprep.subr.bf16.mxu0 %v3059
        %4314 = vmatpush1.bf16.msra.mxu0 %v3058
        %4315 = vmatprep.subr.bf16.mxu0 %v3067
        %4316 = vmatpush1.bf16.msra.mxu0 %v3066
        %4317 = vmatprep.subr.bf16.mxu0 %v3075
        %4318 = vmatpush1.bf16.msra.mxu0 %v3074
        %4319 = vmatprep.subr.bf16.mxu0 %v3083
        %4320 = vmatpush1.bf16.msra.mxu0 %v3082
        %4321 = vmatprep.subr.bf16.mxu0 %v3091
        %4322 = vmatpush1.bf16.msra.mxu0 %v3090
        %4323 = vmatprep.subr.bf16.mxu0 %v3099
        %4324 = vmatpush1.bf16.msra.mxu0 %v3098
        %4325 = vmatprep.subr.bf16.mxu0 %v3107
        %4326 = vmatpush1.bf16.msra.mxu0 %v3106
        %4327 = vmatprep.subr.bf16.mxu0 %v3115
        %4328 = vmatpush1.bf16.msra.mxu0 %v3114
        %4329 = vmatprep.subr.bf16.mxu0 %v3123
        %4330 = vmatpush1.bf16.msra.mxu0 %v3122
        %4331 = vmatprep.subr.bf16.mxu0 %v3131
        %4332 = vmatpush1.bf16.msra.mxu0 %v3130
        %4333 = vmatprep.subr.bf16.mxu0 %v3139
        %4334 = vmatpush1.bf16.msra.mxu0 %v3138
        %4335 = vmatprep.subr.bf16.mxu0 %v3147
        %4336 = vmatpush1.bf16.msra.mxu0 %v3146
        %4337 = vmatprep.subr.bf16.mxu0 %v3155
        %4338 = vmatpush1.bf16.msra.mxu0 %v3154
        %4339 = vmatprep.subr.bf16.mxu0 %v3163
        %4340 = vmatpush1.bf16.msra.mxu0 %v3162
        %4341 = vmatprep.subr.bf16.mxu0 %v3171
        %4342 = vmatpush1.bf16.msra.mxu0 %v3170
        %4343 = vmatprep.mubr.bf16.mxu0 %v823
        %4344 = vmatmul.mubr.bf16.gmra.mrb[0].mxu0 %v822
        %v4345 = vpop.f32.mrb[0].mxu0
        %v4346 = vadd.f32 %v4305, %v4345
        %v4347 = vpop.f32.mrb[0].mxu0
        %v4348 = vadd.f32 %v4307, %v4347
        %v4349 = vpop.f32.mrb[0].mxu0
        %v4350 = vpop.f32.mrb[0].mxu0
        %4351 = vdwg.mxu0
        %4352 = vmatprep.subr.bf16.mxu0 %v3179
        %4353 = vmatpush1.bf16.msra.mxu0 %v3178
        %4354 = vmatprep.subr.bf16.mxu0 %v3187
        %4355 = vmatpush1.bf16.msra.mxu0 %v3186
        %4356 = vmatprep.subr.bf16.mxu0 %v3195
        %4357 = vmatpush1.bf16.msra.mxu0 %v3194
        %4358 = vmatprep.subr.bf16.mxu0 %v3203
        %4359 = vmatpush1.bf16.msra.mxu0 %v3202
        %4360 = vmatprep.subr.bf16.mxu0 %v3211
        %4361 = vmatpush1.bf16.msra.mxu0 %v3210
        %4362 = vmatprep.subr.bf16.mxu0 %v3219
        %4363 = vmatpush1.bf16.msra.mxu0 %v3218
        %4364 = vmatprep.subr.bf16.mxu0 %v3227
        %4365 = vmatpush1.bf16.msra.mxu0 %v3226
        %4366 = vmatprep.subr.bf16.mxu0 %v3235
        %4367 = vmatpush1.bf16.msra.mxu0 %v3234
        %4368 = vmatprep.subr.bf16.mxu0 %v3243
        %4369 = vmatpush1.bf16.msra.mxu0 %v3242
        %4370 = vmatprep.subr.bf16.mxu0 %v3251
        %4371 = vmatpush1.bf16.msra.mxu0 %v3250
        %4372 = vmatprep.subr.bf16.mxu0 %v3259
        %4373 = vmatpush1.bf16.msra.mxu0 %v3258
        %4374 = vmatprep.subr.bf16.mxu0 %v3267
        %4375 = vmatpush1.bf16.msra.mxu0 %v3266
        %4376 = vmatprep.subr.bf16.mxu0 %v3275
        %4377 = vmatpush1.bf16.msra.mxu0 %v3274
        %4378 = vmatprep.subr.bf16.mxu0 %v3283
        %4379 = vmatpush1.bf16.msra.mxu0 %v3282
        %4380 = vmatprep.subr.bf16.mxu0 %v3291
        %4381 = vmatpush1.bf16.msra.mxu0 %v3290
        %4382 = vmatprep.subr.bf16.mxu0 %v3299
        %4383 = vmatpush1.bf16.msra.mxu0 %v3298
        %4384 = vmatprep.mubr.bf16.mxu0 %v825
        %4385 = vmatmul.mubr.bf16.gmra.mrb[0].mxu0 %v824
        %v4386 = vpop.f32.mrb[0].mxu0
        %v4387 = vadd.f32 %v4346, %v4386
        %v4388 = vpop.f32.mrb[0].mxu0
        %v4389 = vadd.f32 %v4348, %v4388
        %v4390 = vpop.f32.mrb[0].mxu0
        %v4391 = vpop.f32.mrb[0].mxu0
        %4392 = vdwg.mxu0
        %4393 = vmatprep.subr.bf16.mxu0 %v3307
        %4394 = vmatpush1.bf16.msra.mxu0 %v3306
        %4395 = vmatprep.subr.bf16.mxu0 %v3315
        %4396 = vmatpush1.bf16.msra.mxu0 %v3314
        %4397 = vmatprep.subr.bf16.mxu0 %v3323
        %4398 = vmatpush1.bf16.msra.mxu0 %v3322
        %4399 = vmatprep.subr.bf16.mxu0 %v3331
        %4400 = vmatpush1.bf16.msra.mxu0 %v3330
        %4401 = vmatprep.subr.bf16.mxu0 %v3339
        %4402 = vmatpush1.bf16.msra.mxu0 %v3338
        %4403 = vmatprep.subr.bf16.mxu0 %v3347
        %4404 = vmatpush1.bf16.msra.mxu0 %v3346
        %4405 = vmatprep.subr.bf16.mxu0 %v3355
        %4406 = vmatpush1.bf16.msra.mxu0 %v3354
        %4407 = vmatprep.subr.bf16.mxu0 %v3363
        %4408 = vmatpush1.bf16.msra.mxu0 %v3362
        %4409 = vmatprep.subr.bf16.mxu0 %v3371
        %4410 = vmatpush1.bf16.msra.mxu0 %v3370
        %4411 = vmatprep.subr.bf16.mxu0 %v3379
        %4412 = vmatpush1.bf16.msra.mxu0 %v3378
        %4413 = vmatprep.subr.bf16.mxu0 %v3387
        %4414 = vmatpush1.bf16.msra.mxu0 %v3386
        %4415 = vmatprep.subr.bf16.mxu0 %v3395
        %4416 = vmatpush1.bf16.msra.mxu0 %v3394
        %4417 = vmatprep.subr.bf16.mxu0 %v3403
        %4418 = vmatpush1.bf16.msra.mxu0 %v3402
        %4419 = vmatprep.subr.bf16.mxu0 %v3411
        %4420 = vmatpush1.bf16.msra.mxu0 %v3410
        %4421 = vmatprep.subr.bf16.mxu0 %v3419
        %4422 = vmatpush1.bf16.msra.mxu0 %v3418
        %4423 = vmatprep.subr.bf16.mxu0 %v3427
        %4424 = vmatpush1.bf16.msra.mxu0 %v3426
        %4425 = vmatprep.mubr.bf16.mxu0 %v827
        %4426 = vmatmul.mubr.bf16.gmra.mrb[0].mxu0 %v826
        %v4427 = vpop.f32.mrb[0].mxu0
        %v4428 = vadd.f32 %v4387, %v4427
        %v4429 = vpop.f32.mrb[0].mxu0
        %v4430 = vadd.f32 %v4389, %v4429
        %v4431 = vpop.f32.mrb[0].mxu0
        %v4432 = vpop.f32.mrb[0].mxu0
        %4433 = vdwg.mxu0
        %4434 = vmatprep.subr.bf16.mxu0 %v2925
        %4435 = vmatpush1.bf16.msra.mxu0 %v2924
        %4436 = vmatprep.subr.bf16.mxu0 %v2933
        %4437 = vmatpush1.bf16.msra.mxu0 %v2932
        %4438 = vmatprep.subr.bf16.mxu0 %v2941
        %4439 = vmatpush1.bf16.msra.mxu0 %v2940
        %4440 = vmatprep.subr.bf16.mxu0 %v2949
        %4441 = vmatpush1.bf16.msra.mxu0 %v2948
        %4442 = vmatprep.subr.bf16.mxu0 %v2957
        %4443 = vmatpush1.bf16.msra.mxu0 %v2956
        %4444 = vmatprep.subr.bf16.mxu0 %v2965
        %4445 = vmatpush1.bf16.msra.mxu0 %v2964
        %4446 = vmatprep.subr.bf16.mxu0 %v2973
        %4447 = vmatpush1.bf16.msra.mxu0 %v2972
        %4448 = vmatprep.subr.bf16.mxu0 %v2981
        %4449 = vmatpush1.bf16.msra.mxu0 %v2980
        %4450 = vmatprep.subr.bf16.mxu0 %v2989
        %4451 = vmatpush1.bf16.msra.mxu0 %v2988
        %4452 = vmatprep.subr.bf16.mxu0 %v2997
        %4453 = vmatpush1.bf16.msra.mxu0 %v2996
        %4454 = vmatprep.subr.bf16.mxu0 %v3005
        %4455 = vmatpush1.bf16.msra.mxu0 %v3004
        %4456 = vmatprep.subr.bf16.mxu0 %v3013
        %4457 = vmatpush1.bf16.msra.mxu0 %v3012
        %4458 = vmatprep.subr.bf16.mxu0 %v3021
        %4459 = vmatpush1.bf16.msra.mxu0 %v3020
        %4460 = vmatprep.subr.bf16.mxu0 %v3029
        %4461 = vmatpush1.bf16.msra.mxu0 %v3028
        %4462 = vmatprep.subr.bf16.mxu0 %v3037
        %4463 = vmatpush1.bf16.msra.mxu0 %v3036
        %4464 = vmatprep.subr.bf16.mxu0 %v3045
        %4465 = vmatpush1.bf16.msra.mxu0 %v3044
        %4466 = vmatprep.mubr.bf16.mxu0 %v821
        %4467 = vmatmul.mubr.bf16.gmra.mrb[0].mxu0 %v820
        %v4468 = vpop.f32.mrb[0].mxu0
        %v4469 = vadd.f32 %v1369, %v4468
        %v4470 = vpop.f32.mrb[0].mxu0
        %v4471 = vadd.f32 %v1373, %v4470
        %v4472 = vpop.f32.mrb[0].mxu0
        %v4473 = vpop.f32.mrb[0].mxu0
        %4474 = vdwg.mxu0
        %4475 = vmatprep.subr.bf16.mxu0 %v3053
        %4476 = vmatpush1.bf16.msra.mxu0 %v3052
        %4477 = vmatprep.subr.bf16.mxu0 %v3061
        %4478 = vmatpush1.bf16.msra.mxu0 %v3060
        %4479 = vmatprep.subr.bf16.mxu0 %v3069
        %4480 = vmatpush1.bf16.msra.mxu0 %v3068
        %4481 = vmatprep.subr.bf16.mxu0 %v3077
        %4482 = vmatpush1.bf16.msra.mxu0 %v3076
        %4483 = vmatprep.subr.bf16.mxu0 %v3085
        %4484 = vmatpush1.bf16.msra.mxu0 %v3084
        %4485 = vmatprep.subr.bf16.mxu0 %v3093
        %4486 = vmatpush1.bf16.msra.mxu0 %v3092
        %4487 = vmatprep.subr.bf16.mxu0 %v3101
        %4488 = vmatpush1.bf16.msra.mxu0 %v3100
        %4489 = vmatprep.subr.bf16.mxu0 %v3109
        %4490 = vmatpush1.bf16.msra.mxu0 %v3108
        %4491 = vmatprep.subr.bf16.mxu0 %v3117
        %4492 = vmatpush1.bf16.msra.mxu0 %v3116
        %4493 = vmatprep.subr.bf16.mxu0 %v3125
        %4494 = vmatpush1.bf16.msra.mxu0 %v3124
        %4495 = vmatprep.subr.bf16.mxu0 %v3133
        %4496 = vmatpush1.bf16.msra.mxu0 %v3132
        %4497 = vmatprep.subr.bf16.mxu0 %v3141
        %4498 = vmatpush1.bf16.msra.mxu0 %v3140
        %4499 = vmatprep.subr.bf16.mxu0 %v3149
        %4500 = vmatpush1.bf16.msra.mxu0 %v3148
        %4501 = vmatprep.subr.bf16.mxu0 %v3157
        %4502 = vmatpush1.bf16.msra.mxu0 %v3156
        %4503 = vmatprep.subr.bf16.mxu0 %v3165
        %4504 = vmatpush1.bf16.msra.mxu0 %v3164
        %4505 = vmatprep.subr.bf16.mxu0 %v3173
        %4506 = vmatpush1.bf16.msra.mxu0 %v3172
        %4507 = vmatprep.mubr.bf16.mxu0 %v823
        %4508 = vmatmul.mubr.bf16.gmra.mrb[0].mxu0 %v822
        %v4509 = vpop.f32.mrb[0].mxu0
        %v4510 = vadd.f32 %v4469, %v4509
        %v4511 = vpop.f32.mrb[0].mxu0
        %v4512 = vadd.f32 %v4471, %v4511
        %v4513 = vpop.f32.mrb[0].mxu0
        %v4514 = vpop.f32.mrb[0].mxu0
        %4515 = vdwg.mxu0
        %4516 = vmatprep.subr.bf16.mxu0 %v3181
        %4517 = vmatpush1.bf16.msra.mxu0 %v3180
        %4518 = vmatprep.subr.bf16.mxu0 %v3189
        %4519 = vmatpush1.bf16.msra.mxu0 %v3188
        %4520 = vmatprep.subr.bf16.mxu0 %v3197
        %4521 = vmatpush1.bf16.msra.mxu0 %v3196
        %4522 = vmatprep.subr.bf16.mxu0 %v3205
        %4523 = vmatpush1.bf16.msra.mxu0 %v3204
        %4524 = vmatprep.subr.bf16.mxu0 %v3213
        %4525 = vmatpush1.bf16.msra.mxu0 %v3212
        %4526 = vmatprep.subr.bf16.mxu0 %v3221
        %4527 = vmatpush1.bf16.msra.mxu0 %v3220
        %4528 = vmatprep.subr.bf16.mxu0 %v3229
        %4529 = vmatpush1.bf16.msra.mxu0 %v3228
        %4530 = vmatprep.subr.bf16.mxu0 %v3237
        %4531 = vmatpush1.bf16.msra.mxu0 %v3236
        %4532 = vmatprep.subr.bf16.mxu0 %v3245
        %4533 = vmatpush1.bf16.msra.mxu0 %v3244
        %4534 = vmatprep.subr.bf16.mxu0 %v3253
        %4535 = vmatpush1.bf16.msra.mxu0 %v3252
        %4536 = vmatprep.subr.bf16.mxu0 %v3261
        %4537 = vmatpush1.bf16.msra.mxu0 %v3260
        %4538 = vmatprep.subr.bf16.mxu0 %v3269
        %4539 = vmatpush1.bf16.msra.mxu0 %v3268
        %4540 = vmatprep.subr.bf16.mxu0 %v3277
        %4541 = vmatpush1.bf16.msra.mxu0 %v3276
        %4542 = vmatprep.subr.bf16.mxu0 %v3285
        %4543 = vmatpush1.bf16.msra.mxu0 %v3284
        %4544 = vmatprep.subr.bf16.mxu0 %v3293
        %4545 = vmatpush1.bf16.msra.mxu0 %v3292
        %4546 = vmatprep.subr.bf16.mxu0 %v3301
        %4547 = vmatpush1.bf16.msra.mxu0 %v3300
        %4548 = vmatprep.mubr.bf16.mxu0 %v825
        %4549 = vmatmul.mubr.bf16.gmra.mrb[0].mxu0 %v824
        %v4550 = vpop.f32.mrb[0].mxu0
        %v4551 = vadd.f32 %v4510, %v4550
        %v4552 = vpop.f32.mrb[0].mxu0
        %v4553 = vadd.f32 %v4512, %v4552
        %v4554 = vpop.f32.mrb[0].mxu0
        %v4555 = vpop.f32.mrb[0].mxu0
        %4556 = vdwg.mxu0
        %4557 = vmatprep.subr.bf16.mxu0 %v3309
        %4558 = vmatpush1.bf16.msra.mxu0 %v3308
        %4559 = vmatprep.subr.bf16.mxu0 %v3317
        %4560 = vmatpush1.bf16.msra.mxu0 %v3316
        %4561 = vmatprep.subr.bf16.mxu0 %v3325
        %4562 = vmatpush1.bf16.msra.mxu0 %v3324
        %4563 = vmatprep.subr.bf16.mxu0 %v3333
        %4564 = vmatpush1.bf16.msra.mxu0 %v3332
        %4565 = vmatprep.subr.bf16.mxu0 %v3341
        %4566 = vmatpush1.bf16.msra.mxu0 %v3340
        %4567 = vmatprep.subr.bf16.mxu0 %v3349
        %4568 = vmatpush1.bf16.msra.mxu0 %v3348
        %4569 = vmatprep.subr.bf16.mxu0 %v3357
        %4570 = vmatpush1.bf16.msra.mxu0 %v3356
        %4571 = vmatprep.subr.bf16.mxu0 %v3365
        %4572 = vmatpush1.bf16.msra.mxu0 %v3364
        %4573 = vmatprep.subr.bf16.mxu0 %v3373
        %4574 = vmatpush1.bf16.msra.mxu0 %v3372
        %4575 = vmatprep.subr.bf16.mxu0 %v3381
        %4576 = vmatpush1.bf16.msra.mxu0 %v3380
        %4577 = vmatprep.subr.bf16.mxu0 %v3389
        %4578 = vmatpush1.bf16.msra.mxu0 %v3388
        %4579 = vmatprep.subr.bf16.mxu0 %v3397
        %4580 = vmatpush1.bf16.msra.mxu0 %v3396
        %4581 = vmatprep.subr.bf16.mxu0 %v3405
        %4582 = vmatpush1.bf16.msra.mxu0 %v3404
        %4583 = vmatprep.subr.bf16.mxu0 %v3413
        %4584 = vmatpush1.bf16.msra.mxu0 %v3412
        %4585 = vmatprep.subr.bf16.mxu0 %v3421
        %4586 = vmatpush1.bf16.msra.mxu0 %v3420
        %4587 = vmatprep.subr.bf16.mxu0 %v3429
        %4588 = vmatpush1.bf16.msra.mxu0 %v3428
        %4589 = vmatprep.mubr.bf16.mxu0 %v827
        %4590 = vmatmul.mubr.bf16.gmra.mrb[0].mxu0 %v826
        %v4591 = vpop.f32.mrb[0].mxu0
        %v4592 = vadd.f32 %v4551, %v4591
        %v4593 = vpop.f32.mrb[0].mxu0
        %v4594 = vadd.f32 %v4553, %v4593
        %v4595 = vpop.f32.mrb[0].mxu0
        %v4596 = vpop.f32.mrb[0].mxu0
        %4597 = vdwg.mxu0
        %v4598 = vmax.f32 %v4100, 0.0
        %v4599 = vmax.f32 %v4102, 0.0
        %v4600 = vmax.f32 %v4264, 0.0
        %v4601 = vmax.f32 %v4266, 0.0
        %v4602 = vmax.f32 %v4428, 0.0
        %v4603 = vmax.f32 %v4430, 0.0
        %v4604 = vmax.f32 %v4592, 0.0
        %v4605 = vmax.f32 %v4594, 0.0
        %4606 = vst [vmem:[%s215] sm:$0xff] %v4598
        %4607 = vst [vmem:[%s215 + $0x8] sm:$0xff] %v4599
        %4608 = vst [vmem:[%s215 + $0x10] sm:$0xff] %v4600
        %4609 = vst [vmem:[%s215 + $0x18] sm:$0xff] %v4601
        %4610 = vst [vmem:[%s215 + $0x20] sm:$0xff] %v4602
        %4611 = vst [vmem:[%s215 + $0x28] sm:$0xff] %v4603
        %4612 = vst [vmem:[%s215 + $0x30] sm:$0xff] %v4604
        %4613 = vst [vmem:[%s215 + $0x38] sm:$0xff] %v4605
        %s4614 = sand.u32 %s137, 1
        %s4615 = scalar_lea.sflag [#allocation3], %s4614
        %s4616 = sand.u32 %s137, 1
        %s4617 = smul.addr %s4616, 64
        %s4618 = scalar_lea.vmem [#allocation2], %s4617
        // Predicated region
        $region41: #{fwd.1} parent=39 // pred_check
          %p4619 = pneg %p147
        $region42: #{fwd.1} parent=39 // pred_check_branch
          %4621 = sbr.rel (%p4619) target = $region44
        $region43: #{fwd.1} parent=39 // pred_region
          %s4623 = ssub.s32 1024, 1024
          %4624 = vsyncadd %s4615, %s4623
          %s4625 = smul.addr %s19, 8
          %s4626 = smul.addr %s4625, 128
          %s4627 = scalar_lea.hbm %s5, %s4626
          %s4629 = sshll.u32 %s4618, 4
          %s4630 = int_to_ptr.vmem [resolvable:$true] %s4629
          %4632 = dma.vmem_to_hbm [thread:$0]  %s4630, 1024, %s4627, %s4615
        $region44: #{fwd.1} parent=39 // pred_fallthru
          _
      $region40: #{fwd.1} parent=5 // pred_fallthru
        _
      %p4633 = scmp.le.s32.totalorder 2, %s14
      // Predicated region
      $region45: #{fwd.1} parent=5 // pred_check
        %p4634 = pneg %p4633
      $region46: #{fwd.1} parent=5 // pred_check_branch
        %4636 = sbr.rel (%p4634) target = $region48
      $region47: #{fwd.1} parent=5 // pred_region
        %s4637 = ssub.s32 %s14, 2
        // Predicated region
        $region49: #{fwd.1} parent=47 // pred_check
          %p4638 = pneg %p153
        $region50: #{fwd.1} parent=47 // pred_check_branch
          %4640 = sbr.rel (%p4638) target = $region52
        $region51: #{fwd.1} parent=47 // pred_region
          %s4641 = sand.u32 %s138, 1
          %s4642 = scalar_lea.sflag [#allocation3], %s4641
          %s4643 = sand.u32 %s138, 1
          %s4644 = smul.addr %s4643, 64
          %s4645 = scalar_lea.vmem [#allocation2], %s4644
          %4646 = dma.done %s4642, 1024
        $region52: #{fwd.1} parent=47 // pred_fallthru
          _
      $region48: #{fwd.1} parent=5 // pred_fallthru
        _
    $region6: #{fwd.1} parent=1 // loop_footer
      %s18 = sadd.s32 1, %s14
    $region7: #{fwd.1} parent=1 // loop_footer_branch
      %13 = sbr.rel target = $region3
    $region8: #{fwd.1} parent=1 // loop_exit
      _
    %4647 = vsyncpa [#allocation3], 1
    %s4648 = scalar_lea.sflag [#allocation3], 1
    %4649 = vsyncpa %s4648, 1

// kernel: fwd.1
$region0: #{fwd.1}
  #allocation0 [shape = 'u32[]', space=smem, size = 0x4, offset = 0x4, fixed_abs, tag = 'smem constant byte address 0x4 - core index']
  #allocation1 [shape = 'u32[144,128]{1,0:T(1,128)}', space=vmem, size = 0x12000, scoped, tag = 'internal scratch']
  %s0 = inlined_call_operand.vmem [shape: bf16[16,128], index: 0, kind: input, shape index: {}]
  %s1 = inlined_call_operand.vmem [shape: bf16[128,1024], index: 1, kind: input, shape index: {}]
  %s2 = inlined_call_operand.vmem [shape: f32[1,1024], index: 2, kind: input, shape index: {}, may-alias: {2,4}]
  %s3 = inlined_call_operand.vmem [shape: bf16[1024,1024], index: 3, kind: input, shape index: {}]
  %s4 = inlined_call_operand.vmem [shape: f32[1,1024], index: 4, kind: input, shape index: {}, may-alias: {2,4}]
  %s5 = inlined_call_operand.hbm [shape: f32[16,1024], index: 5, kind: output, shape index: {}]
  %s6 = sld [smem:[#allocation0]]
  $region53: #{fwd.1} parent=0
    _
  %s8 = ssub.s32 1, %s6
  %s9 = scalar_select 0, %s8, %s6
  $region1: #{fwd.1} parent=0
    #allocation2 [shape = 'u8[65536]{0}', space=vmem, size = 0x10000, scoped, tag = 'output window, operand 0']
    #allocation3 [shape = 's32[2]{0}', space=sflag, size = 0x8, scoped, tag = 'scoped memory for fwd.1']
    %10 = vsyncpa [#allocation3], 0
    %s11 = scalar_lea.sflag [#allocation3], 1
    %12 = vsyncpa %s11, 0
    loop: start=0, step=1, limit=4
    $region2: #{fwd.1} parent=1 // loop_pre_header
      _
    $region3: #{fwd.1} parent=1 // loop_header
      %s14 = sphi 0, %s18
      %p15 = scmp.ge.s32.totalorder %s14, 4
      %s24 = sphi 0, %s26
      %s27 = sphi 0, %s24
      %s28 = sphi 0, %s27
      %s44 = sphi 0, %s28
      %s48 = sphi 0, %s48
      %s50 = sphi 0, %s48
      %s51 = sphi 0, %s50
      %s65 = sphi 0, %s51
      %s69 = sphi 0, %s69
      %s71 = sphi 0, %s69
      %s72 = sphi 0, %s71
      %s86 = sphi 0, %s72
      %s90 = sphi 0, %s90
      %s92 = sphi 0, %s90
      %s93 = sphi 0, %s92
      %s107 = sphi 0, %s93
      %s111 = sphi 0, %s111
      %s113 = sphi 0, %s111
      %s114 = sphi 0, %s113
      %s128 = sphi 0, %s114
      %s134 = sphi 0, %s136
      %s137 = sphi 0, %s134
      %s138 = sphi 0, %s137
      %s154 = sphi 0, %s138
    $region4: #{fwd.1} parent=1 // loop_header_branch
      %17 = sbr.rel (%p15) target = $region8
    $region5: #{fwd.1} parent=1 // loop_body
      %s19 = ssub.s32 %s14, 1
      %s20 = ssub.s32 %s14, 2
      %s21 = sadd.s32 %s14, 1
      %s22 = ssub.s32 %s14, %s21
      %p23 = scmp.eq.s32.totalorder %s22, 0
      %s25 = sadd.s32 %s24, 1
      %s26 = scalar_select %p23, %s24, %s25
      %p29 = pneg %p23
      %p30 = scmp.eq.s32.totalorder %s14, 1
      %p31 = por %p29, %p30
      %p32 = scmp.ne.s32.totalorder %s24, %s27
      %p33 = scmp.eq.s32.totalorder %s14, 0
      %p34 = por %p32, %p33
      %p35 = scmp.ne.s32.totalorder %s24, %s27
      %p36 = scmp.eq.s32.totalorder %s19, 1
      %p37 = por %p35, %p36
      %p38 = scmp.ne.s32.totalorder %s27, %s28
      %p39 = scmp.eq.s32.totalorder %s19, 0
      %p40 = por %p38, %p39
      %p41 = scmp.ne.s32.totalorder %s27, %s28
      %p42 = scmp.eq.s32.totalorder %s20, 1
      %p43 = por %p41, %p42
      %p45 = scmp.ne.s32.totalorder %s28, %s44
      %p46 = scmp.eq.s32.totalorder %s20, 0
      %p47 = por %p45, %p46
      %s49 = sadd.s32 %s48, 1
      %p52 = scmp.eq.s32.totalorder %s14, 1
      %p53 = scmp.ne.s32.totalorder %s48, %s50
      %p54 = scmp.eq.s32.totalorder %s14, 0
      %p55 = por %p53, %p54
      %p56 = scmp.ne.s32.totalorder %s48, %s50
      %p57 = scmp.eq.s32.totalorder %s19, 1
      %p58 = por %p56, %p57
      %p59 = scmp.ne.s32.totalorder %s50, %s51
      %p60 = scmp.eq.s32.totalorder %s19, 0
      %p61 = por %p59, %p60
      %p62 = scmp.ne.s32.totalorder %s50, %s51
      %p63 = scmp.eq.s32.totalorder %s20, 1
      %p64 = por %p62, %p63
      %p66 = scmp.ne.s32.totalorder %s51, %s65
      %p67 = scmp.eq.s32.totalorder %s20, 0
      %p68 = por %p66, %p67
      %s70 = sadd.s32 %s69, 1
      %p73 = scmp.eq.s32.totalorder %s14, 1
      %p74 = scmp.ne.s32.totalorder %s69, %s71
      %p75 = scmp.eq.s32.totalorder %s14, 0
      %p76 = por %p74, %p75
      %p77 = scmp.ne.s32.totalorder %s69, %s71
      %p78 = scmp.eq.s32.totalorder %s19, 1
      %p79 = por %p77, %p78
      %p80 = scmp.ne.s32.totalorder %s71, %s72
      %p81 = scmp.eq.s32.totalorder %s19, 0
      %p82 = por %p80, %p81
      %p83 = scmp.ne.s32.totalorder %s71, %s72
      %p84 = scmp.eq.s32.totalorder %s20, 1
      %p85 = por %p83, %p84
      %p87 = scmp.ne.s32.totalorder %s72, %s86
      %p88 = scmp.eq.s32.totalorder %s20, 0
      %p89 = por %p87, %p88
      %s91 = sadd.s32 %s90, 1
      %p94 = scmp.eq.s32.totalorder %s14, 1
      %p95 = scmp.ne.s32.totalorder %s90, %s92
      %p96 = scmp.eq.s32.totalorder %s14, 0
      %p97 = por %p95, %p96
      %p98 = scmp.ne.s32.totalorder %s90, %s92
      %p99 = scmp.eq.s32.totalorder %s19, 1
      %p100 = por %p98, %p99
      %p101 = scmp.ne.s32.totalorder %s92, %s93
      %p102 = scmp.eq.s32.totalorder %s19, 0
      %p103 = por %p101, %p102
      %p104 = scmp.ne.s32.totalorder %s92, %s93
      %p105 = scmp.eq.s32.totalorder %s20, 1
      %p106 = por %p104, %p105
      %p108 = scmp.ne.s32.totalorder %s93, %s107
      %p109 = scmp.eq.s32.totalorder %s20, 0
      %p110 = por %p108, %p109
      %s112 = sadd.s32 %s111, 1
      %p115 = scmp.eq.s32.totalorder %s14, 1
      %p116 = scmp.ne.s32.totalorder %s111, %s113
      %p117 = scmp.eq.s32.totalorder %s14, 0
      %p118 = por %p116, %p117
      %p119 = scmp.ne.s32.totalorder %s111, %s113
      %p120 = scmp.eq.s32.totalorder %s19, 1
      %p121 = por %p119, %p120
      %p122 = scmp.ne.s32.totalorder %s113, %s114
      %p123 = scmp.eq.s32.totalorder %s19, 0
      %p124 = por %p122, %p123
      %p125 = scmp.ne.s32.totalorder %s113, %s114
      %p126 = scmp.eq.s32.totalorder %s20, 1
      %p127 = por %p125, %p126
      %p129 = scmp.ne.s32.totalorder %s114, %s128
      %p130 = scmp.eq.s32.totalorder %s20, 0
      %p131 = por %p129, %p130
      %s132 = ssub.s32 %s14, %s21
      %p133 = scmp.eq.s32.totalorder %s132, 0
      %s135 = sadd.s32 %s134, 1
      %s136 = scalar_select %p133, %s134, %s135
      %p139 = pneg %p133
      %p140 = scmp.eq.s32.totalorder %s14, 1
      %p141 = por %p139, %p140
      %p142 = scmp.ne.s32.totalorder %s134, %s137
      %p143 = scmp.eq.s32.totalorder %s14, 0
      %p144 = por %p142, %p143
      %p145 = scmp.ne.s32.totalorder %s134, %s137
      %p146 = scmp.eq.s32.totalorder %s19, 1
      %p147 = por %p145, %p146
      %p148 = scmp.ne.s32.totalorder %s137, %s138
      %p149 = scmp.eq.s32.totalorder %s19, 0
      %p150 = por %p148, %p149
      %p151 = scmp.ne.s32.totalorder %s137, %s138
      %p152 = scmp.eq.s32.totalorder %s20, 1
      %p153 = por %p151, %p152
      %p155 = scmp.ne.s32.totalorder %s138, %s154
      %p156 = scmp.eq.s32.totalorder %s20, 0
      %p157 = por %p155, %p156
      %p158 = scmp.le.s32.totalorder 1, %s14
      %p159 = scmp.lt.s32.totalorder %s14, 3
      %p160 = pnand %p158, %p159
      %p161 = pneg %p160
      // Predicated region
      $region9: #{fwd.1} parent=5 // pred_check
        _
      $region10: #{fwd.1} parent=5 // pred_check_branch
        %163 = sbr.rel (%p160) target = $region12
      $region11: #{fwd.1} parent=5 // pred_region
        %s164 = ssub.s32 %s14, 1
        // Predicated region
        $region13: #{fwd.1} parent=11 // pred_check
          %p165 = pneg %p61
        $region14: #{fwd.1} parent=11 // pred_check_branch
          %167 = sbr.rel (%p165) target = $region16
        $region15: #{fwd.1} parent=11 // pred_region
          _
        $region16: #{fwd.1} parent=11 // pred_fallthru
          _
        // Predicated region
        $region17: #{fwd.1} parent=11 // pred_check
          %p168 = pneg %p82
        $region18: #{fwd.1} parent=11 // pred_check_branch
          %170 = sbr.rel (%p168) target = $region20
        $region19: #{fwd.1} parent=11 // pred_region
          _
        $region20: #{fwd.1} parent=11 // pred_fallthru
          _
        // Predicated region
        $region21: #{fwd.1} parent=11 // pred_check
          %p171 = pneg %p103
        $region22: #{fwd.1} parent=11 // pred_check_branch
          %173 = sbr.rel (%p171) target = $region24
        $region23: #{fwd.1} parent=11 // pred_region
          _
        $region24: #{fwd.1} parent=11 // pred_fallthru
          _
        // Predicated region
        $region25: #{fwd.1} parent=11 // pred_check
          %p174 = pneg %p124
        $region26: #{fwd.1} parent=11 // pred_check_branch
          %176 = sbr.rel (%p174) target = $region28
        $region27: #{fwd.1} parent=11 // pred_region
          _
        $region28: #{fwd.1} parent=11 // pred_fallthru
          _
      $region12: #{fwd.1} parent=5 // pred_fallthru
        _
      %p177 = scmp.lt.s32.totalorder %s14, 2
      // Predicated region
      $region29: #{fwd.1} parent=5 // pred_check
        %p178 = pneg %p177
      $region30: #{fwd.1} parent=5 // pred_check_branch
        %180 = sbr.rel (%p178) target = $region32
      $region31: #{fwd.1} parent=5 // pred_region
        // Predicated region
        $region33: #{fwd.1} parent=31 // pred_check
          %p181 = pneg %p34
        $region34: #{fwd.1} parent=31 // pred_check_branch
          %183 = sbr.rel (%p181) target = $region36
        $region35: #{fwd.1} parent=31 // pred_region
          %p184 = scmp.lt.s32.totalorder %s14, 1
          %s185 = scalar_select %p184, %s14, 1
          %s186 = smul.addr %s185, 4
          %s187 = scalar_lea.vmem %s0, %s186
        $region36: #{fwd.1} parent=31 // pred_fallthru
          _
      $region32: #{fwd.1} parent=5 // pred_fallthru
        _
      %p188 = scmp.le.s32.totalorder 1, %s14
      %p189 = scmp.lt.s32.totalorder %s14, 3
      %p190 = pnand %p188, %p189
      %p191 = pneg %p190
      // Predicated region
      $region37: #{fwd.1} parent=5 // pred_check
        _
      $region38: #{fwd.1} parent=5 // pred_check_branch
        %193 = sbr.rel (%p190) target = $region40
      $region39: #{fwd.1} parent=5 // pred_region
        %s194 = ssub.s32 %s14, 1
        %p195 = scmp.lt.s32.totalorder %s19, 1
        %s196 = scalar_select %p195, %s19, 1
        %s197 = smul.addr %s196, 4
        %s198 = scalar_lea.vmem %s0, %s197
        %p199 = pneg %p40
        %p200 = pneg %p37
        %p201 = pneg %p61
        %p202 = pneg %p58
        %p203 = pneg %p82
        %p204 = pneg %p79
        %p205 = pneg %p103
        %p206 = pneg %p100
        %p207 = pneg %p124
        %p208 = pneg %p121
        %p209 = pneg %p150
        %p210 = pneg %p147
        %s211 = sand.u32 %s137, 1
        %s212 = scalar_lea.sflag [#allocation3], %s211
        %s213 = sand.u32 %s137, 1
        %s214 = smul.addr %s213, 64
        %s215 = scalar_lea.vmem [#allocation2], %s214
        %p216 = scmp.lt.s32.totalorder %s19, 1
        %s217 = scalar_select %p216, %s19, 1
        %s218 = smul.addr %s217, 4
        %s219 = scalar_lea.vmem %s0, %s218
        %v221 = vld [vmem:[%s219] sm:$0xf]
        %v222 = vld [vmem:[%s1] sm:$0xff]
        %v223 = vld [vmem:[%s1 + $0x8] sm:$0xff]
        %v224 = vld [vmem:[%s1 + $0x10] sm:$0xff]
        %v225 = vld [vmem:[%s1 + $0x18] sm:$0xff]
        %v226 = vld [vmem:[%s1 + $0x20] sm:$0xff]
        %v227 = vld [vmem:[%s1 + $0x28] sm:$0xff]
        %v228 = vld [vmem:[%s1 + $0x30] sm:$0xff]
        %v229 = vld [vmem:[%s1 + $0x38] sm:$0xff]
        %v230 = vld [vmem:[%s1 + $0x40] sm:$0xff]
        %v231 = vld [vmem:[%s1 + $0x48] sm:$0xff]
        %v232 = vld [vmem:[%s1 + $0x50] sm:$0xff]
        %v233 = vld [vmem:[%s1 + $0x58] sm:$0xff]
        %v234 = vld [vmem:[%s1 + $0x60] sm:$0xff]
        %v235 = vld [vmem:[%s1 + $0x68] sm:$0xff]
        %v236 = vld [vmem:[%s1 + $0x70] sm:$0xff]
        %v237 = vld [vmem:[%s1 + $0x78] sm:$0xff]
        %v238 = vld [vmem:[%s1 + $0x80] sm:$0xff]
        %v239 = vld [vmem:[%s1 + $0x88] sm:$0xff]
        %v240 = vld [vmem:[%s1 + $0x90] sm:$0xff]
        %v241 = vld [vmem:[%s1 + $0x98] sm:$0xff]
        %v242 = vld [vmem:[%s1 + $0xa0] sm:$0xff]
        %v243 = vld [vmem:[%s1 + $0xa8] sm:$0xff]
        %v244 = vld [vmem:[%s1 + $0xb0] sm:$0xff]
        %v245 = vld [vmem:[%s1 + $0xb8] sm:$0xff]
        %v246 = vld [vmem:[%s1 + $0xc0] sm:$0xff]
        %v247 = vld [vmem:[%s1 + $0xc8] sm:$0xff]
        %v248 = vld [vmem:[%s1 + $0xd0] sm:$0xff]
        %v249 = vld [vmem:[%s1 + $0xd8] sm:$0xff]
        %v250 = vld [vmem:[%s1 + $0xe0] sm:$0xff]
        %v251 = vld [vmem:[%s1 + $0xe8] sm:$0xff]
        %v252 = vld [vmem:[%s1 + $0xf0] sm:$0xff]
        %v253 = vld [vmem:[%s1 + $0xf8] sm:$0xff]
        %v254 = vld [vmem:[%s1 + $0x100] sm:$0xff]
        %v255 = vld [vmem:[%s1 + $0x108] sm:$0xff]
        %v256 = vld [vmem:[%s1 + $0x110] sm:$0xff]
        %v257 = vld [vmem:[%s1 + $0x118] sm:$0xff]
        %v258 = vld [vmem:[%s1 + $0x120] sm:$0xff]
        %v259 = vld [vmem:[%s1 + $0x128] sm:$0xff]
        %v260 = vld [vmem:[%s1 + $0x130] sm:$0xff]
        %v261 = vld [vmem:[%s1 + $0x138] sm:$0xff]
        %v262 = vld [vmem:[%s1 + $0x140] sm:$0xff]
        %v263 = vld [vmem:[%s1 + $0x148] sm:$0xff]
        %v264 = vld [vmem:[%s1 + $0x150] sm:$0xff]
        %v265 = vld [vmem:[%s1 + $0x158] sm:$0xff]
        %v266 = vld [vmem:[%s1 + $0x160] sm:$0xff]
        %v267 = vld [vmem:[%s1 + $0x168] sm:$0xff]
        %v268 = vld [vmem:[%s1 + $0x170] sm:$0xff]
        %v269 = vld [vmem:[%s1 + $0x178] sm:$0xff]
        %v270 = vld [vmem:[%s1 + $0x180] sm:$0xff]
        %v271 = vld [vmem:[%s1 + $0x188] sm:$0xff]
        %v272 = vld [vmem:[%s1 + $0x190] sm:$0xff]
        %v273 = vld [vmem:[%s1 + $0x198] sm:$0xff]
        %v274 = vld [vmem:[%s1 + $0x1a0] sm:$0xff]
        %v275 = vld [vmem:[%s1 + $0x1a8] sm:$0xff]
        %v276 = vld [vmem:[%s1 + $0x1b0] sm:$0xff]
        %v277 = vld [vmem:[%s1 + $0x1b8] sm:$0xff]
        %v278 = vld [vmem:[%s1 + $0x1c0] sm:$0xff]
        %v279 = vld [vmem:[%s1 + $0x1c8] sm:$0xff]
        %v280 = vld [vmem:[%s1 + $0x1d0] sm:$0xff]
        %v281 = vld [vmem:[%s1 + $0x1d8] sm:$0xff]
        %v282 = vld [vmem:[%s1 + $0x1e0] sm:$0xff]
        %v283 = vld [vmem:[%s1 + $0x1e8] sm:$0xff]
        %v284 = vld [vmem:[%s1 + $0x1f0] sm:$0xff]
        %v285 = vld [vmem:[%s1 + $0x1f8] sm:$0xff]
        %v286 = vld [vmem:[%s2] sm:$0xff]
        %v288 = vlaneseq
        %v289 = vshrl.u32 %v288, 7
        %v290 = vsub.s32 0, %v289
        %v291 = vrot.slane %v286, %v290
        %v292 = vlaneseq
        %v293 = vshrl.u32 %v292, 7
        %v294 = vsub.s32 1, %v293
        %v295 = vrot.slane %v286, %v294
        %v296 = vlaneseq
        %v297 = vshrl.u32 %v296, 7
        %v298 = vsub.s32 2, %v297
        %v299 = vrot.slane %v286, %v298
        %v300 = vlaneseq
        %v301 = vshrl.u32 %v300, 7
        %v302 = vsub.s32 3, %v301
        %v303 = vrot.slane %v286, %v302
        %v304 = vlaneseq
        %v305 = vshrl.u32 %v304, 7
        %v306 = vsub.s32 4, %v305
        %v307 = vrot.slane %v286, %v306
        %v308 = vlaneseq
        %v309 = vshrl.u32 %v308, 7
        %v310 = vsub.s32 5, %v309
        %v311 = vrot.slane %v286, %v310
        %v312 = vlaneseq
        %v313 = vshrl.u32 %v312, 7
        %v314 = vsub.s32 6, %v313
        %v315 = vrot.slane %v286, %v314
        %v316 = vlaneseq
        %v317 = vshrl.u32 %v316, 7
        %v318 = vsub.s32 7, %v317
        %v319 = vrot.slane %v286, %v318
        %v392 = vunpack.c.l.b16 %v222
        %v393 = vunpack.c.h.b16 %v222
        %v394 = vunpack.c.l.b16 %v223
        %v395 = vunpack.c.h.b16 %v223
        %v396 = vunpack.c.l.b16 %v224
        %v397 = vunpack.c.h.b16 %v224
        %v398 = vunpack.c.l.b16 %v225
        %v399 = vunpack.c.h.b16 %v225
        %v400 = vunpack.c.l.b16 %v226
        %v401 = vunpack.c.h.b16 %v226
        %v402 = vunpack.c.l.b16 %v227
        %v403 = vunpack.c.h.b16 %v227
        %v404 = vunpack.c.l.b16 %v228
        %v405 = vunpack.c.h.b16 %v228
        %v406 = vunpack.c.l.b16 %v229
        %v407 = vunpack.c.h.b16 %v229
        %v408 = vunpack.c.l.b16 %v230
        %v409 = vunpack.c.h.b16 %v230
        %v410 = vunpack.c.l.b16 %v231
        %v411 = vunpack.c.h.b16 %v231
        %v412 = vunpack.c.l.b16 %v232
        %v413 = vunpack.c.h.b16 %v232
        %v414 = vunpack.c.l.b16 %v233
        %v415 = vunpack.c.h.b16 %v233
        %v416 = vunpack.c.l.b16 %v234
        %v417 = vunpack.c.h.b16 %v234
        %v418 = vunpack.c.l.b16 %v235
        %v419 = vunpack.c.h.b16 %v235
        %v420 = vunpack.c.l.b16 %v236
        %v421 = vunpack.c.h.b16 %v236
        %v422 = vunpack.c.l.b16 %v237
        %v423 = vunpack.c.h.b16 %v237
        %v424 = vunpack.c.l.b16 %v238
        %v425 = vunpack.c.h.b16 %v238
        %v426 = vunpack.c.l.b16 %v239
        %v427 = vunpack.c.h.b16 %v239
        %v428 = vunpack.c.l.b16 %v240
        %v429 = vunpack.c.h.b16 %v240
        %v430 = vunpack.c.l.b16 %v241
        %v431 = vunpack.c.h.b16 %v241
        %v432 = vunpack.c.l.b16 %v242
        %v433 = vunpack.c.h.b16 %v242
        %v434 = vunpack.c.l.b16 %v243
        %v435 = vunpack.c.h.b16 %v243
        %v436 = vunpack.c.l.b16 %v244
        %v437 = vunpack.c.h.b16 %v244
        %v438 = vunpack.c.l.b16 %v245
        %v439 = vunpack.c.h.b16 %v245
        %v440 = vunpack.c.l.b16 %v246
        %v441 = vunpack.c.h.b16 %v246
        %v442 = vunpack.c.l.b16 %v247
        %v443 = vunpack.c.h.b16 %v247
        %v444 = vunpack.c.l.b16 %v248
        %v445 = vunpack.c.h.b16 %v248
        %v446 = vunpack.c.l.b16 %v249
        %v447 = vunpack.c.h.b16 %v249
        %v448 = vunpack.c.l.b16 %v250
        %v449 = vunpack.c.h.b16 %v250
        %v450 = vunpack.c.l.b16 %v251
        %v451 = vunpack.c.h.b16 %v251
        %v452 = vunpack.c.l.b16 %v252
        %v453 = vunpack.c.h.b16 %v252
        %v454 = vunpack.c.l.b16 %v253
        %v455 = vunpack.c.h.b16 %v253
        %v456 = vunpack.c.l.b16 %v254
        %v457 = vunpack.c.h.b16 %v254
        %v458 = vunpack.c.l.b16 %v255
        %v459 = vunpack.c.h.b16 %v255
        %v460 = vunpack.c.l.b16 %v256
        %v461 = vunpack.c.h.b16 %v256
        %v462 = vunpack.c.l.b16 %v257
        %v463 = vunpack.c.h.b16 %v257
        %v464 = vunpack.c.l.b16 %v258
        %v465 = vunpack.c.h.b16 %v258
        %v466 = vunpack.c.l.b16 %v259
        %v467 = vunpack.c.h.b16 %v259
        %v468 = vunpack.c.l.b16 %v260
        %v469 = vunpack.c.h.b16 %v260
        %v470 = vunpack.c.l.b16 %v261
        %v471 = vunpack.c.h.b16 %v261
        %v472 = vunpack.c.l.b16 %v262
        %v473 = vunpack.c.h.b16 %v262
        %v474 = vunpack.c.l.b16 %v263
        %v475 = vunpack.c.h.b16 %v263
        %v476 = vunpack.c.l.b16 %v264
        %v477 = vunpack.c.h.b16 %v264
        %v478 = vunpack.c.l.b16 %v265
        %v479 = vunpack.c.h.b16 %v265
        %v480 = vunpack.c.l.b16 %v266
        %v481 = vunpack.c.h.b16 %v266
        %v482 = vunpack.c.l.b16 %v267
        %v483 = vunpack.c.h.b16 %v267
        %v484 = vunpack.c.l.b16 %v268
        %v485 = vunpack.c.h.b16 %v268
        %v486 = vunpack.c.l.b16 %v269
        %v487 = vunpack.c.h.b16 %v269
        %v488 = vunpack.c.l.b16 %v270
        %v489 = vunpack.c.h.b16 %v270
        %v490 = vunpack.c.l.b16 %v271
        %v491 = vunpack.c.h.b16 %v271
        %v492 = vunpack.c.l.b16 %v272
        %v493 = vunpack.c.h.b16 %v272
        %v494 = vunpack.c.l.b16 %v273
        %v495 = vunpack.c.h.b16 %v273
        %v496 = vunpack.c.l.b16 %v274
        %v497 = vunpack.c.h.b16 %v274
        %v498 = vunpack.c.l.b16 %v275
        %v499 = vunpack.c.h.b16 %v275
        %v500 = vunpack.c.l.b16 %v276
        %v501 = vunpack.c.h.b16 %v276
        %v502 = vunpack.c.l.b16 %v277
        %v503 = vunpack.c.h.b16 %v277
        %v504 = vunpack.c.l.b16 %v278
        %v505 = vunpack.c.h.b16 %v278
        %v506 = vunpack.c.l.b16 %v279
        %v507 = vunpack.c.h.b16 %v279
        %v508 = vunpack.c.l.b16 %v280
        %v509 = vunpack.c.h.b16 %v280
        %v510 = vunpack.c.l.b16 %v281
        %v511 = vunpack.c.h.b16 %v281
        %v512 = vunpack.c.l.b16 %v282
        %v513 = vunpack.c.h.b16 %v282
        %v514 = vunpack.c.l.b16 %v283
        %v515 = vunpack.c.h.b16 %v283
        %v516 = vunpack.c.l.b16 %v284
        %v517 = vunpack.c.h.b16 %v284
        %v518 = vunpack.c.l.b16 %v285
        %v519 = vunpack.c.h.b16 %v285
        %v520 = vpack.c.b16 %v400, %v392
        %v521 = vpack.c.b16 %v401, %v393
        %v522 = vpack.c.b16 %v402, %v394
        %v523 = vpack.c.b16 %v403, %v395
        %v524 = vpack.c.b16 %v404, %v396
        %v525 = vpack.c.b16 %v405, %v397
        %v526 = vpack.c.b16 %v406, %v398
        %v527 = vpack.c.b16 %v407, %v399
        %v528 = vpack.c.b16 %v416, %v408
        %v529 = vpack.c.b16 %v417, %v409
        %v530 = vpack.c.b16 %v418, %v410
        %v531 = vpack.c.b16 %v419, %v411
        %v532 = vpack.c.b16 %v420, %v412
        %v533 = vpack.c.b16 %v421, %v413
        %v534 = vpack.c.b16 %v422, %v414
        %v535 = vpack.c.b16 %v423, %v415
        %v536 = vpack.c.b16 %v432, %v424
        %v537 = vpack.c.b16 %v433, %v425
        %v538 = vpack.c.b16 %v434, %v426
        %v539 = vpack.c.b16 %v435, %v427
        %v540 = vpack.c.b16 %v436, %v428
        %v541 = vpack.c.b16 %v437, %v429
        %v542 = vpack.c.b16 %v438, %v430
        %v543 = vpack.c.b16 %v439, %v431
        %v544 = vpack.c.b16 %v448, %v440
        %v545 = vpack.c.b16 %v449, %v441
        %v546 = vpack.c.b16 %v450, %v442
        %v547 = vpack.c.b16 %v451, %v443
        %v548 = vpack.c.b16 %v452, %v444
        %v549 = vpack.c.b16 %v453, %v445
        %v550 = vpack.c.b16 %v454, %v446
        %v551 = vpack.c.b16 %v455, %v447
        %v552 = vpack.c.b16 %v464, %v456
        %v553 = vpack.c.b16 %v465, %v457
        %v554 = vpack.c.b16 %v466, %v458
        %v555 = vpack.c.b16 %v467, %v459
        %v556 = vpack.c.b16 %v468, %v460
        %v557 = vpack.c.b16 %v469, %v461
        %v558 = vpack.c.b16 %v470, %v462
        %v559 = vpack.c.b16 %v471, %v463
        %v560 = vpack.c.b16 %v480, %v472
        %v561 = vpack.c.b16 %v481, %v473
        %v562 = vpack.c.b16 %v482, %v474
        %v563 = vpack.c.b16 %v483, %v475
        %v564 = vpack.c.b16 %v484, %v476
        %v565 = vpack.c.b16 %v485, %v477
        %v566 = vpack.c.b16 %v486, %v478
        %v567 = vpack.c.b16 %v487, %v479
        %v568 = vpack.c.b16 %v496, %v488
        %v569 = vpack.c.b16 %v497, %v489
        %v570 = vpack.c.b16 %v498, %v490
        %v571 = vpack.c.b16 %v499, %v491
        %v572 = vpack.c.b16 %v500, %v492
        %v573 = vpack.c.b16 %v501, %v493
        %v574 = vpack.c.b16 %v502, %v494
        %v575 = vpack.c.b16 %v503, %v495
        %v576 = vpack.c.b16 %v512, %v504
        %v577 = vpack.c.b16 %v513, %v505
        %v578 = vpack.c.b16 %v514, %v506
        %v579 = vpack.c.b16 %v515, %v507
        %v580 = vpack.c.b16 %v516, %v508
        %v581 = vpack.c.b16 %v517, %v509
        %v582 = vpack.c.b16 %v518, %v510
        %v583 = vpack.c.b16 %v519, %v511
        %648 = vmatprep.subr.bf16.mxu0 %v521
        %649 = vmatpush1.bf16.msra.mxu0 %v520
        %650 = vmatprep.subr.bf16.mxu0 %v529
        %651 = vmatpush1.bf16.msra.mxu0 %v528
        %652 = vmatprep.subr.bf16.mxu0 %v537
        %653 = vmatpush1.bf16.msra.mxu0 %v536
        %654 = vmatprep.subr.bf16.mxu0 %v545
        %655 = vmatpush1.bf16.msra.mxu0 %v544
        %656 = vmatprep.subr.bf16.mxu0 %v553
        %657 = vmatpush1.bf16.msra.mxu0 %v552
        %658 = vmatprep.subr.bf16.mxu0 %v561
        %659 = vmatpush1.bf16.msra.mxu0 %v560
        %660 = vmatprep.subr.bf16.mxu0 %v569
        %661 = vmatpush1.bf16.msra.mxu0 %v568
        %662 = vmatprep.subr.bf16.mxu0 %v577
        %663 = vmatpush1.bf16.msra.mxu0 %v576
        %664 = vmatprep.subr.bf16.mxu0 0
        %665 = vmatpush1.bf16.msra.mxu0 0
        %666 = vmatprep.subr.bf16.mxu0 0
        %667 = vmatpush1.bf16.msra.mxu0 0
        %668 = vmatprep.subr.bf16.mxu0 0
        %669 = vmatpush1.bf16.msra.mxu0 0
        %670 = vmatprep.subr.bf16.mxu0 0
        %671 = vmatpush1.bf16.msra.mxu0 0
        %672 = vmatprep.subr.bf16.mxu0 0
        %673 = vmatpush1.bf16.msra.mxu0 0
        %674 = vmatprep.subr.bf16.mxu0 0
        %675 = vmatpush1.bf16.msra.mxu0 0
        %676 = vmatprep.subr.bf16.mxu0 0
        %677 = vmatpush1.bf16.msra.mxu0 0
        %678 = vmatprep.subr.bf16.mxu0 0
        %679 = vmatpush1.bf16.msra.mxu0 0
        %680 = vmatprep.mubr.bf16.mxu0 0
        %681 = vmatmul.mubr.bf16.gmra.mrb[0].mxu0 %v221
        %v682 = vpop.f32.mrb[0].mxu0
        %v683 = vadd.f32 %v291, %v682
        %v684 = vpop.f32.mrb[0].mxu0
        %v685 = vadd.f32 %v295, %v684
        %v686 = vpop.f32.mrb[0].mxu0
        %v687 = vpop.f32.mrb[0].mxu0
        %688 = vdwg.mxu0
        %689 = vmatprep.subr.bf16.mxu0 %v523
        %690 = vmatpush1.bf16.msra.mxu0 %v522
        %691 = vmatprep.subr.bf16.mxu0 %v531
        %692 = vmatpush1.bf16.msra.mxu0 %v530
        %693 = vmatprep.subr.bf16.mxu0 %v539
        %694 = vmatpush1.bf16.msra.mxu0 %v538
        %695 = vmatprep.subr.bf16.mxu0 %v547
        %696 = vmatpush1.bf16.msra.mxu0 %v546
        %697 = vmatprep.subr.bf16.mxu0 %v555
        %698 = vmatpush1.bf16.msra.mxu0 %v554
        %699 = vmatprep.subr.bf16.mxu0 %v563
        %700 = vmatpush1.bf16.msra.mxu0 %v562
        %701 = vmatprep.subr.bf16.mxu0 %v571
        %702 = vmatpush1.bf16.msra.mxu0 %v570
        %703 = vmatprep.subr.bf16.mxu0 %v579
        %704 = vmatpush1.bf16.msra.mxu0 %v578
        %705 = vmatprep.subr.bf16.mxu0 0
        %706 = vmatpush1.bf16.msra.mxu0 0
        %707 = vmatprep.subr.bf16.mxu0 0
        %708 = vmatpush1.bf16.msra.mxu0 0
        %709 = vmatprep.subr.bf16.mxu0 0
        %710 = vmatpush1.bf16.msra.mxu0 0
        %711 = vmatprep.subr.bf16.mxu0 0
        %712 = vmatpush1.bf16.msra.mxu0 0
        %713 = vmatprep.subr.bf16.mxu0 0
        %714 = vmatpush1.bf16.msra.mxu0 0
        %715 = vmatprep.subr.bf16.mxu0 0
        %716 = vmatpush1.bf16.msra.mxu0 0
        %717 = vmatprep.subr.bf16.mxu0 0
        %718 = vmatpush1.bf16.msra.mxu0 0
        %719 = vmatprep.subr.bf16.mxu0 0
        %720 = vmatpush1.bf16.msra.mxu0 0
        %721 = vmatprep.mubr.bf16.mxu0 0
        %722 = vmatmul.mubr.bf16.gmra.mrb[0].mxu0 %v221
        %v723 = vpop.f32.mrb[0].mxu0
        %v724 = vadd.f32 %v299, %v723
        %v725 = vpop.f32.mrb[0].mxu0
        %v726 = vadd.f32 %v303, %v725
        %v727 = vpop.f32.mrb[0].mxu0
        %v728 = vpop.f32.mrb[0].mxu0
        %729 = vdwg.mxu0
        %730 = vmatprep.subr.bf16.mxu0 %v525
        %731 = vmatpush1.bf16.msra.mxu0 %v524
        %732 = vmatprep.subr.bf16.mxu0 %v533
        %733 = vmatpush1.bf16.msra.mxu0 %v532
        %734 = vmatprep.subr.bf16.mxu0 %v541
        %735 = vmatpush1.bf16.msra.mxu0 %v540
        %736 = vmatprep.subr.bf16.mxu0 %v549
        %737 = vmatpush1.bf16.msra.mxu0 %v548
        %738 = vmatprep.subr.bf16.mxu0 %v557
        %739 = vmatpush1.bf16.msra.mxu0 %v556
        %740 = vmatprep.subr.bf16.mxu0 %v565
        %741 = vmatpush1.bf16.msra.mxu0 %v564
        %742 = vmatprep.subr.bf16.mxu0 %v573
        %743 = vmatpush1.bf16.msra.mxu0 %v572
        %744 = vmatprep.subr.bf16.mxu0 %v581
        %745 = vmatpush1.bf16.msra.mxu0 %v580
        %746 = vmatprep.subr.bf16.mxu0 0
        %747 = vmatpush1.bf16.msra.mxu0 0
        %748 = vmatprep.subr.bf16.mxu0 0
        %749 = vmatpush1.bf16.msra.mxu0 0
        %750 = vmatprep.subr.bf16.mxu0 0
        %751 = vmatpush1.bf16.msra.mxu0 0
        %752 = vmatprep.subr.bf16.mxu0 0
        %753 = vmatpush1.bf16.msra.mxu0 0
        %754 = vmatprep.subr.bf16.mxu0 0
        %755 = vmatpush1.bf16.msra.mxu0 0
        %756 = vmatprep.subr.bf16.mxu0 0
        %757 = vmatpush1.bf16.msra.mxu0 0
        %758 = vmatprep.subr.bf16.mxu0 0
        %759 = vmatpush1.bf16.msra.mxu0 0
        %760 = vmatprep.subr.bf16.mxu0 0
        %761 = vmatpush1.bf16.msra.mxu0 0
        %762 = vmatprep.mubr.bf16.mxu0 0
        %763 = vmatmul.mubr.bf16.gmra.mrb[0].mxu0 %v221
        %v764 = vpop.f32.mrb[0].mxu0
        %v765 = vadd.f32 %v307, %v764
        %v766 = vpop.f32.mrb[0].mxu0
        %v767 = vadd.f32 %v311, %v766
        %v768 = vpop.f32.mrb[0].mxu0
        %v769 = vpop.f32.mrb[0].mxu0
        %770 = vdwg.mxu0
        %771 = vmatprep.subr.bf16.mxu0 %v527
        %772 = vmatpush1.bf16.msra.mxu0 %v526
        %773 = vmatprep.subr.bf16.mxu0 %v535
        %774 = vmatpush1.bf16.msra.mxu0 %v534
        %775 = vmatprep.subr.bf16.mxu0 %v543
        %776 = vmatpush1.bf16.msra.mxu0 %v542
        %777 = vmatprep.subr.bf16.mxu0 %v551
        %778 = vmatpush1.bf16.msra.mxu0 %v550
        %779 = vmatprep.subr.bf16.mxu0 %v559
        %780 = vmatpush1.bf16.msra.mxu0 %v558
        %781 = vmatprep.subr.bf16.mxu0 %v567
        %782 = vmatpush1.bf16.msra.mxu0 %v566
        %783 = vmatprep.subr.bf16.mxu0 %v575
        %784 = vmatpush1.bf16.msra.mxu0 %v574
        %785 = vmatprep.subr.bf16.mxu0 %v583
        %786 = vmatpush1.bf16.msra.mxu0 %v582
        %787 = vmatprep.subr.bf16.mxu0 0
        %788 = vmatpush1.bf16.msra.mxu0 0
        %789 = vmatprep.subr.bf16.mxu0 0
        %790 = vmatpush1.bf16.msra.mxu0 0
        %791 = vmatprep.subr.bf16.mxu0 0
        %792 = vmatpush1.bf16.msra.mxu0 0
        %793 = vmatprep.subr.bf16.mxu0 0
        %794 = vmatpush1.bf16.msra.mxu0 0
        %795 = vmatprep.subr.bf16.mxu0 0
        %796 = vmatpush1.bf16.msra.mxu0 0
        %797 = vmatprep.subr.bf16.mxu0 0
        %798 = vmatpush1.bf16.msra.mxu0 0
        %799 = vmatprep.subr.bf16.mxu0 0
        %800 = vmatpush1.bf16.msra.mxu0 0
        %801 = vmatprep.subr.bf16.mxu0 0
        %802 = vmatpush1.bf16.msra.mxu0 0
        %803 = vmatprep.mubr.bf16.mxu0 0
        %804 = vmatmul.mubr.bf16.gmra.mrb[0].mxu0 %v221
        %v805 = vpop.f32.mrb[0].mxu0
        %v806 = vadd.f32 %v315, %v805
        %v807 = vpop.f32.mrb[0].mxu0
        %v808 = vadd.f32 %v319, %v807
        %v809 = vpop.f32.mrb[0].mxu0
        %v810 = vpop.f32.mrb[0].mxu0
        %811 = vdwg.mxu0
        %v812 = vmax.f32 %v683, 0.0
        %v813 = vmax.f32 %v685, 0.0
        %v814 = vmax.f32 %v724, 0.0
        %v815 = vmax.f32 %v726, 0.0
        %v816 = vmax.f32 %v765, 0.0
        %v817 = vmax.f32 %v767, 0.0
        %v818 = vmax.f32 %v806, 0.0
        %v819 = vmax.f32 %v808, 0.0
        %v820 = vpack.c.bf16 %v812, %v812
        %v821 = vpack.c.bf16 %v813, %v813
        %v822 = vpack.c.bf16 %v814, %v814
        %v823 = vpack.c.bf16 %v815, %v815
        %v824 = vpack.c.bf16 %v816, %v816
        %v825 = vpack.c.bf16 %v817, %v817
        %v826 = vpack.c.bf16 %v818, %v818
        %v827 = vpack.c.bf16 %v819, %v819
        %v828 = vld [vmem:[%s3] sm:$0xff]
        %v829 = vld [vmem:[%s3 + $0x8] sm:$0xff]
        %v830 = vld [vmem:[%s3 + $0x10] sm:$0xff]
        %v831 = vld [vmem:[%s3 + $0x18] sm:$0xff]
        %v832 = vld [vmem:[%s3 + $0x20] sm:$0xff]
        %v833 = vld [vmem:[%s3 + $0x28] sm:$0xff]
        %v834 = vld [vmem:[%s3 + $0x30] sm:$0xff]
        %v835 = vld [vmem:[%s3 + $0x38] sm:$0xff]
        %v836 = vld [vmem:[%s3 + $0x40] sm:$0xff]
        %v837 = vld [vmem:[%s3 + $0x48] sm:$0xff]
        %v838 = vld [vmem:[%s3 + $0x50] sm:$0xff]
        %v839 = vld [vmem:[%s3 + $0x58] sm:$0xff]
        %v840 = vld [vmem:[%s3 + $0x60] sm:$0xff]
        %v841 = vld [vmem:[%s3 + $0x68] sm:$0xff]
        %v842 = vld [vmem:[%s3 + $0x70] sm:$0xff]
        %v843 = vld [vmem:[%s3 + $0x78] sm:$0xff]
        %v844 = vld [vmem:[%s3 + $0x80] sm:$0xff]
        %v845 = vld [vmem:[%s3 + $0x88] sm:$0xff]
        %v846 = vld [vmem:[%s3 + $0x90] sm:$0xff]
        %v847 = vld [vmem:[%s3 + $0x98] sm:$0xff]
        %v848 = vld [vmem:[%s3 + $0xa0] sm:$0xff]
        %v849 = vld [vmem:[%s3 + $0xa8] sm:$0xff]
        %v850 = vld [vmem:[%s3 + $0xb0] sm:$0xff]
        %v851 = vld [vmem:[%s3 + $0xb8] sm:$0xff]
        %v852 = vld [vmem:[%s3 + $0xc0] sm:$0xff]
        %v853 = vld [vmem:[%s3 + $0xc8] sm:$0xff]
        %v854 = vld [vmem:[%s3 + $0xd0] sm:$0xff]
        %v855 = vld [vmem:[%s3 + $0xd8] sm:$0xff]
        %v856 = vld [vmem:[%s3 + $0xe0] sm:$0xff]
        %v857 = vld [vmem:[%s3 + $0xe8] sm:$0xff]
        %v858 = vld [vmem:[%s3 + $0xf0] sm:$0xff]
        %v859 = vld [vmem:[%s3 + $0xf8] sm:$0xff]
        %v860 = vld [vmem:[%s3 + $0x100] sm:$0xff]
        %v861 = vld [vmem:[%s3 + $0x108] sm:$0xff]
        %v862 = vld [vmem:[%s3 + $0x110] sm:$0xff]
        %v863 = vld [vmem:[%s3 + $0x118] sm:$0xff]
        %v864 = vld [vmem:[%s3 + $0x120] sm:$0xff]
        %v865 = vld [vmem:[%s3 + $0x128] sm:$0xff]
        %v866 = vld [vmem:[%s3 + $0x130] sm:$0xff]
        %v867 = vld [vmem:[%s3 + $0x138] sm:$0xff]
        %v868 = vld [vmem:[%s3 + $0x140] sm:$0xff]
        %v869 = vld [vmem:[%s3 + $0x148] sm:$0xff]
        %v870 = vld [vmem:[%s3 + $0x150] sm:$0xff]
        %v871 = vld [vmem:[%s3 + $0x158] sm:$0xff]
        %v872 = vld [vmem:[%s3 + $0x160] sm:$0xff]
        %v873 = vld [vmem:[%s3 + $0x168] sm:$0xff]
        %v874 = vld [vmem:[%s3 + $0x170] sm:$0xff]
        %v875 = vld [vmem:[%s3 + $0x178] sm:$0xff]
        %v876 = vld [vmem:[%s3 + $0x180] sm:$0xff]
        %v877 = vld [vmem:[%s3 + $0x188] sm:$0xff]
        %v878 = vld [vmem:[%s3 + $0x190] sm:$0xff]
        %v879 = vld [vmem:[%s3 + $0x198] sm:$0xff]
        %v880 = vld [vmem:[%s3 + $0x1a0] sm:$0xff]
        %v881 = vld [vmem:[%s3 + $0x1a8] sm:$0xff]
        %v882 = vld [vmem:[%s3 + $0x1b0] sm:$0xff]
        %v883 = vld [vmem:[%s3 + $0x1b8] sm:$0xff]
        %v884 = vld [vmem:[%s3 + $0x1c0] sm:$0xff]
        %v885 = vld [vmem:[%s3 + $0x1c8] sm:$0xff]
        %v886 = vld [vmem:[%s3 + $0x1d0] sm:$0xff]
        %v887 = vld [vmem:[%s3 + $0x1d8] sm:$0xff]
        %v888 = vld [vmem:[%s3 + $0x1e0] sm:$0xff]
        %v889 = vld [vmem:[%s3 + $0x1e8] sm:$0xff]
        %v890 = vld [vmem:[%s3 + $0x1f0] sm:$0xff]
        %v891 = vld [vmem:[%s3 + $0x1f8] sm:$0xff]
        %v892 = vld [vmem:[%s3 + $0x200] sm:$0xff]
        %v893 = vld [vmem:[%s3 + $0x208] sm:$0xff]
        %v894 = vld [vmem:[%s3 + $0x210] sm:$0xff]
        %v895 = vld [vmem:[%s3 + $0x218] sm:$0xff]
        %v896 = vld [vmem:[%s3 + $0x220] sm:$0xff]
        %v897 = vld [vmem:[%s3 + $0x228] sm:$0xff]
        %v898 = vld [vmem:[%s3 + $0x230] sm:$0xff]
        %v899 = vld [vmem:[%s3 + $0x238] sm:$0xff]
        %v900 = vld [vmem:[%s3 + $0x240] sm:$0xff]
        %v901 = vld [vmem:[%s3 + $0x248] sm:$0xff]
        %v902 = vld [vmem:[%s3 + $0x250] sm:$0xff]
        %v903 = vld [vmem:[%s3 + $0x258] sm:$0xff]
        %v904 = vld [vmem:[%s3 + $0x260] sm:$0xff]
        %v905 = vld [vmem:[%s3 + $0x268] sm:$0xff]
        %v906 = vld [vmem:[%s3 + $0x270] sm:$0xff]
        %v907 = vld [vmem:[%s3 + $0x278] sm:$0xff]
        %v908 = vld [vmem:[%s3 + $0x280] sm:$0xff]
        %v909 = vld [vmem:[%s3 + $0x288] sm:$0xff]
        %v910 = vld [vmem:[%s3 + $0x290] sm:$0xff]
        %v911 = vld [vmem:[%s3 + $0x298] sm:$0xff]
        %v912 = vld [vmem:[%s3 + $0x2a0] sm:$0xff]
        %v913 = vld [vmem:[%s3 + $0x2a8] sm:$0xff]
        %v914 = vld [vmem:[%s3 + $0x2b0] sm:$0xff]
        %v915 = vld [vmem:[%s3 + $0x2b8] sm:$0xff]
        %v916 = vld [vmem:[%s3 + $0x2c0] sm:$0xff]
        %v917 = vld [vmem:[%s3 + $0x2c8] sm:$0xff]
        %v918 = vld [vmem:[%s3 + $0x2d0] sm:$0xff]
        %v919 = vld [vmem:[%s3 + $0x2d8] sm:$0xff]
        %v920 = vld [vmem:[%s3 + $0x2e0] sm:$0xff]
        %v921 = vld [vmem:[%s3 + $0x2e8] sm:$0xff]
        %v922 = vld [vmem:[%s3 + $0x2f0] sm:$0xff]
        %v923 = vld [vmem:[%s3 + $0x2f8] sm:$0xff]
        %v924 = vld [vmem:[%s3 + $0x300] sm:$0xff]
        %v925 = vld [vmem:[%s3 + $0x308] sm:$0xff]
        %v926 = vld [vmem:[%s3 + $0x310] sm:$0xff]
        %v927 = vld [vmem:[%s3 + $0x318] sm:$0xff]
        %v928 = vld [vmem:[%s3 + $0x320] sm:$0xff]
        %v929 = vld [vmem:[%s3 + $0x328] sm:$0xff]
        %v930 = vld [vmem:[%s3 + $0x330] sm:$0xff]
        %v931 = vld [vmem:[%s3 + $0x338] sm:$0xff]
        %v932 = vld [vmem:[%s3 + $0x340] sm:$0xff]
        %v933 = vld [vmem:[%s3 + $0x348] sm:$0xff]
        %v934 = vld [vmem:[%s3 + $0x350] sm:$0xff]
        %v935 = vld [vmem:[%s3 + $0x358] sm:$0xff]
        %v936 = vld [vmem:[%s3 + $0x360] sm:$0xff]
        %v937 = vld [vmem:[%s3 + $0x368] sm:$0xff]
        %v938 = vld [vmem:[%s3 + $0x370] sm:$0xff]
        %v939 = vld [vmem:[%s3 + $0x378] sm:$0xff]
        %v940 = vld [vmem:[%s3 + $0x380] sm:$0xff]
        %v941 = vld [vmem:[%s3 + $0x388] sm:$0xff]
        %v942 = vld [vmem:[%s3 + $0x390] sm:$0xff]
        %v943 = vld [vmem:[%s3 + $0x398] sm:$0xff]
        %v944 = vld [vmem:[%s3 + $0x3a0] sm:$0xff]
        %v945 = vld [vmem:[%s3 + $0x3a8] sm:$0xff]
        %v946 = vld [vmem:[%s3 + $0x3b0] sm:$0xff]
        %v947 = vld [vmem:[%s3 + $0x3b8] sm:$0xff]
        %v948 = vld [vmem:[%s3 + $0x3c0] sm:$0xff]
        %v949 = vld [vmem:[%s3 + $0x3c8] sm:$0xff]
        %v950 = vld [vmem:[%s3 + $0x3d0] sm:$0xff]
        %v951 = vld [vmem:[%s3 + $0x3d8] sm:$0xff]
        %v952 = vld [vmem:[%s3 + $0x3e0] sm:$0xff]
        %v953 = vld [vmem:[%s3 + $0x3e8] sm:$0xff]
        %v954 = vld [vmem:[%s3 + $0x3f0] sm:$0xff]
        %v955 = vld [vmem:[%s3 + $0x3f8] sm:$0xff]
        %v956 = vld [vmem:[%s3 + $0x400] sm:$0xff]
        %v957 = vld [vmem:[%s3 + $0x408] sm:$0xff]
        %v958 = vld [vmem:[%s3 + $0x410] sm:$0xff]
        %v959 = vld [vmem:[%s3 + $0x418] sm:$0xff]
        %v960 = vld [vmem:[%s3 + $0x420] sm:$0xff]
        %v961 = vld [vmem:[%s3 + $0x428] sm:$0xff]
        %v962 = vld [vmem:[%s3 + $0x430] sm:$0xff]
        %v963 = vld [vmem:[%s3 + $0x438] sm:$0xff]
        %v964 = vld [vmem:[%s3 + $0x440] sm:$0xff]
        %v965 = vld [vmem:[%s3 + $0x448] sm:$0xff]
        %v966 = vld [vmem:[%s3 + $0x450] sm:$0xff]
        %v967 = vld [vmem:[%s3 + $0x458] sm:$0xff]
        %v968 = vld [vmem:[%s3 + $0x460] sm:$0xff]
        %v969 = vld [vmem:[%s3 + $0x468] sm:$0xff]
        %v970 = vld [vmem:[%s3 + $0x470] sm:$0xff]
        %v971 = vld [vmem:[%s3 + $0x478] sm:$0xff]
        %v972 = vld [vmem:[%s3 + $0x480] sm:$0xff]
        %v973 = vld [vmem:[%s3 + $0x488] sm:$0xff]
        %v974 = vld [vmem:[%s3 + $0x490] sm:$0xff]
        %v975 = vld [vmem:[%s3 + $0x498] sm:$0xff]
        %v976 = vld [vmem:[%s3 + $0x4a0] sm:$0xff]
        %v977 = vld [vmem:[%s3 + $0x4a8] sm:$0xff]
        %v978 = vld [vmem:[%s3 + $0x4b0] sm:$0xff]
        %v979 = vld [vmem:[%s3 + $0x4b8] sm:$0xff]
        %v980 = vld [vmem:[%s3 + $0x4c0] sm:$0xff]
        %v981 = vld [vmem:[%s3 + $0x4c8] sm:$0xff]
        %v982 = vld [vmem:[%s3 + $0x4d0] sm:$0xff]
        %v983 = vld [vmem:[%s3 + $0x4d8] sm:$0xff]
        %v984 = vld [vmem:[%s3 + $0x4e0] sm:$0xff]
        %v985 = vld [vmem:[%s3 + $0x4e8] sm:$0xff]
        %v986 = vld [vmem:[%s3 + $0x4f0] sm:$0xff]
        %v987 = vld [vmem:[%s3 + $0x4f8] sm:$0xff]
        %v988 = vld [vmem:[%s3 + $0x500] sm:$0xff]
        %v989 = vld [vmem:[%s3 + $0x508] sm:$0xff]
        %v990 = vld [vmem:[%s3 + $0x510] sm:$0xff]
        %v991 = vld [vmem:[%s3 + $0x518] sm:$0xff]
        %v992 = vld [vmem:[%s3 + $0x520] sm:$0xff]
        %v993 = vld [vmem:[%s3 + $0x528] sm:$0xff]
        %v994 = vld [vmem:[%s3 + $0x530] sm:$0xff]
        %v995 = vld [vmem:[%s3 + $0x538] sm:$0xff]
        %v996 = vld [vmem:[%s3 + $0x540] sm:$0xff]
        %v997 = vld [vmem:[%s3 + $0x548] sm:$0xff]
        %v998 = vld [vmem:[%s3 + $0x550] sm:$0xff]
        %v999 = vld [vmem:[%s3 + $0x558] sm:$0xff]
        %v1000 = vld [vmem:[%s3 + $0x560] sm:$0xff]
        %v1001 = vld [vmem:[%s3 + $0x568] sm:$0xff]
        %v1002 = vld [vmem:[%s3 + $0x570] sm:$0xff]
        %v1003 = vld [vmem:[%s3 + $0x578] sm:$0xff]
        %v1004 = vld [vmem:[%s3 + $0x580] sm:$0xff]
        %v1005 = vld [vmem:[%s3 + $0x588] sm:$0xff]
        %v1006 = vld [vmem:[%s3 + $0x590] sm:$0xff]
        %v1007 = vld [vmem:[%s3 + $0x598] sm:$0xff]
        %v1008 = vld [vmem:[%s3 + $0x5a0] sm:$0xff]
        %v1009 = vld [vmem:[%s3 + $0x5a8] sm:$0xff]
        %v1010 = vld [vmem:[%s3 + $0x5b0] sm:$0xff]
        %v1011 = vld [vmem:[%s3 + $0x5b8] sm:$0xff]
        %v1012 = vld [vmem:[%s3 + $0x5c0] sm:$0xff]
        %v1013 = vld [vmem:[%s3 + $0x5c8] sm:$0xff]
        %v1014 = vld [vmem:[%s3 + $0x5d0] sm:$0xff]
        %v1015 = vld [vmem:[%s3 + $0x5d8] sm:$0xff]
        %v1016 = vld [vmem:[%s3 + $0x5e0] sm:$0xff]
        %v1017 = vld [vmem:[%s3 + $0x5e8] sm:$0xff]
        %v1018 = vld [vmem:[%s3 + $0x5f0] sm:$0xff]
        %v1019 = vld [vmem:[%s3 + $0x5f8] sm:$0xff]
        %v1020 = vld [vmem:[%s3 + $0x600] sm:$0xff]
        %v1021 = vld [vmem:[%s3 + $0x608] sm:$0xff]
        %v1022 = vld [vmem:[%s3 + $0x610] sm:$0xff]
        %v1023 = vld [vmem:[%s3 + $0x618] sm:$0xff]
        %v1024 = vld [vmem:[%s3 + $0x620] sm:$0xff]
        %v1025 = vld [vmem:[%s3 + $0x628] sm:$0xff]
        %v1026 = vld [vmem:[%s3 + $0x630] sm:$0xff]
        %v1027 = vld [vmem:[%s3 + $0x638] sm:$0xff]
        %v1028 = vld [vmem:[%s3 + $0x640] sm:$0xff]
        %v1029 = vld [vmem:[%s3 + $0x648] sm:$0xff]
        %v1030 = vld [vmem:[%s3 + $0x650] sm:$0xff]
        %v1031 = vld [vmem:[%s3 + $0x658] sm:$0xff]
        %v1032 = vld [vmem:[%s3 + $0x660] sm:$0xff]
        %v1033 = vld [vmem:[%s3 + $0x668] sm:$0xff]
        %v1034 = vld [vmem:[%s3 + $0x670] sm:$0xff]
        %v1035 = vld [vmem:[%s3 + $0x678] sm:$0xff]
        %v1036 = vld [vmem:[%s3 + $0x680] sm:$0xff]
        %v1037 = vld [vmem:[%s3 + $0x688] sm:$0xff]
        %v1038 = vld [vmem:[%s3 + $0x690] sm:$0xff]
        %v1039 = vld [vmem:[%s3 + $0x698] sm:$0xff]
        %v1040 = vld [vmem:[%s3 + $0x6a0] sm:$0xff]
        %v1041 = vld [vmem:[%s3 + $0x6a8] sm:$0xff]
        %v1042 = vld [vmem:[%s3 + $0x6b0] sm:$0xff]
        %v1043 = vld [vmem:[%s3 + $0x6b8] sm:$0xff]
        %v1044 = vld [vmem:[%s3 + $0x6c0] sm:$0xff]
        %v1045 = vld [vmem:[%s3 + $0x6c8] sm:$0xff]
        %v1046 = vld [vmem:[%s3 + $0x6d0] sm:$0xff]
        %v1047 = vld [vmem:[%s3 + $0x6d8] sm:$0xff]
        %v1048 = vld [vmem:[%s3 + $0x6e0] sm:$0xff]
        %v1049 = vld [vmem:[%s3 + $0x6e8] sm:$0xff]
        %v1050 = vld [vmem:[%s3 + $0x6f0] sm:$0xff]
        %v1051 = vld [vmem:[%s3 + $0x6f8] sm:$0xff]
        %v1052 = vld [vmem:[%s3 + $0x700] sm:$0xff]
        %v1053 = vld [vmem:[%s3 + $0x708] sm:$0xff]
        %v1054 = vld [vmem:[%s3 + $0x710] sm:$0xff]
        %v1055 = vld [vmem:[%s3 + $0x718] sm:$0xff]
        %v1056 = vld [vmem:[%s3 + $0x720] sm:$0xff]
        %v1057 = vld [vmem:[%s3 + $0x728] sm:$0xff]
        %v1058 = vld [vmem:[%s3 + $0x730] sm:$0xff]
        %v1059 = vld [vmem:[%s3 + $0x738] sm:$0xff]
        %v1060 = vld [vmem:[%s3 + $0x740] sm:$0xff]
        %v1061 = vld [vmem:[%s3 + $0x748] sm:$0xff]
        %v1062 = vld [vmem:[%s3 + $0x750] sm:$0xff]
        %v1063 = vld [vmem:[%s3 + $0x758] sm:$0xff]
        %v1064 = vld [vmem:[%s3 + $0x760] sm:$0xff]
        %v1065 = vld [vmem:[%s3 + $0x768] sm:$0xff]
        %v1066 = vld [vmem:[%s3 + $0x770] sm:$0xff]
        %v1067 = vld [vmem:[%s3 + $0x778] sm:$0xff]
        %v1068 = vld [vmem:[%s3 + $0x780] sm:$0xff]
        %v1069 = vld [vmem:[%s3 + $0x788] sm:$0xff]
        %v1070 = vld [vmem:[%s3 + $0x790] sm:$0xff]
        %v1071 = vld [vmem:[%s3 + $0x798] sm:$0xff]
        %v1072 = vld [vmem:[%s3 + $0x7a0] sm:$0xff]
        %v1073 = vld [vmem:[%s3 + $0x7a8] sm:$0xff]
        %v1074 = vld [vmem:[%s3 + $0x7b0] sm:$0xff]
        %v1075 = vld [vmem:[%s3 + $0x7b8] sm:$0xff]
        %v1076 = vld [vmem:[%s3 + $0x7c0] sm:$0xff]
        %v1077 = vld [vmem:[%s3 + $0x7c8] sm:$0xff]
        %v1078 = vld [vmem:[%s3 + $0x7d0] sm:$0xff]
        %v1079 = vld [vmem:[%s3 + $0x7d8] sm:$0xff]
        %v1080 = vld [vmem:[%s3 + $0x7e0] sm:$0xff]
        %v1081 = vld [vmem:[%s3 + $0x7e8] sm:$0xff]
        %v1082 = vld [vmem:[%s3 + $0x7f0] sm:$0xff]
        %v1083 = vld [vmem:[%s3 + $0x7f8] sm:$0xff]
        %v1084 = vld [vmem:[%s3 + $0x800] sm:$0xff]
        %v1085 = vld [vmem:[%s3 + $0x808] sm:$0xff]
        %v1086 = vld [vmem:[%s3 + $0x810] sm:$0xff]
        %v1087 = vld [vmem:[%s3 + $0x818] sm:$0xff]
        %v1088 = vld [vmem:[%s3 + $0x820] sm:$0xff]
        %v1089 = vld [vmem:[%s3 + $0x828] sm:$0xff]
        %v1090 = vld [vmem:[%s3 + $0x830] sm:$0xff]
        %v1091 = vld [vmem:[%s3 + $0x838] sm:$0xff]
        %v1092 = vld [vmem:[%s3 + $0x840] sm:$0xff]
        %v1093 = vld [vmem:[%s3 + $0x848] sm:$0xff]
        %v1094 = vld [vmem:[%s3 + $0x850] sm:$0xff]
        %v1095 = vld [vmem:[%s3 + $0x858] sm:$0xff]
        %v1096 = vld [vmem:[%s3 + $0x860] sm:$0xff]
        %v1097 = vld [vmem:[%s3 + $0x868] sm:$0xff]
        %v1098 = vld [vmem:[%s3 + $0x870] sm:$0xff]
        %v1099 = vld [vmem:[%s3 + $0x878] sm:$0xff]
        %v1100 = vld [vmem:[%s3 + $0x880] sm:$0xff]
        %v1101 = vld [vmem:[%s3 + $0x888] sm:$0xff]
        %v1102 = vld [vmem:[%s3 + $0x890] sm:$0xff]
        %v1103 = vld [vmem:[%s3 + $0x898] sm:$0xff]
        %v1104 = vld [vmem:[%s3 + $0x8a0] sm:$0xff]
        %v1105 = vld [vmem:[%s3 + $0x8a8] sm:$0xff]
        %v1106 = vld [vmem:[%s3 + $0x8b0] sm:$0xff]
        %v1107 = vld [vmem:[%s3 + $0x8b8] sm:$0xff]
        %v1108 = vld [vmem:[%s3 + $0x8c0] sm:$0xff]
        %v1109 = vld [vmem:[%s3 + $0x8c8] sm:$0xff]
        %v1110 = vld [vmem:[%s3 + $0x8d0] sm:$0xff]
        %v1111 = vld [vmem:[%s3 + $0x8d8] sm:$0xff]
        %v1112 = vld [vmem:[%s3 + $0x8e0] sm:$0xff]
        %v1113 = vld [vmem:[%s3 + $0x8e8] sm:$0xff]
        %v1114 = vld [vmem:[%s3 + $0x8f0] sm:$0xff]
        %v1115 = vld [vmem:[%s3 + $0x8f8] sm:$0xff]
        %v1116 = vld [vmem:[%s3 + $0x900] sm:$0xff]
        %v1117 = vld [vmem:[%s3 + $0x908] sm:$0xff]
        %v1118 = vld [vmem:[%s3 + $0x910] sm:$0xff]
        %v1119 = vld [vmem:[%s3 + $0x918] sm:$0xff]
        %v1120 = vld [vmem:[%s3 + $0x920] sm:$0xff]
        %v1121 = vld [vmem:[%s3 + $0x928] sm:$0xff]
        %v1122 = vld [vmem:[%s3 + $0x930] sm:$0xff]
        %v1123 = vld [vmem:[%s3 + $0x938] sm:$0xff]
        %v1124 = vld [vmem:[%s3 + $0x940] sm:$0xff]
        %v1125 = vld [vmem:[%s3 + $0x948] sm:$0xff]
        %v1126 = vld [vmem:[%s3 + $0x950] sm:$0xff]
        %v1127 = vld [vmem:[%s3 + $0x958] sm:$0xff]
        %v1128 = vld [vmem:[%s3 + $0x960] sm:$0xff]
        %v1129 = vld [vmem:[%s3 + $0x968] sm:$0xff]
        %v1130 = vld [vmem:[%s3 + $0x970] sm:$0xff]
        %v1131 = vld [vmem:[%s3 + $0x978] sm:$0xff]
        %v1132 = vld [vmem:[%s3 + $0x980] sm:$0xff]
        %v1133 = vld [vmem:[%s3 + $0x988] sm:$0xff]
        %v1134 = vld [vmem:[%s3 + $0x990] sm:$0xff]
        %v1135 = vld [vmem:[%s3 + $0x998] sm:$0xff]
        %v1136 = vld [vmem:[%s3 + $0x9a0] sm:$0xff]
        %v1137 = vld [vmem:[%s3 + $0x9a8] sm:$0xff]
        %v1138 = vld [vmem:[%s3 + $0x9b0] sm:$0xff]
        %v1139 = vld [vmem:[%s3 + $0x9b8] sm:$0xff]
        %v1140 = vld [vmem:[%s3 + $0x9c0] sm:$0xff]
        %v1141 = vld [vmem:[%s3 + $0x9c8] sm:$0xff]
        %v1142 = vld [vmem:[%s3 + $0x9d0] sm:$0xff]
        %v1143 = vld [vmem:[%s3 + $0x9d8] sm:$0xff]
        %v1144 = vld [vmem:[%s3 + $0x9e0] sm:$0xff]
        %v1145 = vld [vmem:[%s3 + $0x9e8] sm:$0xff]
        %v1146 = vld [vmem:[%s3 + $0x9f0] sm:$0xff]
        %v1147 = vld [vmem:[%s3 + $0x9f8] sm:$0xff]
        %v1148 = vld [vmem:[%s3 + $0xa00] sm:$0xff]
        %v1149 = vld [vmem:[%s3 + $0xa08] sm:$0xff]
        %v1150 = vld [vmem:[%s3 + $0xa10] sm:$0xff]
        %v1151 = vld [vmem:[%s3 + $0xa18] sm:$0xff]
        %v1152 = vld [vmem:[%s3 + $0xa20] sm:$0xff]
        %v1153 = vld [vmem:[%s3 + $0xa28] sm:$0xff]
        %v1154 = vld [vmem:[%s3 + $0xa30] sm:$0xff]
        %v1155 = vld [vmem:[%s3 + $0xa38] sm:$0xff]
        %v1156 = vld [vmem:[%s3 + $0xa40] sm:$0xff]
        %v1157 = vld [vmem:[%s3 + $0xa48] sm:$0xff]
        %v1158 = vld [vmem:[%s3 + $0xa50] sm:$0xff]
        %v1159 = vld [vmem:[%s3 + $0xa58] sm:$0xff]
        %v1160 = vld [vmem:[%s3 + $0xa60] sm:$0xff]
        %v1161 = vld [vmem:[%s3 + $0xa68] sm:$0xff]
        %v1162 = vld [vmem:[%s3 + $0xa70] sm:$0xff]
        %v1163 = vld [vmem:[%s3 + $0xa78] sm:$0xff]
        %v1164 = vld [vmem:[%s3 + $0xa80] sm:$0xff]
        %v1165 = vld [vmem:[%s3 + $0xa88] sm:$0xff]
        %v1166 = vld [vmem:[%s3 + $0xa90] sm:$0xff]
        %v1167 = vld [vmem:[%s3 + $0xa98] sm:$0xff]
        %v1168 = vld [vmem:[%s3 + $0xaa0] sm:$0xff]
        %v1169 = vld [vmem:[%s3 + $0xaa8] sm:$0xff]
        %v1170 = vld [vmem:[%s3 + $0xab0] sm:$0xff]
        %v1171 = vld [vmem:[%s3 + $0xab8] sm:$0xff]
        %v1172 = vld [vmem:[%s3 + $0xac0] sm:$0xff]
        %v1173 = vld [vmem:[%s3 + $0xac8] sm:$0xff]
        %v1174 = vld [vmem:[%s3 + $0xad0] sm:$0xff]
        %v1175 = vld [vmem:[%s3 + $0xad8] sm:$0xff]
        %v1176 = vld [vmem:[%s3 + $0xae0] sm:$0xff]
        %v1177 = vld [vmem:[%s3 + $0xae8] sm:$0xff]
        %v1178 = vld [vmem:[%s3 + $0xaf0] sm:$0xff]
        %v1179 = vld [vmem:[%s3 + $0xaf8] sm:$0xff]
        %v1180 = vld [vmem:[%s3 + $0xb00] sm:$0xff]
        %v1181 = vld [vmem:[%s3 + $0xb08] sm:$0xff]
        %v1182 = vld [vmem:[%s3 + $0xb10] sm:$0xff]
        %v1183 = vld [vmem:[%s3 + $0xb18] sm:$0xff]
        %v1184 = vld [vmem:[%s3 + $0xb20] sm:$0xff]
        %v1185 = vld [vmem:[%s3 + $0xb28] sm:$0xff]
        %v1186 = vld [vmem:[%s3 + $0xb30] sm:$0xff]
        %v1187 = vld [vmem:[%s3 + $0xb38] sm:$0xff]
        %v1188 = vld [vmem:[%s3 + $0xb40] sm:$0xff]
        %v1189 = vld [vmem:[%s3 + $0xb48] sm:$0xff]
        %v1190 = vld [vmem:[%s3 + $0xb50] sm:$0xff]
        %v1191 = vld [vmem:[%s3 + $0xb58] sm:$0xff]
        %v1192 = vld [vmem:[%s3 + $0xb60] sm:$0xff]
        %v1193 = vld [vmem:[%s3 + $0xb68] sm:$0xff]
        %v1194 = vld [vmem:[%s3 + $0xb70] sm:$0xff]
        %v1195 = vld [vmem:[%s3 + $0xb78] sm:$0xff]
        %v1196 = vld [vmem:[%s3 + $0xb80] sm:$0xff]
        %v1197 = vld [vmem:[%s3 + $0xb88] sm:$0xff]
        %v1198 = vld [vmem:[%s3 + $0xb90] sm:$0xff]
        %v1199 = vld [vmem:[%s3 + $0xb98] sm:$0xff]
        %v1200 = vld [vmem:[%s3 + $0xba0] sm:$0xff]
        %v1201 = vld [vmem:[%s3 + $0xba8] sm:$0xff]
        %v1202 = vld [vmem:[%s3 + $0xbb0] sm:$0xff]
        %v1203 = vld [vmem:[%s3 + $0xbb8] sm:$0xff]
        %v1204 = vld [vmem:[%s3 + $0xbc0] sm:$0xff]
        %v1205 = vld [vmem:[%s3 + $0xbc8] sm:$0xff]
        %v1206 = vld [vmem:[%s3 + $0xbd0] sm:$0xff]
        %v1207 = vld [vmem:[%s3 + $0xbd8] sm:$0xff]
        %v1208 = vld [vmem:[%s3 + $0xbe0] sm:$0xff]
        %v1209 = vld [vmem:[%s3 + $0xbe8] sm:$0xff]
        %v1210 = vld [vmem:[%s3 + $0xbf0] sm:$0xff]
        %v1211 = vld [vmem:[%s3 + $0xbf8] sm:$0xff]
        %v1212 = vld [vmem:[%s3 + $0xc00] sm:$0xff]
        %v1213 = vld [vmem:[%s3 + $0xc08] sm:$0xff]
        %v1214 = vld [vmem:[%s3 + $0xc10] sm:$0xff]
        %v1215 = vld [vmem:[%s3 + $0xc18] sm:$0xff]
        %v1216 = vld [vmem:[%s3 + $0xc20] sm:$0xff]
        %v1217 = vld [vmem:[%s3 + $0xc28] sm:$0xff]
        %v1218 = vld [vmem:[%s3 + $0xc30] sm:$0xff]
        %v1219 = vld [vmem:[%s3 + $0xc38] sm:$0xff]
        %v1220 = vld [vmem:[%s3 + $0xc40] sm:$0xff]
        %v1221 = vld [vmem:[%s3 + $0xc48] sm:$0xff]
        %v1222 = vld [vmem:[%s3 + $0xc50] sm:$0xff]
        %v1223 = vld [vmem:[%s3 + $0xc58] sm:$0xff]
        %v1224 = vld [vmem:[%s3 + $0xc60] sm:$0xff]
        %v1225 = vld [vmem:[%s3 + $0xc68] sm:$0xff]
        %v1226 = vld [vmem:[%s3 + $0xc70] sm:$0xff]
        %v1227 = vld [vmem:[%s3 + $0xc78] sm:$0xff]
        %v1228 = vld [vmem:[%s3 + $0xc80] sm:$0xff]
        %v1229 = vld [vmem:[%s3 + $0xc88] sm:$0xff]
        %v1230 = vld [vmem:[%s3 + $0xc90] sm:$0xff]
        %v1231 = vld [vmem:[%s3 + $0xc98] sm:$0xff]
        %v1232 = vld [vmem:[%s3 + $0xca0] sm:$0xff]
        %v1233 = vld [vmem:[%s3 + $0xca8] sm:$0xff]
        %v1234 = vld [vmem:[%s3 + $0xcb0] sm:$0xff]
        %v1235 = vld [vmem:[%s3 + $0xcb8] sm:$0xff]
        %v1236 = vld [vmem:[%s3 + $0xcc0] sm:$0xff]
        %v1237 = vld [vmem:[%s3 + $0xcc8] sm:$0xff]
        %v1238 = vld [vmem:[%s3 + $0xcd0] sm:$0xff]
        %v1239 = vld [vmem:[%s3 + $0xcd8] sm:$0xff]
        %v1240 = vld [vmem:[%s3 + $0xce0] sm:$0xff]
        %v1241 = vld [vmem:[%s3 + $0xce8] sm:$0xff]
        %v1242 = vld [vmem:[%s3 + $0xcf0] sm:$0xff]
        %v1243 = vld [vmem:[%s3 + $0xcf8] sm:$0xff]
        %v1244 = vld [vmem:[%s3 + $0xd00] sm:$0xff]
        %v1245 = vld [vmem:[%s3 + $0xd08] sm:$0xff]
        %v1246 = vld [vmem:[%s3 + $0xd10] sm:$0xff]
        %v1247 = vld [vmem:[%s3 + $0xd18] sm:$0xff]
        %v1248 = vld [vmem:[%s3 + $0xd20] sm:$0xff]
        %v1249 = vld [vmem:[%s3 + $0xd28] sm:$0xff]
        %v1250 = vld [vmem:[%s3 + $0xd30] sm:$0xff]
        %v1251 = vld [vmem:[%s3 + $0xd38] sm:$0xff]
        %v1252 = vld [vmem:[%s3 + $0xd40] sm:$0xff]
        %v1253 = vld [vmem:[%s3 + $0xd48] sm:$0xff]
        %v1254 = vld [vmem:[%s3 + $0xd50] sm:$0xff]
        %v1255 = vld [vmem:[%s3 + $0xd58] sm:$0xff]
        %v1256 = vld [vmem:[%s3 + $0xd60] sm:$0xff]
        %v1257 = vld [vmem:[%s3 + $0xd68] sm:$0xff]
        %v1258 = vld [vmem:[%s3 + $0xd70] sm:$0xff]
        %v1259 = vld [vmem:[%s3 + $0xd78] sm:$0xff]
        %v1260 = vld [vmem:[%s3 + $0xd80] sm:$0xff]
        %v1261 = vld [vmem:[%s3 + $0xd88] sm:$0xff]
        %v1262 = vld [vmem:[%s3 + $0xd90] sm:$0xff]
        %v1263 = vld [vmem:[%s3 + $0xd98] sm:$0xff]
        %v1264 = vld [vmem:[%s3 + $0xda0] sm:$0xff]
        %v1265 = vld [vmem:[%s3 + $0xda8] sm:$0xff]
        %v1266 = vld [vmem:[%s3 + $0xdb0] sm:$0xff]
        %v1267 = vld [vmem:[%s3 + $0xdb8] sm:$0xff]
        %v1268 = vld [vmem:[%s3 + $0xdc0] sm:$0xff]
        %v1269 = vld [vmem:[%s3 + $0xdc8] sm:$0xff]
        %v1270 = vld [vmem:[%s3 + $0xdd0] sm:$0xff]
        %v1271 = vld [vmem:[%s3 + $0xdd8] sm:$0xff]
        %v1272 = vld [vmem:[%s3 + $0xde0] sm:$0xff]
        %v1273 = vld [vmem:[%s3 + $0xde8] sm:$0xff]
        %v1274 = vld [vmem:[%s3 + $0xdf0] sm:$0xff]
        %v1275 = vld [vmem:[%s3 + $0xdf8] sm:$0xff]
        %v1276 = vld [vmem:[%s3 + $0xe00] sm:$0xff]
        %v1277 = vld [vmem:[%s3 + $0xe08] sm:$0xff]
        %v1278 = vld [vmem:[%s3 + $0xe10] sm:$0xff]
        %v1279 = vld [vmem:[%s3 + $0xe18] sm:$0xff]
        %v1280 = vld [vmem:[%s3 + $0xe20] sm:$0xff]
        %v1281 = vld [vmem:[%s3 + $0xe28] sm:$0xff]
        %v1282 = vld [vmem:[%s3 + $0xe30] sm:$0xff]
        %v1283 = vld [vmem:[%s3 + $0xe38] sm:$0xff]
        %v1284 = vld [vmem:[%s3 + $0xe40] sm:$0xff]
        %v1285 = vld [vmem:[%s3 + $0xe48] sm:$0xff]
        %v1286 = vld [vmem:[%s3 + $0xe50] sm:$0xff]
        %v1287 = vld [vmem:[%s3 + $0xe58] sm:$0xff]
        %v1288 = vld [vmem:[%s3 + $0xe60] sm:$0xff]
        %v1289 = vld [vmem:[%s3 + $0xe68] sm:$0xff]
        %v1290 = vld [vmem:[%s3 + $0xe70] sm:$0xff]
        %v1291 = vld [vmem:[%s3 + $0xe78] sm:$0xff]
        %v1292 = vld [vmem:[%s3 + $0xe80] sm:$0xff]
        %v1293 = vld [vmem:[%s3 + $0xe88] sm:$0xff]
        %v1294 = vld [vmem:[%s3 + $0xe90] sm:$0xff]
        %v1295 = vld [vmem:[%s3 + $0xe98] sm:$0xff]
        %v1296 = vld [vmem:[%s3 + $0xea0] sm:$0xff]
        %v1297 = vld [vmem:[%s3 + $0xea8] sm:$0xff]
        %v1298 = vld [vmem:[%s3 + $0xeb0] sm:$0xff]
        %v1299 = vld [vmem:[%s3 + $0xeb8] sm:$0xff]
        %v1300 = vld [vmem:[%s3 + $0xec0] sm:$0xff]
        %v1301 = vld [vmem:[%s3 + $0xec8] sm:$0xff]
        %v1302 = vld [vmem:[%s3 + $0xed0] sm:$0xff]
        %v1303 = vld [vmem:[%s3 + $0xed8] sm:$0xff]
        %v1304 = vld [vmem:[%s3 + $0xee0] sm:$0xff]
        %v1305 = vld [vmem:[%s3 + $0xee8] sm:$0xff]
        %v1306 = vld [vmem:[%s3 + $0xef0] sm:$0xff]
        %v1307 = vld [vmem:[%s3 + $0xef8] sm:$0xff]
        %v1308 = vld [vmem:[%s3 + $0xf00] sm:$0xff]
        %v1309 = vld [vmem:[%s3 + $0xf08] sm:$0xff]
        %v1310 = vld [vmem:[%s3 + $0xf10] sm:$0xff]
        %v1311 = vld [vmem:[%s3 + $0xf18] sm:$0xff]
        %v1312 = vld [vmem:[%s3 + $0xf20] sm:$0xff]
        %v1313 = vld [vmem:[%s3 + $0xf28] sm:$0xff]
        %v1314 = vld [vmem:[%s3 + $0xf30] sm:$0xff]
        %v1315 = vld [vmem:[%s3 + $0xf38] sm:$0xff]
        %v1316 = vld [vmem:[%s3 + $0xf40] sm:$0xff]
        %v1317 = vld [vmem:[%s3 + $0xf48] sm:$0xff]
        %v1318 = vld [vmem:[%s3 + $0xf50] sm:$0xff]
        %v1319 = vld [vmem:[%s3 + $0xf58] sm:$0xff]
        %v1320 = vld [vmem:[%s3 + $0xf60] sm:$0xff]
        %v1321 = vld [vmem:[%s3 + $0xf68] sm:$0xff]
        %v1322 = vld [vmem:[%s3 + $0xf70] sm:$0xff]
        %v1323 = vld [vmem:[%s3 + $0xf78] sm:$0xff]
        %v1324 = vld [vmem:[%s3 + $0xf80] sm:$0xff]
        %v1325 = vld [vmem:[%s3 + $0xf88] sm:$0xff]
        %v1326 = vld [vmem:[%s3 + $0xf90] sm:$0xff]
        %v1327 = vld [vmem:[%s3 + $0xf98] sm:$0xff]
        %v1328 = vld [vmem:[%s3 + $0xfa0] sm:$0xff]
        %v1329 = vld [vmem:[%s3 + $0xfa8] sm:$0xff]
        %v1330 = vld [vmem:[%s3 + $0xfb0] sm:$0xff]
        %v1331 = vld [vmem:[%s3 + $0xfb8] sm:$0xff]
        %v1332 = vld [vmem:[%s3 + $0xfc0] sm:$0xff]
        %v1333 = vld [vmem:[%s3 + $0xfc8] sm:$0xff]
        %v1334 = vld [vmem:[%s3 + $0xfd0] sm:$0xff]
        %v1335 = vld [vmem:[%s3 + $0xfd8] sm:$0xff]
        %v1336 = vld [vmem:[%s3 + $0xfe0] sm:$0xff]
        %v1337 = vld [vmem:[%s3 + $0xfe8] sm:$0xff]
        %v1338 = vld [vmem:[%s3 + $0xff0] sm:$0xff]
        %v1339 = vld [vmem:[%s3 + $0xff8] sm:$0xff]
        %v1340 = vld [vmem:[%s4] sm:$0xff]
        %v1342 = vlaneseq
        %v1343 = vshrl.u32 %v1342, 7
        %v1344 = vsub.s32 0, %v1343
        %v1345 = vrot.slane %v1340, %v1344
        %v1346 = vlaneseq
        %v1347 = vshrl.u32 %v1346, 7
        %v1348 = vsub.s32 1, %v1347
        %v1349 = vrot.slane %v1340, %v1348
        %v1350 = vlaneseq
        %v1351 = vshrl.u32 %v1350, 7
        %v1352 = vsub.s32 2, %v1351
        %v1353 = vrot.slane %v1340, %v1352
        %v1354 = vlaneseq
        %v1355 = vshrl.u32 %v1354, 7
        %v1356 = vsub.s32 3, %v1355
        %v1357 = vrot.slane %v1340, %v1356
        %v1358 = vlaneseq
        %v1359 = vshrl.u32 %v1358, 7
        %v1360 = vsub.s32 4, %v1359
        %v1361 = vrot.slane %v1340, %v1360
        %v1362 = vlaneseq
        %v1363 = vshrl.u32 %v1362, 7
        %v1364 = vsub.s32 5, %v1363
        %v1365 = vrot.slane %v1340, %v1364
        %v1366 = vlaneseq
        %v1367 = vshrl.u32 %v1366, 7
        %v1368 = vsub.s32 6, %v1367
        %v1369 = vrot.slane %v1340, %v1368
        %v1370 = vlaneseq
        %v1371 = vshrl.u32 %v1370, 7
        %v1372 = vsub.s32 7, %v1371
        %v1373 = vrot.slane %v1340, %v1372
        %v1894 = vunpack.c.l.b16 %v828
        %v1895 = vunpack.c.h.b16 %v828
        %v1896 = vunpack.c.l.b16 %v829
        %v1897 = vunpack.c.h.b16 %v829
        %v1898 = vunpack.c.l.b16 %v830
        %v1899 = vunpack.c.h.b16 %v830
        %v1900 = vunpack.c.l.b16 %v831
        %v1901 = vunpack.c.h.b16 %v831
        %v1902 = vunpack.c.l.b16 %v832
        %v1903 = vunpack.c.h.b16 %v832
        %v1904 = vunpack.c.l.b16 %v833
        %v1905 = vunpack.c.h.b16 %v833
        %v1906 = vunpack.c.l.b16 %v834
        %v1907 = vunpack.c.h.b16 %v834
        %v1908 = vunpack.c.l.b16 %v835
        %v1909 = vunpack.c.h.b16 %v835
        %v1910 = vunpack.c.l.b16 %v836
        %v1911 = vunpack.c.h.b16 %v836
        %v1912 = vunpack.c.l.b16 %v837
        %v1913 = vunpack.c.h.b16 %v837
        %v1914 = vunpack.c.l.b16 %v838
        %v1915 = vunpack.c.h.b16 %v838
        %v1916 = vunpack.c.l.b16 %v839
        %v1917 = vunpack.c.h.b16 %v839
        %v1918 = vunpack.c.l.b16 %v840
        %v1919 = vunpack.c.h.b16 %v840
        %v1920 = vunpack.c.l.b16 %v841
        %v1921 = vunpack.c.h.b16 %v841
        %v1922 = vunpack.c.l.b16 %v842
        %v1923 = vunpack.c.h.b16 %v842
        %v1924 = vunpack.c.l.b16 %v843
        %v1925 = vunpack.c.h.b16 %v843
        %v1926 = vunpack.c.l.b16 %v844
        %v1927 = vunpack.c.h.b16 %v844
        %v1928 = vunpack.c.l.b16 %v845
        %v1929 = vunpack.c.h.b16 %v845
        %v1930 = vunpack.c.l.b16 %v846
        %v1931 = vunpack.c.h.b16 %v846
        %v1932 = vunpack.c.l.b16 %v847
        %v1933 = vunpack.c.h.b16 %v847
        %v1934 = vunpack.c.l.b16 %v848
        %v1935 = vunpack.c.h.b16 %v848
        %v1936 = vunpack.c.l.b16 %v849
        %v1937 = vunpack.c.h.b16 %v849
        %v1938 = vunpack.c.l.b16 %v850
        %v1939 = vunpack.c.h.b16 %v850
        %v1940 = vunpack.c.l.b16 %v851
        %v1941 = vunpack.c.h.b16 %v851
        %v1942 = vunpack.c.l.b16 %v852
        %v1943 = vunpack.c.h.b16 %v852
        %v1944 = vunpack.c.l.b16 %v853
        %v1945 = vunpack.c.h.b16 %v853
        %v1946 = vunpack.c.l.b16 %v854
        %v1947 = vunpack.c.h.b16 %v854
        %v1948 = vunpack.c.l.b16 %v855
        %v1949 = vunpack.c.h.b16 %v855
        %v1950 = vunpack.c.l.b16 %v856
        %v1951 = vunpack.c.h.b16 %v856
        %v1952 = vunpack.c.l.b16 %v857
        %v1953 = vunpack.c.h.b16 %v857
        %v1954 = vunpack.c.l.b16 %v858
        %v1955 = vunpack.c.h.b16 %v858
        %v1956 = vunpack.c.l.b16 %v859
        %v1957 = vunpack.c.h.b16 %v859
        %v1958 = vunpack.c.l.b16 %v860
        %v1959 = vunpack.c.h.b16 %v860
        %v1960 = vunpack.c.l.b16 %v861
        %v1961 = vunpack.c.h.b16 %v861
        %v1962 = vunpack.c.l.b16 %v862
        %v1963 = vunpack.c.h.b16 %v862
        %v1964 = vunpack.c.l.b16 %v863
        %v1965 = vunpack.c.h.b16 %v863
        %v1966 = vunpack.c.l.b16 %v864
        %v1967 = vunpack.c.h.b16 %v864
        %v1968 = vunpack.c.l.b16 %v865
        %v1969 = vunpack.c.h.b16 %v865
        %v1970 = vunpack.c.l.b16 %v866
        %v1971 = vunpack.c.h.b16 %v866
        %v1972 = vunpack.c.l.b16 %v867
        %v1973 = vunpack.c.h.b16 %v867
        %v1974 = vunpack.c.l.b16 %v868
        %v1975 = vunpack.c.h.b16 %v868
        %v1976 = vunpack.c.l.b16 %v869
        %v1977 = vunpack.c.h.b16 %v869
        %v1978 = vunpack.c.l.b16 %v870
        %v1979 = vunpack.c.h.b16 %v870
        %v1980 = vunpack.c.l.b16 %v871
        %v1981 = vunpack.c.h.b16 %v871
        %v1982 = vunpack.c.l.b16 %v872
        %v1983 = vunpack.c.h.b16 %v872
        %v1984 = vunpack.c.l.b16 %v873
        %v1985 = vunpack.c.h.b16 %v873
        %v1986 = vunpack.c.l.b16 %v874
        %v1987 = vunpack.c.h.b16 %v874
        %v1988 = vunpack.c.l.b16 %v875
        %v1989 = vunpack.c.h.b16 %v875
        %v1990 = vunpack.c.l.b16 %v876
        %v1991 = vunpack.c.h.b16 %v876
        %v1992 = vunpack.c.l.b16 %v877
        %v1993 = vunpack.c.h.b16 %v877
        %v1994 = vunpack.c.l.b16 %v878
        %v1995 = vunpack.c.h.b16 %v878
        %v1996 = vunpack.c.l.b16 %v879
        %v1997 = vunpack.c.h.b16 %v879
        %v1998 = vunpack.c.l.b16 %v880
        %v1999 = vunpack.c.h.b16 %v880
        %v2000 = vunpack.c.l.b16 %v881
        %v2001 = vunpack.c.h.b16 %v881
        %v2002 = vunpack.c.l.b16 %v882
        %v2003 = vunpack.c.h.b16 %v882
        %v2004 = vunpack.c.l.b16 %v883
        %v2005 = vunpack.c.h.b16 %v883
        %v2006 = vunpack.c.l.b16 %v884
        %v2007 = vunpack.c.h.b16 %v884
        %v2008 = vunpack.c.l.b16 %v885
        %v2009 = vunpack.c.h.b16 %v885
        %v2010 = vunpack.c.l.b16 %v886
        %v2011 = vunpack.c.h.b16 %v886
        %v2012 = vunpack.c.l.b16 %v887
        %v2013 = vunpack.c.h.b16 %v887
        %v2014 = vunpack.c.l.b16 %v888
        %v2015 = vunpack.c.h.b16 %v888
        %v2016 = vunpack.c.l.b16 %v889
        %v2017 = vunpack.c.h.b16 %v889
        %v2018 = vunpack.c.l.b16 %v890
        %v2019 = vunpack.c.h.b16 %v890
        %v2020 = vunpack.c.l.b16 %v891
        %v2021 = vunpack.c.h.b16 %v891
        %v2022 = vunpack.c.l.b16 %v892
        %v2023 = vunpack.c.h.b16 %v892
        %v2024 = vunpack.c.l.b16 %v893
        %v2025 = vunpack.c.h.b16 %v893
        %v2026 = vunpack.c.l.b16 %v894
        %v2027 = vunpack.c.h.b16 %v894
        %v2028 = vunpack.c.l.b16 %v895
        %v2029 = vunpack.c.h.b16 %v895
        %v2030 = vunpack.c.l.b16 %v896
        %v2031 = vunpack.c.h.b16 %v896
        %v2032 = vunpack.c.l.b16 %v897
        %v2033 = vunpack.c.h.b16 %v897
        %v2034 = vunpack.c.l.b16 %v898
        %v2035 = vunpack.c.h.b16 %v898
        %v2036 = vunpack.c.l.b16 %v899
        %v2037 = vunpack.c.h.b16 %v899
        %v2038 = vunpack.c.l.b16 %v900
        %v2039 = vunpack.c.h.b16 %v900
        %v2040 = vunpack.c.l.b16 %v901
        %v2041 = vunpack.c.h.b16 %v901
        %v2042 = vunpack.c.l.b16 %v902
        %v2043 = vunpack.c.h.b16 %v902
        %v2044 = vunpack.c.l.b16 %v903
        %v2045 = vunpack.c.h.b16 %v903
        %v2046 = vunpack.c.l.b16 %v904
        %v2047 = vunpack.c.h.b16 %v904
        %v2048 = vunpack.c.l.b16 %v905
        %v2049 = vunpack.c.h.b16 %v905
        %v2050 = vunpack.c.l.b16 %v906
        %v2051 = vunpack.c.h.b16 %v906
        %v2052 = vunpack.c.l.b16 %v907
        %v2053 = vunpack.c.h.b16 %v907
        %v2054 = vunpack.c.l.b16 %v908
        %v2055 = vunpack.c.h.b16 %v908
        %v2056 = vunpack.c.l.b16 %v909
        %v2057 = vunpack.c.h.b16 %v909
        %v2058 = vunpack.c.l.b16 %v910
        %v2059 = vunpack.c.h.b16 %v910
        %v2060 = vunpack.c.l.b16 %v911
        %v2061 = vunpack.c.h.b16 %v911
        %v2062 = vunpack.c.l.b16 %v912
        %v2063 = vunpack.c.h.b16 %v912
        %v2064 = vunpack.c.l.b16 %v913
        %v2065 = vunpack.c.h.b16 %v913
        %v2066 = vunpack.c.l.b16 %v914
        %v2067 = vunpack.c.h.b16 %v914
        %v2068 = vunpack.c.l.b16 %v915
        %v2069 = vunpack.c.h.b16 %v915
        %v2070 = vunpack.c.l.b16 %v916
        %v2071 = vunpack.c.h.b16 %v916
        %v2072 = vunpack.c.l.b16 %v917
        %v2073 = vunpack.c.h.b16 %v917
        %v2074 = vunpack.c.l.b16 %v918
        %v2075 = vunpack.c.h.b16 %v918
        %v2076 = vunpack.c.l.b16 %v919
        %v2077 = vunpack.c.h.b16 %v919
        %v2078 = vunpack.c.l.b16 %v920
        %v2079 = vunpack.c.h.b16 %v920
        %v2080 = vunpack.c.l.b16 %v921
        %v2081 = vunpack.c.h.b16 %v921
        %v2082 = vunpack.c.l.b16 %v922
        %v2083 = vunpack.c.h.b16 %v922
        %v2084 = vunpack.c.l.b16 %v923
        %v2085 = vunpack.c.h.b16 %v923
        %v2086 = vunpack.c.l.b16 %v924
        %v2087 = vunpack.c.h.b16 %v924
        %v2088 = vunpack.c.l.b16 %v925
        %v2089 = vunpack.c.h.b16 %v925
        %v2090 = vunpack.c.l.b16 %v926
        %v2091 = vunpack.c.h.b16 %v926
        %v2092 = vunpack.c.l.b16 %v927
        %v2093 = vunpack.c.h.b16 %v927
        %v2094 = vunpack.c.l.b16 %v928
        %v2095 = vunpack.c.h.b16 %v928
        %v2096 = vunpack.c.l.b16 %v929
        %v2097 = vunpack.c.h.b16 %v929
        %v2098 = vunpack.c.l.b16 %v930
        %v2099 = vunpack.c.h.b16 %v930
        %v2100 = vunpack.c.l.b16 %v931
        %v2101 = vunpack.c.h.b16 %v931
        %v2102 = vunpack.c.l.b16 %v932
        %v2103 = vunpack.c.h.b16 %v932
        %v2104 = vunpack.c.l.b16 %v933
        %v2105 = vunpack.c.h.b16 %v933
        %v2106 = vunpack.c.l.b16 %v934
        %v2107 = vunpack.c.h.b16 %v934
        %v2108 = vunpack.c.l.b16 %v935
        %v2109 = vunpack.c.h.b16 %v935
        %v2110 = vunpack.c.l.b16 %v936
        %v2111 = vunpack.c.h.b16 %v936
        %v2112 = vunpack.c.l.b16 %v937
        %v2113 = vunpack.c.h.b16 %v937
        %v2114 = vunpack.c.l.b16 %v938
        %v2115 = vunpack.c.h.b16 %v938
        %v2116 = vunpack.c.l.b16 %v939
        %v2117 = vunpack.c.h.b16 %v939
        %v2118 = vunpack.c.l.b16 %v940
        %v2119 = vunpack.c.h.b16 %v940
        %v2120 = vunpack.c.l.b16 %v941
        %v2121 = vunpack.c.h.b16 %v941
        %v2122 = vunpack.c.l.b16 %v942
        %v2123 = vunpack.c.h.b16 %v942
        %v2124 = vunpack.c.l.b16 %v943
        %v2125 = vunpack.c.h.b16 %v943
        %v2126 = vunpack.c.l.b16 %v944
        %v2127 = vunpack.c.h.b16 %v944
        %v2128 = vunpack.c.l.b16 %v945
        %v2129 = vunpack.c.h.b16 %v945
        %v2130 = vunpack.c.l.b16 %v946
        %v2131 = vunpack.c.h.b16 %v946
        %v2132 = vunpack.c.l.b16 %v947
        %v2133 = vunpack.c.h.b16 %v947
        %v2134 = vunpack.c.l.b16 %v948
        %v2135 = vunpack.c.h.b16 %v948
        %v2136 = vunpack.c.l.b16 %v949
        %v2137 = vunpack.c.h.b16 %v949
        %v2138 = vunpack.c.l.b16 %v950
        %v2139 = vunpack.c.h.b16 %v950
        %v2140 = vunpack.c.l.b16 %v951
        %v2141 = vunpack.c.h.b16 %v951
        %v2142 = vunpack.c.l.b16 %v952
        %v2143 = vunpack.c.h.b16 %v952
        %v2144 = vunpack.c.l.b16 %v953
        %v2145 = vunpack.c.h.b16 %v953
        %v2146 = vunpack.c.l.b16 %v954
        %v2147 = vunpack.c.h.b16 %v954
        %v2148 = vunpack.c.l.b16 %v955
        %v2149 = vunpack.c.h.b16 %v955
        %v2150 = vunpack.c.l.b16 %v956
        %v2151 = vunpack.c.h.b16 %v956
        %v2152 = vunpack.c.l.b16 %v957
        %v2153 = vunpack.c.h.b16 %v957
        %v2154 = vunpack.c.l.b16 %v958
        %v2155 = vunpack.c.h.b16 %v958
        %v2156 = vunpack.c.l.b16 %v959
        %v2157 = vunpack.c.h.b16 %v959
        %v2158 = vunpack.c.l.b16 %v960
        %v2159 = vunpack.c.h.b16 %v960
        %v2160 = vunpack.c.l.b16 %v961
        %v2161 = vunpack.c.h.b16 %v961
        %v2162 = vunpack.c.l.b16 %v962
        %v2163 = vunpack.c.h.b16 %v962
        %v2164 = vunpack.c.l.b16 %v963
        %v2165 = vunpack.c.h.b16 %v963
        %v2166 = vunpack.c.l.b16 %v964
        %v2167 = vunpack.c.h.b16 %v964
        %v2168 = vunpack.c.l.b16 %v965
        %v2169 = vunpack.c.h.b16 %v965
        %v2170 = vunpack.c.l.b16 %v966
        %v2171 = vunpack.c.h.b16 %v966
        %v2172 = vunpack.c.l.b16 %v967
        %v2173 = vunpack.c.h.b16 %v967
        %v2174 = vunpack.c.l.b16 %v968
        %v2175 = vunpack.c.h.b16 %v968
        %v2176 = vunpack.c.l.b16 %v969
        %v2177 = vunpack.c.h.b16 %v969
        %v2178 = vunpack.c.l.b16 %v970
        %v2179 = vunpack.c.h.b16 %v970
        %v2180 = vunpack.c.l.b16 %v971
        %v2181 = vunpack.c.h.b16 %v971
        %v2182 = vunpack.c.l.b16 %v972
        %v2183 = vunpack.c.h.b16 %v972
        %v2184 = vunpack.c.l.b16 %v973
        %v2185 = vunpack.c.h.b16 %v973
        %v2186 = vunpack.c.l.b16 %v974
        %v2187 = vunpack.c.h.b16 %v974
        %v2188 = vunpack.c.l.b16 %v975
        %v2189 = vunpack.c.h.b16 %v975
        %v2190 = vunpack.c.l.b16 %v976
        %v2191 = vunpack.c.h.b16 %v976
        %v2192 = vunpack.c.l.b16 %v977
        %v2193 = vunpack.c.h.b16 %v977
        %v2194 = vunpack.c.l.b16 %v978
        %v2195 = vunpack.c.h.b16 %v978
        %v2196 = vunpack.c.l.b16 %v979
        %v2197 = vunpack.c.h.b16 %v979
        %v2198 = vunpack.c.l.b16 %v980
        %v2199 = vunpack.c.h.b16 %v980
        %v2200 = vunpack.c.l.b16 %v981
        %v2201 = vunpack.c.h.b16 %v981
        %v2202 = vunpack.c.l.b16 %v982
        %v2203 = vunpack.c.h.b16 %v982
        %v2204 = vunpack.c.l.b16 %v983
        %v2205 = vunpack.c.h.b16 %v983
        %v2206 = vunpack.c.l.b16 %v984
        %v2207 = vunpack.c.h.b16 %v984
        %v2208 = vunpack.c.l.b16 %v985
        %v2209 = vunpack.c.h.b16 %v985
        %v2210 = vunpack.c.l.b16 %v986
        %v2211 = vunpack.c.h.b16 %v986
        %v2212 = vunpack.c.l.b16 %v987
        %v2213 = vunpack.c.h.b16 %v987
        %v2214 = vunpack.c.l.b16 %v988
        %v2215 = vunpack.c.h.b16 %v988
        %v2216 = vunpack.c.l.b16 %v989
        %v2217 = vunpack.c.h.b16 %v989
        %v2218 = vunpack.c.l.b16 %v990
        %v2219 = vunpack.c.h.b16 %v990
        %v2220 = vunpack.c.l.b16 %v991
        %v2221 = vunpack.c.h.b16 %v991
        %v2222 = vunpack.c.l.b16 %v992
        %v2223 = vunpack.c.h.b16 %v992
        %v2224 = vunpack.c.l.b16 %v993
        %v2225 = vunpack.c.h.b16 %v993
        %v2226 = vunpack.c.l.b16 %v994
        %v2227 = vunpack.c.h.b16 %v994
        %v2228 = vunpack.c.l.b16 %v995
        %v2229 = vunpack.c.h.b16 %v995
        %v2230 = vunpack.c.l.b16 %v996
        %v2231 = vunpack.c.h.b16 %v996
        %v2232 = vunpack.c.l.b16 %v997
        %v2233 = vunpack.c.h.b16 %v997
        %v2234 = vunpack.c.l.b16 %v998
        %v2235 = vunpack.c.h.b16 %v998
        %v2236 = vunpack.c.l.b16 %v999
        %v2237 = vunpack.c.h.b16 %v999
        %v2238 = vunpack.c.l.b16 %v1000
        %v2239 = vunpack.c.h.b16 %v1000
        %v2240 = vunpack.c.l.b16 %v1001
        %v2241 = vunpack.c.h.b16 %v1001
        %v2242 = vunpack.c.l.b16 %v1002
        %v2243 = vunpack.c.h.b16 %v1002
        %v2244 = vunpack.c.l.b16 %v1003
        %v2245 = vunpack.c.h.b16 %v1003
        %v2246 = vunpack.c.l.b16 %v1004
        %v2247 = vunpack.c.h.b16 %v1004
        %v2248 = vunpack.c.l.b16 %v1005
        %v2249 = vunpack.c.h.b16 %v1005
        %v2250 = vunpack.c.l.b16 %v1006
        %v2251 = vunpack.c.h.b16 %v1006
        %v2252 = vunpack.c.l.b16 %v1007
        %v2253 = vunpack.c.h.b16 %v1007
        %v2254 = vunpack.c.l.b16 %v1008
        %v2255 = vunpack.c.h.b16 %v1008
        %v2256 = vunpack.c.l.b16 %v1009
        %v2257 = vunpack.c.h.b16 %v1009
        %v2258 = vunpack.c.l.b16 %v1010
        %v2259 = vunpack.c.h.b16 %v1010
        %v2260 = vunpack.c.l.b16 %v1011
        %v2261 = vunpack.c.h.b16 %v1011
        %v2262 = vunpack.c.l.b16 %v1012
        %v2263 = vunpack.c.h.b16 %v1012
        %v2264 = vunpack.c.l.b16 %v1013
        %v2265 = vunpack.c.h.b16 %v1013
        %v2266 = vunpack.c.l.b16 %v1014
        %v2267 = vunpack.c.h.b16 %v1014
        %v2268 = vunpack.c.l.b16 %v1015
        %v2269 = vunpack.c.h.b16 %v1015
        %v2270 = vunpack.c.l.b16 %v1016
        %v2271 = vunpack.c.h.b16 %v1016
        %v2272 = vunpack.c.l.b16 %v1017
        %v2273 = vunpack.c.h.b16 %v1017
        %v2274 = vunpack.c.l.b16 %v1018
        %v2275 = vunpack.c.h.b16 %v1018
        %v2276 = vunpack.c.l.b16 %v1019
        %v2277 = vunpack.c.h.b16 %v1019
        %v2278 = vunpack.c.l.b16 %v1020
        %v2279 = vunpack.c.h.b16 %v1020
        %v2280 = vunpack.c.l.b16 %v1021
        %v2281 = vunpack.c.h.b16 %v1021
        %v2282 = vunpack.c.l.b16 %v1022
        %v2283 = vunpack.c.h.b16 %v1022
        %v2284 = vunpack.c.l.b16 %v1023
        %v2285 = vunpack.c.h.b16 %v1023
        %v2286 = vunpack.c.l.b16 %v1024
        %v2287 = vunpack.c.h.b16 %v1024
        %v2288 = vunpack.c.l.b16 %v1025
        %v2289 = vunpack.c.h.b16 %v1025
        %v2290 = vunpack.c.l.b16 %v1026
        %v2291 = vunpack.c.h.b16 %v1026
        %v2292 = vunpack.c.l.b16 %v1027
        %v2293 = vunpack.c.h.b16 %v1027
        %v2294 = vunpack.c.l.b16 %v1028
        %v2295 = vunpack.c.h.b16 %v1028
        %v2296 = vunpack.c.l.b16 %v1029
        %v2297 = vunpack.c.h.b16 %v1029
        %v2298 = vunpack.c.l.b16 %v1030
        %v2299 = vunpack.c.h.b16 %v1030
        %v2300 = vunpack.c.l.b16 %v1031
        %v2301 = vunpack.c.h.b16 %v1031
        %v2302 = vunpack.c.l.b16 %v1032
        %v2303 = vunpack.c.h.b16 %v1032
        %v2304 = vunpack.c.l.b16 %v1033
        %v2305 = vunpack.c.h.b16 %v1033
        %v2306 = vunpack.c.l.b16 %v1034
        %v2307 = vunpack.c.h.b16 %v1034
        %v2308 = vunpack.c.l.b16 %v1035
        %v2309 = vunpack.c.h.b16 %v1035
        %v2310 = vunpack.c.l.b16 %v1036
        %v2311 = vunpack.c.h.b16 %v1036
        %v2312 = vunpack.c.l.b16 %v1037
        %v2313 = vunpack.c.h.b16 %v1037
        %v2314 = vunpack.c.l.b16 %v1038
        %v2315 = vunpack.c.h.b16 %v1038
        %v2316 = vunpack.c.l.b16 %v1039
        %v2317 = vunpack.c.h.b16 %v1039
        %v2318 = vunpack.c.l.b16 %v1040
        %v2319 = vunpack.c.h.b16 %v1040
        %v2320 = vunpack.c.l.b16 %v1041
        %v2321 = vunpack.c.h.b16 %v1041
        %v2322 = vunpack.c.l.b16 %v1042
        %v2323 = vunpack.c.h.b16 %v1042
        %v2324 = vunpack.c.l.b16 %v1043
        %v2325 = vunpack.c.h.b16 %v1043
        %v2326 = vunpack.c.l.b16 %v1044
        %v2327 = vunpack.c.h.b16 %v1044
        %v2328 = vunpack.c.l.b16 %v1045
        %v2329 = vunpack.c.h.b16 %v1045
        %v2330 = vunpack.c.l.b16 %v1046
        %v2331 = vunpack.c.h.b16 %v1046
        %v2332 = vunpack.c.l.b16 %v1047
        %v2333 = vunpack.c.h.b16 %v1047
        %v2334 = vunpack.c.l.b16 %v1048
        %v2335 = vunpack.c.h.b16 %v1048
        %v2336 = vunpack.c.l.b16 %v1049
        %v2337 = vunpack.c.h.b16 %v1049
        %v2338 = vunpack.c.l.b16 %v1050
        %v2339 = vunpack.c.h.b16 %v1050
        %v2340 = vunpack.c.l.b16 %v1051
        %v2341 = vunpack.c.h.b16 %v1051
        %v2342 = vunpack.c.l.b16 %v1052
        %v2343 = vunpack.c.h.b16 %v1052
        %v2344 = vunpack.c.l.b16 %v1053
        %v2345 = vunpack.c.h.b16 %v1053
        %v2346 = vunpack.c.l.b16 %v1054
        %v2347 = vunpack.c.h.b16 %v1054
        %v2348 = vunpack.c.l.b16 %v1055
        %v2349 = vunpack.c.h.b16 %v1055
        %v2350 = vunpack.c.l.b16 %v1056
        %v2351 = vunpack.c.h.b16 %v1056
        %v2352 = vunpack.c.l.b16 %v1057
        %v2353 = vunpack.c.h.b16 %v1057
        %v2354 = vunpack.c.l.b16 %v1058
        %v2355 = vunpack.c.h.b16 %v1058
        %v2356 = vunpack.c.l.b16 %v1059
        %v2357 = vunpack.c.h.b16 %v1059
        %v2358 = vunpack.c.l.b16 %v1060
        %v2359 = vunpack.c.h.b16 %v1060
        %v2360 = vunpack.c.l.b16 %v1061
        %v2361 = vunpack.c.h.b16 %v1061
        %v2362 = vunpack.c.l.b16 %v1062
        %v2363 = vunpack.c.h.b16 %v1062
        %v2364 = vunpack.c.l.b16 %v1063
        %v2365 = vunpack.c.h.b16 %v1063
        %v2366 = vunpack.c.l.b16 %v1064
        %v2367 = vunpack.c.h.b16 %v1064
        %v2368 = vunpack.c.l.b16 %v1065
        %v2369 = vunpack.c.h.b16 %v1065
        %v2370 = vunpack.c.l.b16 %v1066
        %v2371 = vunpack.c.h.b16 %v1066
        %v2372 = vunpack.c.l.b16 %v1067
        %v2373 = vunpack.c.h.b16 %v1067
        %v2374 = vunpack.c.l.b16 %v1068
        %v2375 = vunpack.c.h.b16 %v1068
        %v2376 = vunpack.c.l.b16 %v1069
        %v2377 = vunpack.c.h.b16 %v1069
        %v2378 = vunpack.c.l.b16 %v1070
        %v2379 = vunpack.c.h.b16 %v1070
        %v2380 = vunpack.c.l.b16 %v1071
        %v2381 = vunpack.c.h.b16 %v1071
        %v2382 = vunpack.c.l.b16 %v1072
        %v2383 = vunpack.c.h.b16 %v1072
        %v2384 = vunpack.c.l.b16 %v1073
        %v2385 = vunpack.c.h.b16 %v1073
        %v2386 = vunpack.c.l.b16 %v1074
        %v2387 = vunpack.c.h.b16 %v1074
        %v2388 = vunpack.c.l.b16 %v1075
        %v2389 = vunpack.c.h.b16 %v1075
        %v2390 = vunpack.c.l.b16 %v1076
        %v2391 = vunpack.c.h.b16 %v1076
        %v2392 = vunpack.c.l.b16 %v1077
        %v2393 = vunpack.c.h.b16 %v1077
        %v2394 = vunpack.c.l.b16 %v1078
        %v2395 = vunpack.c.h.b16 %v1078
        %v2396 = vunpack.c.l.b16 %v1079
        %v2397 = vunpack.c.h.b16 %v1079
        %v2398 = vunpack.c.l.b16 %v1080
        %v2399 = vunpack.c.h.b16 %v1080
        %v2400 = vunpack.c.l.b16 %v1081
        %v2401 = vunpack.c.h.b16 %v1081
        %v2402 = vunpack.c.l.b16 %v1082
        %v2403 = vunpack.c.h.b16 %v1082
        %v2404 = vunpack.c.l.b16 %v1083
        %v2405 = vunpack.c.h.b16 %v1083
        %v2406 = vunpack.c.l.b16 %v1084
        %v2407 = vunpack.c.h.b16 %v1084
        %v2408 = vunpack.c.l.b16 %v1085
        %v2409 = vunpack.c.h.b16 %v1085
        %v2410 = vunpack.c.l.b16 %v1086
        %v2411 = vunpack.c.h.b16 %v1086
        %v2412 = vunpack.c.l.b16 %v1087
        %v2413 = vunpack.c.h.b16 %v1087
        %v2414 = vunpack.c.l.b16 %v1088
        %v2415 = vunpack.c.h.b16 %v1088
        %v2416 = vunpack.c.l.b16 %v1089
        %v2417 = vunpack.c.h.b16 %v1089
        %v2418 = vunpack.c.l.b16 %v1090
        %v2419 = vunpack.c.h.b16 %v1090
        %v2420 = vunpack.c.l.b16 %v1091
        %v2421 = vunpack.c.h.b16 %v1091
        %v2422 = vunpack.c.l.b16 %v1092
        %v2423 = vunpack.c.h.b16 %v1092
        %v2424 = vunpack.c.l.b16 %v1093
        %v2425 = vunpack.c.h.b16 %v1093
        %v2426 = vunpack.c.l.b16 %v1094
        %v2427 = vunpack.c.h.b16 %v1094
        %v2428 = vunpack.c.l.b16 %v1095
        %v2429 = vunpack.c.h.b16 %v1095
        %v2430 = vunpack.c.l.b16 %v1096
        %v2431 = vunpack.c.h.b16 %v1096
        %v2432 = vunpack.c.l.b16 %v1097
        %v2433 = vunpack.c.h.b16 %v1097
        %v2434 = vunpack.c.l.b16 %v1098
        %v2435 = vunpack.c.h.b16 %v1098
        %v2436 = vunpack.c.l.b16 %v1099
        %v2437 = vunpack.c.h.b16 %v1099
        %v2438 = vunpack.c.l.b16 %v1100
        %v2439 = vunpack.c.h.b16 %v1100
        %v2440 = vunpack.c.l.b16 %v1101
        %v2441 = vunpack.c.h.b16 %v1101
        %v2442 = vunpack.c.l.b16 %v1102
        %v2443 = vunpack.c.h.b16 %v1102
        %v2444 = vunpack.c.l.b16 %v1103
        %v2445 = vunpack.c.h.b16 %v1103
        %v2446 = vunpack.c.l.b16 %v1104
        %v2447 = vunpack.c.h.b16 %v1104
        %v2448 = vunpack.c.l.b16 %v1105
        %v2449 = vunpack.c.h.b16 %v1105
        %v2450 = vunpack.c.l.b16 %v1106
        %v2451 = vunpack.c.h.b16 %v1106
        %v2452 = vunpack.c.l.b16 %v1107
        %v2453 = vunpack.c.h.b16 %v1107
        %v2454 = vunpack.c.l.b16 %v1108
        %v2455 = vunpack.c.h.b16 %v1108
        %v2456 = vunpack.c.l.b16 %v1109
        %v2457 = vunpack.c.h.b16 %v1109
        %v2458 = vunpack.c.l.b16 %v1110
        %v2459 = vunpack.c.h.b16 %v1110
        %v2460 = vunpack.c.l.b16 %v1111
        %v2461 = vunpack.c.h.b16 %v1111
        %v2462 = vunpack.c.l.b16 %v1112
        %v2463 = vunpack.c.h.b16 %v1112
        %v2464 = vunpack.c.l.b16 %v1113
        %v2465 = vunpack.c.h.b16 %v1113
        %v2466 = vunpack.c.l.b16 %v1114
        %v2467 = vunpack.c.h.b16 %v1114
        %v2468 = vunpack.c.l.b16 %v1115
        %v2469 = vunpack.c.h.b16 %v1115
        %v2470 = vunpack.c.l.b16 %v1116
        %v2471 = vunpack.c.h.b16 %v1116
        %v2472 = vunpack.c.l.b16 %v1117
        %v2473 = vunpack.c.h.b16 %v1117
        %v2474 = vunpack.c.l.b16 %v1118
        %v2475 = vunpack.c.h.b16 %v1118
        %v2476 = vunpack.c.l.b16 %v1119
        %v2477 = vunpack.c.h.b16 %v1119
        %v2478 = vunpack.c.l.b16 %v1120
        %v2479 = vunpack.c.h.b16 %v1120
        %v2480 = vunpack.c.l.b16 %v1121
        %v2481 = vunpack.c.h.b16 %v1121
        %v2482 = vunpack.c.l.b16 %v1122
        %v2483 = vunpack.c.h.b16 %v1122
        %v2484 = vunpack.c.l.b16 %v1123
        %v2485 = vunpack.c.h.b16 %v1123
        %v2486 = vunpack.c.l.b16 %v1124
        %v2487 = vunpack.c.h.b16 %v1124
        %v2488 = vunpack.c.l.b16 %v1125
        %v2489 = vunpack.c.h.b16 %v1125
        %v2490 = vunpack.c.l.b16 %v1126
        %v2491 = vunpack.c.h.b16 %v1126
        %v2492 = vunpack.c.l.b16 %v1127
        %v2493 = vunpack.c.h.b16 %v1127
        %v2494 = vunpack.c.l.b16 %v1128
        %v2495 = vunpack.c.h.b16 %v1128
        %v2496 = vunpack.c.l.b16 %v1129
        %v2497 = vunpack.c.h.b16 %v1129
        %v2498 = vunpack.c.l.b16 %v1130
        %v2499 = vunpack.c.h.b16 %v1130
        %v2500 = vunpack.c.l.b16 %v1131
        %v2501 = vunpack.c.h.b16 %v1131
        %v2502 = vunpack.c.l.b16 %v1132
        %v2503 = vunpack.c.h.b16 %v1132
        %v2504 = vunpack.c.l.b16 %v1133
        %v2505 = vunpack.c.h.b16 %v1133
        %v2506 = vunpack.c.l.b16 %v1134
        %v2507 = vunpack.c.h.b16 %v1134
        %v2508 = vunpack.c.l.b16 %v1135
        %v2509 = vunpack.c.h.b16 %v1135
        %v2510 = vunpack.c.l.b16 %v1136
        %v2511 = vunpack.c.h.b16 %v1136
        %v2512 = vunpack.c.l.b16 %v1137
        %v2513 = vunpack.c.h.b16 %v1137
        %v2514 = vunpack.c.l.b16 %v1138
        %v2515 = vunpack.c.h.b16 %v1138
        %v2516 = vunpack.c.l.b16 %v1139
        %v2517 = vunpack.c.h.b16 %v1139
        %v2518 = vunpack.c.l.b16 %v1140
        %v2519 = vunpack.c.h.b16 %v1140
        %v2520 = vunpack.c.l.b16 %v1141
        %v2521 = vunpack.c.h.b16 %v1141
        %v2522 = vunpack.c.l.b16 %v1142
        %v2523 = vunpack.c.h.b16 %v1142
        %v2524 = vunpack.c.l.b16 %v1143
        %v2525 = vunpack.c.h.b16 %v1143
        %v2526 = vunpack.c.l.b16 %v1144
        %v2527 = vunpack.c.h.b16 %v1144
        %v2528 = vunpack.c.l.b16 %v1145
        %v2529 = vunpack.c.h.b16 %v1145
        %v2530 = vunpack.c.l.b16 %v1146
        %v2531 = vunpack.c.h.b16 %v1146
        %v2532 = vunpack.c.l.b16 %v1147
        %v2533 = vunpack.c.h.b16 %v1147
        %v2534 = vunpack.c.l.b16 %v1148
        %v2535 = vunpack.c.h.b16 %v1148
        %v2536 = vunpack.c.l.b16 %v1149
        %v2537 = vunpack.c.h.b16 %v1149
        %v2538 = vunpack.c.l.b16 %v1150
        %v2539 = vunpack.c.h.b16 %v1150
        %v2540 = vunpack.c.l.b16 %v1151
        %v2541 = vunpack.c.h.b16 %v1151
        %v2542 = vunpack.c.l.b16 %v1152
        %v2543 = vunpack.c.h.b16 %v1152
        %v2544 = vunpack.c.l.b16 %v1153
        %v2545 = vunpack.c.h.b16 %v1153
        %v2546 = vunpack.c.l.b16 %v1154
        %v2547 = vunpack.c.h.b16 %v1154
        %v2548 = vunpack.c.l.b16 %v1155
        %v2549 = vunpack.c.h.b16 %v1155
        %v2550 = vunpack.c.l.b16 %v1156
        %v2551 = vunpack.c.h.b16 %v1156
        %v2552 = vunpack.c.l.b16 %v1157
        %v2553 = vunpack.c.h.b16 %v1157
        %v2554 = vunpack.c.l.b16 %v1158
        %v2555 = vunpack.c.h.b16 %v1158
        %v2556 = vunpack.c.l.b16 %v1159
        %v2557 = vunpack.c.h.b16 %v1159
        %v2558 = vunpack.c.l.b16 %v1160
        %v2559 = vunpack.c.h.b16 %v1160
        %v2560 = vunpack.c.l.b16 %v1161
        %v2561 = vunpack.c.h.b16 %v1161
        %v2562 = vunpack.c.l.b16 %v1162
        %v2563 = vunpack.c.h.b16 %v1162
        %v2564 = vunpack.c.l.b16 %v1163
        %v2565 = vunpack.c.h.b16 %v1163
        %v2566 = vunpack.c.l.b16 %v1164
        %v2567 = vunpack.c.h.b16 %v1164
        %v2568 = vunpack.c.l.b16 %v1165
        %v2569 = vunpack.c.h.b16 %v1165
        %v2570 = vunpack.c.l.b16 %v1166
        %v2571 = vunpack.c.h.b16 %v1166
        %v2572 = vunpack.c.l.b16 %v1167
        %v2573 = vunpack.c.h.b16 %v1167
        %v2574 = vunpack.c.l.b16 %v1168
        %v2575 = vunpack.c.h.b16 %v1168
        %v2576 = vunpack.c.l.b16 %v1169
        %v2577 = vunpack.c.h.b16 %v1169
        %v2578 = vunpack.c.l.b16 %v1170
        %v2579 = vunpack.c.h.b16 %v1170
        %v2580 = vunpack.c.l.b16 %v1171
        %v2581 = vunpack.c.h.b16 %v1171
        %v2582 = vunpack.c.l.b16 %v1172
        %v2583 = vunpack.c.h.b16 %v1172
        %v2584 = vunpack.c.l.b16 %v1173
        %v2585 = vunpack.c.h.b16 %v1173
        %v2586 = vunpack.c.l.b16 %v1174
        %v2587 = vunpack.c.h.b16 %v1174
        %v2588 = vunpack.c.l.b16 %v1175
        %v2589 = vunpack.c.h.b16 %v1175
        %v2590 = vunpack.c.l.b16 %v1176
        %v2591 = vunpack.c.h.b16 %v1176
        %v2592 = vunpack.c.l.b16 %v1177
        %v2593 = vunpack.c.h.b16 %v1177
        %v2594 = vunpack.c.l.b16 %v1178
        %v2595 = vunpack.c.h.b16 %v1178
        %v2596 = vunpack.c.l.b16 %v1179
        %v2597 = vunpack.c.h.b16 %v1179
        %v2598 = vunpack.c.l.b16 %v1180
        %v2599 = vunpack.c.h.b16 %v1180
        %v2600 = vunpack.c.l.b16 %v1181
        %v2601 = vunpack.c.h.b16 %v1181
        %v2602 = vunpack.c.l.b16 %v1182
        %v2603 = vunpack.c.h.b16 %v1182
        %v2604 = vunpack.c.l.b16 %v1183
        %v2605 = vunpack.c.h.b16 %v1183
        %v2606 = vunpack.c.l.b16 %v1184
        %v2607 = vunpack.c.h.b16 %v1184
        %v2608 = vunpack.c.l.b16 %v1185
        %v2609 = vunpack.c.h.b16 %v1185
        %v2610 = vunpack.c.l.b16 %v1186
        %v2611 = vunpack.c.h.b16 %v1186
        %v2612 = vunpack.c.l.b16 %v1187
        %v2613 = vunpack.c.h.b16 %v1187
        %v2614 = vunpack.c.l.b16 %v1188
        %v2615 = vunpack.c.h.b16 %v1188
        %v2616 = vunpack.c.l.b16 %v1189
        %v2617 = vunpack.c.h.b16 %v1189
        %v2618 = vunpack.c.l.b16 %v1190
        %v2619 = vunpack.c.h.b16 %v1190
        %v2620 = vunpack.c.l.b16 %v1191
        %v2621 = vunpack.c.h.b16 %v1191
        %v2622 = vunpack.c.l.b16 %v1192
        %v2623 = vunpack.c.h.b16 %v1192
        %v2624 = vunpack.c.l.b16 %v1193
        %v2625 = vunpack.c.h.b16 %v1193
        %v2626 = vunpack.c.l.b16 %v1194
        %v2627 = vunpack.c.h.b16 %v1194
        %v2628 = vunpack.c.l.b16 %v1195
        %v2629 = vunpack.c.h.b16 %v1195
        %v2630 = vunpack.c.l.b16 %v1196
        %v2631 = vunpack.c.h.b16 %v1196
        %v2632 = vunpack.c.l.b16 %v1197
        %v2633 = vunpack.c.h.b16 %v1197
        %v2634 = vunpack.c.l.b16 %v1198
        %v2635 = vunpack.c.h.b16 %v1198
        %v2636 = vunpack.c.l.b16 %v1199
        %v2637 = vunpack.c.h.b16 %v1199
        %v2638 = vunpack.c.l.b16 %v1200
        %v2639 = vunpack.c.h.b16 %v1200
        %v2640 = vunpack.c.l.b16 %v1201
        %v2641 = vunpack.c.h.b16 %v1201
        %v2642 = vunpack.c.l.b16 %v1202
        %v2643 = vunpack.c.h.b16 %v1202
        %v2644 = vunpack.c.l.b16 %v1203
        %v2645 = vunpack.c.h.b16 %v1203
        %v2646 = vunpack.c.l.b16 %v1204
        %v2647 = vunpack.c.h.b16 %v1204
        %v2648 = vunpack.c.l.b16 %v1205
        %v2649 = vunpack.c.h.b16 %v1205
        %v2650 = vunpack.c.l.b16 %v1206
        %v2651 = vunpack.c.h.b16 %v1206
        %v2652 = vunpack.c.l.b16 %v1207
        %v2653 = vunpack.c.h.b16 %v1207
        %v2654 = vunpack.c.l.b16 %v1208
        %v2655 = vunpack.c.h.b16 %v1208
        %v2656 = vunpack.c.l.b16 %v1209
        %v2657 = vunpack.c.h.b16 %v1209
        %v2658 = vunpack.c.l.b16 %v1210
        %v2659 = vunpack.c.h.b16 %v1210
        %v2660 = vunpack.c.l.b16 %v1211
        %v2661 = vunpack.c.h.b16 %v1211
        %v2662 = vunpack.c.l.b16 %v1212
        %v2663 = vunpack.c.h.b16 %v1212
        %v2664 = vunpack.c.l.b16 %v1213
        %v2665 = vunpack.c.h.b16 %v1213
        %v2666 = vunpack.c.l.b16 %v1214
        %v2667 = vunpack.c.h.b16 %v1214
        %v2668 = vunpack.c.l.b16 %v1215
        %v2669 = vunpack.c.h.b16 %v1215
        %v2670 = vunpack.c.l.b16 %v1216
        %v2671 = vunpack.c.h.b16 %v1216
        %v2672 = vunpack.c.l.b16 %v1217
        %v2673 = vunpack.c.h.b16 %v1217
        %v2674 = vunpack.c.l.b16 %v1218
        %v2675 = vunpack.c.h.b16 %v1218
        %v2676 = vunpack.c.l.b16 %v1219
        %v2677 = vunpack.c.h.b16 %v1219
        %v2678 = vunpack.c.l.b16 %v1220
        %v2679 = vunpack.c.h.b16 %v1220
        %v2680 = vunpack.c.l.b16 %v1221
        %v2681 = vunpack.c.h.b16 %v1221
        %v2682 = vunpack.c.l.b16 %v1222
        %v2683 = vunpack.c.h.b16 %v1222
        %v2684 = vunpack.c.l.b16 %v1223
        %v2685 = vunpack.c.h.b16 %v1223
        %v2686 = vunpack.c.l.b16 %v1224
        %v2687 = vunpack.c.h.b16 %v1224
        %v2688 = vunpack.c.l.b16 %v1225
        %v2689 = vunpack.c.h.b16 %v1225
        %v2690 = vunpack.c.l.b16 %v1226
        %v2691 = vunpack.c.h.b16 %v1226
        %v2692 = vunpack.c.l.b16 %v1227
        %v2693 = vunpack.c.h.b16 %v1227
        %v2694 = vunpack.c.l.b16 %v1228
        %v2695 = vunpack.c.h.b16 %v1228
        %v2696 = vunpack.c.l.b16 %v1229
        %v2697 = vunpack.c.h.b16 %v1229
        %v2698 = vunpack.c.l.b16 %v1230
        %v2699 = vunpack.c.h.b16 %v1230
        %v2700 = vunpack.c.l.b16 %v1231
        %v2701 = vunpack.c.h.b16 %v1231
        %v2702 = vunpack.c.l.b16 %v1232
        %v2703 = vunpack.c.h.b16 %v1232
        %v2704 = vunpack.c.l.b16 %v1233
        %v2705 = vunpack.c.h.b16 %v1233
        %v2706 = vunpack.c.l.b16 %v1234
        %v2707 = vunpack.c.h.b16 %v1234
        %v2708 = vunpack.c.l.b16 %v1235
        %v2709 = vunpack.c.h.b16 %v1235
        %v2710 = vunpack.c.l.b16 %v1236
        %v2711 = vunpack.c.h.b16 %v1236
        %v2712 = vunpack.c.l.b16 %v1237
        %v2713 = vunpack.c.h.b16 %v1237
        %v2714 = vunpack.c.l.b16 %v1238
        %v2715 = vunpack.c.h.b16 %v1238
        %v2716 = vunpack.c.l.b16 %v1239
        %v2717 = vunpack.c.h.b16 %v1239
        %v2718 = vunpack.c.l.b16 %v1240
        %v2719 = vunpack.c.h.b16 %v1240
        %v2720 = vunpack.c.l.b16 %v1241
        %v2721 = vunpack.c.h.b16 %v1241
        %v2722 = vunpack.c.l.b16 %v1242
        %v2723 = vunpack.c.h.b16 %v1242
        %v2724 = vunpack.c.l.b16 %v1243
        %v2725 = vunpack.c.h.b16 %v1243
        %v2726 = vunpack.c.l.b16 %v1244
        %v2727 = vunpack.c.h.b16 %v1244
        %v2728 = vunpack.c.l.b16 %v1245
        %v2729 = vunpack.c.h.b16 %v1245
        %v2730 = vunpack.c.l.b16 %v1246
        %v2731 = vunpack.c.h.b16 %v1246
        %v2732 = vunpack.c.l.b16 %v1247
        %v2733 = vunpack.c.h.b16 %v1247
        %v2734 = vunpack.c.l.b16 %v1248
        %v2735 = vunpack.c.h.b16 %v1248
        %v2736 = vunpack.c.l.b16 %v1249
        %v2737 = vunpack.c.h.b16 %v1249
        %v2738 = vunpack.c.l.b16 %v1250
        %v2739 = vunpack.c.h.b16 %v1250
        %v2740 = vunpack.c.l.b16 %v1251
        %v2741 = vunpack.c.h.b16 %v1251
        %v2742 = vunpack.c.l.b16 %v1252
        %v2743 = vunpack.c.h.b16 %v1252
        %v2744 = vunpack.c.l.b16 %v1253
        %v2745 = vunpack.c.h.b16 %v1253
        %v2746 = vunpack.c.l.b16 %v1254
        %v2747 = vunpack.c.h.b16 %v1254
        %v2748 = vunpack.c.l.b16 %v1255
        %v2749 = vunpack.c.h.b16 %v1255
        %v2750 = vunpack.c.l.b16 %v1256
        %v2751 = vunpack.c.h.b16 %v1256
        %v2752 = vunpack.c.l.b16 %v1257
        %v2753 = vunpack.c.h.b16 %v1257
        %v2754 = vunpack.c.l.b16 %v1258
        %v2755 = vunpack.c.h.b16 %v1258
        %v2756 = vunpack.c.l.b16 %v1259
        %v2757 = vunpack.c.h.b16 %v1259
        %v2758 = vunpack.c.l.b16 %v1260
        %v2759 = vunpack.c.h.b16 %v1260
        %v2760 = vunpack.c.l.b16 %v1261
        %v2761 = vunpack.c.h.b16 %v1261
        %v2762 = vunpack.c.l.b16 %v1262
        %v2763 = vunpack.c.h.b16 %v1262
        %v2764 = vunpack.c.l.b16 %v1263
        %v2765 = vunpack.c.h.b16 %v1263
        %v2766 = vunpack.c.l.b16 %v1264
        %v2767 = vunpack.c.h.b16 %v1264
        %v2768 = vunpack.c.l.b16 %v1265
        %v2769 = vunpack.c.h.b16 %v1265
        %v2770 = vunpack.c.l.b16 %v1266
        %v2771 = vunpack.c.h.b16 %v1266
        %v2772 = vunpack.c.l.b16 %v1267
        %v2773 = vunpack.c.h.b16 %v1267
        %v2774 = vunpack.c.l.b16 %v1268
        %v2775 = vunpack.c.h.b16 %v1268
        %v2776 = vunpack.c.l.b16 %v1269
        %v2777 = vunpack.c.h.b16 %v1269
        %v2778 = vunpack.c.l.b16 %v1270
        %v2779 = vunpack.c.h.b16 %v1270
        %v2780 = vunpack.c.l.b16 %v1271
        %v2781 = vunpack.c.h.b16 %v1271
        %v2782 = vunpack.c.l.b16 %v1272
        %v2783 = vunpack.c.h.b16 %v1272
        %v2784 = vunpack.c.l.b16 %v1273
        %v2785 = vunpack.c.h.b16 %v1273
        %v2786 = vunpack.c.l.b16 %v1274
        %v2787 = vunpack.c.h.b16 %v1274
        %v2788 = vunpack.c.l.b16 %v1275
        %v2789 = vunpack.c.h.b16 %v1275
        %v2790 = vunpack.c.l.b16 %v1276
        %v2791 = vunpack.c.h.b16 %v1276
        %v2792 = vunpack.c.l.b16 %v1277
        %v2793 = vunpack.c.h.b16 %v1277
        %v2794 = vunpack.c.l.b16 %v1278
        %v2795 = vunpack.c.h.b16 %v1278
        %v2796 = vunpack.c.l.b16 %v1279
        %v2797 = vunpack.c.h.b16 %v1279
        %v2798 = vunpack.c.l.b16 %v1280
        %v2799 = vunpack.c.h.b16 %v1280
        %v2800 = vunpack.c.l.b16 %v1281
        %v2801 = vunpack.c.h.b16 %v1281
        %v2802 = vunpack.c.l.b16 %v1282
        %v2803 = vunpack.c.h.b16 %v1282
        %v2804 = vunpack.c.l.b16 %v1283
        %v2805 = vunpack.c.h.b16 %v1283
        %v2806 = vunpack.c.l.b16 %v1284
        %v2807 = vunpack.c.h.b16 %v1284
        %v2808 = vunpack.c.l.b16 %v1285
        %v2809 = vunpack.c.h.b16 %v1285
        %v2810 = vunpack.c.l.b16 %v1286
        %v2811 = vunpack.c.h.b16 %v1286
        %v2812 = vunpack.c.l.b16 %v1287
        %v2813 = vunpack.c.h.b16 %v1287
        %v2814 = vunpack.c.l.b16 %v1288
        %v2815 = vunpack.c.h.b16 %v1288
        %v2816 = vunpack.c.l.b16 %v1289
        %v2817 = vunpack.c.h.b16 %v1289
        %v2818 = vunpack.c.l.b16 %v1290
        %v2819 = vunpack.c.h.b16 %v1290
        %v2820 = vunpack.c.l.b16 %v1291
        %v2821 = vunpack.c.h.b16 %v1291
        %v2822 = vunpack.c.l.b16 %v1292
        %v2823 = vunpack.c.h.b16 %v1292
        %v2824 = vunpack.c.l.b16 %v1293
        %v2825 = vunpack.c.h.b16 %v1293
        %v2826 = vunpack.c.l.b16 %v1294
        %v2827 = vunpack.c.h.b16 %v1294
        %v2828 = vunpack.c.l.b16 %v1295
        %v2829 = vunpack.c.h.b16 %v1295
        %v2830 = vunpack.c.l.b16 %v1296
        %v2831 = vunpack.c.h.b16 %v1296
        %v2832 = vunpack.c.l.b16 %v1297
        %v2833 = vunpack.c.h.b16 %v1297
        %v2834 = vunpack.c.l.b16 %v1298
        %v2835 = vunpack.c.h.b16 %v1298
        %v2836 = vunpack.c.l.b16 %v1299
        %v2837 = vunpack.c.h.b16 %v1299
        %v2838 = vunpack.c.l.b16 %v1300
        %v2839 = vunpack.c.h.b16 %v1300
        %v2840 = vunpack.c.l.b16 %v1301
        %v2841 = vunpack.c.h.b16 %v1301
        %v2842 = vunpack.c.l.b16 %v1302
        %v2843 = vunpack.c.h.b16 %v1302
        %v2844 = vunpack.c.l.b16 %v1303
        %v2845 = vunpack.c.h.b16 %v1303
        %v2846 = vunpack.c.l.b16 %v1304
        %v2847 = vunpack.c.h.b16 %v1304
        %v2848 = vunpack.c.l.b16 %v1305
        %v2849 = vunpack.c.h.b16 %v1305
        %v2850 = vunpack.c.l.b16 %v1306
        %v2851 = vunpack.c.h.b16 %v1306
        %v2852 = vunpack.c.l.b16 %v1307
        %v2853 = vunpack.c.h.b16 %v1307
        %v2854 = vunpack.c.l.b16 %v1308
        %v2855 = vunpack.c.h.b16 %v1308
        %v2856 = vunpack.c.l.b16 %v1309
        %v2857 = vunpack.c.h.b16 %v1309
        %v2858 = vunpack.c.l.b16 %v1310
        %v2859 = vunpack.c.h.b16 %v1310
        %v2860 = vunpack.c.l.b16 %v1311
        %v2861 = vunpack.c.h.b16 %v1311
        %v2862 = vunpack.c.l.b16 %v1312
        %v2863 = vunpack.c.h.b16 %v1312
        %v2864 = vunpack.c.l.b16 %v1313
        %v2865 = vunpack.c.h.b16 %v1313
        %v2866 = vunpack.c.l.b16 %v1314
        %v2867 = vunpack.c.h.b16 %v1314
        %v2868 = vunpack.c.l.b16 %v1315
        %v2869 = vunpack.c.h.b16 %v1315
        %v2870 = vunpack.c.l.b16 %v1316
        %v2871 = vunpack.c.h.b16 %v1316
        %v2872 = vunpack.c.l.b16 %v1317
        %v2873 = vunpack.c.h.b16 %v1317
        %v2874 = vunpack.c.l.b16 %v1318
        %v2875 = vunpack.c.h.b16 %v1318
        %v2876 = vunpack.c.l.b16 %v1319
        %v2877 = vunpack.c.h.b16 %v1319
        %v2878 = vunpack.c.l.b16 %v1320
        %v2879 = vunpack.c.h.b16 %v1320
        %v2880 = vunpack.c.l.b16 %v1321
        %v2881 = vunpack.c.h.b16 %v1321
        %v2882 = vunpack.c.l.b16 %v1322
        %v2883 = vunpack.c.h.b16 %v1322
        %v2884 = vunpack.c.l.b16 %v1323
        %v2885 = vunpack.c.h.b16 %v1323
        %v2886 = vunpack.c.l.b16 %v1324
        %v2887 = vunpack.c.h.b16 %v1324
        %v2888 = vunpack.c.l.b16 %v1325
        %v2889 = vunpack.c.h.b16 %v1325
        %v2890 = vunpack.c.l.b16 %v1326
        %v2891 = vunpack.c.h.b16 %v1326
        %v2892 = vunpack.c.l.b16 %v1327
        %v2893 = vunpack.c.h.b16 %v1327
        %v2894 = vunpack.c.l.b16 %v1328
        %v2895 = vunpack.c.h.b16 %v1328
        %v2896 = vunpack.c.l.b16 %v1329
        %v2897 = vunpack.c.h.b16 %v1329
        %v2898 = vunpack.c.l.b16 %v1330
        %v2899 = vunpack.c.h.b16 %v1330
        %v2900 = vunpack.c.l.b16 %v1331
        %v2901 = vunpack.c.h.b16 %v1331
        %v2902 = vunpack.c.l.b16 %v1332
        %v2903 = vunpack.c.h.b16 %v1332
        %v2904 = vunpack.c.l.b16 %v1333
        %v2905 = vunpack.c.h.b16 %v1333
        %v2906 = vunpack.c.l.b16 %v1334
        %v2907 = vunpack.c.h.b16 %v1334
        %v2908 = vunpack.c.l.b16 %v1335
        %v2909 = vunpack.c.h.b16 %v1335
        %v2910 = vunpack.c.l.b16 %v1336
        %v2911 = vunpack.c.h.b16 %v1336
        %v2912 = vunpack.c.l.b16 %v1337
        %v2913 = vunpack.c.h.b16 %v1337
        %v2914 = vunpack.c.l.b16 %v1338
        %v2915 = vunpack.c.h.b16 %v1338
        %v2916 = vunpack.c.l.b16 %v1339
        %v2917 = vunpack.c.h.b16 %v1339
        %v2918 = vpack.c.b16 %v1902, %v1894
        %v2919 = vpack.c.b16 %v1903, %v1895
        %v2920 = vpack.c.b16 %v1904, %v1896
        %v2921 = vpack.c.b16 %v1905, %v1897
        %v2922 = vpack.c.b16 %v1906, %v1898
        %v2923 = vpack.c.b16 %v1907, %v1899
        %v2924 = vpack.c.b16 %v1908, %v1900
        %v2925 = vpack.c.b16 %v1909, %v1901
        %v2926 = vpack.c.b16 %v1918, %v1910
        %v2927 = vpack.c.b16 %v1919, %v1911
        %v2928 = vpack.c.b16 %v1920, %v1912
        %v2929 = vpack.c.b16 %v1921, %v1913
        %v2930 = vpack.c.b16 %v1922, %v1914
        %v2931 = vpack.c.b16 %v1923, %v1915
        %v2932 = vpack.c.b16 %v1924, %v1916
        %v2933 = vpack.c.b16 %v1925, %v1917
        %v2934 = vpack.c.b16 %v1934, %v1926
        %v2935 = vpack.c.b16 %v1935, %v1927
        %v2936 = vpack.c.b16 %v1936, %v1928
        %v2937 = vpack.c.b16 %v1937, %v1929
        %v2938 = vpack.c.b16 %v1938, %v1930
        %v2939 = vpack.c.b16 %v1939, %v1931
        %v2940 = vpack.c.b16 %v1940, %v1932
        %v2941 = vpack.c.b16 %v1941, %v1933
        %v2942 = vpack.c.b16 %v1950, %v1942
        %v2943 = vpack.c.b16 %v1951, %v1943
        %v2944 = vpack.c.b16 %v1952, %v1944
        %v2945 = vpack.c.b16 %v1953, %v1945
        %v2946 = vpack.c.b16 %v1954, %v1946
        %v2947 = vpack.c.b16 %v1955, %v1947
        %v2948 = vpack.c.b16 %v1956, %v1948
        %v2949 = vpack.c.b16 %v1957, %v1949
        %v2950 = vpack.c.b16 %v1966, %v1958
        %v2951 = vpack.c.b16 %v1967, %v1959
        %v2952 = vpack.c.b16 %v1968, %v1960
        %v2953 = vpack.c.b16 %v1969, %v1961
        %v2954 = vpack.c.b16 %v1970, %v1962
        %v2955 = vpack.c.b16 %v1971, %v1963
        %v2956 = vpack.c.b16 %v1972, %v1964
        %v2957 = vpack.c.b16 %v1973, %v1965
        %v2958 = vpack.c.b16 %v1982, %v1974
        %v2959 = vpack.c.b16 %v1983, %v1975
        %v2960 = vpack.c.b16 %v1984, %v1976
        %v2961 = vpack.c.b16 %v1985, %v1977
        %v2962 = vpack.c.b16 %v1986, %v1978
        %v2963 = vpack.c.b16 %v1987, %v1979
        %v2964 = vpack.c.b16 %v1988, %v1980
        %v2965 = vpack.c.b16 %v1989, %v1981
        %v2966 = vpack.c.b16 %v1998, %v1990
        %v2967 = vpack.c.b16 %v1999, %v1991
        %v2968 = vpack.c.b16 %v2000, %v1992
        %v2969 = vpack.c.b16 %v2001, %v1993
        %v2970 = vpack.c.b16 %v2002, %v1994
        %v2971 = vpack.c.b16 %v2003, %v1995
        %v2972 = vpack.c.b16 %v2004, %v1996
        %v2973 = vpack.c.b16 %v2005, %v1997
        %v2974 = vpack.c.b16 %v2014, %v2006
        %v2975 = vpack.c.b16 %v2015, %v2007
        %v2976 = vpack.c.b16 %v2016, %v2008
        %v2977 = vpack.c.b16 %v2017, %v2009
        %v2978 = vpack.c.b16 %v2018, %v2010
        %v2979 = vpack.c.b16 %v2019, %v2011
        %v2980 = vpack.c.b16 %v2020, %v2012
        %v2981 = vpack.c.b16 %v2021, %v2013
        %v2982 = vpack.c.b16 %v2030, %v2022
        %v2983 = vpack.c.b16 %v2031, %v2023
        %v2984 = vpack.c.b16 %v2032, %v2024
        %v2985 = vpack.c.b16 %v2033, %v2025
        %v2986 = vpack.c.b16 %v2034, %v2026
        %v2987 = vpack.c.b16 %v2035, %v2027
        %v2988 = vpack.c.b16 %v2036, %v2028
        %v2989 = vpack.c.b16 %v2037, %v2029
        %v2990 = vpack.c.b16 %v2046, %v2038
        %v2991 = vpack.c.b16 %v2047, %v2039
        %v2992 = vpack.c.b16 %v2048, %v2040
        %v2993 = vpack.c.b16 %v2049, %v2041
        %v2994 = vpack.c.b16 %v2050, %v2042
        %v2995 = vpack.c.b16 %v2051, %v2043
        %v2996 = vpack.c.b16 %v2052, %v2044
        %v2997 = vpack.c.b16 %v2053, %v2045
        %v2998 = vpack.c.b16 %v2062, %v2054
        %v2999 = vpack.c.b16 %v2063, %v2055
        %v3000 = vpack.c.b16 %v2064, %v2056
        %v3001 = vpack.c.b16 %v2065, %v2057
        %v3002 = vpack.c.b16 %v2066, %v2058
        %v3003 = vpack.c.b16 %v2067, %v2059
        %v3004 = vpack.c.b16 %v2068, %v2060
        %v3005 = vpack.c.b16 %v2069, %v2061
        %v3006 = vpack.c.b16 %v2078, %v2070
        %v3007 = vpack.c.b16 %v2079, %v2071
        %v3008 = vpack.c.b16 %v2080, %v2072
        %v3009 = vpack.c.b16 %v2081, %v2073
        %v3010 = vpack.c.b16 %v2082, %v2074
        %v3011 = vpack.c.b16 %v2083, %v2075
        %v3012 = vpack.c.b16 %v2084, %v2076
        %v3013 = vpack.c.b16 %v2085, %v2077
        %v3014 = vpack.c.b16 %v2094, %v2086
        %v3015 = vpack.c.b16 %v2095, %v2087
        %v3016 = vpack.c.b16 %v2096, %v2088
        %v3017 = vpack.c.b16 %v2097, %v2089
        %v3018 = vpack.c.b16 %v2098, %v2090
        %v3019 = vpack.c.b16 %v2099, %v2091
        %v3020 = vpack.c.b16 %v2100, %v2092
        %v3021 = vpack.c.b16 %v2101, %v2093
        %v3022 = vpack.c.b16 %v2110, %v2102
        %v3023 = vpack.c.b16 %v2111, %v2103
        %v3024 = vpack.c.b16 %v2112, %v2104
        %v3025 = vpack.c.b16 %v2113, %v2105
        %v3026 = vpack.c.b16 %v2114, %v2106
        %v3027 = vpack.c.b16 %v2115, %v2107
        %v3028 = vpack.c.b16 %v2116, %v2108
        %v3029 = vpack.c.b16 %v2117, %v2109
        %v3030 = vpack.c.b16 %v2126, %v2118
        %v3031 = vpack.c.b16 %v2127, %v2119
        %v3032 = vpack.c.b16 %v2128, %v2120
        %v3033 = vpack.c.b16 %v2129, %v2121
        %v3034 = vpack.c.b16 %v2130, %v2122
        %v3035 = vpack.c.b16 %v2131, %v2123
        %v3036 = vpack.c.b16 %v2132, %v2124
        %v3037 = vpack.c.b16 %v2133, %v2125
        %v3038 = vpack.c.b16 %v2142, %v2134
        %v3039 = vpack.c.b16 %v2143, %v2135
        %v3040 = vpack.c.b16 %v2144, %v2136
        %v3041 = vpack.c.b16 %v2145, %v2137
        %v3042 = vpack.c.b16 %v2146, %v2138
        %v3043 = vpack.c.b16 %v2147, %v2139
        %v3044 = vpack.c.b16 %v2148, %v2140
        %v3045 = vpack.c.b16 %v2149, %v2141
        %v3046 = vpack.c.b16 %v2158, %v2150
        %v3047 = vpack.c.b16 %v2159, %v2151
        %v3048 = vpack.c.b16 %v2160, %v2152
        %v3049 = vpack.c.b16 %v2161, %v2153
        %v3050 = vpack.c.b16 %v2162, %v2154
        %v3051 = vpack.c.b16 %v2163, %v2155
        %v3052 = vpack.c.b16 %v2164, %v2156
        %v3053 = vpack.c.b16 %v2165, %v2157
        %v3054 = vpack.c.b16 %v2174, %v2166
        %v3055 = vpack.c.b16 %v2175, %v2167
        %v3056 = vpack.c.b16 %v2176, %v2168
        %v3057 = vpack.c.b16 %v2177, %v2169
        %v3058 = vpack.c.b16 %v2178, %v2170
        %v3059 = vpack.c.b16 %v2179, %v2171
        %v3060 = vpack.c.b16 %v2180, %v2172
        %v3061 = vpack.c.b16 %v2181, %v2173
        %v3062 = vpack.c.b16 %v2190, %v2182
        %v3063 = vpack.c.b16 %v2191, %v2183
        %v3064 = vpack.c.b16 %v2192, %v2184
        %v3065 = vpack.c.b16 %v2193, %v2185
        %v3066 = vpack.c.b16 %v2194, %v2186
        %v3067 = vpack.c.b16 %v2195, %v2187
        %v3068 = vpack.c.b16 %v2196, %v2188
        %v3069 = vpack.c.b16 %v2197, %v2189
        %v3070 = vpack.c.b16 %v2206, %v2198
        %v3071 = vpack.c.b16 %v2207, %v2199
        %v3072 = vpack.c.b16 %v2208, %v2200
        %v3073 = vpack.c.b16 %v2209, %v2201
        %v3074 = vpack.c.b16 %v2210, %v2202
        %v3075 = vpack.c.b16 %v2211, %v2203
        %v3076 = vpack.c.b16 %v2212, %v2204
        %v3077 = vpack.c.b16 %v2213, %v2205
        %v3078 = vpack.c.b16 %v2222, %v2214
        %v3079 = vpack.c.b16 %v2223, %v2215
        %v3080 = vpack.c.b16 %v2224, %v2216
        %v3081 = vpack.c.b16 %v2225, %v2217
        %v3082 = vpack.c.b16 %v2226, %v2218
        %v3083 = vpack.c.b16 %v2227, %v2219
        %v3084 = vpack.c.b16 %v2228, %v2220
        %v3085 = vpack.c.b16 %v2229, %v2221
        %v3086 = vpack.c.b16 %v2238, %v2230
        %v3087 = vpack.c.b16 %v2239, %v2231
        %v3088 = vpack.c.b16 %v2240, %v2232
        %v3089 = vpack.c.b16 %v2241, %v2233
        %v3090 = vpack.c.b16 %v2242, %v2234
        %v3091 = vpack.c.b16 %v2243, %v2235
        %v3092 = vpack.c.b16 %v2244, %v2236
        %v3093 = vpack.c.b16 %v2245, %v2237
        %v3094 = vpack.c.b16 %v2254, %v2246
        %v3095 = vpack.c.b16 %v2255, %v2247
        %v3096 = vpack.c.b16 %v2256, %v2248
        %v3097 = vpack.c.b16 %v2257, %v2249
        %v3098 = vpack.c.b16 %v2258, %v2250
        %v3099 = vpack.c.b16 %v2259, %v2251
        %v3100 = vpack.c.b16 %v2260, %v2252
        %v3101 = vpack.c.b16 %v2261, %v2253
        %v3102 = vpack.c.b16 %v2270, %v2262
        %v3103 = vpack.c.b16 %v2271, %v2263
        %v3104 = vpack.c.b16 %v2272, %v2264
        %v3105 = vpack.c.b16 %v2273, %v2265
        %v3106 = vpack.c.b16 %v2274, %v2266
        %v3107 = vpack.c.b16 %v2275, %v2267
        %v3108 = vpack.c.b16 %v2276, %v2268
        %v3109 = vpack.c.b16 %v2277, %v2269
        %v3110 = vpack.c.b16 %v2286, %v2278
        %v3111 = vpack.c.b16 %v2287, %v2279
        %v3112 = vpack.c.b16 %v2288, %v2280
        %v3113 = vpack.c.b16 %v2289, %v2281
        %v3114 = vpack.c.b16 %v2290, %v2282
        %v3115 = vpack.c.b16 %v2291, %v2283
        %v3116 = vpack.c.b16 %v2292, %v2284
        %v3117 = vpack.c.b16 %v2293, %v2285
        %v3118 = vpack.c.b16 %v2302, %v2294
        %v3119 = vpack.c.b16 %v2303, %v2295
        %v3120 = vpack.c.b16 %v2304, %v2296
        %v3121 = vpack.c.b16 %v2305, %v2297
        %v3122 = vpack.c.b16 %v2306, %v2298
        %v3123 = vpack.c.b16 %v2307, %v2299
        %v3124 = vpack.c.b16 %v2308, %v2300
        %v3125 = vpack.c.b16 %v2309, %v2301
        %v3126 = vpack.c.b16 %v2318, %v2310
        %v3127 = vpack.c.b16 %v2319, %v2311
        %v3128 = vpack.c.b16 %v2320, %v2312
        %v3129 = vpack.c.b16 %v2321, %v2313
        %v3130 = vpack.c.b16 %v2322, %v2314
        %v3131 = vpack.c.b16 %v2323, %v2315
        %v3132 = vpack.c.b16 %v2324, %v2316
        %v3133 = vpack.c.b16 %v2325, %v2317
        %v3134 = vpack.c.b16 %v2334, %v2326
        %v3135 = vpack.c.b16 %v2335, %v2327
        %v3136 = vpack.c.b16 %v2336, %v2328
        %v3137 = vpack.c.b16 %v2337, %v2329
        %v3138 = vpack.c.b16 %v2338, %v2330
        %v3139 = vpack.c.b16 %v2339, %v2331
        %v3140 = vpack.c.b16 %v2340, %v2332
        %v3141 = vpack.c.b16 %v2341, %v2333
        %v3142 = vpack.c.b16 %v2350, %v2342
        %v3143 = vpack.c.b16 %v2351, %v2343
        %v3144 = vpack.c.b16 %v2352, %v2344
        %v3145 = vpack.c.b16 %v2353, %v2345
        %v3146 = vpack.c.b16 %v2354, %v2346
        %v3147 = vpack.c.b16 %v2355, %v2347
        %v3148 = vpack.c.b16 %v2356, %v2348
        %v3149 = vpack.c.b16 %v2357, %v2349
        %v3150 = vpack.c.b16 %v2366, %v2358
        %v3151 = vpack.c.b16 %v2367, %v2359
        %v3152 = vpack.c.b16 %v2368, %v2360
        %v3153 = vpack.c.b16 %v2369, %v2361
        %v3154 = vpack.c.b16 %v2370, %v2362
        %v3155 = vpack.c.b16 %v2371, %v2363
        %v3156 = vpack.c.b16 %v2372, %v2364
        %v3157 = vpack.c.b16 %v2373, %v2365
        %v3158 = vpack.c.b16 %v2382, %v2374
        %v3159 = vpack.c.b16 %v2383, %v2375
        %v3160 = vpack.c.b16 %v2384, %v2376
        %v3161 = vpack.c.b16 %v2385, %v2377
        %v3162 = vpack.c.b16 %v2386, %v2378
        %v3163 = vpack.c.b16 %v2387, %v2379
        %v3164 = vpack.c.b16 %v2388, %v2380
        %v3165 = vpack.c.b16 %v2389, %v2381
        %v3166 = vpack.c.b16 %v2398, %v2390
        %v3167 = vpack.c.b16 %v2399, %v2391
        %v3168 = vpack.c.b16 %v2400, %v2392
        %v3169 = vpack.c.b16 %v2401, %v2393
        %v3170 = vpack.c.b16 %v2402, %v2394
        %v3171 = vpack.c.b16 %v2403, %v2395
        %v3172 = vpack.c.b16 %v2404, %v2396
        %v3173 = vpack.c.b16 %v2405, %v2397
        %v3174 = vpack.c.b16 %v2414, %v2406
        %v3175 = vpack.c.b16 %v2415, %v2407
        %v3176 = vpack.c.b16 %v2416, %v2408
        %v3177 = vpack.c.b16 %v2417, %v2409
        %v3178 = vpack.c.b16 %v2418, %v2410
        %v3179 = vpack.c.b16 %v2419, %v2411
        %v3180 = vpack.c.b16 %v2420, %v2412
        %v3181 = vpack.c.b16 %v2421, %v2413
        %v3182 = vpack.c.b16 %v2430, %v2422
        %v3183 = vpack.c.b16 %v2431, %v2423
        %v3184 = vpack.c.b16 %v2432, %v2424
        %v3185 = vpack.c.b16 %v2433, %v2425
        %v3186 = vpack.c.b16 %v2434, %v2426
        %v3187 = vpack.c.b16 %v2435, %v2427
        %v3188 = vpack.c.b16 %v2436, %v2428
        %v3189 = vpack.c.b16 %v2437, %v2429
        %v3190 = vpack.c.b16 %v2446, %v2438
        %v3191 = vpack.c.b16 %v2447, %v2439
        %v3192 = vpack.c.b16 %v2448, %v2440
        %v3193 = vpack.c.b16 %v2449, %v2441
        %v3194 = vpack.c.b16 %v2450, %v2442
        %v3195 = vpack.c.b16 %v2451, %v2443
        %v3196 = vpack.c.b16 %v2452, %v2444
        %v3197 = vpack.c.b16 %v2453, %v2445
        %v3198 = vpack.c.b16 %v2462, %v2454
        %v3199 = vpack.c.b16 %v2463, %v2455
        %v3200 = vpack.c.b16 %v2464, %v2456
        %v3201 = vpack.c.b16 %v2465, %v2457
        %v3202 = vpack.c.b16 %v2466, %v2458
        %v3203 = vpack.c.b16 %v2467, %v2459
        %v3204 = vpack.c.b16 %v2468, %v2460
        %v3205 = vpack.c.b16 %v2469, %v2461
        %v3206 = vpack.c.b16 %v2478, %v2470
        %v3207 = vpack.c.b16 %v2479, %v2471
        %v3208 = vpack.c.b16 %v2480, %v2472
        %v3209 = vpack.c.b16 %v2481, %v2473
        %v3210 = vpack.c.b16 %v2482, %v2474
        %v3211 = vpack.c.b16 %v2483, %v2475
        %v3212 = vpack.c.b16 %v2484, %v2476
        %v3213 = vpack.c.b16 %v2485, %v2477
        %v3214 = vpack.c.b16 %v2494, %v2486
        %v3215 = vpack.c.b16 %v2495, %v2487
        %v3216 = vpack.c.b16 %v2496, %v2488
        %v3217 = vpack.c.b16 %v2497, %v2489
        %v3218 = vpack.c.b16 %v2498, %v2490
        %v3219 = vpack.c.b16 %v2499, %v2491
        %v3220 = vpack.c.b16 %v2500, %v2492
        %v3221 = vpack.c.b16 %v2501, %v2493
        %v3222 = vpack.c.b16 %v2510, %v2502
        %v3223 = vpack.c.b16 %v2511, %v2503
        %v3224 = vpack.c.b16 %v2512, %v2504
        %v3225 = vpack.c.b16 %v2513, %v2505
        %v3226 = vpack.c.b16 %v2514, %v2506
        %v3227 = vpack.c.b16 %v2515, %v2507
        %v3228 = vpack.c.b16 %v2516, %v2508
        %v3229 = vpack.c.b16 %v2517, %v2509
        %v3230 = vpack.c.b16 %v2526, %v2518
        %v3231 = vpack.c.b16 %v2527, %v2519
        %v3232 = vpack.c.b16 %v2528, %v2520
        %v3233 = vpack.c.b16 %v2529, %v2521
        %v3234 = vpack.c.b16 %v2530, %v2522
        %v3235 = vpack.c.b16 %v2531, %v2523
        %v3236 = vpack.c.b16 %v2532, %v2524
        %v3237 = vpack.c.b16 %v2533, %v2525
        %v3238 = vpack.c.b16 %v2542, %v2534
        %v3239 = vpack.c.b16 %v2543, %v2535
        %v3240 = vpack.c.b16 %v2544, %v2536
        %v3241 = vpack.c.b16 %v2545, %v2537
        %v3242 = vpack.c.b16 %v2546, %v2538
        %v3243 = vpack.c.b16 %v2547, %v2539
        %v3244 = vpack.c.b16 %v2548, %v2540
        %v3245 = vpack.c.b16 %v2549, %v2541
        %v3246 = vpack.c.b16 %v2558, %v2550
        %v3247 = vpack.c.b16 %v2559, %v2551
        %v3248 = vpack.c.b16 %v2560, %v2552
        %v3249 = vpack.c.b16 %v2561, %v2553
        %v3250 = vpack.c.b16 %v2562, %v2554
        %v3251 = vpack.c.b16 %v2563, %v2555
        %v3252 = vpack.c.b16 %v2564, %v2556
        %v3253 = vpack.c.b16 %v2565, %v2557
        %v3254 = vpack.c.b16 %v2574, %v2566
        %v3255 = vpack.c.b16 %v2575, %v2567
        %v3256 = vpack.c.b16 %v2576, %v2568
        %v3257 = vpack.c.b16 %v2577, %v2569
        %v3258 = vpack.c.b16 %v2578, %v2570
        %v3259 = vpack.c.b16 %v2579, %v2571
        %v3260 = vpack.c.b16 %v2580, %v2572
        %v3261 = vpack.c.b16 %v2581, %v2573
        %v3262 = vpack.c.b16 %v2590, %v2582
        %v3263 = vpack.c.b16 %v2591, %v2583
        %v3264 = vpack.c.b16 %v2592, %v2584
        %v3265 = vpack.c.b16 %v2593, %v2585
        %v3266 = vpack.c.b16 %v2594, %v2586
        %v3267 = vpack.c.b16 %v2595, %v2587
        %v3268 = vpack.c.b16 %v2596, %v2588
        %v3269 = vpack.c.b16 %v2597, %v2589
        %v3270 = vpack.c.b16 %v2606, %v2598
        %v3271 = vpack.c.b16 %v2607, %v2599
        %v3272 = vpack.c.b16 %v2608, %v2600
        %v3273 = vpack.c.b16 %v2609, %v2601
        %v3274 = vpack.c.b16 %v2610, %v2602
        %v3275 = vpack.c.b16 %v2611, %v2603
        %v3276 = vpack.c.b16 %v2612, %v2604
        %v3277 = vpack.c.b16 %v2613, %v2605
        %v3278 = vpack.c.b16 %v2622, %v2614
        %v3279 = vpack.c.b16 %v2623, %v2615
        %v3280 = vpack.c.b16 %v2624, %v2616
        %v3281 = vpack.c.b16 %v2625, %v2617
        %v3282 = vpack.c.b16 %v2626, %v2618
        %v3283 = vpack.c.b16 %v2627, %v2619
        %v3284 = vpack.c.b16 %v2628, %v2620
        %v3285 = vpack.c.b16 %v2629, %v2621
        %v3286 = vpack.c.b16 %v2638, %v2630
        %v3287 = vpack.c.b16 %v2639, %v2631
        %v3288 = vpack.c.b16 %v2640, %v2632
        %v3289 = vpack.c.b16 %v2641, %v2633
        %v3290 = vpack.c.b16 %v2642, %v2634
        %v3291 = vpack.c.b16 %v2643, %v2635
        %v3292 = vpack.c.b16 %v2644, %v2636
        %v3293 = vpack.c.b16 %v2645, %v2637
        %v3294 = vpack.c.b16 %v2654, %v2646
        %v3295 = vpack.c.b16 %v2655, %v2647
        %v3296 = vpack.c.b16 %v2656, %v2648
        %v3297 = vpack.c.b16 %v2657, %v2649
        %v3298 = vpack.c.b16 %v2658, %v2650
        %v3299 = vpack.c.b16 %v2659, %v2651
        %v3300 = vpack.c.b16 %v2660, %v2652
        %v3301 = vpack.c.b16 %v2661, %v2653
        %v3302 = vpack.c.b16 %v2670, %v2662
        %v3303 = vpack.c.b16 %v2671, %v2663
        %v3304 = vpack.c.b16 %v2672, %v2664
        %v3305 = vpack.c.b16 %v2673, %v2665
        %v3306 = vpack.c.b16 %v2674, %v2666
        %v3307 = vpack.c.b16 %v2675, %v2667
        %v3308 = vpack.c.b16 %v2676, %v2668
        %v3309 = vpack.c.b16 %v2677, %v2669
        %v3310 = vpack.c.b16 %v2686, %v2678
        %v3311 = vpack.c.b16 %v2687, %v2679
        %v3312 = vpack.c.b16 %v2688, %v2680
        %v3313 = vpack.c.b16 %v2689, %v2681
        %v3314 = vpack.c.b16 %v2690, %v2682
        %v3315 = vpack.c.b16 %v2691, %v2683
        %v3316 = vpack.c.b16 %v2692, %v2684
        %v3317 = vpack.c.b16 %v2693, %v2685
        %v3318 = vpack.c.b16 %v2702, %v2694
        %v3319 = vpack.c.b16 %v2703, %v2695
        %v3320 = vpack.c.b16 %v2704, %v2696
        %v3321 = vpack.c.b16 %v2705, %v2697
        %v3322 = vpack.c.b16 %v2706, %v2698
        %v3323 = vpack.c.b16 %v2707, %v2699
        %v3324 = vpack.c.b16 %v2708, %v2700
        %v3325 = vpack.c.b16 %v2709, %v2701
        %v3326 = vpack.c.b16 %v2718, %v2710
        %v3327 = vpack.c.b16 %v2719, %v2711
        %v3328 = vpack.c.b16 %v2720, %v2712
        %v3329 = vpack.c.b16 %v2721, %v2713
        %v3330 = vpack.c.b16 %v2722, %v2714
        %v3331 = vpack.c.b16 %v2723, %v2715
        %v3332 = vpack.c.b16 %v2724, %v2716
        %v3333 = vpack.c.b16 %v2725, %v2717
        %v3334 = vpack.c.b16 %v2734, %v2726
        %v3335 = vpack.c.b16 %v2735, %v2727
        %v3336 = vpack.c.b16 %v2736, %v2728
        %v3337 = vpack.c.b16 %v2737, %v2729
        %v3338 = vpack.c.b16 %v2738, %v2730
        %v3339 = vpack.c.b16 %v2739, %v2731
        %v3340 = vpack.c.b16 %v2740, %v2732
        %v3341 = vpack.c.b16 %v2741, %v2733
        %v3342 = vpack.c.b16 %v2750, %v2742
        %v3343 = vpack.c.b16 %v2751, %v2743
        %v3344 = vpack.c.b16 %v2752, %v2744
        %v3345 = vpack.c.b16 %v2753, %v2745
        %v3346 = vpack.c.b16 %v2754, %v2746
        %v3347 = vpack.c.b16 %v2755, %v2747
        %v3348 = vpack.c.b16 %v2756, %v2748
        %v3349 = vpack.c.b16 %v2757, %v2749
        %v3350 = vpack.c.b16 %v2766, %v2758
        %v3351 = vpack.c.b16 %v2767, %v2759
        %v3352 = vpack.c.b16 %v2768, %v2760
        %v3353 = vpack.c.b16 %v2769, %v2761
        %v3354 = vpack.c.b16 %v2770, %v2762
        %v3355 = vpack.c.b16 %v2771, %v2763
        %v3356 = vpack.c.b16 %v2772, %v2764
        %v3357 = vpack.c.b16 %v2773, %v2765
        %v3358 = vpack.c.b16 %v2782, %v2774
        %v3359 = vpack.c.b16 %v2783, %v2775
        %v3360 = vpack.c.b16 %v2784, %v2776
        %v3361 = vpack.c.b16 %v2785, %v2777
        %v3362 = vpack.c.b16 %v2786, %v2778
        %v3363 = vpack.c.b16 %v2787, %v2779
        %v3364 = vpack.c.b16 %v2788, %v2780
        %v3365 = vpack.c.b16 %v2789, %v2781
        %v3366 = vpack.c.b16 %v2798, %v2790
        %v3367 = vpack.c.b16 %v2799, %v2791
        %v3368 = vpack.c.b16 %v2800, %v2792
        %v3369 = vpack.c.b16 %v2801, %v2793
        %v3370 = vpack.c.b16 %v2802, %v2794
        %v3371 = vpack.c.b16 %v2803, %v2795
        %v3372 = vpack.c.b16 %v2804, %v2796
        %v3373 = vpack.c.b16 %v2805, %v2797
        %v3374 = vpack.c.b16 %v2814, %v2806
        %v3375 = vpack.c.b16 %v2815, %v2807
        %v3376 = vpack.c.b16 %v2816, %v2808
        %v3377 = vpack.c.b16 %v2817, %v2809
        %v3378 = vpack.c.b16 %v2818, %v2810
        %v3379 = vpack.c.b16 %v2819, %v2811
        %v3380 = vpack.c.b16 %v2820, %v2812
        %v3381 = vpack.c.b16 %v2821, %v2813
        %v3382 = vpack.c.b16 %v2830, %v2822
        %v3383 = vpack.c.b16 %v2831, %v2823
        %v3384 = vpack.c.b16 %v2832, %v2824
        %v3385 = vpack.c.b16 %v2833, %v2825
        %v3386 = vpack.c.b16 %v2834, %v2826
        %v3387 = vpack.c.b16 %v2835, %v2827
        %v3388 = vpack.c.b16 %v2836, %v2828
        %v3389 = vpack.c.b16 %v2837, %v2829
        %v3390 = vpack.c.b16 %v2846, %v2838
        %v3391 = vpack.c.b16 %v2847, %v2839
        %v3392 = vpack.c.b16 %v2848, %v2840
        %v3393 = vpack.c.b16 %v2849, %v2841
        %v3394 = vpack.c.b16 %v2850, %v2842
        %v3395 = vpack.c.b16 %v2851, %v2843
        %v3396 = vpack.c.b16 %v2852, %v2844
        %v3397 = vpack.c.b16 %v2853, %v2845
        %v3398 = vpack.c.b16 %v2862, %v2854
        %v3399 = vpack.c.b16 %v2863, %v2855
        %v3400 = vpack.c.b16 %v2864, %v2856
        %v3401 = vpack.c.b16 %v2865, %v2857
        %v3402 = vpack.c.b16 %v2866, %v2858
        %v3403 = vpack.c.b16 %v2867, %v2859
        %v3404 = vpack.c.b16 %v2868, %v2860
        %v3405 = vpack.c.b16 %v2869, %v2861
        %v3406 = vpack.c.b16 %v2878, %v2870
        %v3407 = vpack.c.b16 %v2879, %v2871
        %v3408 = vpack.c.b16 %v2880, %v2872
        %v3409 = vpack.c.b16 %v2881, %v2873
        %v3410 = vpack.c.b16 %v2882, %v2874
        %v3411 = vpack.c.b16 %v2883, %v2875
        %v3412 = vpack.c.b16 %v2884, %v2876
        %v3413 = vpack.c.b16 %v2885, %v2877
        %v3414 = vpack.c.b16 %v2894, %v2886
        %v3415 = vpack.c.b16 %v2895, %v2887
        %v3416 = vpack.c.b16 %v2896, %v2888
        %v3417 = vpack.c.b16 %v2897, %v2889
        %v3418 = vpack.c.b16 %v2898, %v2890
        %v3419 = vpack.c.b16 %v2899, %v2891
        %v3420 = vpack.c.b16 %v2900, %v2892
        %v3421 = vpack.c.b16 %v2901, %v2893
        %v3422 = vpack.c.b16 %v2910, %v2902
        %v3423 = vpack.c.b16 %v2911, %v2903
        %v3424 = vpack.c.b16 %v2912, %v2904
        %v3425 = vpack.c.b16 %v2913, %v2905
        %v3426 = vpack.c.b16 %v2914, %v2906
        %v3427 = vpack.c.b16 %v2915, %v2907
        %v3428 = vpack.c.b16 %v2916, %v2908
        %v3429 = vpack.c.b16 %v2917, %v2909
        %3942 = vmatprep.subr.bf16.mxu0 %v2919
        %3943 = vmatpush1.bf16.msra.mxu0 %v2918
        %3944 = vmatprep.subr.bf16.mxu0 %v2927
        %3945 = vmatpush1.bf16.msra.mxu0 %v2926
        %3946 = vmatprep.subr.bf16.mxu0 %v2935
        %3947 = vmatpush1.bf16.msra.mxu0 %v2934
        %3948 = vmatprep.subr.bf16.mxu0 %v2943
        %3949 = vmatpush1.bf16.msra.mxu0 %v2942
        %3950 = vmatprep.subr.bf16.mxu0 %v2951
        %3951 = vmatpush1.bf16.msra.mxu0 %v2950
        %3952 = vmatprep.subr.bf16.mxu0 %v2959
        %3953 = vmatpush1.bf16.msra.mxu0 %v2958
        %3954 = vmatprep.subr.bf16.mxu0 %v2967
        %3955 = vmatpush1.bf16.msra.mxu0 %v2966
        %3956 = vmatprep.subr.bf16.mxu0 %v2975
        %3957 = vmatpush1.bf16.msra.mxu0 %v2974
        %3958 = vmatprep.subr.bf16.mxu0 %v2983
        %3959 = vmatpush1.bf16.msra.mxu0 %v2982
        %3960 = vmatprep.subr.bf16.mxu0 %v2991
        %3961 = vmatpush1.bf16.msra.mxu0 %v2990
        %3962 = vmatprep.subr.bf16.mxu0 %v2999
        %3963 = vmatpush1.bf16.msra.mxu0 %v2998
        %3964 = vmatprep.subr.bf16.mxu0 %v3007
        %3965 = vmatpush1.bf16.msra.mxu0 %v3006
        %3966 = vmatprep.subr.bf16.mxu0 %v3015
        %3967 = vmatpush1.bf16.msra.mxu0 %v3014
        %3968 = vmatprep.subr.bf16.mxu0 %v3023
        %3969 = vmatpush1.bf16.msra.mxu0 %v3022
        %3970 = vmatprep.subr.bf16.mxu0 %v3031
        %3971 = vmatpush1.bf16.msra.mxu0 %v3030
        %3972 = vmatprep.subr.bf16.mxu0 %v3039
        %3973 = vmatpush1.bf16.msra.mxu0 %v3038
        %3974 = vmatprep.mubr.bf16.mxu0 %v821
        %3975 = vmatmul.mubr.bf16.gmra.mrb[0].mxu0 %v820
        %v3976 = vpop.f32.mrb[0].mxu0
        %v3977 = vadd.f32 %v1345, %v3976
        %v3978 = vpop.f32.mrb[0].mxu0
        %v3979 = vadd.f32 %v1349, %v3978
        %v3980 = vpop.f32.mrb[0].mxu0
        %v3981 = vpop.f32.mrb[0].mxu0
        %3982 = vdwg.mxu0
        %3983 = vmatprep.subr.bf16.mxu0 %v3047
        %3984 = vmatpush1.bf16.msra.mxu0 %v3046
        %3985 = vmatprep.subr.bf16.mxu0 %v3055
        %3986 = vmatpush1.bf16.msra.mxu0 %v3054
        %3987 = vmatprep.subr.bf16.mxu0 %v3063
        %3988 = vmatpush1.bf16.msra.mxu0 %v3062
        %3989 = vmatprep.subr.bf16.mxu0 %v3071
        %3990 = vmatpush1.bf16.msra.mxu0 %v3070
        %3991 = vmatprep.subr.bf16.mxu0 %v3079
        %3992 = vmatpush1.bf16.msra.mxu0 %v3078
        %3993 = vmatprep.subr.bf16.mxu0 %v3087
        %3994 = vmatpush1.bf16.msra.mxu0 %v3086
        %3995 = vmatprep.subr.bf16.mxu0 %v3095
        %3996 = vmatpush1.bf16.msra.mxu0 %v3094
        %3997 = vmatprep.subr.bf16.mxu0 %v3103
        %3998 = vmatpush1.bf16.msra.mxu0 %v3102
        %3999 = vmatprep.subr.bf16.mxu0 %v3111
        %4000 = vmatpush1.bf16.msra.mxu0 %v3110
        %4001 = vmatprep.subr.bf16.mxu0 %v3119
        %4002 = vmatpush1.bf16.msra.mxu0 %v3118
        %4003 = vmatprep.subr.bf16.mxu0 %v3127
        %4004 = vmatpush1.bf16.msra.mxu0 %v3126
        %4005 = vmatprep.subr.bf16.mxu0 %v3135
        %4006 = vmatpush1.bf16.msra.mxu0 %v3134
        %4007 = vmatprep.subr.bf16.mxu0 %v3143
        %4008 = vmatpush1.bf16.msra.mxu0 %v3142
        %4009 = vmatprep.subr.bf16.mxu0 %v3151
        %4010 = vmatpush1.bf16.msra.mxu0 %v3150
        %4011 = vmatprep.subr.bf16.mxu0 %v3159
        %4012 = vmatpush1.bf16.msra.mxu0 %v3158
        %4013 = vmatprep.subr.bf16.mxu0 %v3167
        %4014 = vmatpush1.bf16.msra.mxu0 %v3166
        %4015 = vmatprep.mubr.bf16.mxu0 %v823
        %4016 = vmatmul.mubr.bf16.gmra.mrb[0].mxu0 %v822
        %v4017 = vpop.f32.mrb[0].mxu0
        %v4018 = vadd.f32 %v3977, %v4017
        %v4019 = vpop.f32.mrb[0].mxu0
        %v4020 = vadd.f32 %v3979, %v4019
        %v4021 = vpop.f32.mrb[0].mxu0
        %v4022 = vpop.f32.mrb[0].mxu0
        %4023 = vdwg.mxu0
        %4024 = vmatprep.subr.bf16.mxu0 %v3175
        %4025 = vmatpush1.bf16.msra.mxu0 %v3174
        %4026 = vmatprep.subr.bf16.mxu0 %v3183
        %4027 = vmatpush1.bf16.msra.mxu0 %v3182
        %4028 = vmatprep.subr.bf16.mxu0 %v3191
        %4029 = vmatpush1.bf16.msra.mxu0 %v3190
        %4030 = vmatprep.subr.bf16.mxu0 %v3199
        %4031 = vmatpush1.bf16.msra.mxu0 %v3198
        %4032 = vmatprep.subr.bf16.mxu0 %v3207
        %4033 = vmatpush1.bf16.msra.mxu0 %v3206
        %4034 = vmatprep.subr.bf16.mxu0 %v3215
        %4035 = vmatpush1.bf16.msra.mxu0 %v3214
        %4036 = vmatprep.subr.bf16.mxu0 %v3223
        %4037 = vmatpush1.bf16.msra.mxu0 %v3222
        %4038 = vmatprep.subr.bf16.mxu0 %v3231
        %4039 = vmatpush1.bf16.msra.mxu0 %v3230
        %4040 = vmatprep.subr.bf16.mxu0 %v3239
        %4041 = vmatpush1.bf16.msra.mxu0 %v3238
        %4042 = vmatprep.subr.bf16.mxu0 %v3247
        %4043 = vmatpush1.bf16.msra.mxu0 %v3246
        %4044 = vmatprep.subr.bf16.mxu0 %v3255
        %4045 = vmatpush1.bf16.msra.mxu0 %v3254
        %4046 = vmatprep.subr.bf16.mxu0 %v3263
        %4047 = vmatpush1.bf16.msra.mxu0 %v3262
        %4048 = vmatprep.subr.bf16.mxu0 %v3271
        %4049 = vmatpush1.bf16.msra.mxu0 %v3270
        %4050 = vmatprep.subr.bf16.mxu0 %v3279
        %4051 = vmatpush1.bf16.msra.mxu0 %v3278
        %4052 = vmatprep.subr.bf16.mxu0 %v3287
        %4053 = vmatpush1.bf16.msra.mxu0 %v3286
        %4054 = vmatprep.subr.bf16.mxu0 %v3295
        %4055 = vmatpush1.bf16.msra.mxu0 %v3294
        %4056 = vmatprep.mubr.bf16.mxu0 %v825
        %4057 = vmatmul.mubr.bf16.gmra.mrb[0].mxu0 %v824
        %v4058 = vpop.f32.mrb[0].mxu0
        %v4059 = vadd.f32 %v4018, %v4058
        %v4060 = vpop.f32.mrb[0].mxu0
        %v4061 = vadd.f32 %v4020, %v4060
        %v4062 = vpop.f32.mrb[0].mxu0
        %v4063 = vpop.f32.mrb[0].mxu0
        %4064 = vdwg.mxu0
        %4065 = vmatprep.subr.bf16.mxu0 %v3303
        %4066 = vmatpush1.bf16.msra.mxu0 %v3302
        %4067 = vmatprep.subr.bf16.mxu0 %v3311
        %4068 = vmatpush1.bf16.msra.mxu0 %v3310
        %4069 = vmatprep.subr.bf16.mxu0 %v3319
        %4070 = vmatpush1.bf16.msra.mxu0 %v3318
        %4071 = vmatprep.subr.bf16.mxu0 %v3327
        %4072 = vmatpush1.bf16.msra.mxu0 %v3326
        %4073 = vmatprep.subr.bf16.mxu0 %v3335
        %4074 = vmatpush1.bf16.msra.mxu0 %v3334
        %4075 = vmatprep.subr.bf16.mxu0 %v3343
        %4076 = vmatpush1.bf16.msra.mxu0 %v3342
        %4077 = vmatprep.subr.bf16.mxu0 %v3351
        %4078 = vmatpush1.bf16.msra.mxu0 %v3350
        %4079 = vmatprep.subr.bf16.mxu0 %v3359
        %4080 = vmatpush1.bf16.msra.mxu0 %v3358
        %4081 = vmatprep.subr.bf16.mxu0 %v3367
        %4082 = vmatpush1.bf16.msra.mxu0 %v3366
        %4083 = vmatprep.subr.bf16.mxu0 %v3375
        %4084 = vmatpush1.bf16.msra.mxu0 %v3374
        %4085 = vmatprep.subr.bf16.mxu0 %v3383
        %4086 = vmatpush1.bf16.msra.mxu0 %v3382
        %4087 = vmatprep.subr.bf16.mxu0 %v3391
        %4088 = vmatpush1.bf16.msra.mxu0 %v3390
        %4089 = vmatprep.subr.bf16.mxu0 %v3399
        %4090 = vmatpush1.bf16.msra.mxu0 %v3398
        %4091 = vmatprep.subr.bf16.mxu0 %v3407
        %4092 = vmatpush1.bf16.msra.mxu0 %v3406
        %4093 = vmatprep.subr.bf16.mxu0 %v3415
        %4094 = vmatpush1.bf16.msra.mxu0 %v3414
        %4095 = vmatprep.subr.bf16.mxu0 %v3423
        %4096 = vmatpush1.bf16.msra.mxu0 %v3422
        %4097 = vmatprep.mubr.bf16.mxu0 %v827
        %4098 = vmatmul.mubr.bf16.gmra.mrb[0].mxu0 %v826
        %v4099 = vpop.f32.mrb[0].mxu0
        %v4100 = vadd.f32 %v4059, %v4099
        %v4101 = vpop.f32.mrb[0].mxu0
        %v4102 = vadd.f32 %v4061, %v4101
        %v4103 = vpop.f32.mrb[0].mxu0
        %v4104 = vpop.f32.mrb[0].mxu0
        %4105 = vdwg.mxu0
        %4106 = vmatprep.subr.bf16.mxu0 %v2921
        %4107 = vmatpush1.bf16.msra.mxu0 %v2920
        %4108 = vmatprep.subr.bf16.mxu0 %v2929
        %4109 = vmatpush1.bf16.msra.mxu0 %v2928
        %4110 = vmatprep.subr.bf16.mxu0 %v2937
        %4111 = vmatpush1.bf16.msra.mxu0 %v2936
        %4112 = vmatprep.subr.bf16.mxu0 %v2945
        %4113 = vmatpush1.bf16.msra.mxu0 %v2944
        %4114 = vmatprep.subr.bf16.mxu0 %v2953
        %4115 = vmatpush1.bf16.msra.mxu0 %v2952
        %4116 = vmatprep.subr.bf16.mxu0 %v2961
        %4117 = vmatpush1.bf16.msra.mxu0 %v2960
        %4118 = vmatprep.subr.bf16.mxu0 %v2969
        %4119 = vmatpush1.bf16.msra.mxu0 %v2968
        %4120 = vmatprep.subr.bf16.mxu0 %v2977
        %4121 = vmatpush1.bf16.msra.mxu0 %v2976
        %4122 = vmatprep.subr.bf16.mxu0 %v2985
        %4123 = vmatpush1.bf16.msra.mxu0 %v2984
        %4124 = vmatprep.subr.bf16.mxu0 %v2993
        %4125 = vmatpush1.bf16.msra.mxu0 %v2992
        %4126 = vmatprep.subr.bf16.mxu0 %v3001
        %4127 = vmatpush1.bf16.msra.mxu0 %v3000
        %4128 = vmatprep.subr.bf16.mxu0 %v3009
        %4129 = vmatpush1.bf16.msra.mxu0 %v3008
        %4130 = vmatprep.subr.bf16.mxu0 %v3017
        %4131 = vmatpush1.bf16.msra.mxu0 %v3016
        %4132 = vmatprep.subr.bf16.mxu0 %v3025
        %4133 = vmatpush1.bf16.msra.mxu0 %v3024
        %4134 = vmatprep.subr.bf16.mxu0 %v3033
        %4135 = vmatpush1.bf16.msra.mxu0 %v3032
        %4136 = vmatprep.subr.bf16.mxu0 %v3041
        %4137 = vmatpush1.bf16.msra.mxu0 %v3040
        %4138 = vmatprep.mubr.bf16.mxu0 %v821
        %4139 = vmatmul.mubr.bf16.gmra.mrb[0].mxu0 %v820
        %v4140 = vpop.f32.mrb[0].mxu0
        %v4141 = vadd.f32 %v1353, %v4140
        %v4142 = vpop.f32.mrb[0].mxu0
        %v4143 = vadd.f32 %v1357, %v4142
        %v4144 = vpop.f32.mrb[0].mxu0
        %v4145 = vpop.f32.mrb[0].mxu0
        %4146 = vdwg.mxu0
        %4147 = vmatprep.subr.bf16.mxu0 %v3049
        %4148 = vmatpush1.bf16.msra.mxu0 %v3048
        %4149 = vmatprep.subr.bf16.mxu0 %v3057
        %4150 = vmatpush1.bf16.msra.mxu0 %v3056
        %4151 = vmatprep.subr.bf16.mxu0 %v3065
        %4152 = vmatpush1.bf16.msra.mxu0 %v3064
        %4153 = vmatprep.subr.bf16.mxu0 %v3073
        %4154 = vmatpush1.bf16.msra.mxu0 %v3072
        %4155 = vmatprep.subr.bf16.mxu0 %v3081
        %4156 = vmatpush1.bf16.msra.mxu0 %v3080
        %4157 = vmatprep.subr.bf16.mxu0 %v3089
        %4158 = vmatpush1.bf16.msra.mxu0 %v3088
        %4159 = vmatprep.subr.bf16.mxu0 %v3097
        %4160 = vmatpush1.bf16.msra.mxu0 %v3096
        %4161 = vmatprep.subr.bf16.mxu0 %v3105
        %4162 = vmatpush1.bf16.msra.mxu0 %v3104
        %4163 = vmatprep.subr.bf16.mxu0 %v3113
        %4164 = vmatpush1.bf16.msra.mxu0 %v3112
        %4165 = vmatprep.subr.bf16.mxu0 %v3121
        %4166 = vmatpush1.bf16.msra.mxu0 %v3120
        %4167 = vmatprep.subr.bf16.mxu0 %v3129
        %4168 = vmatpush1.bf16.msra.mxu0 %v3128
        %4169 = vmatprep.subr.bf16.mxu0 %v3137
        %4170 = vmatpush1.bf16.msra.mxu0 %v3136
        %4171 = vmatprep.subr.bf16.mxu0 %v3145
        %4172 = vmatpush1.bf16.msra.mxu0 %v3144
        %4173 = vmatprep.subr.bf16.mxu0 %v3153
        %4174 = vmatpush1.bf16.msra.mxu0 %v3152
        %4175 = vmatprep.subr.bf16.mxu0 %v3161
        %4176 = vmatpush1.bf16.msra.mxu0 %v3160
        %4177 = vmatprep.subr.bf16.mxu0 %v3169
        %4178 = vmatpush1.bf16.msra.mxu0 %v3168
        %4179 = vmatprep.mubr.bf16.mxu0 %v823
        %4180 = vmatmul.mubr.bf16.gmra.mrb[0].mxu0 %v822
        %v4181 = vpop.f32.mrb[0].mxu0
        %v4182 = vadd.f32 %v4141, %v4181
        %v4183 = vpop.f32.mrb[0].mxu0
        %v4184 = vadd.f32 %v4143, %v4183
        %v4185 = vpop.f32.mrb[0].mxu0
        %v4186 = vpop.f32.mrb[0].mxu0
        %4187 = vdwg.mxu0
        %4188 = vmatprep.subr.bf16.mxu0 %v3177
        %4189 = vmatpush1.bf16.msra.mxu0 %v3176
        %4190 = vmatprep.subr.bf16.mxu0 %v3185
        %4191 = vmatpush1.bf16.msra.mxu0 %v3184
        %4192 = vmatprep.subr.bf16.mxu0 %v3193
        %4193 = vmatpush1.bf16.msra.mxu0 %v3192
        %4194 = vmatprep.subr.bf16.mxu0 %v3201
        %4195 = vmatpush1.bf16.msra.mxu0 %v3200
        %4196 = vmatprep.subr.bf16.mxu0 %v3209
        %4197 = vmatpush1.bf16.msra.mxu0 %v3208
        %4198 = vmatprep.subr.bf16.mxu0 %v3217
        %4199 = vmatpush1.bf16.msra.mxu0 %v3216
        %4200 = vmatprep.subr.bf16.mxu0 %v3225
        %4201 = vmatpush1.bf16.msra.mxu0 %v3224
        %4202 = vmatprep.subr.bf16.mxu0 %v3233
        %4203 = vmatpush1.bf16.msra.mxu0 %v3232
        %4204 = vmatprep.subr.bf16.mxu0 %v3241
        %4205 = vmatpush1.bf16.msra.mxu0 %v3240
        %4206 = vmatprep.subr.bf16.mxu0 %v3249
        %4207 = vmatpush1.bf16.msra.mxu0 %v3248
        %4208 = vmatprep.subr.bf16.mxu0 %v3257
        %4209 = vmatpush1.bf16.msra.mxu0 %v3256
        %4210 = vmatprep.subr.bf16.mxu0 %v3265
        %4211 = vmatpush1.bf16.msra.mxu0 %v3264
        %4212 = vmatprep.subr.bf16.mxu0 %v3273
        %4213 = vmatpush1.bf16.msra.mxu0 %v3272
        %4214 = vmatprep.subr.bf16.mxu0 %v3281
        %4215 = vmatpush1.bf16.msra.mxu0 %v3280
        %4216 = vmatprep.subr.bf16.mxu0 %v3289
        %4217 = vmatpush1.bf16.msra.mxu0 %v3288
        %4218 = vmatprep.subr.bf16.mxu0 %v3297
        %4219 = vmatpush1.bf16.msra.mxu0 %v3296
        %4220 = vmatprep.mubr.bf16.mxu0 %v825
        %4221 = vmatmul.mubr.bf16.gmra.mrb[0].mxu0 %v824
        %v4222 = vpop.f32.mrb[0].mxu0
        %v4223 = vadd.f32 %v4182, %v4222
        %v4224 = vpop.f32.mrb[0].mxu0
        %v4225 = vadd.f32 %v4184, %v4224
        %v4226 = vpop.f32.mrb[0].mxu0
        %v4227 = vpop.f32.mrb[0].mxu0
        %4228 = vdwg.mxu0
        %4229 = vmatprep.subr.bf16.mxu0 %v3305
        %4230 = vmatpush1.bf16.msra.mxu0 %v3304
        %4231 = vmatprep.subr.bf16.mxu0 %v3313
        %4232 = vmatpush1.bf16.msra.mxu0 %v3312
        %4233 = vmatprep.subr.bf16.mxu0 %v3321
        %4234 = vmatpush1.bf16.msra.mxu0 %v3320
        %4235 = vmatprep.subr.bf16.mxu0 %v3329
        %4236 = vmatpush1.bf16.msra.mxu0 %v3328
        %4237 = vmatprep.subr.bf16.mxu0 %v3337
        %4238 = vmatpush1.bf16.msra.mxu0 %v3336
        %4239 = vmatprep.subr.bf16.mxu0 %v3345
        %4240 = vmatpush1.bf16.msra.mxu0 %v3344
        %4241 = vmatprep.subr.bf16.mxu0 %v3353
        %4242 = vmatpush1.bf16.msra.mxu0 %v3352
        %4243 = vmatprep.subr.bf16.mxu0 %v3361
        %4244 = vmatpush1.bf16.msra.mxu0 %v3360
        %4245 = vmatprep.subr.bf16.mxu0 %v3369
        %4246 = vmatpush1.bf16.msra.mxu0 %v3368
        %4247 = vmatprep.subr.bf16.mxu0 %v3377
        %4248 = vmatpush1.bf16.msra.mxu0 %v3376
        %4249 = vmatprep.subr.bf16.mxu0 %v3385
        %4250 = vmatpush1.bf16.msra.mxu0 %v3384
        %4251 = vmatprep.subr.bf16.mxu0 %v3393
        %4252 = vmatpush1.bf16.msra.mxu0 %v3392
        %4253 = vmatprep.subr.bf16.mxu0 %v3401
        %4254 = vmatpush1.bf16.msra.mxu0 %v3400
        %4255 = vmatprep.subr.bf16.mxu0 %v3409
        %4256 = vmatpush1.bf16.msra.mxu0 %v3408
        %4257 = vmatprep.subr.bf16.mxu0 %v3417
        %4258 = vmatpush1.bf16.msra.mxu0 %v3416
        %4259 = vmatprep.subr.bf16.mxu0 %v3425
        %4260 = vmatpush1.bf16.msra.mxu0 %v3424
        %4261 = vmatprep.mubr.bf16.mxu0 %v827
        %4262 = vmatmul.mubr.bf16.gmra.mrb[0].mxu0 %v826
        %v4263 = vpop.f32.mrb[0].mxu0
        %v4264 = vadd.f32 %v4223, %v4263
        %v4265 = vpop.f32.mrb[0].mxu0
        %v4266 = vadd.f32 %v4225, %v4265
        %v4267 = vpop.f32.mrb[0].mxu0
        %v4268 = vpop.f32.mrb[0].mxu0
        %4269 = vdwg.mxu0
        %4270 = vmatprep.subr.bf16.mxu0 %v2923
        %4271 = vmatpush1.bf16.msra.mxu0 %v2922
        %4272 = vmatprep.subr.bf16.mxu0 %v2931
        %4273 = vmatpush1.bf16.msra.mxu0 %v2930
        %4274 = vmatprep.subr.bf16.mxu0 %v2939
        %4275 = vmatpush1.bf16.msra.mxu0 %v2938
        %4276 = vmatprep.subr.bf16.mxu0 %v2947
        %4277 = vmatpush1.bf16.msra.mxu0 %v2946
        %4278 = vmatprep.subr.bf16.mxu0 %v2955
        %4279 = vmatpush1.bf16.msra.mxu0 %v2954
        %4280 = vmatprep.subr.bf16.mxu0 %v2963
        %4281 = vmatpush1.bf16.msra.mxu0 %v2962
        %4282 = vmatprep.subr.bf16.mxu0 %v2971
        %4283 = vmatpush1.bf16.msra.mxu0 %v2970
        %4284 = vmatprep.subr.bf16.mxu0 %v2979
        %4285 = vmatpush1.bf16.msra.mxu0 %v2978
        %4286 = vmatprep.subr.bf16.mxu0 %v2987
        %4287 = vmatpush1.bf16.msra.mxu0 %v2986
        %4288 = vmatprep.subr.bf16.mxu0 %v2995
        %4289 = vmatpush1.bf16.msra.mxu0 %v2994
        %4290 = vmatprep.subr.bf16.mxu0 %v3003
        %4291 = vmatpush1.bf16.msra.mxu0 %v3002
        %4292 = vmatprep.subr.bf16.mxu0 %v3011
        %4293 = vmatpush1.bf16.msra.mxu0 %v3010
        %4294 = vmatprep.subr.bf16.mxu0 %v3019
        %4295 = vmatpush1.bf16.msra.mxu0 %v3018
        %4296 = vmatprep.subr.bf16.mxu0 %v3027
        %4297 = vmatpush1.bf16.msra.mxu0 %v3026
        %4298 = vmatprep.subr.bf16.mxu0 %v3035
        %4299 = vmatpush1.bf16.msra.mxu0 %v3034
        %4300 = vmatprep.subr.bf16.mxu0 %v3043
        %4301 = vmatpush1.bf16.msra.mxu0 %v3042
        %4302 = vmatprep.mubr.bf16.mxu0 %v821
        %4303 = vmatmul.mubr.bf16.gmra.mrb[0].mxu0 %v820
        %v4304 = vpop.f32.mrb[0].mxu0
        %v4305 = vadd.f32 %v1361, %v4304
        %v4306 = vpop.f32.mrb[0].mxu0
        %v4307 = vadd.f32 %v1365, %v4306
        %v4308 = vpop.f32.mrb[0].mxu0
        %v4309 = vpop.f32.mrb[0].mxu0
        %4310 = vdwg.mxu0
        %4311 = vmatprep.subr.bf16.mxu0 %v3051
        %4312 = vmatpush1.bf16.msra.mxu0 %v3050
        %4313 = vmatprep.subr.bf16.mxu0 %v3059
        %4314 = vmatpush1.bf16.msra.mxu0 %v3058
        %4315 = vmatprep.subr.bf16.mxu0 %v3067
        %4316 = vmatpush1.bf16.msra.mxu0 %v3066
        %4317 = vmatprep.subr.bf16.mxu0 %v3075
        %4318 = vmatpush1.bf16.msra.mxu0 %v3074
        %4319 = vmatprep.subr.bf16.mxu0 %v3083
        %4320 = vmatpush1.bf16.msra.mxu0 %v3082
        %4321 = vmatprep.subr.bf16.mxu0 %v3091
        %4322 = vmatpush1.bf16.msra.mxu0 %v3090
        %4323 = vmatprep.subr.bf16.mxu0 %v3099
        %4324 = vmatpush1.bf16.msra.mxu0 %v3098
        %4325 = vmatprep.subr.bf16.mxu0 %v3107
        %4326 = vmatpush1.bf16.msra.mxu0 %v3106
        %4327 = vmatprep.subr.bf16.mxu0 %v3115
        %4328 = vmatpush1.bf16.msra.mxu0 %v3114
        %4329 = vmatprep.subr.bf16.mxu0 %v3123
        %4330 = vmatpush1.bf16.msra.mxu0 %v3122
        %4331 = vmatprep.subr.bf16.mxu0 %v3131
        %4332 = vmatpush1.bf16.msra.mxu0 %v3130
        %4333 = vmatprep.subr.bf16.mxu0 %v3139
        %4334 = vmatpush1.bf16.msra.mxu0 %v3138
        %4335 = vmatprep.subr.bf16.mxu0 %v3147
        %4336 = vmatpush1.bf16.msra.mxu0 %v3146
        %4337 = vmatprep.subr.bf16.mxu0 %v3155
        %4338 = vmatpush1.bf16.msra.mxu0 %v3154
        %4339 = vmatprep.subr.bf16.mxu0 %v3163
        %4340 = vmatpush1.bf16.msra.mxu0 %v3162
        %4341 = vmatprep.subr.bf16.mxu0 %v3171
        %4342 = vmatpush1.bf16.msra.mxu0 %v3170
        %4343 = vmatprep.mubr.bf16.mxu0 %v823
        %4344 = vmatmul.mubr.bf16.gmra.mrb[0].mxu0 %v822
        %v4345 = vpop.f32.mrb[0].mxu0
        %v4346 = vadd.f32 %v4305, %v4345
        %v4347 = vpop.f32.mrb[0].mxu0
        %v4348 = vadd.f32 %v4307, %v4347
        %v4349 = vpop.f32.mrb[0].mxu0
        %v4350 = vpop.f32.mrb[0].mxu0
        %4351 = vdwg.mxu0
        %4352 = vmatprep.subr.bf16.mxu0 %v3179
        %4353 = vmatpush1.bf16.msra.mxu0 %v3178
        %4354 = vmatprep.subr.bf16.mxu0 %v3187
        %4355 = vmatpush1.bf16.msra.mxu0 %v3186
        %4356 = vmatprep.subr.bf16.mxu0 %v3195
        %4357 = vmatpush1.bf16.msra.mxu0 %v3194
        %4358 = vmatprep.subr.bf16.mxu0 %v3203
        %4359 = vmatpush1.bf16.msra.mxu0 %v3202
        %4360 = vmatprep.subr.bf16.mxu0 %v3211
        %4361 = vmatpush1.bf16.msra.mxu0 %v3210
        %4362 = vmatprep.subr.bf16.mxu0 %v3219
        %4363 = vmatpush1.bf16.msra.mxu0 %v3218
        %4364 = vmatprep.subr.bf16.mxu0 %v3227
        %4365 = vmatpush1.bf16.msra.mxu0 %v3226
        %4366 = vmatprep.subr.bf16.mxu0 %v3235
        %4367 = vmatpush1.bf16.msra.mxu0 %v3234
        %4368 = vmatprep.subr.bf16.mxu0 %v3243
        %4369 = vmatpush1.bf16.msra.mxu0 %v3242
        %4370 = vmatprep.subr.bf16.mxu0 %v3251
        %4371 = vmatpush1.bf16.msra.mxu0 %v3250
        %4372 = vmatprep.subr.bf16.mxu0 %v3259
        %4373 = vmatpush1.bf16.msra.mxu0 %v3258
        %4374 = vmatprep.subr.bf16.mxu0 %v3267
        %4375 = vmatpush1.bf16.msra.mxu0 %v3266
        %4376 = vmatprep.subr.bf16.mxu0 %v3275
        %4377 = vmatpush1.bf16.msra.mxu0 %v3274
        %4378 = vmatprep.subr.bf16.mxu0 %v3283
        %4379 = vmatpush1.bf16.msra.mxu0 %v3282
        %4380 = vmatprep.subr.bf16.mxu0 %v3291
        %4381 = vmatpush1.bf16.msra.mxu0 %v3290
        %4382 = vmatprep.subr.bf16.mxu0 %v3299
        %4383 = vmatpush1.bf16.msra.mxu0 %v3298
        %4384 = vmatprep.mubr.bf16.mxu0 %v825
        %4385 = vmatmul.mubr.bf16.gmra.mrb[0].mxu0 %v824
        %v4386 = vpop.f32.mrb[0].mxu0
        %v4387 = vadd.f32 %v4346, %v4386
        %v4388 = vpop.f32.mrb[0].mxu0
        %v4389 = vadd.f32 %v4348, %v4388
        %v4390 = vpop.f32.mrb[0].mxu0
        %v4391 = vpop.f32.mrb[0].mxu0
        %4392 = vdwg.mxu0
        %4393 = vmatprep.subr.bf16.mxu0 %v3307
        %4394 = vmatpush1.bf16.msra.mxu0 %v3306
        %4395 = vmatprep.subr.bf16.mxu0 %v3315
        %4396 = vmatpush1.bf16.msra.mxu0 %v3314
        %4397 = vmatprep.subr.bf16.mxu0 %v3323
        %4398 = vmatpush1.bf16.msra.mxu0 %v3322
        %4399 = vmatprep.subr.bf16.mxu0 %v3331
        %4400 = vmatpush1.bf16.msra.mxu0 %v3330
        %4401 = vmatprep.subr.bf16.mxu0 %v3339
        %4402 = vmatpush1.bf16.msra.mxu0 %v3338
        %4403 = vmatprep.subr.bf16.mxu0 %v3347
        %4404 = vmatpush1.bf16.msra.mxu0 %v3346
        %4405 = vmatprep.subr.bf16.mxu0 %v3355
        %4406 = vmatpush1.bf16.msra.mxu0 %v3354
        %4407 = vmatprep.subr.bf16.mxu0 %v3363
        %4408 = vmatpush1.bf16.msra.mxu0 %v3362
        %4409 = vmatprep.subr.bf16.mxu0 %v3371
        %4410 = vmatpush1.bf16.msra.mxu0 %v3370
        %4411 = vmatprep.subr.bf16.mxu0 %v3379
        %4412 = vmatpush1.bf16.msra.mxu0 %v3378
        %4413 = vmatprep.subr.bf16.mxu0 %v3387
        %4414 = vmatpush1.bf16.msra.mxu0 %v3386
        %4415 = vmatprep.subr.bf16.mxu0 %v3395
        %4416 = vmatpush1.bf16.msra.mxu0 %v3394
        %4417 = vmatprep.subr.bf16.mxu0 %v3403
        %4418 = vmatpush1.bf16.msra.mxu0 %v3402
        %4419 = vmatprep.subr.bf16.mxu0 %v3411
        %4420 = vmatpush1.bf16.msra.mxu0 %v3410
        %4421 = vmatprep.subr.bf16.mxu0 %v3419
        %4422 = vmatpush1.bf16.msra.mxu0 %v3418
        %4423 = vmatprep.subr.bf16.mxu0 %v3427
        %4424 = vmatpush1.bf16.msra.mxu0 %v3426
        %4425 = vmatprep.mubr.bf16.mxu0 %v827
        %4426 = vmatmul.mubr.bf16.gmra.mrb[0].mxu0 %v826
        %v4427 = vpop.f32.mrb[0].mxu0
        %v4428 = vadd.f32 %v4387, %v4427
        %v4429 = vpop.f32.mrb[0].mxu0
        %v4430 = vadd.f32 %v4389, %v4429
        %v4431 = vpop.f32.mrb[0].mxu0
        %v4432 = vpop.f32.mrb[0].mxu0
        %4433 = vdwg.mxu0
        %4434 = vmatprep.subr.bf16.mxu0 %v2925
        %4435 = vmatpush1.bf16.msra.mxu0 %v2924
        %4436 = vmatprep.subr.bf16.mxu0 %v2933
        %4437 = vmatpush1.bf16.msra.mxu0 %v2932
        %4438 = vmatprep.subr.bf16.mxu0 %v2941
        %4439 = vmatpush1.bf16.msra.mxu0 %v2940
        %4440 = vmatprep.subr.bf16.mxu0 %v2949
        %4441 = vmatpush1.bf16.msra.mxu0 %v2948
        %4442 = vmatprep.subr.bf16.mxu0 %v2957
        %4443 = vmatpush1.bf16.msra.mxu0 %v2956
        %4444 = vmatprep.subr.bf16.mxu0 %v2965
        %4445 = vmatpush1.bf16.msra.mxu0 %v2964
        %4446 = vmatprep.subr.bf16.mxu0 %v2973
        %4447 = vmatpush1.bf16.msra.mxu0 %v2972
        %4448 = vmatprep.subr.bf16.mxu0 %v2981
        %4449 = vmatpush1.bf16.msra.mxu0 %v2980
        %4450 = vmatprep.subr.bf16.mxu0 %v2989
        %4451 = vmatpush1.bf16.msra.mxu0 %v2988
        %4452 = vmatprep.subr.bf16.mxu0 %v2997
        %4453 = vmatpush1.bf16.msra.mxu0 %v2996
        %4454 = vmatprep.subr.bf16.mxu0 %v3005
        %4455 = vmatpush1.bf16.msra.mxu0 %v3004
        %4456 = vmatprep.subr.bf16.mxu0 %v3013
        %4457 = vmatpush1.bf16.msra.mxu0 %v3012
        %4458 = vmatprep.subr.bf16.mxu0 %v3021
        %4459 = vmatpush1.bf16.msra.mxu0 %v3020
        %4460 = vmatprep.subr.bf16.mxu0 %v3029
        %4461 = vmatpush1.bf16.msra.mxu0 %v3028
        %4462 = vmatprep.subr.bf16.mxu0 %v3037
        %4463 = vmatpush1.bf16.msra.mxu0 %v3036
        %4464 = vmatprep.subr.bf16.mxu0 %v3045
        %4465 = vmatpush1.bf16.msra.mxu0 %v3044
        %4466 = vmatprep.mubr.bf16.mxu0 %v821
        %4467 = vmatmul.mubr.bf16.gmra.mrb[0].mxu0 %v820
        %v4468 = vpop.f32.mrb[0].mxu0
        %v4469 = vadd.f32 %v1369, %v4468
        %v4470 = vpop.f32.mrb[0].mxu0
        %v4471 = vadd.f32 %v1373, %v4470
        %v4472 = vpop.f32.mrb[0].mxu0
        %v4473 = vpop.f32.mrb[0].mxu0
        %4474 = vdwg.mxu0
        %4475 = vmatprep.subr.bf16.mxu0 %v3053
        %4476 = vmatpush1.bf16.msra.mxu0 %v3052
        %4477 = vmatprep.subr.bf16.mxu0 %v3061
        %4478 = vmatpush1.bf16.msra.mxu0 %v3060
        %4479 = vmatprep.subr.bf16.mxu0 %v3069
        %4480 = vmatpush1.bf16.msra.mxu0 %v3068
        %4481 = vmatprep.subr.bf16.mxu0 %v3077
        %4482 = vmatpush1.bf16.msra.mxu0 %v3076
        %4483 = vmatprep.subr.bf16.mxu0 %v3085
        %4484 = vmatpush1.bf16.msra.mxu0 %v3084
        %4485 = vmatprep.subr.bf16.mxu0 %v3093
        %4486 = vmatpush1.bf16.msra.mxu0 %v3092
        %4487 = vmatprep.subr.bf16.mxu0 %v3101
        %4488 = vmatpush1.bf16.msra.mxu0 %v3100
        %4489 = vmatprep.subr.bf16.mxu0 %v3109
        %4490 = vmatpush1.bf16.msra.mxu0 %v3108
        %4491 = vmatprep.subr.bf16.mxu0 %v3117
        %4492 = vmatpush1.bf16.msra.mxu0 %v3116
        %4493 = vmatprep.subr.bf16.mxu0 %v3125
        %4494 = vmatpush1.bf16.msra.mxu0 %v3124
        %4495 = vmatprep.subr.bf16.mxu0 %v3133
        %4496 = vmatpush1.bf16.msra.mxu0 %v3132
        %4497 = vmatprep.subr.bf16.mxu0 %v3141
        %4498 = vmatpush1.bf16.msra.mxu0 %v3140
        %4499 = vmatprep.subr.bf16.mxu0 %v3149
        %4500 = vmatpush1.bf16.msra.mxu0 %v3148
        %4501 = vmatprep.subr.bf16.mxu0 %v3157
        %4502 = vmatpush1.bf16.msra.mxu0 %v3156
        %4503 = vmatprep.subr.bf16.mxu0 %v3165
        %4504 = vmatpush1.bf16.msra.mxu0 %v3164
        %4505 = vmatprep.subr.bf16.mxu0 %v3173
        %4506 = vmatpush1.bf16.msra.mxu0 %v3172
        %4507 = vmatprep.mubr.bf16.mxu0 %v823
        %4508 = vmatmul.mubr.bf16.gmra.mrb[0].mxu0 %v822
        %v4509 = vpop.f32.mrb[0].mxu0
        %v4510 = vadd.f32 %v4469, %v4509
        %v4511 = vpop.f32.mrb[0].mxu0
        %v4512 = vadd.f32 %v4471, %v4511
        %v4513 = vpop.f32.mrb[0].mxu0
        %v4514 = vpop.f32.mrb[0].mxu0
        %4515 = vdwg.mxu0
        %4516 = vmatprep.subr.bf16.mxu0 %v3181
        %4517 = vmatpush1.bf16.msra.mxu0 %v3180
        %4518 = vmatprep.subr.bf16.mxu0 %v3189
        %4519 = vmatpush1.bf16.msra.mxu0 %v3188
        %4520 = vmatprep.subr.bf16.mxu0 %v3197
        %4521 = vmatpush1.bf16.msra.mxu0 %v3196
        %4522 = vmatprep.subr.bf16.mxu0 %v3205
        %4523 = vmatpush1.bf16.msra.mxu0 %v3204
        %4524 = vmatprep.subr.bf16.mxu0 %v3213
        %4525 = vmatpush1.bf16.msra.mxu0 %v3212
        %4526 = vmatprep.subr.bf16.mxu0 %v3221
        %4527 = vmatpush1.bf16.msra.mxu0 %v3220
        %4528 = vmatprep.subr.bf16.mxu0 %v3229
        %4529 = vmatpush1.bf16.msra.mxu0 %v3228
        %4530 = vmatprep.subr.bf16.mxu0 %v3237
        %4531 = vmatpush1.bf16.msra.mxu0 %v3236
        %4532 = vmatprep.subr.bf16.mxu0 %v3245
        %4533 = vmatpush1.bf16.msra.mxu0 %v3244
        %4534 = vmatprep.subr.bf16.mxu0 %v3253
        %4535 = vmatpush1.bf16.msra.mxu0 %v3252
        %4536 = vmatprep.subr.bf16.mxu0 %v3261
        %4537 = vmatpush1.bf16.msra.mxu0 %v3260
        %4538 = vmatprep.subr.bf16.mxu0 %v3269
        %4539 = vmatpush1.bf16.msra.mxu0 %v3268
        %4540 = vmatprep.subr.bf16.mxu0 %v3277
        %4541 = vmatpush1.bf16.msra.mxu0 %v3276
        %4542 = vmatprep.subr.bf16.mxu0 %v3285
        %4543 = vmatpush1.bf16.msra.mxu0 %v3284
        %4544 = vmatprep.subr.bf16.mxu0 %v3293
        %4545 = vmatpush1.bf16.msra.mxu0 %v3292
        %4546 = vmatprep.subr.bf16.mxu0 %v3301
        %4547 = vmatpush1.bf16.msra.mxu0 %v3300
        %4548 = vmatprep.mubr.bf16.mxu0 %v825
        %4549 = vmatmul.mubr.bf16.gmra.mrb[0].mxu0 %v824
        %v4550 = vpop.f32.mrb[0].mxu0
        %v4551 = vadd.f32 %v4510, %v4550
        %v4552 = vpop.f32.mrb[0].mxu0
        %v4553 = vadd.f32 %v4512, %v4552
        %v4554 = vpop.f32.mrb[0].mxu0
        %v4555 = vpop.f32.mrb[0].mxu0
        %4556 = vdwg.mxu0
        %4557 = vmatprep.subr.bf16.mxu0 %v3309
        %4558 = vmatpush1.bf16.msra.mxu0 %v3308
        %4559 = vmatprep.subr.bf16.mxu0 %v3317
        %4560 = vmatpush1.bf16.msra.mxu0 %v3316
        %4561 = vmatprep.subr.bf16.mxu0 %v3325
        %4562 = vmatpush1.bf16.msra.mxu0 %v3324
        %4563 = vmatprep.subr.bf16.mxu0 %v3333
        %4564 = vmatpush1.bf16.msra.mxu0 %v3332
        %4565 = vmatprep.subr.bf16.mxu0 %v3341
        %4566 = vmatpush1.bf16.msra.mxu0 %v3340
        %4567 = vmatprep.subr.bf16.mxu0 %v3349
        %4568 = vmatpush1.bf16.msra.mxu0 %v3348
        %4569 = vmatprep.subr.bf16.mxu0 %v3357
        %4570 = vmatpush1.bf16.msra.mxu0 %v3356
        %4571 = vmatprep.subr.bf16.mxu0 %v3365
        %4572 = vmatpush1.bf16.msra.mxu0 %v3364
        %4573 = vmatprep.subr.bf16.mxu0 %v3373
        %4574 = vmatpush1.bf16.msra.mxu0 %v3372
        %4575 = vmatprep.subr.bf16.mxu0 %v3381
        %4576 = vmatpush1.bf16.msra.mxu0 %v3380
        %4577 = vmatprep.subr.bf16.mxu0 %v3389
        %4578 = vmatpush1.bf16.msra.mxu0 %v3388
        %4579 = vmatprep.subr.bf16.mxu0 %v3397
        %4580 = vmatpush1.bf16.msra.mxu0 %v3396
        %4581 = vmatprep.subr.bf16.mxu0 %v3405
        %4582 = vmatpush1.bf16.msra.mxu0 %v3404
        %4583 = vmatprep.subr.bf16.mxu0 %v3413
        %4584 = vmatpush1.bf16.msra.mxu0 %v3412
        %4585 = vmatprep.subr.bf16.mxu0 %v3421
        %4586 = vmatpush1.bf16.msra.mxu0 %v3420
        %4587 = vmatprep.subr.bf16.mxu0 %v3429
        %4588 = vmatpush1.bf16.msra.mxu0 %v3428
        %4589 = vmatprep.mubr.bf16.mxu0 %v827
        %4590 = vmatmul.mubr.bf16.gmra.mrb[0].mxu0 %v826
        %v4591 = vpop.f32.mrb[0].mxu0
        %v4592 = vadd.f32 %v4551, %v4591
        %v4593 = vpop.f32.mrb[0].mxu0
        %v4594 = vadd.f32 %v4553, %v4593
        %v4595 = vpop.f32.mrb[0].mxu0
        %v4596 = vpop.f32.mrb[0].mxu0
        %4597 = vdwg.mxu0
        %v4598 = vmax.f32 %v4100, 0.0
        %v4599 = vmax.f32 %v4102, 0.0
        %v4600 = vmax.f32 %v4264, 0.0
        %v4601 = vmax.f32 %v4266, 0.0
        %v4602 = vmax.f32 %v4428, 0.0
        %v4603 = vmax.f32 %v4430, 0.0
        %v4604 = vmax.f32 %v4592, 0.0
        %v4605 = vmax.f32 %v4594, 0.0
        %4606 = vst [vmem:[%s215] sm:$0xff] %v4598
        %4607 = vst [vmem:[%s215 + $0x8] sm:$0xff] %v4599
        %4608 = vst [vmem:[%s215 + $0x10] sm:$0xff] %v4600
        %4609 = vst [vmem:[%s215 + $0x18] sm:$0xff] %v4601
        %4610 = vst [vmem:[%s215 + $0x20] sm:$0xff] %v4602
        %4611 = vst [vmem:[%s215 + $0x28] sm:$0xff] %v4603
        %4612 = vst [vmem:[%s215 + $0x30] sm:$0xff] %v4604
        %4613 = vst [vmem:[%s215 + $0x38] sm:$0xff] %v4605
        %s4614 = sand.u32 %s137, 1
        %s4615 = scalar_lea.sflag [#allocation3], %s4614
        %s4616 = sand.u32 %s137, 1
        %s4617 = smul.addr %s4616, 64
        %s4618 = scalar_lea.vmem [#allocation2], %s4617
        // Predicated region
        $region41: #{fwd.1} parent=39 // pred_check
          %p4619 = pneg %p147
        $region42: #{fwd.1} parent=39 // pred_check_branch
          %4621 = sbr.rel (%p4619) target = $region44
        $region43: #{fwd.1} parent=39 // pred_region
          %s4623 = ssub.s32 1024, 1024
          %4624 = vsyncadd %s4615, %s4623
          %s4625 = smul.addr %s19, 8
          %s4626 = smul.addr %s4625, 128
          %s4627 = scalar_lea.hbm %s5, %s4626
          %s4629 = sshll.u32 %s4618, 4
          %s4630 = int_to_ptr.vmem [resolvable:$true] %s4629
          %4632 = dma.vmem_to_hbm [thread:$0]  %s4630, 1024, %s4627, %s4615
        $region44: #{fwd.1} parent=39 // pred_fallthru
          _
      $region40: #{fwd.1} parent=5 // pred_fallthru
        _
      %p4633 = scmp.le.s32.totalorder 2, %s14
      // Predicated region
      $region45: #{fwd.1} parent=5 // pred_check
        %p4634 = pneg %p4633
      $region46: #{fwd.1} parent=5 // pred_check_branch
        %4636 = sbr.rel (%p4634) target = $region48
      $region47: #{fwd.1} parent=5 // pred_region
        %s4637 = ssub.s32 %s14, 2
        // Predicated region
        $region49: #{fwd.1} parent=47 // pred_check
          %p4638 = pneg %p153
        $region50: #{fwd.1} parent=47 // pred_check_branch
          %4640 = sbr.rel (%p4638) target = $region52
        $region51: #{fwd.1} parent=47 // pred_region
          %s4641 = sand.u32 %s138, 1
          %s4642 = scalar_lea.sflag [#allocation3], %s4641
          %s4643 = sand.u32 %s138, 1
          %s4644 = smul.addr %s4643, 64
          %s4645 = scalar_lea.vmem [#allocation2], %s4644
          %4646 = dma.done %s4642, 1024
        $region52: #{fwd.1} parent=47 // pred_fallthru
          _
      $region48: #{fwd.1} parent=5 // pred_fallthru
        _
    $region6: #{fwd.1} parent=1 // loop_footer
      %s18 = sadd.s32 1, %s14
    $region7: #{fwd.1} parent=1 // loop_footer_branch
      %13 = sbr.rel target = $region3
    $region8: #{fwd.1} parent=1 // loop_exit
      _
    %4647 = vsyncpa [#allocation3], 1
    %s4648 = scalar_lea.sflag [#allocation3], 1
    %4649 = vsyncpa %s4648, 1

</llo_original>
